<compile_context>
chip_gen: v5e
topology: v5e:2x2
jax: 0.10.0
libtpu: 0.0.40
codegen_flags: <defaults>
</compile_context>

<pallas_src>
from functools import partial

import jax
import jax.numpy as jnp
from jax.experimental import pallas as pl
from jax.experimental.pallas import tpu as pltpu

NC = 3
NDF = 32
BN_EPS = 1e-5
LRELU_SLOPE = 0.2
LANE = 128
SUBLANE = 8


def _round_up(x, m):
    return (x + m - 1) // m * m


# ---------------- Pallas kernels (one fused call per layer) ----------------

def _conv_bn_lrelu_kernel(p_ref, w_ref, o_ref, *, m_valid):
    """Fused: y = patches @ W (bf16 in, f32 acc) -> BatchNorm2d with batch
    statistics (gamma=1, beta=0, biased variance) -> LeakyReLU(0.2).
    Zero-padded rows/channels are inert for the mean and masked out of the
    (two-pass, centered) variance; padded outputs are sliced off in glue."""
    y = jnp.dot(p_ref[...], w_ref[...], preferred_element_type=jnp.float32)
    inv_m = 1.0 / m_valid
    mean = jnp.sum(y, axis=0, keepdims=True) * inv_m          # padded rows are 0
    row = jax.lax.broadcasted_iota(jnp.int32, y.shape, 0)
    d = jnp.where(row < m_valid, y - mean, 0.0)               # centered variance
    var = jnp.sum(d * d, axis=0, keepdims=True) * inv_m
    yhat = (y - mean) * jax.lax.rsqrt(var + BN_EPS)
    act = jnp.where(yhat >= 0, yhat, LRELU_SLOPE * yhat)
    o_ref[...] = act.astype(o_ref.dtype)                      # bf16 store


def _tail_kernel(p_ref, w3_ref, w4_ref, o_ref, *, m_valid):
    """Fused tail: conv3 matmul + BN + LReLU, then 1x1 conv4 (bf16) + sigmoid."""
    y = jnp.dot(p_ref[...], w3_ref[...], preferred_element_type=jnp.float32)
    inv_m = 1.0 / m_valid
    mean = jnp.sum(y, axis=0, keepdims=True) * inv_m
    row = jax.lax.broadcasted_iota(jnp.int32, y.shape, 0)
    d = jnp.where(row < m_valid, y - mean, 0.0)
    var = jnp.sum(d * d, axis=0, keepdims=True) * inv_m
    yhat = (y - mean) * jax.lax.rsqrt(var + BN_EPS)
    act = jnp.where(yhat >= 0, yhat, LRELU_SLOPE * yhat)
    z = jnp.dot(act.astype(jnp.bfloat16), w4_ref[...],
                preferred_element_type=jnp.float32)
    sig = pl.reciprocal(1.0 + jnp.exp(-z), approx=True)       # EUP slot
    o_ref[...] = jnp.clip(sig, 0.0, 1.0)                      # keep approx in [0,1]


# ---------------- Glue: patch extraction + layer plumbing (channels-last) ----

def _extract_patches(x_nhwc, k, s, p):
    """NHWC -> im2col patches (N*Ho*Wo, Cin*k*k) in ONE XLA op.
    K is ordered (Cin, kh, kw), matching _weight_to_2d."""
    patches = jax.lax.conv_general_dilated_patches(
        x_nhwc, filter_shape=(k, k), window_strides=(s, s),
        padding=((p, p), (p, p)),
        dimension_numbers=("NHWC", "HWIO", "NHWC"))
    N, Ho, Wo, K = patches.shape
    return patches.reshape(N * Ho * Wo, K), (N, Ho, Wo)


def _weight_to_2d(w):
    """PyTorch (Cout, Cin, kh, kw) -> (K = Cin*kh*kw, Cout), matching patch order."""
    cout = w.shape[0]
    return jnp.transpose(w, (1, 2, 3, 0)).reshape(-1, cout)


def _vmem_spec():
    return pl.BlockSpec(memory_space=pltpu.MemorySpace.VMEM)


def _conv_bn_lrelu(x_nhwc, w, k, s, p):
    """Conv2d(bias=False) + BatchNorm2d(batch stats) + LeakyReLU(0.2).
    NHWC bf16 in, NHWC bf16 out.  Single whole-array pallas_call (no grid)."""
    cout = w.shape[0]
    cp = _round_up(cout, LANE)                        # lane-dense output channels
    patches, (N, Ho, Wo) = _extract_patches(x_nhwc, k, s, p)
    M, K = patches.shape
    Mp = _round_up(M, SUBLANE)
    Kp = _round_up(K, LANE)                           # lane-dense patch loads / MXU K
    # Single-shot VMEM path; re-enable M tiling if this ever trips.
    assert (Mp * Kp + Kp * cp) * 2 + Mp * cp * 6 < 12 * 1024 * 1024, (
        "inputs too large for the single-shot VMEM path; add M tiling")
    if Mp > M or Kp > K:                              # zero pad: inert for stats
        patches = jnp.pad(patches, ((0, Mp - M), (0, Kp - K)))
    w2d = _weight_to_2d(w).astype(jnp.bfloat16)
    if Kp > K or cp > cout:                           # zero pad: inert, sliced off
        w2d = jnp.pad(w2d, ((0, Kp - K), (0, cp - cout)))

    act = pl.pallas_call(
        partial(_conv_bn_lrelu_kernel, m_valid=M),
        out_shape=jax.ShapeDtypeStruct((Mp, cp), jnp.bfloat16),
        in_specs=[_vmem_spec(), _vmem_spec()],
        out_specs=_vmem_spec(),
    )(patches, w2d)

    return act[:M, :cout].reshape(N, Ho, Wo, cout)


def _conv_bn_lrelu_conv_sigmoid(x_nhwc, w3, w4, k, s, p):
    """Fused conv3 + BN + LReLU + 1x1 conv4 + sigmoid.  Returns NCHW f32."""
    patches, (N, Ho, Wo) = _extract_patches(x_nhwc, k, s, p)
    M, K = patches.shape
    Mp = _round_up(M, SUBLANE)
    if Mp > M:
        patches = jnp.pad(patches, ((0, Mp - M), (0, 0)))
    w3_2d = _weight_to_2d(w3).astype(jnp.bfloat16)                 # (K, 256)
    assert (Mp * K + K * w3_2d.shape[1]) * 2 < 12 * 1024 * 1024, (
        "tail too large for the single-shot VMEM path; add M tiling")
    w4_2d = _weight_to_2d(w4).astype(jnp.bfloat16)                 # (256, 1)
    w4_2d = jnp.pad(w4_2d, ((0, 0), (0, LANE - w4_2d.shape[1])))   # lane-dense store

    out = pl.pallas_call(
        partial(_tail_kernel, m_valid=M),
        out_shape=jax.ShapeDtypeStruct((Mp, LANE), jnp.float32),
        in_specs=[_vmem_spec(), _vmem_spec(), _vmem_spec()],
        out_specs=_vmem_spec(),
    )(patches, w3_2d, w4_2d)

    out = out[:M, :1].reshape(N, Ho, Wo, 1)
    return jnp.transpose(out, (0, 3, 1, 2))                        # back to NCHW


def dc_discriminator(x, params):
    """Forward pass of DCDiscriminator. x: (N, 3, H, W) float32, NCHW."""
    w1, w2, w3, w4 = params
    x = jnp.transpose(x, (0, 2, 3, 1)).astype(jnp.bfloat16)   # NCHW -> NHWC once
    x = _conv_bn_lrelu(x, w1, k=4, s=2, p=1)                  # Conv(3,64,4,2,1)+BN+LReLU
    x = _conv_bn_lrelu(x, w2, k=8, s=2, p=1)                  # Conv(64,128,8,2,1)+BN+LReLU
    # Conv(128,256,8,2,1)+BN+LReLU fused with Conv(256,1,1,1,0)+Sigmoid:
    return _conv_bn_lrelu_conv_sigmoid(x, w3, w4, k=8, s=2, p=1)


def init_params(key):
    # Deterministic synthetic init (DCGAN-style N(0, 0.02)); shapes follow
    # PyTorch Conv2d weight layout (Cout, Cin, kh, kw), bias=False everywhere.
    k1, k2, k3, k4 = jax.random.split(key, 4)
    w1 = jax.random.normal(k1, (NDF * 2, NC, 4, 4), jnp.float32) * 0.02
    w2 = jax.random.normal(k2, (NDF * 4, NDF * 2, 8, 8), jnp.float32) * 0.02
    w3 = jax.random.normal(k3, (NDF * 8, NDF * 4, 8, 8), jnp.float32) * 0.02
    w4 = jax.random.normal(k4, (1, NDF * 8, 1, 1), jnp.float32) * 0.02
    return (w1, w2, w3, w4)


if __name__ == "__main__":
    key = jax.random.PRNGKey(0)
    pkey, xkey = jax.random.split(key)
    params = init_params(pkey)
    # Small input consistent with the module: 32x32 -> 16 -> 6 -> 1 -> 1
    x = jax.random.normal(xkey, (2, NC, 32, 32), jnp.float32)
    out = jax.jit(dc_discriminator)(x, params)
    out = jax.block_until_ready(out)
    assert out.shape == (2, 1, 1, 1), out.shape
    assert bool(jnp.all((out >= 0.0) & (out <= 1.0)))
    print("KERNEL_OK")
</pallas_src>

<mosaic_0001>
module attributes {stable_mosaic.version = 11 : i64} {
  func.func @_conv_bn_lrelu_kernel(%arg0: memref<512x128xbf16, #tpu.memory_space<vmem>>, %arg1: memref<128x128xbf16, #tpu.memory_space<vmem>>, %arg2: memref<512x128xbf16, #tpu.memory_space<vmem>>) attributes {dimension_semantics = [], scalar_prefetch = 0 : i64, scratch_operands = 0 : i64, tpu.core_type = #tpu.core_type<tc>} {
    %c0 = arith.constant 0 : index
    %c0_0 = arith.constant 0 : index
    %0 = vector.load %arg0[%c0, %c0_0] : memref<512x128xbf16, #tpu.memory_space<vmem>>, vector<512x128xbf16>
    %c0_1 = arith.constant 0 : index
    %c0_2 = arith.constant 0 : index
    %1 = vector.load %arg1[%c0_1, %c0_2] : memref<128x128xbf16, #tpu.memory_space<vmem>>, vector<128x128xbf16>
    %cst = arith.constant dense<0.000000e+00> : vector<512x128xf32>
    %2 = tpu.matmul %0, %1, %cst {dimension_numbers = #tpu.dot_dimension_numbers<[1], [0], [0], [1], [0, 0, 1, 1], [], []>} : vector<512x128xbf16>, vector<128x128xbf16>, vector<512x128xf32> -> vector<512x128xf32>
    %cst_3 = arith.constant dense<0.000000e+00> : vector<128xf32>
    %3 = vector.multi_reduction <add>, %2, %cst_3 [0] : vector<512x128xf32> to vector<128xf32>
    %4 = vector.shape_cast %3 : vector<128xf32> to vector<1x128xf32>
    %cst_4 = arith.constant 0.001953125 : f32
    %5 = vector.broadcast %cst_4 : f32 to vector<1x128xf32>
    %6 = arith.mulf %4, %5 : vector<1x128xf32>
    %7 = tpu.iota {dimensions = array<i32: 0>} : vector<512x128xi32>
    %c512_i32 = arith.constant 512 : i32
    %8 = vector.broadcast %c512_i32 : i32 to vector<512x128xi32>
    %9 = arith.cmpi slt, %7, %8 : vector<512x128xi32>
    %10 = vector.broadcast %6 : vector<1x128xf32> to vector<512x128xf32>
    %11 = arith.subf %2, %10 : vector<512x128xf32>
    %cst_5 = arith.constant 0.000000e+00 : f32
    %12 = vector.broadcast %cst_5 : f32 to vector<512x128xf32>
    %13 = arith.select %9, %11, %12 : vector<512x128xi1>, vector<512x128xf32>
    %14 = arith.mulf %13, %13 : vector<512x128xf32>
    %cst_6 = arith.constant dense<0.000000e+00> : vector<128xf32>
    %15 = vector.multi_reduction <add>, %14, %cst_6 [0] : vector<512x128xf32> to vector<128xf32>
    %16 = vector.shape_cast %15 : vector<128xf32> to vector<1x128xf32>
    %cst_7 = arith.constant 0.001953125 : f32
    %17 = vector.broadcast %cst_7 : f32 to vector<1x128xf32>
    %18 = arith.mulf %16, %17 : vector<1x128xf32>
    %19 = vector.broadcast %6 : vector<1x128xf32> to vector<512x128xf32>
    %20 = arith.subf %2, %19 : vector<512x128xf32>
    %cst_8 = arith.constant 9.99999974E-6 : f32
    %21 = vector.broadcast %cst_8 : f32 to vector<1x128xf32>
    %22 = arith.addf %18, %21 : vector<1x128xf32>
    %23 = math.rsqrt %22 : vector<1x128xf32>
    %24 = vector.broadcast %23 : vector<1x128xf32> to vector<512x128xf32>
    %25 = arith.mulf %20, %24 : vector<512x128xf32>
    %cst_9 = arith.constant 0.000000e+00 : f32
    %26 = vector.broadcast %cst_9 : f32 to vector<512x128xf32>
    %27 = arith.cmpf oge, %25, %26 : vector<512x128xf32>
    %cst_10 = arith.constant 2.000000e-01 : f32
    %28 = vector.broadcast %cst_10 : f32 to vector<512x128xf32>
    %29 = arith.mulf %28, %25 : vector<512x128xf32>
    %30 = arith.select %27, %25, %29 : vector<512x128xi1>, vector<512x128xf32>
    %31 = arith.truncf %30 : vector<512x128xf32> to vector<512x128xbf16>
    %c0_11 = arith.constant 0 : index
    %c0_12 = arith.constant 0 : index
    %32 = vector.load %arg2[%c0_11, %c0_12] : memref<512x128xbf16, #tpu.memory_space<vmem>>, vector<512x128xbf16>
    tpu.vector_store %arg2[%c0_11, %c0_12], %31 {strides = array<i32>} : memref<512x128xbf16, #tpu.memory_space<vmem>>, vector<512x128xbf16>,
    return
  }
}

module attributes {stable_mosaic.version = 11 : i64} {
  func.func @_conv_bn_lrelu_kernel(%arg0: memref<72x4096xbf16, #tpu.memory_space<vmem>>, %arg1: memref<4096x128xbf16, #tpu.memory_space<vmem>>, %arg2: memref<72x128xbf16, #tpu.memory_space<vmem>>) attributes {dimension_semantics = [], scalar_prefetch = 0 : i64, scratch_operands = 0 : i64, tpu.core_type = #tpu.core_type<tc>} {
    %c0 = arith.constant 0 : index
    %c0_0 = arith.constant 0 : index
    %0 = vector.load %arg0[%c0, %c0_0] : memref<72x4096xbf16, #tpu.memory_space<vmem>>, vector<72x4096xbf16>
    %c0_1 = arith.constant 0 : index
    %c0_2 = arith.constant 0 : index
    %1 = vector.load %arg1[%c0_1, %c0_2] : memref<4096x128xbf16, #tpu.memory_space<vmem>>, vector<4096x128xbf16>
    %cst = arith.constant dense<0.000000e+00> : vector<72x128xf32>
    %2 = tpu.matmul %0, %1, %cst {dimension_numbers = #tpu.dot_dimension_numbers<[1], [0], [0], [1], [0, 0, 1, 1], [], []>} : vector<72x4096xbf16>, vector<4096x128xbf16>, vector<72x128xf32> -> vector<72x128xf32>
    %cst_3 = arith.constant dense<0.000000e+00> : vector<128xf32>
    %3 = vector.multi_reduction <add>, %2, %cst_3 [0] : vector<72x128xf32> to vector<128xf32>
    %4 = vector.shape_cast %3 : vector<128xf32> to vector<1x128xf32>
    %cst_4 = arith.constant 0.013888889 : f32
    %5 = vector.broadcast %cst_4 : f32 to vector<1x128xf32>
    %6 = arith.mulf %4, %5 : vector<1x128xf32>
    %7 = tpu.iota {dimensions = array<i32: 0>} : vector<72x128xi32>
    %c72_i32 = arith.constant 72 : i32
    %8 = vector.broadcast %c72_i32 : i32 to vector<72x128xi32>
    %9 = arith.cmpi slt, %7, %8 : vector<72x128xi32>
    %10 = vector.broadcast %6 : vector<1x128xf32> to vector<72x128xf32>
    %11 = arith.subf %2, %10 : vector<72x128xf32>
    %cst_5 = arith.constant 0.000000e+00 : f32
    %12 = vector.broadcast %cst_5 : f32 to vector<72x128xf32>
    %13 = arith.select %9, %11, %12 : vector<72x128xi1>, vector<72x128xf32>
    %14 = arith.mulf %13, %13 : vector<72x128xf32>
    %cst_6 = arith.constant dense<0.000000e+00> : vector<128xf32>
    %15 = vector.multi_reduction <add>, %14, %cst_6 [0] : vector<72x128xf32> to vector<128xf32>
    %16 = vector.shape_cast %15 : vector<128xf32> to vector<1x128xf32>
    %cst_7 = arith.constant 0.013888889 : f32
    %17 = vector.broadcast %cst_7 : f32 to vector<1x128xf32>
    %18 = arith.mulf %16, %17 : vector<1x128xf32>
    %19 = vector.broadcast %6 : vector<1x128xf32> to vector<72x128xf32>
    %20 = arith.subf %2, %19 : vector<72x128xf32>
    %cst_8 = arith.constant 9.99999974E-6 : f32
    %21 = vector.broadcast %cst_8 : f32 to vector<1x128xf32>
    %22 = arith.addf %18, %21 : vector<1x128xf32>
    %23 = math.rsqrt %22 : vector<1x128xf32>
    %24 = vector.broadcast %23 : vector<1x128xf32> to vector<72x128xf32>
    %25 = arith.mulf %20, %24 : vector<72x128xf32>
    %cst_9 = arith.constant 0.000000e+00 : f32
    %26 = vector.broadcast %cst_9 : f32 to vector<72x128xf32>
    %27 = arith.cmpf oge, %25, %26 : vector<72x128xf32>
    %cst_10 = arith.constant 2.000000e-01 : f32
    %28 = vector.broadcast %cst_10 : f32 to vector<72x128xf32>
    %29 = arith.mulf %28, %25 : vector<72x128xf32>
    %30 = arith.select %27, %25, %29 : vector<72x128xi1>, vector<72x128xf32>
    %31 = arith.truncf %30 : vector<72x128xf32> to vector<72x128xbf16>
    %c0_11 = arith.constant 0 : index
    %c0_12 = arith.constant 0 : index
    %32 = vector.load %arg2[%c0_11, %c0_12] : memref<72x128xbf16, #tpu.memory_space<vmem>>, vector<72x128xbf16>
    tpu.vector_store %arg2[%c0_11, %c0_12], %31 {strides = array<i32>} : memref<72x128xbf16, #tpu.memory_space<vmem>>, vector<72x128xbf16>,
    return
  }
}

module attributes {stable_mosaic.version = 11 : i64} {
  func.func @_tail_kernel(%arg0: memref<8x8192xbf16, #tpu.memory_space<vmem>>, %arg1: memref<8192x256xbf16, #tpu.memory_space<vmem>>, %arg2: memref<256x128xbf16, #tpu.memory_space<vmem>>, %arg3: memref<8x128xf32, #tpu.memory_space<vmem>>) attributes {dimension_semantics = [], scalar_prefetch = 0 : i64, scratch_operands = 0 : i64, tpu.core_type = #tpu.core_type<tc>} {
    %c0 = arith.constant 0 : index
    %c0_0 = arith.constant 0 : index
    %0 = vector.load %arg0[%c0, %c0_0] : memref<8x8192xbf16, #tpu.memory_space<vmem>>, vector<8x8192xbf16>
    %c0_1 = arith.constant 0 : index
    %c0_2 = arith.constant 0 : index
    %1 = vector.load %arg1[%c0_1, %c0_2] : memref<8192x256xbf16, #tpu.memory_space<vmem>>, vector<8192x256xbf16>
    %cst = arith.constant dense<0.000000e+00> : vector<8x256xf32>
    %2 = tpu.matmul %0, %1, %cst {dimension_numbers = #tpu.dot_dimension_numbers<[1], [0], [0], [1], [0, 0, 1, 1], [], []>} : vector<8x8192xbf16>, vector<8192x256xbf16>, vector<8x256xf32> -> vector<8x256xf32>
    %cst_3 = arith.constant dense<0.000000e+00> : vector<256xf32>
    %3 = vector.multi_reduction <add>, %2, %cst_3 [0] : vector<8x256xf32> to vector<256xf32>
    %4 = vector.shape_cast %3 : vector<256xf32> to vector<1x256xf32>
    %cst_4 = arith.constant 5.000000e-01 : f32
    %5 = vector.broadcast %cst_4 : f32 to vector<1x256xf32>
    %6 = arith.mulf %4, %5 : vector<1x256xf32>
    %7 = tpu.iota {dimensions = array<i32: 0>} : vector<8x256xi32>
    %c2_i32 = arith.constant 2 : i32
    %8 = vector.broadcast %c2_i32 : i32 to vector<8x256xi32>
    %9 = arith.cmpi slt, %7, %8 : vector<8x256xi32>
    %10 = vector.broadcast %6 : vector<1x256xf32> to vector<8x256xf32>
    %11 = arith.subf %2, %10 : vector<8x256xf32>
    %cst_5 = arith.constant 0.000000e+00 : f32
    %12 = vector.broadcast %cst_5 : f32 to vector<8x256xf32>
    %13 = arith.select %9, %11, %12 : vector<8x256xi1>, vector<8x256xf32>
    %14 = arith.mulf %13, %13 : vector<8x256xf32>
    %cst_6 = arith.constant dense<0.000000e+00> : vector<256xf32>
    %15 = vector.multi_reduction <add>, %14, %cst_6 [0] : vector<8x256xf32> to vector<256xf32>
    %16 = vector.shape_cast %15 : vector<256xf32> to vector<1x256xf32>
    %cst_7 = arith.constant 5.000000e-01 : f32
    %17 = vector.broadcast %cst_7 : f32 to vector<1x256xf32>
    %18 = arith.mulf %16, %17 : vector<1x256xf32>
    %19 = vector.broadcast %6 : vector<1x256xf32> to vector<8x256xf32>
    %20 = arith.subf %2, %19 : vector<8x256xf32>
    %cst_8 = arith.constant 9.99999974E-6 : f32
    %21 = vector.broadcast %cst_8 : f32 to vector<1x256xf32>
    %22 = arith.addf %18, %21 : vector<1x256xf32>
    %23 = math.rsqrt %22 : vector<1x256xf32>
    %24 = vector.broadcast %23 : vector<1x256xf32> to vector<8x256xf32>
    %25 = arith.mulf %20, %24 : vector<8x256xf32>
    %cst_9 = arith.constant 0.000000e+00 : f32
    %26 = vector.broadcast %cst_9 : f32 to vector<8x256xf32>
    %27 = arith.cmpf oge, %25, %26 : vector<8x256xf32>
    %cst_10 = arith.constant 2.000000e-01 : f32
    %28 = vector.broadcast %cst_10 : f32 to vector<8x256xf32>
    %29 = arith.mulf %28, %25 : vector<8x256xf32>
    %30 = arith.select %27, %25, %29 : vector<8x256xi1>, vector<8x256xf32>
    %31 = arith.truncf %30 : vector<8x256xf32> to vector<8x256xbf16>
    %c0_11 = arith.constant 0 : index
    %c0_12 = arith.constant 0 : index
    %32 = vector.load %arg2[%c0_11, %c0_12] : memref<256x128xbf16, #tpu.memory_space<vmem>>, vector<256x128xbf16>
    %cst_13 = arith.constant dense<0.000000e+00> : vector<8x128xf32>
    %33 = tpu.matmul %31, %32, %cst_13 {dimension_numbers = #tpu.dot_dimension_numbers<[1], [0], [0], [1], [0, 0, 1, 1], [], []>} : vector<8x256xbf16>, vector<256x128xbf16>, vector<8x128xf32> -> vector<8x128xf32>
    %cst_14 = arith.constant 0.000000e+00 : f32
    %34 = vector.broadcast %cst_14 : f32 to vector<8x128xf32>
    %35 = arith.subf %34, %33 : vector<8x128xf32>
    %36 = math.exp %35 : vector<8x128xf32>
    %cst_15 = arith.constant 1.000000e+00 : f32
    %37 = vector.broadcast %cst_15 : f32 to vector<8x128xf32>
    %38 = arith.addf %37, %36 : vector<8x128xf32>
    %39 = tpu.reciprocal %38 {approx = true} : vector<8x128xf32> -> vector<8x128xf32>
    %cst_16 = arith.constant 0.000000e+00 : f32
    %cst_17 = arith.constant 1.000000e+00 : f32
    %40 = vector.broadcast %cst_16 : f32 to vector<8x128xf32>
    %41 = arith.maximumf %40, %39 : vector<8x128xf32>
    %42 = vector.broadcast %cst_17 : f32 to vector<8x128xf32>
    %43 = arith.minimumf %42, %41 : vector<8x128xf32>
    %c0_18 = arith.constant 0 : index
    %c0_19 = arith.constant 0 : index
    %44 = vector.load %arg3[%c0_18, %c0_19] : memref<8x128xf32, #tpu.memory_space<vmem>>, vector<8x128xf32>
    tpu.vector_store %arg3[%c0_18, %c0_19], %43 {strides = array<i32>} : memref<8x128xf32, #tpu.memory_space<vmem>>, vector<8x128xf32>,
    return
  }
}

</mosaic_0001>

<llo_original>
// kernel: dc_discriminator.3
$region0: #{dc_discriminator.3}
  #allocation0 [shape = 'u32[]', space=smem, size = 0x4, offset = 0x4, fixed_abs, tag = 'smem constant byte address 0x4 - core index']
  #allocation1 [shape = 'u32[72,128]{1,0:T(1,128)}', space=vmem, size = 0x9000, scoped, tag = 'internal scratch']
  %s0 = inlined_call_operand.vmem [shape: bf16[512,128], index: 0, kind: input, shape index: {}]
  %s1 = inlined_call_operand.vmem [shape: bf16[128,128], index: 1, kind: input, shape index: {}]
  %s2 = inlined_call_operand.vmem [shape: bf16[512,128], index: 2, kind: output, shape index: {}]
  %s3 = sld [smem:[#allocation0]]
  $region18: #{dc_discriminator.3} parent=0
    _
  %s5 = ssub.s32 1, %s3
  %s6 = scalar_select 0, %s5, %s3
  // Predicated region
  $region2: #{dc_discriminator.3} parent=0 // pred_check
    _
  $region3: #{dc_discriminator.3} parent=0 // pred_check_branch
    %8 = sbr.rel (0) target = $region5
  $region4: #{dc_discriminator.3} parent=0 // pred_region
    _
  $region5: #{dc_discriminator.3} parent=0 // pred_fallthru
    _
  // Predicated region
  $region6: #{dc_discriminator.3} parent=0 // pred_check
    _
  $region7: #{dc_discriminator.3} parent=0 // pred_check_branch
    %10 = sbr.rel (0) target = $region9
  $region8: #{dc_discriminator.3} parent=0 // pred_region
    _
  $region9: #{dc_discriminator.3} parent=0 // pred_fallthru
    _
  %v11 = vld [vmem:[%s0] sm:$0xf]
  %v12 = vld [vmem:[%s0 + $0x4] sm:$0xf]
  %v13 = vld [vmem:[%s0 + $0x8] sm:$0xf]
  %v14 = vld [vmem:[%s0 + $0xc] sm:$0xf]
  %v15 = vld [vmem:[%s0 + $0x10] sm:$0xf]
  %v16 = vld [vmem:[%s0 + $0x14] sm:$0xf]
  %v17 = vld [vmem:[%s0 + $0x18] sm:$0xf]
  %v18 = vld [vmem:[%s0 + $0x1c] sm:$0xf]
  %v19 = vld [vmem:[%s0 + $0x20] sm:$0xf]
  %v20 = vld [vmem:[%s0 + $0x24] sm:$0xf]
  %v21 = vld [vmem:[%s0 + $0x28] sm:$0xf]
  %v22 = vld [vmem:[%s0 + $0x2c] sm:$0xf]
  %v23 = vld [vmem:[%s0 + $0x30] sm:$0xf]
  %v24 = vld [vmem:[%s0 + $0x34] sm:$0xf]
  %v25 = vld [vmem:[%s0 + $0x38] sm:$0xf]
  %v26 = vld [vmem:[%s0 + $0x3c] sm:$0xf]
  %v27 = vld [vmem:[%s0 + $0x40] sm:$0xf]
  %v28 = vld [vmem:[%s0 + $0x44] sm:$0xf]
  %v29 = vld [vmem:[%s0 + $0x48] sm:$0xf]
  %v30 = vld [vmem:[%s0 + $0x4c] sm:$0xf]
  %v31 = vld [vmem:[%s0 + $0x50] sm:$0xf]
  %v32 = vld [vmem:[%s0 + $0x54] sm:$0xf]
  %v33 = vld [vmem:[%s0 + $0x58] sm:$0xf]
  %v34 = vld [vmem:[%s0 + $0x5c] sm:$0xf]
  %v35 = vld [vmem:[%s0 + $0x60] sm:$0xf]
  %v36 = vld [vmem:[%s0 + $0x64] sm:$0xf]
  %v37 = vld [vmem:[%s0 + $0x68] sm:$0xf]
  %v38 = vld [vmem:[%s0 + $0x6c] sm:$0xf]
  %v39 = vld [vmem:[%s0 + $0x70] sm:$0xf]
  %v40 = vld [vmem:[%s0 + $0x74] sm:$0xf]
  %v41 = vld [vmem:[%s0 + $0x78] sm:$0xf]
  %v42 = vld [vmem:[%s0 + $0x7c] sm:$0xf]
  %v43 = vld [vmem:[%s0 + $0x80] sm:$0xf]
  %v44 = vld [vmem:[%s0 + $0x84] sm:$0xf]
  %v45 = vld [vmem:[%s0 + $0x88] sm:$0xf]
  %v46 = vld [vmem:[%s0 + $0x8c] sm:$0xf]
  %v47 = vld [vmem:[%s0 + $0x90] sm:$0xf]
  %v48 = vld [vmem:[%s0 + $0x94] sm:$0xf]
  %v49 = vld [vmem:[%s0 + $0x98] sm:$0xf]
  %v50 = vld [vmem:[%s0 + $0x9c] sm:$0xf]
  %v51 = vld [vmem:[%s0 + $0xa0] sm:$0xf]
  %v52 = vld [vmem:[%s0 + $0xa4] sm:$0xf]
  %v53 = vld [vmem:[%s0 + $0xa8] sm:$0xf]
  %v54 = vld [vmem:[%s0 + $0xac] sm:$0xf]
  %v55 = vld [vmem:[%s0 + $0xb0] sm:$0xf]
  %v56 = vld [vmem:[%s0 + $0xb4] sm:$0xf]
  %v57 = vld [vmem:[%s0 + $0xb8] sm:$0xf]
  %v58 = vld [vmem:[%s0 + $0xbc] sm:$0xf]
  %v59 = vld [vmem:[%s0 + $0xc0] sm:$0xf]
  %v60 = vld [vmem:[%s0 + $0xc4] sm:$0xf]
  %v61 = vld [vmem:[%s0 + $0xc8] sm:$0xf]
  %v62 = vld [vmem:[%s0 + $0xcc] sm:$0xf]
  %v63 = vld [vmem:[%s0 + $0xd0] sm:$0xf]
  %v64 = vld [vmem:[%s0 + $0xd4] sm:$0xf]
  %v65 = vld [vmem:[%s0 + $0xd8] sm:$0xf]
  %v66 = vld [vmem:[%s0 + $0xdc] sm:$0xf]
  %v67 = vld [vmem:[%s0 + $0xe0] sm:$0xf]
  %v68 = vld [vmem:[%s0 + $0xe4] sm:$0xf]
  %v69 = vld [vmem:[%s0 + $0xe8] sm:$0xf]
  %v70 = vld [vmem:[%s0 + $0xec] sm:$0xf]
  %v71 = vld [vmem:[%s0 + $0xf0] sm:$0xf]
  %v72 = vld [vmem:[%s0 + $0xf4] sm:$0xf]
  %v73 = vld [vmem:[%s0 + $0xf8] sm:$0xf]
  %v74 = vld [vmem:[%s0 + $0xfc] sm:$0xf]
  %v75 = vld [vmem:[%s1] sm:$0xf]
  %v76 = vld [vmem:[%s1 + $0x4] sm:$0xf]
  %v77 = vld [vmem:[%s1 + $0x8] sm:$0xf]
  %v78 = vld [vmem:[%s1 + $0xc] sm:$0xf]
  %v79 = vld [vmem:[%s1 + $0x10] sm:$0xf]
  %v80 = vld [vmem:[%s1 + $0x14] sm:$0xf]
  %v81 = vld [vmem:[%s1 + $0x18] sm:$0xf]
  %v82 = vld [vmem:[%s1 + $0x1c] sm:$0xf]
  %v83 = vld [vmem:[%s1 + $0x20] sm:$0xf]
  %v84 = vld [vmem:[%s1 + $0x24] sm:$0xf]
  %v85 = vld [vmem:[%s1 + $0x28] sm:$0xf]
  %v86 = vld [vmem:[%s1 + $0x2c] sm:$0xf]
  %v87 = vld [vmem:[%s1 + $0x30] sm:$0xf]
  %v88 = vld [vmem:[%s1 + $0x34] sm:$0xf]
  %v89 = vld [vmem:[%s1 + $0x38] sm:$0xf]
  %v90 = vld [vmem:[%s1 + $0x3c] sm:$0xf]
  %v155 = vunpack.c.l.b16 %v11
  %v156 = vunpack.c.l.b16 %v12
  %v157 = vunpack.c.l.b16 %v13
  %v158 = vunpack.c.l.b16 %v14
  %v159 = vunpack.c.l.b16 %v15
  %v160 = vunpack.c.l.b16 %v16
  %v161 = vunpack.c.l.b16 %v17
  %v162 = vunpack.c.l.b16 %v18
  %v163 = vunpack.c.l.b16 %v19
  %v164 = vunpack.c.l.b16 %v20
  %v165 = vunpack.c.l.b16 %v21
  %v166 = vunpack.c.l.b16 %v22
  %v167 = vunpack.c.l.b16 %v23
  %v168 = vunpack.c.l.b16 %v24
  %v169 = vunpack.c.l.b16 %v25
  %v170 = vunpack.c.l.b16 %v26
  %v171 = vunpack.c.l.b16 %v27
  %v172 = vunpack.c.l.b16 %v28
  %v173 = vunpack.c.l.b16 %v29
  %v174 = vunpack.c.l.b16 %v30
  %v175 = vunpack.c.l.b16 %v31
  %v176 = vunpack.c.l.b16 %v32
  %v177 = vunpack.c.l.b16 %v33
  %v178 = vunpack.c.l.b16 %v34
  %v179 = vunpack.c.l.b16 %v35
  %v180 = vunpack.c.l.b16 %v36
  %v181 = vunpack.c.l.b16 %v37
  %v182 = vunpack.c.l.b16 %v38
  %v183 = vunpack.c.l.b16 %v39
  %v184 = vunpack.c.l.b16 %v40
  %v185 = vunpack.c.l.b16 %v41
  %v186 = vunpack.c.l.b16 %v42
  %v187 = vunpack.c.l.b16 %v43
  %v188 = vunpack.c.l.b16 %v44
  %v189 = vunpack.c.l.b16 %v45
  %v190 = vunpack.c.l.b16 %v46
  %v191 = vunpack.c.l.b16 %v47
  %v192 = vunpack.c.l.b16 %v48
  %v193 = vunpack.c.l.b16 %v49
  %v194 = vunpack.c.l.b16 %v50
  %v195 = vunpack.c.l.b16 %v51
  %v196 = vunpack.c.l.b16 %v52
  %v197 = vunpack.c.l.b16 %v53
  %v198 = vunpack.c.l.b16 %v54
  %v199 = vunpack.c.l.b16 %v55
  %v200 = vunpack.c.l.b16 %v56
  %v201 = vunpack.c.l.b16 %v57
  %v202 = vunpack.c.l.b16 %v58
  %v203 = vunpack.c.l.b16 %v59
  %v204 = vunpack.c.l.b16 %v60
  %v205 = vunpack.c.l.b16 %v61
  %v206 = vunpack.c.l.b16 %v62
  %v207 = vunpack.c.l.b16 %v63
  %v208 = vunpack.c.l.b16 %v64
  %v209 = vunpack.c.l.b16 %v65
  %v210 = vunpack.c.l.b16 %v66
  %v211 = vunpack.c.l.b16 %v67
  %v212 = vunpack.c.l.b16 %v68
  %v213 = vunpack.c.l.b16 %v69
  %v214 = vunpack.c.l.b16 %v70
  %v215 = vunpack.c.l.b16 %v71
  %v216 = vunpack.c.l.b16 %v72
  %v217 = vunpack.c.l.b16 %v73
  %v218 = vunpack.c.l.b16 %v74
  %v219 = vpack.c.b16 %v156, %v155
  %v220 = vpack.c.b16 %v158, %v157
  %v221 = vpack.c.b16 %v160, %v159
  %v222 = vpack.c.b16 %v162, %v161
  %v223 = vpack.c.b16 %v164, %v163
  %v224 = vpack.c.b16 %v166, %v165
  %v225 = vpack.c.b16 %v168, %v167
  %v226 = vpack.c.b16 %v170, %v169
  %v227 = vpack.c.b16 %v172, %v171
  %v228 = vpack.c.b16 %v174, %v173
  %v229 = vpack.c.b16 %v176, %v175
  %v230 = vpack.c.b16 %v178, %v177
  %v231 = vpack.c.b16 %v180, %v179
  %v232 = vpack.c.b16 %v182, %v181
  %v233 = vpack.c.b16 %v184, %v183
  %v234 = vpack.c.b16 %v186, %v185
  %v235 = vpack.c.b16 %v188, %v187
  %v236 = vpack.c.b16 %v190, %v189
  %v237 = vpack.c.b16 %v192, %v191
  %v238 = vpack.c.b16 %v194, %v193
  %v239 = vpack.c.b16 %v196, %v195
  %v240 = vpack.c.b16 %v198, %v197
  %v241 = vpack.c.b16 %v200, %v199
  %v242 = vpack.c.b16 %v202, %v201
  %v243 = vpack.c.b16 %v204, %v203
  %v244 = vpack.c.b16 %v206, %v205
  %v245 = vpack.c.b16 %v208, %v207
  %v246 = vpack.c.b16 %v210, %v209
  %v247 = vpack.c.b16 %v212, %v211
  %v248 = vpack.c.b16 %v214, %v213
  %v249 = vpack.c.b16 %v216, %v215
  %v250 = vpack.c.b16 %v218, %v217
  %v299 = vunpack.c.l.b16 %v75
  %v300 = vunpack.c.l.b16 %v76
  %v301 = vunpack.c.l.b16 %v77
  %v302 = vunpack.c.l.b16 %v78
  %v303 = vunpack.c.l.b16 %v79
  %v304 = vunpack.c.l.b16 %v80
  %v305 = vunpack.c.l.b16 %v81
  %v306 = vunpack.c.l.b16 %v82
  %v307 = vunpack.c.l.b16 %v83
  %v308 = vunpack.c.l.b16 %v84
  %v309 = vunpack.c.l.b16 %v85
  %v310 = vunpack.c.l.b16 %v86
  %v311 = vunpack.c.l.b16 %v87
  %v312 = vunpack.c.l.b16 %v88
  %v313 = vunpack.c.l.b16 %v89
  %v314 = vunpack.c.l.b16 %v90
  %v315 = vpack.c.b16 %v300, %v299
  %v316 = vpack.c.b16 %v302, %v301
  %v317 = vpack.c.b16 %v304, %v303
  %v318 = vpack.c.b16 %v306, %v305
  %v319 = vpack.c.b16 %v308, %v307
  %v320 = vpack.c.b16 %v310, %v309
  %v321 = vpack.c.b16 %v312, %v311
  %v322 = vpack.c.b16 %v314, %v313
  %331 = vmatpush.bf16.msra.mxu0 %v322
  %332 = vmatpush.bf16.msra.mxu0 %v321
  %333 = vmatpush.bf16.msra.mxu0 %v320
  %334 = vmatpush.bf16.msra.mxu0 %v319
  %335 = vmatpush.bf16.msra.mxu0 %v318
  %336 = vmatpush.bf16.msra.mxu0 %v317
  %337 = vmatpush.bf16.msra.mxu0 %v316
  %338 = vmatpush.bf16.msra.mxu0 %v315
  %339 = vmatmul.bf16.gmra.mxu0 %v219
  %v340 = vpop.f32.mrf.mxu0
  %v341 = vadd.f32 0.0, %v340
  %v342 = vpop.f32.mrf.mxu0
  %v343 = vadd.f32 0.0, %v342
  %344 = vmatmul.bf16.gmra.mxu0 %v220
  %v345 = vpop.f32.mrf.mxu0
  %v346 = vadd.f32 0.0, %v345
  %v347 = vpop.f32.mrf.mxu0
  %v348 = vadd.f32 0.0, %v347
  %349 = vmatmul.bf16.gmra.mxu0 %v221
  %v350 = vpop.f32.mrf.mxu0
  %v351 = vadd.f32 0.0, %v350
  %v352 = vpop.f32.mrf.mxu0
  %v353 = vadd.f32 0.0, %v352
  %354 = vmatmul.bf16.gmra.mxu0 %v222
  %v355 = vpop.f32.mrf.mxu0
  %v356 = vadd.f32 0.0, %v355
  %v357 = vpop.f32.mrf.mxu0
  %v358 = vadd.f32 0.0, %v357
  %359 = vmatmul.bf16.gmra.mxu0 %v223
  %v360 = vpop.f32.mrf.mxu0
  %v361 = vadd.f32 0.0, %v360
  %v362 = vpop.f32.mrf.mxu0
  %v363 = vadd.f32 0.0, %v362
  %364 = vmatmul.bf16.gmra.mxu0 %v224
  %v365 = vpop.f32.mrf.mxu0
  %v366 = vadd.f32 0.0, %v365
  %v367 = vpop.f32.mrf.mxu0
  %v368 = vadd.f32 0.0, %v367
  %369 = vmatmul.bf16.gmra.mxu0 %v225
  %v370 = vpop.f32.mrf.mxu0
  %v371 = vadd.f32 0.0, %v370
  %v372 = vpop.f32.mrf.mxu0
  %v373 = vadd.f32 0.0, %v372
  %374 = vmatmul.bf16.gmra.mxu0 %v226
  %v375 = vpop.f32.mrf.mxu0
  %v376 = vadd.f32 0.0, %v375
  %v377 = vpop.f32.mrf.mxu0
  %v378 = vadd.f32 0.0, %v377
  %379 = vmatmul.bf16.gmra.mxu0 %v227
  %v380 = vpop.f32.mrf.mxu0
  %v381 = vadd.f32 0.0, %v380
  %v382 = vpop.f32.mrf.mxu0
  %v383 = vadd.f32 0.0, %v382
  %384 = vmatmul.bf16.gmra.mxu0 %v228
  %v385 = vpop.f32.mrf.mxu0
  %v386 = vadd.f32 0.0, %v385
  %v387 = vpop.f32.mrf.mxu0
  %v388 = vadd.f32 0.0, %v387
  %389 = vmatmul.bf16.gmra.mxu0 %v229
  %v390 = vpop.f32.mrf.mxu0
  %v391 = vadd.f32 0.0, %v390
  %v392 = vpop.f32.mrf.mxu0
  %v393 = vadd.f32 0.0, %v392
  %394 = vmatmul.bf16.gmra.mxu0 %v230
  %v395 = vpop.f32.mrf.mxu0
  %v396 = vadd.f32 0.0, %v395
  %v397 = vpop.f32.mrf.mxu0
  %v398 = vadd.f32 0.0, %v397
  %399 = vmatmul.bf16.gmra.mxu0 %v231
  %v400 = vpop.f32.mrf.mxu0
  %v401 = vadd.f32 0.0, %v400
  %v402 = vpop.f32.mrf.mxu0
  %v403 = vadd.f32 0.0, %v402
  %404 = vmatmul.bf16.gmra.mxu0 %v232
  %v405 = vpop.f32.mrf.mxu0
  %v406 = vadd.f32 0.0, %v405
  %v407 = vpop.f32.mrf.mxu0
  %v408 = vadd.f32 0.0, %v407
  %409 = vmatmul.bf16.gmra.mxu0 %v233
  %v410 = vpop.f32.mrf.mxu0
  %v411 = vadd.f32 0.0, %v410
  %v412 = vpop.f32.mrf.mxu0
  %v413 = vadd.f32 0.0, %v412
  %414 = vmatmul.bf16.gmra.mxu0 %v234
  %v415 = vpop.f32.mrf.mxu0
  %v416 = vadd.f32 0.0, %v415
  %v417 = vpop.f32.mrf.mxu0
  %v418 = vadd.f32 0.0, %v417
  %419 = vmatmul.bf16.gmra.mxu0 %v235
  %v420 = vpop.f32.mrf.mxu0
  %v421 = vadd.f32 0.0, %v420
  %v422 = vpop.f32.mrf.mxu0
  %v423 = vadd.f32 0.0, %v422
  %424 = vmatmul.bf16.gmra.mxu0 %v236
  %v425 = vpop.f32.mrf.mxu0
  %v426 = vadd.f32 0.0, %v425
  %v427 = vpop.f32.mrf.mxu0
  %v428 = vadd.f32 0.0, %v427
  %429 = vmatmul.bf16.gmra.mxu0 %v237
  %v430 = vpop.f32.mrf.mxu0
  %v431 = vadd.f32 0.0, %v430
  %v432 = vpop.f32.mrf.mxu0
  %v433 = vadd.f32 0.0, %v432
  %434 = vmatmul.bf16.gmra.mxu0 %v238
  %v435 = vpop.f32.mrf.mxu0
  %v436 = vadd.f32 0.0, %v435
  %v437 = vpop.f32.mrf.mxu0
  %v438 = vadd.f32 0.0, %v437
  %439 = vmatmul.bf16.gmra.mxu0 %v239
  %v440 = vpop.f32.mrf.mxu0
  %v441 = vadd.f32 0.0, %v440
  %v442 = vpop.f32.mrf.mxu0
  %v443 = vadd.f32 0.0, %v442
  %444 = vmatmul.bf16.gmra.mxu0 %v240
  %v445 = vpop.f32.mrf.mxu0
  %v446 = vadd.f32 0.0, %v445
  %v447 = vpop.f32.mrf.mxu0
  %v448 = vadd.f32 0.0, %v447
  %449 = vmatmul.bf16.gmra.mxu0 %v241
  %v450 = vpop.f32.mrf.mxu0
  %v451 = vadd.f32 0.0, %v450
  %v452 = vpop.f32.mrf.mxu0
  %v453 = vadd.f32 0.0, %v452
  %454 = vmatmul.bf16.gmra.mxu0 %v242
  %v455 = vpop.f32.mrf.mxu0
  %v456 = vadd.f32 0.0, %v455
  %v457 = vpop.f32.mrf.mxu0
  %v458 = vadd.f32 0.0, %v457
  %459 = vmatmul.bf16.gmra.mxu0 %v243
  %v460 = vpop.f32.mrf.mxu0
  %v461 = vadd.f32 0.0, %v460
  %v462 = vpop.f32.mrf.mxu0
  %v463 = vadd.f32 0.0, %v462
  %464 = vmatmul.bf16.gmra.mxu0 %v244
  %v465 = vpop.f32.mrf.mxu0
  %v466 = vadd.f32 0.0, %v465
  %v467 = vpop.f32.mrf.mxu0
  %v468 = vadd.f32 0.0, %v467
  %469 = vmatmul.bf16.gmra.mxu0 %v245
  %v470 = vpop.f32.mrf.mxu0
  %v471 = vadd.f32 0.0, %v470
  %v472 = vpop.f32.mrf.mxu0
  %v473 = vadd.f32 0.0, %v472
  %474 = vmatmul.bf16.gmra.mxu0 %v246
  %v475 = vpop.f32.mrf.mxu0
  %v476 = vadd.f32 0.0, %v475
  %v477 = vpop.f32.mrf.mxu0
  %v478 = vadd.f32 0.0, %v477
  %479 = vmatmul.bf16.gmra.mxu0 %v247
  %v480 = vpop.f32.mrf.mxu0
  %v481 = vadd.f32 0.0, %v480
  %v482 = vpop.f32.mrf.mxu0
  %v483 = vadd.f32 0.0, %v482
  %484 = vmatmul.bf16.gmra.mxu0 %v248
  %v485 = vpop.f32.mrf.mxu0
  %v486 = vadd.f32 0.0, %v485
  %v487 = vpop.f32.mrf.mxu0
  %v488 = vadd.f32 0.0, %v487
  %489 = vmatmul.bf16.gmra.mxu0 %v249
  %v490 = vpop.f32.mrf.mxu0
  %v491 = vadd.f32 0.0, %v490
  %v492 = vpop.f32.mrf.mxu0
  %v493 = vadd.f32 0.0, %v492
  %494 = vmatmul.bf16.gmra.mxu0 %v250
  %v495 = vpop.f32.mrf.mxu0
  %v496 = vadd.f32 0.0, %v495
  %v497 = vpop.f32.mrf.mxu0
  %v498 = vadd.f32 0.0, %v497
  %499 = vdwg.mxu0
  %v500 = vadd.f32 %v341, %v343
  %v501 = vadd.f32 %v500, %v346
  %v502 = vadd.f32 %v501, %v348
  %v503 = vadd.f32 %v502, %v351
  %v504 = vadd.f32 %v503, %v353
  %v505 = vadd.f32 %v504, %v356
  %v506 = vadd.f32 %v505, %v358
  %v507 = vadd.f32 %v506, %v361
  %v508 = vadd.f32 %v507, %v363
  %v509 = vadd.f32 %v508, %v366
  %v510 = vadd.f32 %v509, %v368
  %v511 = vadd.f32 %v510, %v371
  %v512 = vadd.f32 %v511, %v373
  %v513 = vadd.f32 %v512, %v376
  %v514 = vadd.f32 %v513, %v378
  %v515 = vadd.f32 %v514, %v381
  %v516 = vadd.f32 %v515, %v383
  %v517 = vadd.f32 %v516, %v386
  %v518 = vadd.f32 %v517, %v388
  %v519 = vadd.f32 %v518, %v391
  %v520 = vadd.f32 %v519, %v393
  %v521 = vadd.f32 %v520, %v396
  %v522 = vadd.f32 %v521, %v398
  %v523 = vadd.f32 %v522, %v401
  %v524 = vadd.f32 %v523, %v403
  %v525 = vadd.f32 %v524, %v406
  %v526 = vadd.f32 %v525, %v408
  %v527 = vadd.f32 %v526, %v411
  %v528 = vadd.f32 %v527, %v413
  %v529 = vadd.f32 %v528, %v416
  %v530 = vadd.f32 %v529, %v418
  %v531 = vadd.f32 %v530, %v421
  %v532 = vadd.f32 %v531, %v423
  %v533 = vadd.f32 %v532, %v426
  %v534 = vadd.f32 %v533, %v428
  %v535 = vadd.f32 %v534, %v431
  %v536 = vadd.f32 %v535, %v433
  %v537 = vadd.f32 %v536, %v436
  %v538 = vadd.f32 %v537, %v438
  %v539 = vadd.f32 %v538, %v441
  %v540 = vadd.f32 %v539, %v443
  %v541 = vadd.f32 %v540, %v446
  %v542 = vadd.f32 %v541, %v448
  %v543 = vadd.f32 %v542, %v451
  %v544 = vadd.f32 %v543, %v453
  %v545 = vadd.f32 %v544, %v456
  %v546 = vadd.f32 %v545, %v458
  %v547 = vadd.f32 %v546, %v461
  %v548 = vadd.f32 %v547, %v463
  %v549 = vadd.f32 %v548, %v466
  %v550 = vadd.f32 %v549, %v468
  %v551 = vadd.f32 %v550, %v471
  %v552 = vadd.f32 %v551, %v473
  %v553 = vadd.f32 %v552, %v476
  %v554 = vadd.f32 %v553, %v478
  %v555 = vadd.f32 %v554, %v481
  %v556 = vadd.f32 %v555, %v483
  %v557 = vadd.f32 %v556, %v486
  %v558 = vadd.f32 %v557, %v488
  %v559 = vadd.f32 %v558, %v491
  %v560 = vadd.f32 %v559, %v493
  %v561 = vadd.f32 %v560, %v496
  %v562 = vadd.f32 %v561, %v498
  %v563 = vrot.slane %v562, 4
  %v564 = vadd.f32 %v562, %v563
  %v565 = vrot.slane %v564, 2
  %v566 = vadd.f32 %v564, %v565
  %v567 = vrot.slane %v566, 1
  %v568 = vadd.f32 %v566, %v567
  %v569 = vmul.f32 %v568, 0.001953125
  %v570 = vlaneseq
  %v571 = vshrl.u32 %v570, 7
  %v572 = vadd.s32 %v571, 8
  %v573 = vadd.s32 %v571, 16
  %v574 = vadd.s32 %v571, 24
  %v575 = vadd.s32 %v571, 32
  %v576 = vadd.s32 %v571, 40
  %v577 = vadd.s32 %v571, 48
  %v578 = vadd.s32 %v571, 56
  %v579 = vadd.s32 %v571, 64
  %v580 = vadd.s32 %v571, 72
  %v581 = vadd.s32 %v571, 80
  %v582 = vadd.s32 %v571, 88
  %v583 = vadd.s32 %v571, 96
  %v584 = vadd.s32 %v571, 104
  %v585 = vadd.s32 %v571, 112
  %v586 = vadd.s32 %v571, 120
  %v587 = vadd.s32 %v571, 128
  %v588 = vadd.s32 %v571, 136
  %v589 = vadd.s32 %v571, 144
  %v590 = vadd.s32 %v571, 152
  %v591 = vadd.s32 %v571, 160
  %v592 = vadd.s32 %v571, 168
  %v593 = vadd.s32 %v571, 176
  %v594 = vadd.s32 %v571, 184
  %v595 = vadd.s32 %v571, 192
  %v596 = vadd.s32 %v571, 200
  %v597 = vadd.s32 %v571, 208
  %v598 = vadd.s32 %v571, 216
  %v599 = vadd.s32 %v571, 224
  %v600 = vadd.s32 %v571, 232
  %v601 = vadd.s32 %v571, 240
  %v602 = vadd.s32 %v571, 248
  %v603 = vadd.s32 %v571, 256
  %v604 = vadd.s32 %v571, 264
  %v605 = vadd.s32 %v571, 272
  %v606 = vadd.s32 %v571, 280
  %v607 = vadd.s32 %v571, 288
  %v608 = vadd.s32 %v571, 296
  %v609 = vadd.s32 %v571, 304
  %v610 = vadd.s32 %v571, 312
  %v611 = vadd.s32 %v571, 320
  %v612 = vadd.s32 %v571, 328
  %v613 = vadd.s32 %v571, 336
  %v614 = vadd.s32 %v571, 344
  %v615 = vadd.s32 %v571, 352
  %v616 = vadd.s32 %v571, 360
  %v617 = vadd.s32 %v571, 368
  %v618 = vadd.s32 %v571, 376
  %v619 = vadd.s32 %v571, 384
  %v620 = vadd.s32 %v571, 392
  %v621 = vadd.s32 %v571, 400
  %v622 = vadd.s32 %v571, 408
  %v623 = vadd.s32 %v571, 416
  %v624 = vadd.s32 %v571, 424
  %v625 = vadd.s32 %v571, 432
  %v626 = vadd.s32 %v571, 440
  %v627 = vadd.s32 %v571, 448
  %v628 = vadd.s32 %v571, 456
  %v629 = vadd.s32 %v571, 464
  %v630 = vadd.s32 %v571, 472
  %v631 = vadd.s32 %v571, 480
  %v632 = vadd.s32 %v571, 488
  %v633 = vadd.s32 %v571, 496
  %v634 = vadd.s32 %v571, 504
  %vm635 = vcmp.lt.s32.totalorder %v571, 512
  %vm636 = vcmp.lt.s32.totalorder %v572, 512
  %vm637 = vcmp.lt.s32.totalorder %v573, 512
  %vm638 = vcmp.lt.s32.totalorder %v574, 512
  %vm639 = vcmp.lt.s32.totalorder %v575, 512
  %vm640 = vcmp.lt.s32.totalorder %v576, 512
  %vm641 = vcmp.lt.s32.totalorder %v577, 512
  %vm642 = vcmp.lt.s32.totalorder %v578, 512
  %vm643 = vcmp.lt.s32.totalorder %v579, 512
  %vm644 = vcmp.lt.s32.totalorder %v580, 512
  %vm645 = vcmp.lt.s32.totalorder %v581, 512
  %vm646 = vcmp.lt.s32.totalorder %v582, 512
  %vm647 = vcmp.lt.s32.totalorder %v583, 512
  %vm648 = vcmp.lt.s32.totalorder %v584, 512
  %vm649 = vcmp.lt.s32.totalorder %v585, 512
  %vm650 = vcmp.lt.s32.totalorder %v586, 512
  %vm651 = vcmp.lt.s32.totalorder %v587, 512
  %vm652 = vcmp.lt.s32.totalorder %v588, 512
  %vm653 = vcmp.lt.s32.totalorder %v589, 512
  %vm654 = vcmp.lt.s32.totalorder %v590, 512
  %vm655 = vcmp.lt.s32.totalorder %v591, 512
  %vm656 = vcmp.lt.s32.totalorder %v592, 512
  %vm657 = vcmp.lt.s32.totalorder %v593, 512
  %vm658 = vcmp.lt.s32.totalorder %v594, 512
  %vm659 = vcmp.lt.s32.totalorder %v595, 512
  %vm660 = vcmp.lt.s32.totalorder %v596, 512
  %vm661 = vcmp.lt.s32.totalorder %v597, 512
  %vm662 = vcmp.lt.s32.totalorder %v598, 512
  %vm663 = vcmp.lt.s32.totalorder %v599, 512
  %vm664 = vcmp.lt.s32.totalorder %v600, 512
  %vm665 = vcmp.lt.s32.totalorder %v601, 512
  %vm666 = vcmp.lt.s32.totalorder %v602, 512
  %vm667 = vcmp.lt.s32.totalorder %v603, 512
  %vm668 = vcmp.lt.s32.totalorder %v604, 512
  %vm669 = vcmp.lt.s32.totalorder %v605, 512
  %vm670 = vcmp.lt.s32.totalorder %v606, 512
  %vm671 = vcmp.lt.s32.totalorder %v607, 512
  %vm672 = vcmp.lt.s32.totalorder %v608, 512
  %vm673 = vcmp.lt.s32.totalorder %v609, 512
  %vm674 = vcmp.lt.s32.totalorder %v610, 512
  %vm675 = vcmp.lt.s32.totalorder %v611, 512
  %vm676 = vcmp.lt.s32.totalorder %v612, 512
  %vm677 = vcmp.lt.s32.totalorder %v613, 512
  %vm678 = vcmp.lt.s32.totalorder %v614, 512
  %vm679 = vcmp.lt.s32.totalorder %v615, 512
  %vm680 = vcmp.lt.s32.totalorder %v616, 512
  %vm681 = vcmp.lt.s32.totalorder %v617, 512
  %vm682 = vcmp.lt.s32.totalorder %v618, 512
  %vm683 = vcmp.lt.s32.totalorder %v619, 512
  %vm684 = vcmp.lt.s32.totalorder %v620, 512
  %vm685 = vcmp.lt.s32.totalorder %v621, 512
  %vm686 = vcmp.lt.s32.totalorder %v622, 512
  %vm687 = vcmp.lt.s32.totalorder %v623, 512
  %vm688 = vcmp.lt.s32.totalorder %v624, 512
  %vm689 = vcmp.lt.s32.totalorder %v625, 512
  %vm690 = vcmp.lt.s32.totalorder %v626, 512
  %vm691 = vcmp.lt.s32.totalorder %v627, 512
  %vm692 = vcmp.lt.s32.totalorder %v628, 512
  %vm693 = vcmp.lt.s32.totalorder %v629, 512
  %vm694 = vcmp.lt.s32.totalorder %v630, 512
  %vm695 = vcmp.lt.s32.totalorder %v631, 512
  %vm696 = vcmp.lt.s32.totalorder %v632, 512
  %vm697 = vcmp.lt.s32.totalorder %v633, 512
  %vm698 = vcmp.lt.s32.totalorder %v634, 512
  %v699 = vsub.f32 %v341, %v569
  %v700 = vsub.f32 %v343, %v569
  %v701 = vsub.f32 %v346, %v569
  %v702 = vsub.f32 %v348, %v569
  %v703 = vsub.f32 %v351, %v569
  %v704 = vsub.f32 %v353, %v569
  %v705 = vsub.f32 %v356, %v569
  %v706 = vsub.f32 %v358, %v569
  %v707 = vsub.f32 %v361, %v569
  %v708 = vsub.f32 %v363, %v569
  %v709 = vsub.f32 %v366, %v569
  %v710 = vsub.f32 %v368, %v569
  %v711 = vsub.f32 %v371, %v569
  %v712 = vsub.f32 %v373, %v569
  %v713 = vsub.f32 %v376, %v569
  %v714 = vsub.f32 %v378, %v569
  %v715 = vsub.f32 %v381, %v569
  %v716 = vsub.f32 %v383, %v569
  %v717 = vsub.f32 %v386, %v569
  %v718 = vsub.f32 %v388, %v569
  %v719 = vsub.f32 %v391, %v569
  %v720 = vsub.f32 %v393, %v569
  %v721 = vsub.f32 %v396, %v569
  %v722 = vsub.f32 %v398, %v569
  %v723 = vsub.f32 %v401, %v569
  %v724 = vsub.f32 %v403, %v569
  %v725 = vsub.f32 %v406, %v569
  %v726 = vsub.f32 %v408, %v569
  %v727 = vsub.f32 %v411, %v569
  %v728 = vsub.f32 %v413, %v569
  %v729 = vsub.f32 %v416, %v569
  %v730 = vsub.f32 %v418, %v569
  %v731 = vsub.f32 %v421, %v569
  %v732 = vsub.f32 %v423, %v569
  %v733 = vsub.f32 %v426, %v569
  %v734 = vsub.f32 %v428, %v569
  %v735 = vsub.f32 %v431, %v569
  %v736 = vsub.f32 %v433, %v569
  %v737 = vsub.f32 %v436, %v569
  %v738 = vsub.f32 %v438, %v569
  %v739 = vsub.f32 %v441, %v569
  %v740 = vsub.f32 %v443, %v569
  %v741 = vsub.f32 %v446, %v569
  %v742 = vsub.f32 %v448, %v569
  %v743 = vsub.f32 %v451, %v569
  %v744 = vsub.f32 %v453, %v569
  %v745 = vsub.f32 %v456, %v569
  %v746 = vsub.f32 %v458, %v569
  %v747 = vsub.f32 %v461, %v569
  %v748 = vsub.f32 %v463, %v569
  %v749 = vsub.f32 %v466, %v569
  %v750 = vsub.f32 %v468, %v569
  %v751 = vsub.f32 %v471, %v569
  %v752 = vsub.f32 %v473, %v569
  %v753 = vsub.f32 %v476, %v569
  %v754 = vsub.f32 %v478, %v569
  %v755 = vsub.f32 %v481, %v569
  %v756 = vsub.f32 %v483, %v569
  %v757 = vsub.f32 %v486, %v569
  %v758 = vsub.f32 %v488, %v569
  %v759 = vsub.f32 %v491, %v569
  %v760 = vsub.f32 %v493, %v569
  %v761 = vsub.f32 %v496, %v569
  %v762 = vsub.f32 %v498, %v569
  %v763 = vsel %vm635, %v699, 0.0
  %v764 = vsel %vm636, %v700, 0.0
  %v765 = vsel %vm637, %v701, 0.0
  %v766 = vsel %vm638, %v702, 0.0
  %v767 = vsel %vm639, %v703, 0.0
  %v768 = vsel %vm640, %v704, 0.0
  %v769 = vsel %vm641, %v705, 0.0
  %v770 = vsel %vm642, %v706, 0.0
  %v771 = vsel %vm643, %v707, 0.0
  %v772 = vsel %vm644, %v708, 0.0
  %v773 = vsel %vm645, %v709, 0.0
  %v774 = vsel %vm646, %v710, 0.0
  %v775 = vsel %vm647, %v711, 0.0
  %v776 = vsel %vm648, %v712, 0.0
  %v777 = vsel %vm649, %v713, 0.0
  %v778 = vsel %vm650, %v714, 0.0
  %v779 = vsel %vm651, %v715, 0.0
  %v780 = vsel %vm652, %v716, 0.0
  %v781 = vsel %vm653, %v717, 0.0
  %v782 = vsel %vm654, %v718, 0.0
  %v783 = vsel %vm655, %v719, 0.0
  %v784 = vsel %vm656, %v720, 0.0
  %v785 = vsel %vm657, %v721, 0.0
  %v786 = vsel %vm658, %v722, 0.0
  %v787 = vsel %vm659, %v723, 0.0
  %v788 = vsel %vm660, %v724, 0.0
  %v789 = vsel %vm661, %v725, 0.0
  %v790 = vsel %vm662, %v726, 0.0
  %v791 = vsel %vm663, %v727, 0.0
  %v792 = vsel %vm664, %v728, 0.0
  %v793 = vsel %vm665, %v729, 0.0
  %v794 = vsel %vm666, %v730, 0.0
  %v795 = vsel %vm667, %v731, 0.0
  %v796 = vsel %vm668, %v732, 0.0
  %v797 = vsel %vm669, %v733, 0.0
  %v798 = vsel %vm670, %v734, 0.0
  %v799 = vsel %vm671, %v735, 0.0
  %v800 = vsel %vm672, %v736, 0.0
  %v801 = vsel %vm673, %v737, 0.0
  %v802 = vsel %vm674, %v738, 0.0
  %v803 = vsel %vm675, %v739, 0.0
  %v804 = vsel %vm676, %v740, 0.0
  %v805 = vsel %vm677, %v741, 0.0
  %v806 = vsel %vm678, %v742, 0.0
  %v807 = vsel %vm679, %v743, 0.0
  %v808 = vsel %vm680, %v744, 0.0
  %v809 = vsel %vm681, %v745, 0.0
  %v810 = vsel %vm682, %v746, 0.0
  %v811 = vsel %vm683, %v747, 0.0
  %v812 = vsel %vm684, %v748, 0.0
  %v813 = vsel %vm685, %v749, 0.0
  %v814 = vsel %vm686, %v750, 0.0
  %v815 = vsel %vm687, %v751, 0.0
  %v816 = vsel %vm688, %v752, 0.0
  %v817 = vsel %vm689, %v753, 0.0
  %v818 = vsel %vm690, %v754, 0.0
  %v819 = vsel %vm691, %v755, 0.0
  %v820 = vsel %vm692, %v756, 0.0
  %v821 = vsel %vm693, %v757, 0.0
  %v822 = vsel %vm694, %v758, 0.0
  %v823 = vsel %vm695, %v759, 0.0
  %v824 = vsel %vm696, %v760, 0.0
  %v825 = vsel %vm697, %v761, 0.0
  %v826 = vsel %vm698, %v762, 0.0
  %v827 = vmul.f32 %v763, %v763
  %v828 = vmul.f32 %v764, %v764
  %v829 = vmul.f32 %v765, %v765
  %v830 = vmul.f32 %v766, %v766
  %v831 = vmul.f32 %v767, %v767
  %v832 = vmul.f32 %v768, %v768
  %v833 = vmul.f32 %v769, %v769
  %v834 = vmul.f32 %v770, %v770
  %v835 = vmul.f32 %v771, %v771
  %v836 = vmul.f32 %v772, %v772
  %v837 = vmul.f32 %v773, %v773
  %v838 = vmul.f32 %v774, %v774
  %v839 = vmul.f32 %v775, %v775
  %v840 = vmul.f32 %v776, %v776
  %v841 = vmul.f32 %v777, %v777
  %v842 = vmul.f32 %v778, %v778
  %v843 = vmul.f32 %v779, %v779
  %v844 = vmul.f32 %v780, %v780
  %v845 = vmul.f32 %v781, %v781
  %v846 = vmul.f32 %v782, %v782
  %v847 = vmul.f32 %v783, %v783
  %v848 = vmul.f32 %v784, %v784
  %v849 = vmul.f32 %v785, %v785
  %v850 = vmul.f32 %v786, %v786
  %v851 = vmul.f32 %v787, %v787
  %v852 = vmul.f32 %v788, %v788
  %v853 = vmul.f32 %v789, %v789
  %v854 = vmul.f32 %v790, %v790
  %v855 = vmul.f32 %v791, %v791
  %v856 = vmul.f32 %v792, %v792
  %v857 = vmul.f32 %v793, %v793
  %v858 = vmul.f32 %v794, %v794
  %v859 = vmul.f32 %v795, %v795
  %v860 = vmul.f32 %v796, %v796
  %v861 = vmul.f32 %v797, %v797
  %v862 = vmul.f32 %v798, %v798
  %v863 = vmul.f32 %v799, %v799
  %v864 = vmul.f32 %v800, %v800
  %v865 = vmul.f32 %v801, %v801
  %v866 = vmul.f32 %v802, %v802
  %v867 = vmul.f32 %v803, %v803
  %v868 = vmul.f32 %v804, %v804
  %v869 = vmul.f32 %v805, %v805
  %v870 = vmul.f32 %v806, %v806
  %v871 = vmul.f32 %v807, %v807
  %v872 = vmul.f32 %v808, %v808
  %v873 = vmul.f32 %v809, %v809
  %v874 = vmul.f32 %v810, %v810
  %v875 = vmul.f32 %v811, %v811
  %v876 = vmul.f32 %v812, %v812
  %v877 = vmul.f32 %v813, %v813
  %v878 = vmul.f32 %v814, %v814
  %v879 = vmul.f32 %v815, %v815
  %v880 = vmul.f32 %v816, %v816
  %v881 = vmul.f32 %v817, %v817
  %v882 = vmul.f32 %v818, %v818
  %v883 = vmul.f32 %v819, %v819
  %v884 = vmul.f32 %v820, %v820
  %v885 = vmul.f32 %v821, %v821
  %v886 = vmul.f32 %v822, %v822
  %v887 = vmul.f32 %v823, %v823
  %v888 = vmul.f32 %v824, %v824
  %v889 = vmul.f32 %v825, %v825
  %v890 = vmul.f32 %v826, %v826
  %v891 = vadd.f32 %v827, %v828
  %v892 = vadd.f32 %v891, %v829
  %v893 = vadd.f32 %v892, %v830
  %v894 = vadd.f32 %v893, %v831
  %v895 = vadd.f32 %v894, %v832
  %v896 = vadd.f32 %v895, %v833
  %v897 = vadd.f32 %v896, %v834
  %v898 = vadd.f32 %v897, %v835
  %v899 = vadd.f32 %v898, %v836
  %v900 = vadd.f32 %v899, %v837
  %v901 = vadd.f32 %v900, %v838
  %v902 = vadd.f32 %v901, %v839
  %v903 = vadd.f32 %v902, %v840
  %v904 = vadd.f32 %v903, %v841
  %v905 = vadd.f32 %v904, %v842
  %v906 = vadd.f32 %v905, %v843
  %v907 = vadd.f32 %v906, %v844
  %v908 = vadd.f32 %v907, %v845
  %v909 = vadd.f32 %v908, %v846
  %v910 = vadd.f32 %v909, %v847
  %v911 = vadd.f32 %v910, %v848
  %v912 = vadd.f32 %v911, %v849
  %v913 = vadd.f32 %v912, %v850
  %v914 = vadd.f32 %v913, %v851
  %v915 = vadd.f32 %v914, %v852
  %v916 = vadd.f32 %v915, %v853
  %v917 = vadd.f32 %v916, %v854
  %v918 = vadd.f32 %v917, %v855
  %v919 = vadd.f32 %v918, %v856
  %v920 = vadd.f32 %v919, %v857
  %v921 = vadd.f32 %v920, %v858
  %v922 = vadd.f32 %v921, %v859
  %v923 = vadd.f32 %v922, %v860
  %v924 = vadd.f32 %v923, %v861
  %v925 = vadd.f32 %v924, %v862
  %v926 = vadd.f32 %v925, %v863
  %v927 = vadd.f32 %v926, %v864
  %v928 = vadd.f32 %v927, %v865
  %v929 = vadd.f32 %v928, %v866
  %v930 = vadd.f32 %v929, %v867
  %v931 = vadd.f32 %v930, %v868
  %v932 = vadd.f32 %v931, %v869
  %v933 = vadd.f32 %v932, %v870
  %v934 = vadd.f32 %v933, %v871
  %v935 = vadd.f32 %v934, %v872
  %v936 = vadd.f32 %v935, %v873
  %v937 = vadd.f32 %v936, %v874
  %v938 = vadd.f32 %v937, %v875
  %v939 = vadd.f32 %v938, %v876
  %v940 = vadd.f32 %v939, %v877
  %v941 = vadd.f32 %v940, %v878
  %v942 = vadd.f32 %v941, %v879
  %v943 = vadd.f32 %v942, %v880
  %v944 = vadd.f32 %v943, %v881
  %v945 = vadd.f32 %v944, %v882
  %v946 = vadd.f32 %v945, %v883
  %v947 = vadd.f32 %v946, %v884
  %v948 = vadd.f32 %v947, %v885
  %v949 = vadd.f32 %v948, %v886
  %v950 = vadd.f32 %v949, %v887
  %v951 = vadd.f32 %v950, %v888
  %v952 = vadd.f32 %v951, %v889
  %v953 = vadd.f32 %v952, %v890
  %v954 = vrot.slane %v953, 4
  %v955 = vadd.f32 %v953, %v954
  %v956 = vrot.slane %v955, 2
  %v957 = vadd.f32 %v955, %v956
  %v958 = vrot.slane %v957, 1
  %v959 = vadd.f32 %v957, %v958
  %v960 = vmul.f32 %v959, 0.001953125
  %v961 = vadd.f32 %v960, 1e-05
  %v962 = vrsqrt.pop %v961
  %v963 = vmul.f32 %v962, %v961
  %v964 = vmul.f32 %v963, %v962
  %v965 = vmul.f32 0.5, %v964
  %v966 = vsub.f32 1.5, %v965
  %v967 = vmul.f32 %v962, %v966
  %vm968 = vweird.f32 %v961
  %vm969 = vweird.f32 %v962
  %vm970 = vmor %vm968, %vm969
  %v971 = vsel %vm970, %v962, %v967
  %v972 = vmul.f32 %v699, %v971
  %v973 = vmul.f32 %v700, %v971
  %v974 = vmul.f32 %v701, %v971
  %v975 = vmul.f32 %v702, %v971
  %v976 = vmul.f32 %v703, %v971
  %v977 = vmul.f32 %v704, %v971
  %v978 = vmul.f32 %v705, %v971
  %v979 = vmul.f32 %v706, %v971
  %v980 = vmul.f32 %v707, %v971
  %v981 = vmul.f32 %v708, %v971
  %v982 = vmul.f32 %v709, %v971
  %v983 = vmul.f32 %v710, %v971
  %v984 = vmul.f32 %v711, %v971
  %v985 = vmul.f32 %v712, %v971
  %v986 = vmul.f32 %v713, %v971
  %v987 = vmul.f32 %v714, %v971
  %v988 = vmul.f32 %v715, %v971
  %v989 = vmul.f32 %v716, %v971
  %v990 = vmul.f32 %v717, %v971
  %v991 = vmul.f32 %v718, %v971
  %v992 = vmul.f32 %v719, %v971
  %v993 = vmul.f32 %v720, %v971
  %v994 = vmul.f32 %v721, %v971
  %v995 = vmul.f32 %v722, %v971
  %v996 = vmul.f32 %v723, %v971
  %v997 = vmul.f32 %v724, %v971
  %v998 = vmul.f32 %v725, %v971
  %v999 = vmul.f32 %v726, %v971
  %v1000 = vmul.f32 %v727, %v971
  %v1001 = vmul.f32 %v728, %v971
  %v1002 = vmul.f32 %v729, %v971
  %v1003 = vmul.f32 %v730, %v971
  %v1004 = vmul.f32 %v731, %v971
  %v1005 = vmul.f32 %v732, %v971
  %v1006 = vmul.f32 %v733, %v971
  %v1007 = vmul.f32 %v734, %v971
  %v1008 = vmul.f32 %v735, %v971
  %v1009 = vmul.f32 %v736, %v971
  %v1010 = vmul.f32 %v737, %v971
  %v1011 = vmul.f32 %v738, %v971
  %v1012 = vmul.f32 %v739, %v971
  %v1013 = vmul.f32 %v740, %v971
  %v1014 = vmul.f32 %v741, %v971
  %v1015 = vmul.f32 %v742, %v971
  %v1016 = vmul.f32 %v743, %v971
  %v1017 = vmul.f32 %v744, %v971
  %v1018 = vmul.f32 %v745, %v971
  %v1019 = vmul.f32 %v746, %v971
  %v1020 = vmul.f32 %v747, %v971
  %v1021 = vmul.f32 %v748, %v971
  %v1022 = vmul.f32 %v749, %v971
  %v1023 = vmul.f32 %v750, %v971
  %v1024 = vmul.f32 %v751, %v971
  %v1025 = vmul.f32 %v752, %v971
  %v1026 = vmul.f32 %v753, %v971
  %v1027 = vmul.f32 %v754, %v971
  %v1028 = vmul.f32 %v755, %v971
  %v1029 = vmul.f32 %v756, %v971
  %v1030 = vmul.f32 %v757, %v971
  %v1031 = vmul.f32 %v758, %v971
  %v1032 = vmul.f32 %v759, %v971
  %v1033 = vmul.f32 %v760, %v971
  %v1034 = vmul.f32 %v761, %v971
  %v1035 = vmul.f32 %v762, %v971
  %vm1036 = vcmp.ge.f32.partialorder %v972, 0.0
  %vm1037 = vcmp.ge.f32.partialorder %v973, 0.0
  %vm1038 = vcmp.ge.f32.partialorder %v974, 0.0
  %vm1039 = vcmp.ge.f32.partialorder %v975, 0.0
  %vm1040 = vcmp.ge.f32.partialorder %v976, 0.0
  %vm1041 = vcmp.ge.f32.partialorder %v977, 0.0
  %vm1042 = vcmp.ge.f32.partialorder %v978, 0.0
  %vm1043 = vcmp.ge.f32.partialorder %v979, 0.0
  %vm1044 = vcmp.ge.f32.partialorder %v980, 0.0
  %vm1045 = vcmp.ge.f32.partialorder %v981, 0.0
  %vm1046 = vcmp.ge.f32.partialorder %v982, 0.0
  %vm1047 = vcmp.ge.f32.partialorder %v983, 0.0
  %vm1048 = vcmp.ge.f32.partialorder %v984, 0.0
  %vm1049 = vcmp.ge.f32.partialorder %v985, 0.0
  %vm1050 = vcmp.ge.f32.partialorder %v986, 0.0
  %vm1051 = vcmp.ge.f32.partialorder %v987, 0.0
  %vm1052 = vcmp.ge.f32.partialorder %v988, 0.0
  %vm1053 = vcmp.ge.f32.partialorder %v989, 0.0
  %vm1054 = vcmp.ge.f32.partialorder %v990, 0.0
  %vm1055 = vcmp.ge.f32.partialorder %v991, 0.0
  %vm1056 = vcmp.ge.f32.partialorder %v992, 0.0
  %vm1057 = vcmp.ge.f32.partialorder %v993, 0.0
  %vm1058 = vcmp.ge.f32.partialorder %v994, 0.0
  %vm1059 = vcmp.ge.f32.partialorder %v995, 0.0
  %vm1060 = vcmp.ge.f32.partialorder %v996, 0.0
  %vm1061 = vcmp.ge.f32.partialorder %v997, 0.0
  %vm1062 = vcmp.ge.f32.partialorder %v998, 0.0
  %vm1063 = vcmp.ge.f32.partialorder %v999, 0.0
  %vm1064 = vcmp.ge.f32.partialorder %v1000, 0.0
  %vm1065 = vcmp.ge.f32.partialorder %v1001, 0.0
  %vm1066 = vcmp.ge.f32.partialorder %v1002, 0.0
  %vm1067 = vcmp.ge.f32.partialorder %v1003, 0.0
  %vm1068 = vcmp.ge.f32.partialorder %v1004, 0.0
  %vm1069 = vcmp.ge.f32.partialorder %v1005, 0.0
  %vm1070 = vcmp.ge.f32.partialorder %v1006, 0.0
  %vm1071 = vcmp.ge.f32.partialorder %v1007, 0.0
  %vm1072 = vcmp.ge.f32.partialorder %v1008, 0.0
  %vm1073 = vcmp.ge.f32.partialorder %v1009, 0.0
  %vm1074 = vcmp.ge.f32.partialorder %v1010, 0.0
  %vm1075 = vcmp.ge.f32.partialorder %v1011, 0.0
  %vm1076 = vcmp.ge.f32.partialorder %v1012, 0.0
  %vm1077 = vcmp.ge.f32.partialorder %v1013, 0.0
  %vm1078 = vcmp.ge.f32.partialorder %v1014, 0.0
  %vm1079 = vcmp.ge.f32.partialorder %v1015, 0.0
  %vm1080 = vcmp.ge.f32.partialorder %v1016, 0.0
  %vm1081 = vcmp.ge.f32.partialorder %v1017, 0.0
  %vm1082 = vcmp.ge.f32.partialorder %v1018, 0.0
  %vm1083 = vcmp.ge.f32.partialorder %v1019, 0.0
  %vm1084 = vcmp.ge.f32.partialorder %v1020, 0.0
  %vm1085 = vcmp.ge.f32.partialorder %v1021, 0.0
  %vm1086 = vcmp.ge.f32.partialorder %v1022, 0.0
  %vm1087 = vcmp.ge.f32.partialorder %v1023, 0.0
  %vm1088 = vcmp.ge.f32.partialorder %v1024, 0.0
  %vm1089 = vcmp.ge.f32.partialorder %v1025, 0.0
  %vm1090 = vcmp.ge.f32.partialorder %v1026, 0.0
  %vm1091 = vcmp.ge.f32.partialorder %v1027, 0.0
  %vm1092 = vcmp.ge.f32.partialorder %v1028, 0.0
  %vm1093 = vcmp.ge.f32.partialorder %v1029, 0.0
  %vm1094 = vcmp.ge.f32.partialorder %v1030, 0.0
  %vm1095 = vcmp.ge.f32.partialorder %v1031, 0.0
  %vm1096 = vcmp.ge.f32.partialorder %v1032, 0.0
  %vm1097 = vcmp.ge.f32.partialorder %v1033, 0.0
  %vm1098 = vcmp.ge.f32.partialorder %v1034, 0.0
  %vm1099 = vcmp.ge.f32.partialorder %v1035, 0.0
  %v1100 = vmul.f32 %v972, 0.2
  %v1101 = vmul.f32 %v973, 0.2
  %v1102 = vmul.f32 %v974, 0.2
  %v1103 = vmul.f32 %v975, 0.2
  %v1104 = vmul.f32 %v976, 0.2
  %v1105 = vmul.f32 %v977, 0.2
  %v1106 = vmul.f32 %v978, 0.2
  %v1107 = vmul.f32 %v979, 0.2
  %v1108 = vmul.f32 %v980, 0.2
  %v1109 = vmul.f32 %v981, 0.2
  %v1110 = vmul.f32 %v982, 0.2
  %v1111 = vmul.f32 %v983, 0.2
  %v1112 = vmul.f32 %v984, 0.2
  %v1113 = vmul.f32 %v985, 0.2
  %v1114 = vmul.f32 %v986, 0.2
  %v1115 = vmul.f32 %v987, 0.2
  %v1116 = vmul.f32 %v988, 0.2
  %v1117 = vmul.f32 %v989, 0.2
  %v1118 = vmul.f32 %v990, 0.2
  %v1119 = vmul.f32 %v991, 0.2
  %v1120 = vmul.f32 %v992, 0.2
  %v1121 = vmul.f32 %v993, 0.2
  %v1122 = vmul.f32 %v994, 0.2
  %v1123 = vmul.f32 %v995, 0.2
  %v1124 = vmul.f32 %v996, 0.2
  %v1125 = vmul.f32 %v997, 0.2
  %v1126 = vmul.f32 %v998, 0.2
  %v1127 = vmul.f32 %v999, 0.2
  %v1128 = vmul.f32 %v1000, 0.2
  %v1129 = vmul.f32 %v1001, 0.2
  %v1130 = vmul.f32 %v1002, 0.2
  %v1131 = vmul.f32 %v1003, 0.2
  %v1132 = vmul.f32 %v1004, 0.2
  %v1133 = vmul.f32 %v1005, 0.2
  %v1134 = vmul.f32 %v1006, 0.2
  %v1135 = vmul.f32 %v1007, 0.2
  %v1136 = vmul.f32 %v1008, 0.2
  %v1137 = vmul.f32 %v1009, 0.2
  %v1138 = vmul.f32 %v1010, 0.2
  %v1139 = vmul.f32 %v1011, 0.2
  %v1140 = vmul.f32 %v1012, 0.2
  %v1141 = vmul.f32 %v1013, 0.2
  %v1142 = vmul.f32 %v1014, 0.2
  %v1143 = vmul.f32 %v1015, 0.2
  %v1144 = vmul.f32 %v1016, 0.2
  %v1145 = vmul.f32 %v1017, 0.2
  %v1146 = vmul.f32 %v1018, 0.2
  %v1147 = vmul.f32 %v1019, 0.2
  %v1148 = vmul.f32 %v1020, 0.2
  %v1149 = vmul.f32 %v1021, 0.2
  %v1150 = vmul.f32 %v1022, 0.2
  %v1151 = vmul.f32 %v1023, 0.2
  %v1152 = vmul.f32 %v1024, 0.2
  %v1153 = vmul.f32 %v1025, 0.2
  %v1154 = vmul.f32 %v1026, 0.2
  %v1155 = vmul.f32 %v1027, 0.2
  %v1156 = vmul.f32 %v1028, 0.2
  %v1157 = vmul.f32 %v1029, 0.2
  %v1158 = vmul.f32 %v1030, 0.2
  %v1159 = vmul.f32 %v1031, 0.2
  %v1160 = vmul.f32 %v1032, 0.2
  %v1161 = vmul.f32 %v1033, 0.2
  %v1162 = vmul.f32 %v1034, 0.2
  %v1163 = vmul.f32 %v1035, 0.2
  %v1164 = vsel %vm1036, %v972, %v1100
  %v1165 = vsel %vm1037, %v973, %v1101
  %v1166 = vsel %vm1038, %v974, %v1102
  %v1167 = vsel %vm1039, %v975, %v1103
  %v1168 = vsel %vm1040, %v976, %v1104
  %v1169 = vsel %vm1041, %v977, %v1105
  %v1170 = vsel %vm1042, %v978, %v1106
  %v1171 = vsel %vm1043, %v979, %v1107
  %v1172 = vsel %vm1044, %v980, %v1108
  %v1173 = vsel %vm1045, %v981, %v1109
  %v1174 = vsel %vm1046, %v982, %v1110
  %v1175 = vsel %vm1047, %v983, %v1111
  %v1176 = vsel %vm1048, %v984, %v1112
  %v1177 = vsel %vm1049, %v985, %v1113
  %v1178 = vsel %vm1050, %v986, %v1114
  %v1179 = vsel %vm1051, %v987, %v1115
  %v1180 = vsel %vm1052, %v988, %v1116
  %v1181 = vsel %vm1053, %v989, %v1117
  %v1182 = vsel %vm1054, %v990, %v1118
  %v1183 = vsel %vm1055, %v991, %v1119
  %v1184 = vsel %vm1056, %v992, %v1120
  %v1185 = vsel %vm1057, %v993, %v1121
  %v1186 = vsel %vm1058, %v994, %v1122
  %v1187 = vsel %vm1059, %v995, %v1123
  %v1188 = vsel %vm1060, %v996, %v1124
  %v1189 = vsel %vm1061, %v997, %v1125
  %v1190 = vsel %vm1062, %v998, %v1126
  %v1191 = vsel %vm1063, %v999, %v1127
  %v1192 = vsel %vm1064, %v1000, %v1128
  %v1193 = vsel %vm1065, %v1001, %v1129
  %v1194 = vsel %vm1066, %v1002, %v1130
  %v1195 = vsel %vm1067, %v1003, %v1131
  %v1196 = vsel %vm1068, %v1004, %v1132
  %v1197 = vsel %vm1069, %v1005, %v1133
  %v1198 = vsel %vm1070, %v1006, %v1134
  %v1199 = vsel %vm1071, %v1007, %v1135
  %v1200 = vsel %vm1072, %v1008, %v1136
  %v1201 = vsel %vm1073, %v1009, %v1137
  %v1202 = vsel %vm1074, %v1010, %v1138
  %v1203 = vsel %vm1075, %v1011, %v1139
  %v1204 = vsel %vm1076, %v1012, %v1140
  %v1205 = vsel %vm1077, %v1013, %v1141
  %v1206 = vsel %vm1078, %v1014, %v1142
  %v1207 = vsel %vm1079, %v1015, %v1143
  %v1208 = vsel %vm1080, %v1016, %v1144
  %v1209 = vsel %vm1081, %v1017, %v1145
  %v1210 = vsel %vm1082, %v1018, %v1146
  %v1211 = vsel %vm1083, %v1019, %v1147
  %v1212 = vsel %vm1084, %v1020, %v1148
  %v1213 = vsel %vm1085, %v1021, %v1149
  %v1214 = vsel %vm1086, %v1022, %v1150
  %v1215 = vsel %vm1087, %v1023, %v1151
  %v1216 = vsel %vm1088, %v1024, %v1152
  %v1217 = vsel %vm1089, %v1025, %v1153
  %v1218 = vsel %vm1090, %v1026, %v1154
  %v1219 = vsel %vm1091, %v1027, %v1155
  %v1220 = vsel %vm1092, %v1028, %v1156
  %v1221 = vsel %vm1093, %v1029, %v1157
  %v1222 = vsel %vm1094, %v1030, %v1158
  %v1223 = vsel %vm1095, %v1031, %v1159
  %v1224 = vsel %vm1096, %v1032, %v1160
  %v1225 = vsel %vm1097, %v1033, %v1161
  %v1226 = vsel %vm1098, %v1034, %v1162
  %v1227 = vsel %vm1099, %v1035, %v1163
  %v1228 = vpack.c.bf16 %v1164, %v1164
  %v1229 = vpack.c.bf16 %v1165, %v1165
  %v1230 = vpack.c.bf16 %v1166, %v1166
  %v1231 = vpack.c.bf16 %v1167, %v1167
  %v1232 = vpack.c.bf16 %v1168, %v1168
  %v1233 = vpack.c.bf16 %v1169, %v1169
  %v1234 = vpack.c.bf16 %v1170, %v1170
  %v1235 = vpack.c.bf16 %v1171, %v1171
  %v1236 = vpack.c.bf16 %v1172, %v1172
  %v1237 = vpack.c.bf16 %v1173, %v1173
  %v1238 = vpack.c.bf16 %v1174, %v1174
  %v1239 = vpack.c.bf16 %v1175, %v1175
  %v1240 = vpack.c.bf16 %v1176, %v1176
  %v1241 = vpack.c.bf16 %v1177, %v1177
  %v1242 = vpack.c.bf16 %v1178, %v1178
  %v1243 = vpack.c.bf16 %v1179, %v1179
  %v1244 = vpack.c.bf16 %v1180, %v1180
  %v1245 = vpack.c.bf16 %v1181, %v1181
  %v1246 = vpack.c.bf16 %v1182, %v1182
  %v1247 = vpack.c.bf16 %v1183, %v1183
  %v1248 = vpack.c.bf16 %v1184, %v1184
  %v1249 = vpack.c.bf16 %v1185, %v1185
  %v1250 = vpack.c.bf16 %v1186, %v1186
  %v1251 = vpack.c.bf16 %v1187, %v1187
  %v1252 = vpack.c.bf16 %v1188, %v1188
  %v1253 = vpack.c.bf16 %v1189, %v1189
  %v1254 = vpack.c.bf16 %v1190, %v1190
  %v1255 = vpack.c.bf16 %v1191, %v1191
  %v1256 = vpack.c.bf16 %v1192, %v1192
  %v1257 = vpack.c.bf16 %v1193, %v1193
  %v1258 = vpack.c.bf16 %v1194, %v1194
  %v1259 = vpack.c.bf16 %v1195, %v1195
  %v1260 = vpack.c.bf16 %v1196, %v1196
  %v1261 = vpack.c.bf16 %v1197, %v1197
  %v1262 = vpack.c.bf16 %v1198, %v1198
  %v1263 = vpack.c.bf16 %v1199, %v1199
  %v1264 = vpack.c.bf16 %v1200, %v1200
  %v1265 = vpack.c.bf16 %v1201, %v1201
  %v1266 = vpack.c.bf16 %v1202, %v1202
  %v1267 = vpack.c.bf16 %v1203, %v1203
  %v1268 = vpack.c.bf16 %v1204, %v1204
  %v1269 = vpack.c.bf16 %v1205, %v1205
  %v1270 = vpack.c.bf16 %v1206, %v1206
  %v1271 = vpack.c.bf16 %v1207, %v1207
  %v1272 = vpack.c.bf16 %v1208, %v1208
  %v1273 = vpack.c.bf16 %v1209, %v1209
  %v1274 = vpack.c.bf16 %v1210, %v1210
  %v1275 = vpack.c.bf16 %v1211, %v1211
  %v1276 = vpack.c.bf16 %v1212, %v1212
  %v1277 = vpack.c.bf16 %v1213, %v1213
  %v1278 = vpack.c.bf16 %v1214, %v1214
  %v1279 = vpack.c.bf16 %v1215, %v1215
  %v1280 = vpack.c.bf16 %v1216, %v1216
  %v1281 = vpack.c.bf16 %v1217, %v1217
  %v1282 = vpack.c.bf16 %v1218, %v1218
  %v1283 = vpack.c.bf16 %v1219, %v1219
  %v1284 = vpack.c.bf16 %v1220, %v1220
  %v1285 = vpack.c.bf16 %v1221, %v1221
  %v1286 = vpack.c.bf16 %v1222, %v1222
  %v1287 = vpack.c.bf16 %v1223, %v1223
  %v1288 = vpack.c.bf16 %v1224, %v1224
  %v1289 = vpack.c.bf16 %v1225, %v1225
  %v1290 = vpack.c.bf16 %v1226, %v1226
  %v1291 = vpack.c.bf16 %v1227, %v1227
  %1292 = vst [vmem:[%s2] sm:$0xf] %v1228
  %1293 = vst [vmem:[%s2 + $0x4] sm:$0xf] %v1229
  %1294 = vst [vmem:[%s2 + $0x8] sm:$0xf] %v1230
  %1295 = vst [vmem:[%s2 + $0xc] sm:$0xf] %v1231
  %1296 = vst [vmem:[%s2 + $0x10] sm:$0xf] %v1232
  %1297 = vst [vmem:[%s2 + $0x14] sm:$0xf] %v1233
  %1298 = vst [vmem:[%s2 + $0x18] sm:$0xf] %v1234
  %1299 = vst [vmem:[%s2 + $0x1c] sm:$0xf] %v1235
  %1300 = vst [vmem:[%s2 + $0x20] sm:$0xf] %v1236
  %1301 = vst [vmem:[%s2 + $0x24] sm:$0xf] %v1237
  %1302 = vst [vmem:[%s2 + $0x28] sm:$0xf] %v1238
  %1303 = vst [vmem:[%s2 + $0x2c] sm:$0xf] %v1239
  %1304 = vst [vmem:[%s2 + $0x30] sm:$0xf] %v1240
  %1305 = vst [vmem:[%s2 + $0x34] sm:$0xf] %v1241
  %1306 = vst [vmem:[%s2 + $0x38] sm:$0xf] %v1242
  %1307 = vst [vmem:[%s2 + $0x3c] sm:$0xf] %v1243
  %1308 = vst [vmem:[%s2 + $0x40] sm:$0xf] %v1244
  %1309 = vst [vmem:[%s2 + $0x44] sm:$0xf] %v1245
  %1310 = vst [vmem:[%s2 + $0x48] sm:$0xf] %v1246
  %1311 = vst [vmem:[%s2 + $0x4c] sm:$0xf] %v1247
  %1312 = vst [vmem:[%s2 + $0x50] sm:$0xf] %v1248
  %1313 = vst [vmem:[%s2 + $0x54] sm:$0xf] %v1249
  %1314 = vst [vmem:[%s2 + $0x58] sm:$0xf] %v1250
  %1315 = vst [vmem:[%s2 + $0x5c] sm:$0xf] %v1251
  %1316 = vst [vmem:[%s2 + $0x60] sm:$0xf] %v1252
  %1317 = vst [vmem:[%s2 + $0x64] sm:$0xf] %v1253
  %1318 = vst [vmem:[%s2 + $0x68] sm:$0xf] %v1254
  %1319 = vst [vmem:[%s2 + $0x6c] sm:$0xf] %v1255
  %1320 = vst [vmem:[%s2 + $0x70] sm:$0xf] %v1256
  %1321 = vst [vmem:[%s2 + $0x74] sm:$0xf] %v1257
  %1322 = vst [vmem:[%s2 + $0x78] sm:$0xf] %v1258
  %1323 = vst [vmem:[%s2 + $0x7c] sm:$0xf] %v1259
  %1324 = vst [vmem:[%s2 + $0x80] sm:$0xf] %v1260
  %1325 = vst [vmem:[%s2 + $0x84] sm:$0xf] %v1261
  %1326 = vst [vmem:[%s2 + $0x88] sm:$0xf] %v1262
  %1327 = vst [vmem:[%s2 + $0x8c] sm:$0xf] %v1263
  %1328 = vst [vmem:[%s2 + $0x90] sm:$0xf] %v1264
  %1329 = vst [vmem:[%s2 + $0x94] sm:$0xf] %v1265
  %1330 = vst [vmem:[%s2 + $0x98] sm:$0xf] %v1266
  %1331 = vst [vmem:[%s2 + $0x9c] sm:$0xf] %v1267
  %1332 = vst [vmem:[%s2 + $0xa0] sm:$0xf] %v1268
  %1333 = vst [vmem:[%s2 + $0xa4] sm:$0xf] %v1269
  %1334 = vst [vmem:[%s2 + $0xa8] sm:$0xf] %v1270
  %1335 = vst [vmem:[%s2 + $0xac] sm:$0xf] %v1271
  %1336 = vst [vmem:[%s2 + $0xb0] sm:$0xf] %v1272
  %1337 = vst [vmem:[%s2 + $0xb4] sm:$0xf] %v1273
  %1338 = vst [vmem:[%s2 + $0xb8] sm:$0xf] %v1274
  %1339 = vst [vmem:[%s2 + $0xbc] sm:$0xf] %v1275
  %1340 = vst [vmem:[%s2 + $0xc0] sm:$0xf] %v1276
  %1341 = vst [vmem:[%s2 + $0xc4] sm:$0xf] %v1277
  %1342 = vst [vmem:[%s2 + $0xc8] sm:$0xf] %v1278
  %1343 = vst [vmem:[%s2 + $0xcc] sm:$0xf] %v1279
  %1344 = vst [vmem:[%s2 + $0xd0] sm:$0xf] %v1280
  %1345 = vst [vmem:[%s2 + $0xd4] sm:$0xf] %v1281
  %1346 = vst [vmem:[%s2 + $0xd8] sm:$0xf] %v1282
  %1347 = vst [vmem:[%s2 + $0xdc] sm:$0xf] %v1283
  %1348 = vst [vmem:[%s2 + $0xe0] sm:$0xf] %v1284
  %1349 = vst [vmem:[%s2 + $0xe4] sm:$0xf] %v1285
  %1350 = vst [vmem:[%s2 + $0xe8] sm:$0xf] %v1286
  %1351 = vst [vmem:[%s2 + $0xec] sm:$0xf] %v1287
  %1352 = vst [vmem:[%s2 + $0xf0] sm:$0xf] %v1288
  %1353 = vst [vmem:[%s2 + $0xf4] sm:$0xf] %v1289
  %1354 = vst [vmem:[%s2 + $0xf8] sm:$0xf] %v1290
  %1355 = vst [vmem:[%s2 + $0xfc] sm:$0xf] %v1291
  // Predicated region
  $region10: #{dc_discriminator.3} parent=0 // pred_check
    _
  $region11: #{dc_discriminator.3} parent=0 // pred_check_branch
    %1357 = sbr.rel (0) target = $region13
  $region12: #{dc_discriminator.3} parent=0 // pred_region
    _
  $region13: #{dc_discriminator.3} parent=0 // pred_fallthru
    _
  // Predicated region
  $region14: #{dc_discriminator.3} parent=0 // pred_check
    _
  $region15: #{dc_discriminator.3} parent=0 // pred_check_branch
    %1359 = sbr.rel (0) target = $region17
  $region16: #{dc_discriminator.3} parent=0 // pred_region
    _
  $region17: #{dc_discriminator.3} parent=0 // pred_fallthru
    _

// kernel: dc_discriminator.4
$region0: #{dc_discriminator.4}
  #allocation0 [shape = 'u32[]', space=smem, size = 0x4, offset = 0x4, fixed_abs, tag = 'smem constant byte address 0x4 - core index']
  #allocation1 [shape = 'u32[72,128]{1,0:T(1,128)}', space=vmem, size = 0x9000, scoped, tag = 'internal scratch']
  %s0 = inlined_call_operand.vmem [shape: bf16[72,4096], index: 0, kind: input, shape index: {}]
  %s1 = inlined_call_operand.vmem [shape: bf16[4096,128], index: 1, kind: input, shape index: {}]
  %s2 = inlined_call_operand.vmem [shape: bf16[72,128], index: 2, kind: output, shape index: {}]
  %s3 = sld [smem:[#allocation0]]
  $region18: #{dc_discriminator.4} parent=0
    _
  %s5 = ssub.s32 1, %s3
  %s6 = scalar_select 0, %s5, %s3
  // Predicated region
  $region2: #{dc_discriminator.4} parent=0 // pred_check
    _
  $region3: #{dc_discriminator.4} parent=0 // pred_check_branch
    %8 = sbr.rel (0) target = $region5
  $region4: #{dc_discriminator.4} parent=0 // pred_region
    _
  $region5: #{dc_discriminator.4} parent=0 // pred_fallthru
    _
  // Predicated region
  $region6: #{dc_discriminator.4} parent=0 // pred_check
    _
  $region7: #{dc_discriminator.4} parent=0 // pred_check_branch
    %10 = sbr.rel (0) target = $region9
  $region8: #{dc_discriminator.4} parent=0 // pred_region
    _
  $region9: #{dc_discriminator.4} parent=0 // pred_fallthru
    _
  %v11 = vld [vmem:[%s0] sm:$0xff]
  %v12 = vld [vmem:[%s0 + $0x8] sm:$0xff]
  %v13 = vld [vmem:[%s0 + $0x10] sm:$0xff]
  %v14 = vld [vmem:[%s0 + $0x18] sm:$0xff]
  %v15 = vld [vmem:[%s0 + $0x20] sm:$0xff]
  %v16 = vld [vmem:[%s0 + $0x28] sm:$0xff]
  %v17 = vld [vmem:[%s0 + $0x30] sm:$0xff]
  %v18 = vld [vmem:[%s0 + $0x38] sm:$0xff]
  %v19 = vld [vmem:[%s0 + $0x40] sm:$0xff]
  %v20 = vld [vmem:[%s0 + $0x48] sm:$0xff]
  %v21 = vld [vmem:[%s0 + $0x50] sm:$0xff]
  %v22 = vld [vmem:[%s0 + $0x58] sm:$0xff]
  %v23 = vld [vmem:[%s0 + $0x60] sm:$0xff]
  %v24 = vld [vmem:[%s0 + $0x68] sm:$0xff]
  %v25 = vld [vmem:[%s0 + $0x70] sm:$0xff]
  %v26 = vld [vmem:[%s0 + $0x78] sm:$0xff]
  %v27 = vld [vmem:[%s0 + $0x80] sm:$0xff]
  %v28 = vld [vmem:[%s0 + $0x88] sm:$0xff]
  %v29 = vld [vmem:[%s0 + $0x90] sm:$0xff]
  %v30 = vld [vmem:[%s0 + $0x98] sm:$0xff]
  %v31 = vld [vmem:[%s0 + $0xa0] sm:$0xff]
  %v32 = vld [vmem:[%s0 + $0xa8] sm:$0xff]
  %v33 = vld [vmem:[%s0 + $0xb0] sm:$0xff]
  %v34 = vld [vmem:[%s0 + $0xb8] sm:$0xff]
  %v35 = vld [vmem:[%s0 + $0xc0] sm:$0xff]
  %v36 = vld [vmem:[%s0 + $0xc8] sm:$0xff]
  %v37 = vld [vmem:[%s0 + $0xd0] sm:$0xff]
  %v38 = vld [vmem:[%s0 + $0xd8] sm:$0xff]
  %v39 = vld [vmem:[%s0 + $0xe0] sm:$0xff]
  %v40 = vld [vmem:[%s0 + $0xe8] sm:$0xff]
  %v41 = vld [vmem:[%s0 + $0xf0] sm:$0xff]
  %v42 = vld [vmem:[%s0 + $0xf8] sm:$0xff]
  %v43 = vld [vmem:[%s0 + $0x100] sm:$0xff]
  %v44 = vld [vmem:[%s0 + $0x108] sm:$0xff]
  %v45 = vld [vmem:[%s0 + $0x110] sm:$0xff]
  %v46 = vld [vmem:[%s0 + $0x118] sm:$0xff]
  %v47 = vld [vmem:[%s0 + $0x120] sm:$0xff]
  %v48 = vld [vmem:[%s0 + $0x128] sm:$0xff]
  %v49 = vld [vmem:[%s0 + $0x130] sm:$0xff]
  %v50 = vld [vmem:[%s0 + $0x138] sm:$0xff]
  %v51 = vld [vmem:[%s0 + $0x140] sm:$0xff]
  %v52 = vld [vmem:[%s0 + $0x148] sm:$0xff]
  %v53 = vld [vmem:[%s0 + $0x150] sm:$0xff]
  %v54 = vld [vmem:[%s0 + $0x158] sm:$0xff]
  %v55 = vld [vmem:[%s0 + $0x160] sm:$0xff]
  %v56 = vld [vmem:[%s0 + $0x168] sm:$0xff]
  %v57 = vld [vmem:[%s0 + $0x170] sm:$0xff]
  %v58 = vld [vmem:[%s0 + $0x178] sm:$0xff]
  %v59 = vld [vmem:[%s0 + $0x180] sm:$0xff]
  %v60 = vld [vmem:[%s0 + $0x188] sm:$0xff]
  %v61 = vld [vmem:[%s0 + $0x190] sm:$0xff]
  %v62 = vld [vmem:[%s0 + $0x198] sm:$0xff]
  %v63 = vld [vmem:[%s0 + $0x1a0] sm:$0xff]
  %v64 = vld [vmem:[%s0 + $0x1a8] sm:$0xff]
  %v65 = vld [vmem:[%s0 + $0x1b0] sm:$0xff]
  %v66 = vld [vmem:[%s0 + $0x1b8] sm:$0xff]
  %v67 = vld [vmem:[%s0 + $0x1c0] sm:$0xff]
  %v68 = vld [vmem:[%s0 + $0x1c8] sm:$0xff]
  %v69 = vld [vmem:[%s0 + $0x1d0] sm:$0xff]
  %v70 = vld [vmem:[%s0 + $0x1d8] sm:$0xff]
  %v71 = vld [vmem:[%s0 + $0x1e0] sm:$0xff]
  %v72 = vld [vmem:[%s0 + $0x1e8] sm:$0xff]
  %v73 = vld [vmem:[%s0 + $0x1f0] sm:$0xff]
  %v74 = vld [vmem:[%s0 + $0x1f8] sm:$0xff]
  %v75 = vld [vmem:[%s0 + $0x200] sm:$0xff]
  %v76 = vld [vmem:[%s0 + $0x208] sm:$0xff]
  %v77 = vld [vmem:[%s0 + $0x210] sm:$0xff]
  %v78 = vld [vmem:[%s0 + $0x218] sm:$0xff]
  %v79 = vld [vmem:[%s0 + $0x220] sm:$0xff]
  %v80 = vld [vmem:[%s0 + $0x228] sm:$0xff]
  %v81 = vld [vmem:[%s0 + $0x230] sm:$0xff]
  %v82 = vld [vmem:[%s0 + $0x238] sm:$0xff]
  %v83 = vld [vmem:[%s0 + $0x240] sm:$0xff]
  %v84 = vld [vmem:[%s0 + $0x248] sm:$0xff]
  %v85 = vld [vmem:[%s0 + $0x250] sm:$0xff]
  %v86 = vld [vmem:[%s0 + $0x258] sm:$0xff]
  %v87 = vld [vmem:[%s0 + $0x260] sm:$0xff]
  %v88 = vld [vmem:[%s0 + $0x268] sm:$0xff]
  %v89 = vld [vmem:[%s0 + $0x270] sm:$0xff]
  %v90 = vld [vmem:[%s0 + $0x278] sm:$0xff]
  %v91 = vld [vmem:[%s0 + $0x280] sm:$0xff]
  %v92 = vld [vmem:[%s0 + $0x288] sm:$0xff]
  %v93 = vld [vmem:[%s0 + $0x290] sm:$0xff]
  %v94 = vld [vmem:[%s0 + $0x298] sm:$0xff]
  %v95 = vld [vmem:[%s0 + $0x2a0] sm:$0xff]
  %v96 = vld [vmem:[%s0 + $0x2a8] sm:$0xff]
  %v97 = vld [vmem:[%s0 + $0x2b0] sm:$0xff]
  %v98 = vld [vmem:[%s0 + $0x2b8] sm:$0xff]
  %v99 = vld [vmem:[%s0 + $0x2c0] sm:$0xff]
  %v100 = vld [vmem:[%s0 + $0x2c8] sm:$0xff]
  %v101 = vld [vmem:[%s0 + $0x2d0] sm:$0xff]
  %v102 = vld [vmem:[%s0 + $0x2d8] sm:$0xff]
  %v103 = vld [vmem:[%s0 + $0x2e0] sm:$0xff]
  %v104 = vld [vmem:[%s0 + $0x2e8] sm:$0xff]
  %v105 = vld [vmem:[%s0 + $0x2f0] sm:$0xff]
  %v106 = vld [vmem:[%s0 + $0x2f8] sm:$0xff]
  %v107 = vld [vmem:[%s0 + $0x300] sm:$0xff]
  %v108 = vld [vmem:[%s0 + $0x308] sm:$0xff]
  %v109 = vld [vmem:[%s0 + $0x310] sm:$0xff]
  %v110 = vld [vmem:[%s0 + $0x318] sm:$0xff]
  %v111 = vld [vmem:[%s0 + $0x320] sm:$0xff]
  %v112 = vld [vmem:[%s0 + $0x328] sm:$0xff]
  %v113 = vld [vmem:[%s0 + $0x330] sm:$0xff]
  %v114 = vld [vmem:[%s0 + $0x338] sm:$0xff]
  %v115 = vld [vmem:[%s0 + $0x340] sm:$0xff]
  %v116 = vld [vmem:[%s0 + $0x348] sm:$0xff]
  %v117 = vld [vmem:[%s0 + $0x350] sm:$0xff]
  %v118 = vld [vmem:[%s0 + $0x358] sm:$0xff]
  %v119 = vld [vmem:[%s0 + $0x360] sm:$0xff]
  %v120 = vld [vmem:[%s0 + $0x368] sm:$0xff]
  %v121 = vld [vmem:[%s0 + $0x370] sm:$0xff]
  %v122 = vld [vmem:[%s0 + $0x378] sm:$0xff]
  %v123 = vld [vmem:[%s0 + $0x380] sm:$0xff]
  %v124 = vld [vmem:[%s0 + $0x388] sm:$0xff]
  %v125 = vld [vmem:[%s0 + $0x390] sm:$0xff]
  %v126 = vld [vmem:[%s0 + $0x398] sm:$0xff]
  %v127 = vld [vmem:[%s0 + $0x3a0] sm:$0xff]
  %v128 = vld [vmem:[%s0 + $0x3a8] sm:$0xff]
  %v129 = vld [vmem:[%s0 + $0x3b0] sm:$0xff]
  %v130 = vld [vmem:[%s0 + $0x3b8] sm:$0xff]
  %v131 = vld [vmem:[%s0 + $0x3c0] sm:$0xff]
  %v132 = vld [vmem:[%s0 + $0x3c8] sm:$0xff]
  %v133 = vld [vmem:[%s0 + $0x3d0] sm:$0xff]
  %v134 = vld [vmem:[%s0 + $0x3d8] sm:$0xff]
  %v135 = vld [vmem:[%s0 + $0x3e0] sm:$0xff]
  %v136 = vld [vmem:[%s0 + $0x3e8] sm:$0xff]
  %v137 = vld [vmem:[%s0 + $0x3f0] sm:$0xff]
  %v138 = vld [vmem:[%s0 + $0x3f8] sm:$0xff]
  %v139 = vld [vmem:[%s0 + $0x400] sm:$0xff]
  %v140 = vld [vmem:[%s0 + $0x408] sm:$0xff]
  %v141 = vld [vmem:[%s0 + $0x410] sm:$0xff]
  %v142 = vld [vmem:[%s0 + $0x418] sm:$0xff]
  %v143 = vld [vmem:[%s0 + $0x420] sm:$0xff]
  %v144 = vld [vmem:[%s0 + $0x428] sm:$0xff]
  %v145 = vld [vmem:[%s0 + $0x430] sm:$0xff]
  %v146 = vld [vmem:[%s0 + $0x438] sm:$0xff]
  %v147 = vld [vmem:[%s0 + $0x440] sm:$0xff]
  %v148 = vld [vmem:[%s0 + $0x448] sm:$0xff]
  %v149 = vld [vmem:[%s0 + $0x450] sm:$0xff]
  %v150 = vld [vmem:[%s0 + $0x458] sm:$0xff]
  %v151 = vld [vmem:[%s0 + $0x460] sm:$0xff]
  %v152 = vld [vmem:[%s0 + $0x468] sm:$0xff]
  %v153 = vld [vmem:[%s0 + $0x470] sm:$0xff]
  %v154 = vld [vmem:[%s0 + $0x478] sm:$0xff]
  %v155 = vld [vmem:[%s1] sm:$0xf]
  %v156 = vld [vmem:[%s1 + $0x4] sm:$0xf]
  %v157 = vld [vmem:[%s1 + $0x8] sm:$0xf]
  %v158 = vld [vmem:[%s1 + $0xc] sm:$0xf]
  %v159 = vld [vmem:[%s1 + $0x10] sm:$0xf]
  %v160 = vld [vmem:[%s1 + $0x14] sm:$0xf]
  %v161 = vld [vmem:[%s1 + $0x18] sm:$0xf]
  %v162 = vld [vmem:[%s1 + $0x1c] sm:$0xf]
  %v163 = vld [vmem:[%s1 + $0x20] sm:$0xf]
  %v164 = vld [vmem:[%s1 + $0x24] sm:$0xf]
  %v165 = vld [vmem:[%s1 + $0x28] sm:$0xf]
  %v166 = vld [vmem:[%s1 + $0x2c] sm:$0xf]
  %v167 = vld [vmem:[%s1 + $0x30] sm:$0xf]
  %v168 = vld [vmem:[%s1 + $0x34] sm:$0xf]
  %v169 = vld [vmem:[%s1 + $0x38] sm:$0xf]
  %v170 = vld [vmem:[%s1 + $0x3c] sm:$0xf]
  %v171 = vld [vmem:[%s1 + $0x40] sm:$0xf]
  %v172 = vld [vmem:[%s1 + $0x44] sm:$0xf]
  %v173 = vld [vmem:[%s1 + $0x48] sm:$0xf]
  %v174 = vld [vmem:[%s1 + $0x4c] sm:$0xf]
  %v175 = vld [vmem:[%s1 + $0x50] sm:$0xf]
  %v176 = vld [vmem:[%s1 + $0x54] sm:$0xf]
  %v177 = vld [vmem:[%s1 + $0x58] sm:$0xf]
  %v178 = vld [vmem:[%s1 + $0x5c] sm:$0xf]
  %v179 = vld [vmem:[%s1 + $0x60] sm:$0xf]
  %v180 = vld [vmem:[%s1 + $0x64] sm:$0xf]
  %v181 = vld [vmem:[%s1 + $0x68] sm:$0xf]
  %v182 = vld [vmem:[%s1 + $0x6c] sm:$0xf]
  %v183 = vld [vmem:[%s1 + $0x70] sm:$0xf]
  %v184 = vld [vmem:[%s1 + $0x74] sm:$0xf]
  %v185 = vld [vmem:[%s1 + $0x78] sm:$0xf]
  %v186 = vld [vmem:[%s1 + $0x7c] sm:$0xf]
  %v187 = vld [vmem:[%s1 + $0x80] sm:$0xf]
  %v188 = vld [vmem:[%s1 + $0x84] sm:$0xf]
  %v189 = vld [vmem:[%s1 + $0x88] sm:$0xf]
  %v190 = vld [vmem:[%s1 + $0x8c] sm:$0xf]
  %v191 = vld [vmem:[%s1 + $0x90] sm:$0xf]
  %v192 = vld [vmem:[%s1 + $0x94] sm:$0xf]
  %v193 = vld [vmem:[%s1 + $0x98] sm:$0xf]
  %v194 = vld [vmem:[%s1 + $0x9c] sm:$0xf]
  %v195 = vld [vmem:[%s1 + $0xa0] sm:$0xf]
  %v196 = vld [vmem:[%s1 + $0xa4] sm:$0xf]
  %v197 = vld [vmem:[%s1 + $0xa8] sm:$0xf]
  %v198 = vld [vmem:[%s1 + $0xac] sm:$0xf]
  %v199 = vld [vmem:[%s1 + $0xb0] sm:$0xf]
  %v200 = vld [vmem:[%s1 + $0xb4] sm:$0xf]
  %v201 = vld [vmem:[%s1 + $0xb8] sm:$0xf]
  %v202 = vld [vmem:[%s1 + $0xbc] sm:$0xf]
  %v203 = vld [vmem:[%s1 + $0xc0] sm:$0xf]
  %v204 = vld [vmem:[%s1 + $0xc4] sm:$0xf]
  %v205 = vld [vmem:[%s1 + $0xc8] sm:$0xf]
  %v206 = vld [vmem:[%s1 + $0xcc] sm:$0xf]
  %v207 = vld [vmem:[%s1 + $0xd0] sm:$0xf]
  %v208 = vld [vmem:[%s1 + $0xd4] sm:$0xf]
  %v209 = vld [vmem:[%s1 + $0xd8] sm:$0xf]
  %v210 = vld [vmem:[%s1 + $0xdc] sm:$0xf]
  %v211 = vld [vmem:[%s1 + $0xe0] sm:$0xf]
  %v212 = vld [vmem:[%s1 + $0xe4] sm:$0xf]
  %v213 = vld [vmem:[%s1 + $0xe8] sm:$0xf]
  %v214 = vld [vmem:[%s1 + $0xec] sm:$0xf]
  %v215 = vld [vmem:[%s1 + $0xf0] sm:$0xf]
  %v216 = vld [vmem:[%s1 + $0xf4] sm:$0xf]
  %v217 = vld [vmem:[%s1 + $0xf8] sm:$0xf]
  %v218 = vld [vmem:[%s1 + $0xfc] sm:$0xf]
  %v219 = vld [vmem:[%s1 + $0x100] sm:$0xf]
  %v220 = vld [vmem:[%s1 + $0x104] sm:$0xf]
  %v221 = vld [vmem:[%s1 + $0x108] sm:$0xf]
  %v222 = vld [vmem:[%s1 + $0x10c] sm:$0xf]
  %v223 = vld [vmem:[%s1 + $0x110] sm:$0xf]
  %v224 = vld [vmem:[%s1 + $0x114] sm:$0xf]
  %v225 = vld [vmem:[%s1 + $0x118] sm:$0xf]
  %v226 = vld [vmem:[%s1 + $0x11c] sm:$0xf]
  %v227 = vld [vmem:[%s1 + $0x120] sm:$0xf]
  %v228 = vld [vmem:[%s1 + $0x124] sm:$0xf]
  %v229 = vld [vmem:[%s1 + $0x128] sm:$0xf]
  %v230 = vld [vmem:[%s1 + $0x12c] sm:$0xf]
  %v231 = vld [vmem:[%s1 + $0x130] sm:$0xf]
  %v232 = vld [vmem:[%s1 + $0x134] sm:$0xf]
  %v233 = vld [vmem:[%s1 + $0x138] sm:$0xf]
  %v234 = vld [vmem:[%s1 + $0x13c] sm:$0xf]
  %v235 = vld [vmem:[%s1 + $0x140] sm:$0xf]
  %v236 = vld [vmem:[%s1 + $0x144] sm:$0xf]
  %v237 = vld [vmem:[%s1 + $0x148] sm:$0xf]
  %v238 = vld [vmem:[%s1 + $0x14c] sm:$0xf]
  %v239 = vld [vmem:[%s1 + $0x150] sm:$0xf]
  %v240 = vld [vmem:[%s1 + $0x154] sm:$0xf]
  %v241 = vld [vmem:[%s1 + $0x158] sm:$0xf]
  %v242 = vld [vmem:[%s1 + $0x15c] sm:$0xf]
  %v243 = vld [vmem:[%s1 + $0x160] sm:$0xf]
  %v244 = vld [vmem:[%s1 + $0x164] sm:$0xf]
  %v245 = vld [vmem:[%s1 + $0x168] sm:$0xf]
  %v246 = vld [vmem:[%s1 + $0x16c] sm:$0xf]
  %v247 = vld [vmem:[%s1 + $0x170] sm:$0xf]
  %v248 = vld [vmem:[%s1 + $0x174] sm:$0xf]
  %v249 = vld [vmem:[%s1 + $0x178] sm:$0xf]
  %v250 = vld [vmem:[%s1 + $0x17c] sm:$0xf]
  %v251 = vld [vmem:[%s1 + $0x180] sm:$0xf]
  %v252 = vld [vmem:[%s1 + $0x184] sm:$0xf]
  %v253 = vld [vmem:[%s1 + $0x188] sm:$0xf]
  %v254 = vld [vmem:[%s1 + $0x18c] sm:$0xf]
  %v255 = vld [vmem:[%s1 + $0x190] sm:$0xf]
  %v256 = vld [vmem:[%s1 + $0x194] sm:$0xf]
  %v257 = vld [vmem:[%s1 + $0x198] sm:$0xf]
  %v258 = vld [vmem:[%s1 + $0x19c] sm:$0xf]
  %v259 = vld [vmem:[%s1 + $0x1a0] sm:$0xf]
  %v260 = vld [vmem:[%s1 + $0x1a4] sm:$0xf]
  %v261 = vld [vmem:[%s1 + $0x1a8] sm:$0xf]
  %v262 = vld [vmem:[%s1 + $0x1ac] sm:$0xf]
  %v263 = vld [vmem:[%s1 + $0x1b0] sm:$0xf]
  %v264 = vld [vmem:[%s1 + $0x1b4] sm:$0xf]
  %v265 = vld [vmem:[%s1 + $0x1b8] sm:$0xf]
  %v266 = vld [vmem:[%s1 + $0x1bc] sm:$0xf]
  %v267 = vld [vmem:[%s1 + $0x1c0] sm:$0xf]
  %v268 = vld [vmem:[%s1 + $0x1c4] sm:$0xf]
  %v269 = vld [vmem:[%s1 + $0x1c8] sm:$0xf]
  %v270 = vld [vmem:[%s1 + $0x1cc] sm:$0xf]
  %v271 = vld [vmem:[%s1 + $0x1d0] sm:$0xf]
  %v272 = vld [vmem:[%s1 + $0x1d4] sm:$0xf]
  %v273 = vld [vmem:[%s1 + $0x1d8] sm:$0xf]
  %v274 = vld [vmem:[%s1 + $0x1dc] sm:$0xf]
  %v275 = vld [vmem:[%s1 + $0x1e0] sm:$0xf]
  %v276 = vld [vmem:[%s1 + $0x1e4] sm:$0xf]
  %v277 = vld [vmem:[%s1 + $0x1e8] sm:$0xf]
  %v278 = vld [vmem:[%s1 + $0x1ec] sm:$0xf]
  %v279 = vld [vmem:[%s1 + $0x1f0] sm:$0xf]
  %v280 = vld [vmem:[%s1 + $0x1f4] sm:$0xf]
  %v281 = vld [vmem:[%s1 + $0x1f8] sm:$0xf]
  %v282 = vld [vmem:[%s1 + $0x1fc] sm:$0xf]
  %v283 = vld [vmem:[%s1 + $0x200] sm:$0xf]
  %v284 = vld [vmem:[%s1 + $0x204] sm:$0xf]
  %v285 = vld [vmem:[%s1 + $0x208] sm:$0xf]
  %v286 = vld [vmem:[%s1 + $0x20c] sm:$0xf]
  %v287 = vld [vmem:[%s1 + $0x210] sm:$0xf]
  %v288 = vld [vmem:[%s1 + $0x214] sm:$0xf]
  %v289 = vld [vmem:[%s1 + $0x218] sm:$0xf]
  %v290 = vld [vmem:[%s1 + $0x21c] sm:$0xf]
  %v291 = vld [vmem:[%s1 + $0x220] sm:$0xf]
  %v292 = vld [vmem:[%s1 + $0x224] sm:$0xf]
  %v293 = vld [vmem:[%s1 + $0x228] sm:$0xf]
  %v294 = vld [vmem:[%s1 + $0x22c] sm:$0xf]
  %v295 = vld [vmem:[%s1 + $0x230] sm:$0xf]
  %v296 = vld [vmem:[%s1 + $0x234] sm:$0xf]
  %v297 = vld [vmem:[%s1 + $0x238] sm:$0xf]
  %v298 = vld [vmem:[%s1 + $0x23c] sm:$0xf]
  %v299 = vld [vmem:[%s1 + $0x240] sm:$0xf]
  %v300 = vld [vmem:[%s1 + $0x244] sm:$0xf]
  %v301 = vld [vmem:[%s1 + $0x248] sm:$0xf]
  %v302 = vld [vmem:[%s1 + $0x24c] sm:$0xf]
  %v303 = vld [vmem:[%s1 + $0x250] sm:$0xf]
  %v304 = vld [vmem:[%s1 + $0x254] sm:$0xf]
  %v305 = vld [vmem:[%s1 + $0x258] sm:$0xf]
  %v306 = vld [vmem:[%s1 + $0x25c] sm:$0xf]
  %v307 = vld [vmem:[%s1 + $0x260] sm:$0xf]
  %v308 = vld [vmem:[%s1 + $0x264] sm:$0xf]
  %v309 = vld [vmem:[%s1 + $0x268] sm:$0xf]
  %v310 = vld [vmem:[%s1 + $0x26c] sm:$0xf]
  %v311 = vld [vmem:[%s1 + $0x270] sm:$0xf]
  %v312 = vld [vmem:[%s1 + $0x274] sm:$0xf]
  %v313 = vld [vmem:[%s1 + $0x278] sm:$0xf]
  %v314 = vld [vmem:[%s1 + $0x27c] sm:$0xf]
  %v315 = vld [vmem:[%s1 + $0x280] sm:$0xf]
  %v316 = vld [vmem:[%s1 + $0x284] sm:$0xf]
  %v317 = vld [vmem:[%s1 + $0x288] sm:$0xf]
  %v318 = vld [vmem:[%s1 + $0x28c] sm:$0xf]
  %v319 = vld [vmem:[%s1 + $0x290] sm:$0xf]
  %v320 = vld [vmem:[%s1 + $0x294] sm:$0xf]
  %v321 = vld [vmem:[%s1 + $0x298] sm:$0xf]
  %v322 = vld [vmem:[%s1 + $0x29c] sm:$0xf]
  %v323 = vld [vmem:[%s1 + $0x2a0] sm:$0xf]
  %v324 = vld [vmem:[%s1 + $0x2a4] sm:$0xf]
  %v325 = vld [vmem:[%s1 + $0x2a8] sm:$0xf]
  %v326 = vld [vmem:[%s1 + $0x2ac] sm:$0xf]
  %v327 = vld [vmem:[%s1 + $0x2b0] sm:$0xf]
  %v328 = vld [vmem:[%s1 + $0x2b4] sm:$0xf]
  %v329 = vld [vmem:[%s1 + $0x2b8] sm:$0xf]
  %v330 = vld [vmem:[%s1 + $0x2bc] sm:$0xf]
  %v331 = vld [vmem:[%s1 + $0x2c0] sm:$0xf]
  %v332 = vld [vmem:[%s1 + $0x2c4] sm:$0xf]
  %v333 = vld [vmem:[%s1 + $0x2c8] sm:$0xf]
  %v334 = vld [vmem:[%s1 + $0x2cc] sm:$0xf]
  %v335 = vld [vmem:[%s1 + $0x2d0] sm:$0xf]
  %v336 = vld [vmem:[%s1 + $0x2d4] sm:$0xf]
  %v337 = vld [vmem:[%s1 + $0x2d8] sm:$0xf]
  %v338 = vld [vmem:[%s1 + $0x2dc] sm:$0xf]
  %v339 = vld [vmem:[%s1 + $0x2e0] sm:$0xf]
  %v340 = vld [vmem:[%s1 + $0x2e4] sm:$0xf]
  %v341 = vld [vmem:[%s1 + $0x2e8] sm:$0xf]
  %v342 = vld [vmem:[%s1 + $0x2ec] sm:$0xf]
  %v343 = vld [vmem:[%s1 + $0x2f0] sm:$0xf]
  %v344 = vld [vmem:[%s1 + $0x2f4] sm:$0xf]
  %v345 = vld [vmem:[%s1 + $0x2f8] sm:$0xf]
  %v346 = vld [vmem:[%s1 + $0x2fc] sm:$0xf]
  %v347 = vld [vmem:[%s1 + $0x300] sm:$0xf]
  %v348 = vld [vmem:[%s1 + $0x304] sm:$0xf]
  %v349 = vld [vmem:[%s1 + $0x308] sm:$0xf]
  %v350 = vld [vmem:[%s1 + $0x30c] sm:$0xf]
  %v351 = vld [vmem:[%s1 + $0x310] sm:$0xf]
  %v352 = vld [vmem:[%s1 + $0x314] sm:$0xf]
  %v353 = vld [vmem:[%s1 + $0x318] sm:$0xf]
  %v354 = vld [vmem:[%s1 + $0x31c] sm:$0xf]
  %v355 = vld [vmem:[%s1 + $0x320] sm:$0xf]
  %v356 = vld [vmem:[%s1 + $0x324] sm:$0xf]
  %v357 = vld [vmem:[%s1 + $0x328] sm:$0xf]
  %v358 = vld [vmem:[%s1 + $0x32c] sm:$0xf]
  %v359 = vld [vmem:[%s1 + $0x330] sm:$0xf]
  %v360 = vld [vmem:[%s1 + $0x334] sm:$0xf]
  %v361 = vld [vmem:[%s1 + $0x338] sm:$0xf]
  %v362 = vld [vmem:[%s1 + $0x33c] sm:$0xf]
  %v363 = vld [vmem:[%s1 + $0x340] sm:$0xf]
  %v364 = vld [vmem:[%s1 + $0x344] sm:$0xf]
  %v365 = vld [vmem:[%s1 + $0x348] sm:$0xf]
  %v366 = vld [vmem:[%s1 + $0x34c] sm:$0xf]
  %v367 = vld [vmem:[%s1 + $0x350] sm:$0xf]
  %v368 = vld [vmem:[%s1 + $0x354] sm:$0xf]
  %v369 = vld [vmem:[%s1 + $0x358] sm:$0xf]
  %v370 = vld [vmem:[%s1 + $0x35c] sm:$0xf]
  %v371 = vld [vmem:[%s1 + $0x360] sm:$0xf]
  %v372 = vld [vmem:[%s1 + $0x364] sm:$0xf]
  %v373 = vld [vmem:[%s1 + $0x368] sm:$0xf]
  %v374 = vld [vmem:[%s1 + $0x36c] sm:$0xf]
  %v375 = vld [vmem:[%s1 + $0x370] sm:$0xf]
  %v376 = vld [vmem:[%s1 + $0x374] sm:$0xf]
  %v377 = vld [vmem:[%s1 + $0x378] sm:$0xf]
  %v378 = vld [vmem:[%s1 + $0x37c] sm:$0xf]
  %v379 = vld [vmem:[%s1 + $0x380] sm:$0xf]
  %v380 = vld [vmem:[%s1 + $0x384] sm:$0xf]
  %v381 = vld [vmem:[%s1 + $0x388] sm:$0xf]
  %v382 = vld [vmem:[%s1 + $0x38c] sm:$0xf]
  %v383 = vld [vmem:[%s1 + $0x390] sm:$0xf]
  %v384 = vld [vmem:[%s1 + $0x394] sm:$0xf]
  %v385 = vld [vmem:[%s1 + $0x398] sm:$0xf]
  %v386 = vld [vmem:[%s1 + $0x39c] sm:$0xf]
  %v387 = vld [vmem:[%s1 + $0x3a0] sm:$0xf]
  %v388 = vld [vmem:[%s1 + $0x3a4] sm:$0xf]
  %v389 = vld [vmem:[%s1 + $0x3a8] sm:$0xf]
  %v390 = vld [vmem:[%s1 + $0x3ac] sm:$0xf]
  %v391 = vld [vmem:[%s1 + $0x3b0] sm:$0xf]
  %v392 = vld [vmem:[%s1 + $0x3b4] sm:$0xf]
  %v393 = vld [vmem:[%s1 + $0x3b8] sm:$0xf]
  %v394 = vld [vmem:[%s1 + $0x3bc] sm:$0xf]
  %v395 = vld [vmem:[%s1 + $0x3c0] sm:$0xf]
  %v396 = vld [vmem:[%s1 + $0x3c4] sm:$0xf]
  %v397 = vld [vmem:[%s1 + $0x3c8] sm:$0xf]
  %v398 = vld [vmem:[%s1 + $0x3cc] sm:$0xf]
  %v399 = vld [vmem:[%s1 + $0x3d0] sm:$0xf]
  %v400 = vld [vmem:[%s1 + $0x3d4] sm:$0xf]
  %v401 = vld [vmem:[%s1 + $0x3d8] sm:$0xf]
  %v402 = vld [vmem:[%s1 + $0x3dc] sm:$0xf]
  %v403 = vld [vmem:[%s1 + $0x3e0] sm:$0xf]
  %v404 = vld [vmem:[%s1 + $0x3e4] sm:$0xf]
  %v405 = vld [vmem:[%s1 + $0x3e8] sm:$0xf]
  %v406 = vld [vmem:[%s1 + $0x3ec] sm:$0xf]
  %v407 = vld [vmem:[%s1 + $0x3f0] sm:$0xf]
  %v408 = vld [vmem:[%s1 + $0x3f4] sm:$0xf]
  %v409 = vld [vmem:[%s1 + $0x3f8] sm:$0xf]
  %v410 = vld [vmem:[%s1 + $0x3fc] sm:$0xf]
  %v411 = vld [vmem:[%s1 + $0x400] sm:$0xf]
  %v412 = vld [vmem:[%s1 + $0x404] sm:$0xf]
  %v413 = vld [vmem:[%s1 + $0x408] sm:$0xf]
  %v414 = vld [vmem:[%s1 + $0x40c] sm:$0xf]
  %v415 = vld [vmem:[%s1 + $0x410] sm:$0xf]
  %v416 = vld [vmem:[%s1 + $0x414] sm:$0xf]
  %v417 = vld [vmem:[%s1 + $0x418] sm:$0xf]
  %v418 = vld [vmem:[%s1 + $0x41c] sm:$0xf]
  %v419 = vld [vmem:[%s1 + $0x420] sm:$0xf]
  %v420 = vld [vmem:[%s1 + $0x424] sm:$0xf]
  %v421 = vld [vmem:[%s1 + $0x428] sm:$0xf]
  %v422 = vld [vmem:[%s1 + $0x42c] sm:$0xf]
  %v423 = vld [vmem:[%s1 + $0x430] sm:$0xf]
  %v424 = vld [vmem:[%s1 + $0x434] sm:$0xf]
  %v425 = vld [vmem:[%s1 + $0x438] sm:$0xf]
  %v426 = vld [vmem:[%s1 + $0x43c] sm:$0xf]
  %v427 = vld [vmem:[%s1 + $0x440] sm:$0xf]
  %v428 = vld [vmem:[%s1 + $0x444] sm:$0xf]
  %v429 = vld [vmem:[%s1 + $0x448] sm:$0xf]
  %v430 = vld [vmem:[%s1 + $0x44c] sm:$0xf]
  %v431 = vld [vmem:[%s1 + $0x450] sm:$0xf]
  %v432 = vld [vmem:[%s1 + $0x454] sm:$0xf]
  %v433 = vld [vmem:[%s1 + $0x458] sm:$0xf]
  %v434 = vld [vmem:[%s1 + $0x45c] sm:$0xf]
  %v435 = vld [vmem:[%s1 + $0x460] sm:$0xf]
  %v436 = vld [vmem:[%s1 + $0x464] sm:$0xf]
  %v437 = vld [vmem:[%s1 + $0x468] sm:$0xf]
  %v438 = vld [vmem:[%s1 + $0x46c] sm:$0xf]
  %v439 = vld [vmem:[%s1 + $0x470] sm:$0xf]
  %v440 = vld [vmem:[%s1 + $0x474] sm:$0xf]
  %v441 = vld [vmem:[%s1 + $0x478] sm:$0xf]
  %v442 = vld [vmem:[%s1 + $0x47c] sm:$0xf]
  %v443 = vld [vmem:[%s1 + $0x480] sm:$0xf]
  %v444 = vld [vmem:[%s1 + $0x484] sm:$0xf]
  %v445 = vld [vmem:[%s1 + $0x488] sm:$0xf]
  %v446 = vld [vmem:[%s1 + $0x48c] sm:$0xf]
  %v447 = vld [vmem:[%s1 + $0x490] sm:$0xf]
  %v448 = vld [vmem:[%s1 + $0x494] sm:$0xf]
  %v449 = vld [vmem:[%s1 + $0x498] sm:$0xf]
  %v450 = vld [vmem:[%s1 + $0x49c] sm:$0xf]
  %v451 = vld [vmem:[%s1 + $0x4a0] sm:$0xf]
  %v452 = vld [vmem:[%s1 + $0x4a4] sm:$0xf]
  %v453 = vld [vmem:[%s1 + $0x4a8] sm:$0xf]
  %v454 = vld [vmem:[%s1 + $0x4ac] sm:$0xf]
  %v455 = vld [vmem:[%s1 + $0x4b0] sm:$0xf]
  %v456 = vld [vmem:[%s1 + $0x4b4] sm:$0xf]
  %v457 = vld [vmem:[%s1 + $0x4b8] sm:$0xf]
  %v458 = vld [vmem:[%s1 + $0x4bc] sm:$0xf]
  %v459 = vld [vmem:[%s1 + $0x4c0] sm:$0xf]
  %v460 = vld [vmem:[%s1 + $0x4c4] sm:$0xf]
  %v461 = vld [vmem:[%s1 + $0x4c8] sm:$0xf]
  %v462 = vld [vmem:[%s1 + $0x4cc] sm:$0xf]
  %v463 = vld [vmem:[%s1 + $0x4d0] sm:$0xf]
  %v464 = vld [vmem:[%s1 + $0x4d4] sm:$0xf]
  %v465 = vld [vmem:[%s1 + $0x4d8] sm:$0xf]
  %v466 = vld [vmem:[%s1 + $0x4dc] sm:$0xf]
  %v467 = vld [vmem:[%s1 + $0x4e0] sm:$0xf]
  %v468 = vld [vmem:[%s1 + $0x4e4] sm:$0xf]
  %v469 = vld [vmem:[%s1 + $0x4e8] sm:$0xf]
  %v470 = vld [vmem:[%s1 + $0x4ec] sm:$0xf]
  %v471 = vld [vmem:[%s1 + $0x4f0] sm:$0xf]
  %v472 = vld [vmem:[%s1 + $0x4f4] sm:$0xf]
  %v473 = vld [vmem:[%s1 + $0x4f8] sm:$0xf]
  %v474 = vld [vmem:[%s1 + $0x4fc] sm:$0xf]
  %v475 = vld [vmem:[%s1 + $0x500] sm:$0xf]
  %v476 = vld [vmem:[%s1 + $0x504] sm:$0xf]
  %v477 = vld [vmem:[%s1 + $0x508] sm:$0xf]
  %v478 = vld [vmem:[%s1 + $0x50c] sm:$0xf]
  %v479 = vld [vmem:[%s1 + $0x510] sm:$0xf]
  %v480 = vld [vmem:[%s1 + $0x514] sm:$0xf]
  %v481 = vld [vmem:[%s1 + $0x518] sm:$0xf]
  %v482 = vld [vmem:[%s1 + $0x51c] sm:$0xf]
  %v483 = vld [vmem:[%s1 + $0x520] sm:$0xf]
  %v484 = vld [vmem:[%s1 + $0x524] sm:$0xf]
  %v485 = vld [vmem:[%s1 + $0x528] sm:$0xf]
  %v486 = vld [vmem:[%s1 + $0x52c] sm:$0xf]
  %v487 = vld [vmem:[%s1 + $0x530] sm:$0xf]
  %v488 = vld [vmem:[%s1 + $0x534] sm:$0xf]
  %v489 = vld [vmem:[%s1 + $0x538] sm:$0xf]
  %v490 = vld [vmem:[%s1 + $0x53c] sm:$0xf]
  %v491 = vld [vmem:[%s1 + $0x540] sm:$0xf]
  %v492 = vld [vmem:[%s1 + $0x544] sm:$0xf]
  %v493 = vld [vmem:[%s1 + $0x548] sm:$0xf]
  %v494 = vld [vmem:[%s1 + $0x54c] sm:$0xf]
  %v495 = vld [vmem:[%s1 + $0x550] sm:$0xf]
  %v496 = vld [vmem:[%s1 + $0x554] sm:$0xf]
  %v497 = vld [vmem:[%s1 + $0x558] sm:$0xf]
  %v498 = vld [vmem:[%s1 + $0x55c] sm:$0xf]
  %v499 = vld [vmem:[%s1 + $0x560] sm:$0xf]
  %v500 = vld [vmem:[%s1 + $0x564] sm:$0xf]
  %v501 = vld [vmem:[%s1 + $0x568] sm:$0xf]
  %v502 = vld [vmem:[%s1 + $0x56c] sm:$0xf]
  %v503 = vld [vmem:[%s1 + $0x570] sm:$0xf]
  %v504 = vld [vmem:[%s1 + $0x574] sm:$0xf]
  %v505 = vld [vmem:[%s1 + $0x578] sm:$0xf]
  %v506 = vld [vmem:[%s1 + $0x57c] sm:$0xf]
  %v507 = vld [vmem:[%s1 + $0x580] sm:$0xf]
  %v508 = vld [vmem:[%s1 + $0x584] sm:$0xf]
  %v509 = vld [vmem:[%s1 + $0x588] sm:$0xf]
  %v510 = vld [vmem:[%s1 + $0x58c] sm:$0xf]
  %v511 = vld [vmem:[%s1 + $0x590] sm:$0xf]
  %v512 = vld [vmem:[%s1 + $0x594] sm:$0xf]
  %v513 = vld [vmem:[%s1 + $0x598] sm:$0xf]
  %v514 = vld [vmem:[%s1 + $0x59c] sm:$0xf]
  %v515 = vld [vmem:[%s1 + $0x5a0] sm:$0xf]
  %v516 = vld [vmem:[%s1 + $0x5a4] sm:$0xf]
  %v517 = vld [vmem:[%s1 + $0x5a8] sm:$0xf]
  %v518 = vld [vmem:[%s1 + $0x5ac] sm:$0xf]
  %v519 = vld [vmem:[%s1 + $0x5b0] sm:$0xf]
  %v520 = vld [vmem:[%s1 + $0x5b4] sm:$0xf]
  %v521 = vld [vmem:[%s1 + $0x5b8] sm:$0xf]
  %v522 = vld [vmem:[%s1 + $0x5bc] sm:$0xf]
  %v523 = vld [vmem:[%s1 + $0x5c0] sm:$0xf]
  %v524 = vld [vmem:[%s1 + $0x5c4] sm:$0xf]
  %v525 = vld [vmem:[%s1 + $0x5c8] sm:$0xf]
  %v526 = vld [vmem:[%s1 + $0x5cc] sm:$0xf]
  %v527 = vld [vmem:[%s1 + $0x5d0] sm:$0xf]
  %v528 = vld [vmem:[%s1 + $0x5d4] sm:$0xf]
  %v529 = vld [vmem:[%s1 + $0x5d8] sm:$0xf]
  %v530 = vld [vmem:[%s1 + $0x5dc] sm:$0xf]
  %v531 = vld [vmem:[%s1 + $0x5e0] sm:$0xf]
  %v532 = vld [vmem:[%s1 + $0x5e4] sm:$0xf]
  %v533 = vld [vmem:[%s1 + $0x5e8] sm:$0xf]
  %v534 = vld [vmem:[%s1 + $0x5ec] sm:$0xf]
  %v535 = vld [vmem:[%s1 + $0x5f0] sm:$0xf]
  %v536 = vld [vmem:[%s1 + $0x5f4] sm:$0xf]
  %v537 = vld [vmem:[%s1 + $0x5f8] sm:$0xf]
  %v538 = vld [vmem:[%s1 + $0x5fc] sm:$0xf]
  %v539 = vld [vmem:[%s1 + $0x600] sm:$0xf]
  %v540 = vld [vmem:[%s1 + $0x604] sm:$0xf]
  %v541 = vld [vmem:[%s1 + $0x608] sm:$0xf]
  %v542 = vld [vmem:[%s1 + $0x60c] sm:$0xf]
  %v543 = vld [vmem:[%s1 + $0x610] sm:$0xf]
  %v544 = vld [vmem:[%s1 + $0x614] sm:$0xf]
  %v545 = vld [vmem:[%s1 + $0x618] sm:$0xf]
  %v546 = vld [vmem:[%s1 + $0x61c] sm:$0xf]
  %v547 = vld [vmem:[%s1 + $0x620] sm:$0xf]
  %v548 = vld [vmem:[%s1 + $0x624] sm:$0xf]
  %v549 = vld [vmem:[%s1 + $0x628] sm:$0xf]
  %v550 = vld [vmem:[%s1 + $0x62c] sm:$0xf]
  %v551 = vld [vmem:[%s1 + $0x630] sm:$0xf]
  %v552 = vld [vmem:[%s1 + $0x634] sm:$0xf]
  %v553 = vld [vmem:[%s1 + $0x638] sm:$0xf]
  %v554 = vld [vmem:[%s1 + $0x63c] sm:$0xf]
  %v555 = vld [vmem:[%s1 + $0x640] sm:$0xf]
  %v556 = vld [vmem:[%s1 + $0x644] sm:$0xf]
  %v557 = vld [vmem:[%s1 + $0x648] sm:$0xf]
  %v558 = vld [vmem:[%s1 + $0x64c] sm:$0xf]
  %v559 = vld [vmem:[%s1 + $0x650] sm:$0xf]
  %v560 = vld [vmem:[%s1 + $0x654] sm:$0xf]
  %v561 = vld [vmem:[%s1 + $0x658] sm:$0xf]
  %v562 = vld [vmem:[%s1 + $0x65c] sm:$0xf]
  %v563 = vld [vmem:[%s1 + $0x660] sm:$0xf]
  %v564 = vld [vmem:[%s1 + $0x664] sm:$0xf]
  %v565 = vld [vmem:[%s1 + $0x668] sm:$0xf]
  %v566 = vld [vmem:[%s1 + $0x66c] sm:$0xf]
  %v567 = vld [vmem:[%s1 + $0x670] sm:$0xf]
  %v568 = vld [vmem:[%s1 + $0x674] sm:$0xf]
  %v569 = vld [vmem:[%s1 + $0x678] sm:$0xf]
  %v570 = vld [vmem:[%s1 + $0x67c] sm:$0xf]
  %v571 = vld [vmem:[%s1 + $0x680] sm:$0xf]
  %v572 = vld [vmem:[%s1 + $0x684] sm:$0xf]
  %v573 = vld [vmem:[%s1 + $0x688] sm:$0xf]
  %v574 = vld [vmem:[%s1 + $0x68c] sm:$0xf]
  %v575 = vld [vmem:[%s1 + $0x690] sm:$0xf]
  %v576 = vld [vmem:[%s1 + $0x694] sm:$0xf]
  %v577 = vld [vmem:[%s1 + $0x698] sm:$0xf]
  %v578 = vld [vmem:[%s1 + $0x69c] sm:$0xf]
  %v579 = vld [vmem:[%s1 + $0x6a0] sm:$0xf]
  %v580 = vld [vmem:[%s1 + $0x6a4] sm:$0xf]
  %v581 = vld [vmem:[%s1 + $0x6a8] sm:$0xf]
  %v582 = vld [vmem:[%s1 + $0x6ac] sm:$0xf]
  %v583 = vld [vmem:[%s1 + $0x6b0] sm:$0xf]
  %v584 = vld [vmem:[%s1 + $0x6b4] sm:$0xf]
  %v585 = vld [vmem:[%s1 + $0x6b8] sm:$0xf]
  %v586 = vld [vmem:[%s1 + $0x6bc] sm:$0xf]
  %v587 = vld [vmem:[%s1 + $0x6c0] sm:$0xf]
  %v588 = vld [vmem:[%s1 + $0x6c4] sm:$0xf]
  %v589 = vld [vmem:[%s1 + $0x6c8] sm:$0xf]
  %v590 = vld [vmem:[%s1 + $0x6cc] sm:$0xf]
  %v591 = vld [vmem:[%s1 + $0x6d0] sm:$0xf]
  %v592 = vld [vmem:[%s1 + $0x6d4] sm:$0xf]
  %v593 = vld [vmem:[%s1 + $0x6d8] sm:$0xf]
  %v594 = vld [vmem:[%s1 + $0x6dc] sm:$0xf]
  %v595 = vld [vmem:[%s1 + $0x6e0] sm:$0xf]
  %v596 = vld [vmem:[%s1 + $0x6e4] sm:$0xf]
  %v597 = vld [vmem:[%s1 + $0x6e8] sm:$0xf]
  %v598 = vld [vmem:[%s1 + $0x6ec] sm:$0xf]
  %v599 = vld [vmem:[%s1 + $0x6f0] sm:$0xf]
  %v600 = vld [vmem:[%s1 + $0x6f4] sm:$0xf]
  %v601 = vld [vmem:[%s1 + $0x6f8] sm:$0xf]
  %v602 = vld [vmem:[%s1 + $0x6fc] sm:$0xf]
  %v603 = vld [vmem:[%s1 + $0x700] sm:$0xf]
  %v604 = vld [vmem:[%s1 + $0x704] sm:$0xf]
  %v605 = vld [vmem:[%s1 + $0x708] sm:$0xf]
  %v606 = vld [vmem:[%s1 + $0x70c] sm:$0xf]
  %v607 = vld [vmem:[%s1 + $0x710] sm:$0xf]
  %v608 = vld [vmem:[%s1 + $0x714] sm:$0xf]
  %v609 = vld [vmem:[%s1 + $0x718] sm:$0xf]
  %v610 = vld [vmem:[%s1 + $0x71c] sm:$0xf]
  %v611 = vld [vmem:[%s1 + $0x720] sm:$0xf]
  %v612 = vld [vmem:[%s1 + $0x724] sm:$0xf]
  %v613 = vld [vmem:[%s1 + $0x728] sm:$0xf]
  %v614 = vld [vmem:[%s1 + $0x72c] sm:$0xf]
  %v615 = vld [vmem:[%s1 + $0x730] sm:$0xf]
  %v616 = vld [vmem:[%s1 + $0x734] sm:$0xf]
  %v617 = vld [vmem:[%s1 + $0x738] sm:$0xf]
  %v618 = vld [vmem:[%s1 + $0x73c] sm:$0xf]
  %v619 = vld [vmem:[%s1 + $0x740] sm:$0xf]
  %v620 = vld [vmem:[%s1 + $0x744] sm:$0xf]
  %v621 = vld [vmem:[%s1 + $0x748] sm:$0xf]
  %v622 = vld [vmem:[%s1 + $0x74c] sm:$0xf]
  %v623 = vld [vmem:[%s1 + $0x750] sm:$0xf]
  %v624 = vld [vmem:[%s1 + $0x754] sm:$0xf]
  %v625 = vld [vmem:[%s1 + $0x758] sm:$0xf]
  %v626 = vld [vmem:[%s1 + $0x75c] sm:$0xf]
  %v627 = vld [vmem:[%s1 + $0x760] sm:$0xf]
  %v628 = vld [vmem:[%s1 + $0x764] sm:$0xf]
  %v629 = vld [vmem:[%s1 + $0x768] sm:$0xf]
  %v630 = vld [vmem:[%s1 + $0x76c] sm:$0xf]
  %v631 = vld [vmem:[%s1 + $0x770] sm:$0xf]
  %v632 = vld [vmem:[%s1 + $0x774] sm:$0xf]
  %v633 = vld [vmem:[%s1 + $0x778] sm:$0xf]
  %v634 = vld [vmem:[%s1 + $0x77c] sm:$0xf]
  %v635 = vld [vmem:[%s1 + $0x780] sm:$0xf]
  %v636 = vld [vmem:[%s1 + $0x784] sm:$0xf]
  %v637 = vld [vmem:[%s1 + $0x788] sm:$0xf]
  %v638 = vld [vmem:[%s1 + $0x78c] sm:$0xf]
  %v639 = vld [vmem:[%s1 + $0x790] sm:$0xf]
  %v640 = vld [vmem:[%s1 + $0x794] sm:$0xf]
  %v641 = vld [vmem:[%s1 + $0x798] sm:$0xf]
  %v642 = vld [vmem:[%s1 + $0x79c] sm:$0xf]
  %v643 = vld [vmem:[%s1 + $0x7a0] sm:$0xf]
  %v644 = vld [vmem:[%s1 + $0x7a4] sm:$0xf]
  %v645 = vld [vmem:[%s1 + $0x7a8] sm:$0xf]
  %v646 = vld [vmem:[%s1 + $0x7ac] sm:$0xf]
  %v647 = vld [vmem:[%s1 + $0x7b0] sm:$0xf]
  %v648 = vld [vmem:[%s1 + $0x7b4] sm:$0xf]
  %v649 = vld [vmem:[%s1 + $0x7b8] sm:$0xf]
  %v650 = vld [vmem:[%s1 + $0x7bc] sm:$0xf]
  %v651 = vld [vmem:[%s1 + $0x7c0] sm:$0xf]
  %v652 = vld [vmem:[%s1 + $0x7c4] sm:$0xf]
  %v653 = vld [vmem:[%s1 + $0x7c8] sm:$0xf]
  %v654 = vld [vmem:[%s1 + $0x7cc] sm:$0xf]
  %v655 = vld [vmem:[%s1 + $0x7d0] sm:$0xf]
  %v656 = vld [vmem:[%s1 + $0x7d4] sm:$0xf]
  %v657 = vld [vmem:[%s1 + $0x7d8] sm:$0xf]
  %v658 = vld [vmem:[%s1 + $0x7dc] sm:$0xf]
  %v659 = vld [vmem:[%s1 + $0x7e0] sm:$0xf]
  %v660 = vld [vmem:[%s1 + $0x7e4] sm:$0xf]
  %v661 = vld [vmem:[%s1 + $0x7e8] sm:$0xf]
  %v662 = vld [vmem:[%s1 + $0x7ec] sm:$0xf]
  %v663 = vld [vmem:[%s1 + $0x7f0] sm:$0xf]
  %v664 = vld [vmem:[%s1 + $0x7f4] sm:$0xf]
  %v665 = vld [vmem:[%s1 + $0x7f8] sm:$0xf]
  %v666 = vld [vmem:[%s1 + $0x7fc] sm:$0xf]
  %v811 = vunpack.c.l.b16 %v11
  %v812 = vunpack.c.h.b16 %v11
  %v813 = vunpack.c.l.b16 %v12
  %v814 = vunpack.c.h.b16 %v12
  %v815 = vunpack.c.l.b16 %v13
  %v816 = vunpack.c.h.b16 %v13
  %v817 = vunpack.c.l.b16 %v14
  %v818 = vunpack.c.h.b16 %v14
  %v819 = vunpack.c.l.b16 %v15
  %v820 = vunpack.c.h.b16 %v15
  %v821 = vunpack.c.l.b16 %v16
  %v822 = vunpack.c.h.b16 %v16
  %v823 = vunpack.c.l.b16 %v17
  %v824 = vunpack.c.h.b16 %v17
  %v825 = vunpack.c.l.b16 %v18
  %v826 = vunpack.c.h.b16 %v18
  %v827 = vunpack.c.l.b16 %v19
  %v828 = vunpack.c.h.b16 %v19
  %v829 = vunpack.c.l.b16 %v20
  %v830 = vunpack.c.h.b16 %v20
  %v831 = vunpack.c.l.b16 %v21
  %v832 = vunpack.c.h.b16 %v21
  %v833 = vunpack.c.l.b16 %v22
  %v834 = vunpack.c.h.b16 %v22
  %v835 = vunpack.c.l.b16 %v23
  %v836 = vunpack.c.h.b16 %v23
  %v837 = vunpack.c.l.b16 %v24
  %v838 = vunpack.c.h.b16 %v24
  %v839 = vunpack.c.l.b16 %v25
  %v840 = vunpack.c.h.b16 %v25
  %v841 = vunpack.c.l.b16 %v26
  %v842 = vunpack.c.h.b16 %v26
  %v843 = vunpack.c.l.b16 %v27
  %v844 = vunpack.c.h.b16 %v27
  %v845 = vunpack.c.l.b16 %v28
  %v846 = vunpack.c.h.b16 %v28
  %v847 = vunpack.c.l.b16 %v29
  %v848 = vunpack.c.h.b16 %v29
  %v849 = vunpack.c.l.b16 %v30
  %v850 = vunpack.c.h.b16 %v30
  %v851 = vunpack.c.l.b16 %v31
  %v852 = vunpack.c.h.b16 %v31
  %v853 = vunpack.c.l.b16 %v32
  %v854 = vunpack.c.h.b16 %v32
  %v855 = vunpack.c.l.b16 %v33
  %v856 = vunpack.c.h.b16 %v33
  %v857 = vunpack.c.l.b16 %v34
  %v858 = vunpack.c.h.b16 %v34
  %v859 = vunpack.c.l.b16 %v35
  %v860 = vunpack.c.h.b16 %v35
  %v861 = vunpack.c.l.b16 %v36
  %v862 = vunpack.c.h.b16 %v36
  %v863 = vunpack.c.l.b16 %v37
  %v864 = vunpack.c.h.b16 %v37
  %v865 = vunpack.c.l.b16 %v38
  %v866 = vunpack.c.h.b16 %v38
  %v867 = vunpack.c.l.b16 %v39
  %v868 = vunpack.c.h.b16 %v39
  %v869 = vunpack.c.l.b16 %v40
  %v870 = vunpack.c.h.b16 %v40
  %v871 = vunpack.c.l.b16 %v41
  %v872 = vunpack.c.h.b16 %v41
  %v873 = vunpack.c.l.b16 %v42
  %v874 = vunpack.c.h.b16 %v42
  %v875 = vunpack.c.l.b16 %v43
  %v876 = vunpack.c.h.b16 %v43
  %v877 = vunpack.c.l.b16 %v44
  %v878 = vunpack.c.h.b16 %v44
  %v879 = vunpack.c.l.b16 %v45
  %v880 = vunpack.c.h.b16 %v45
  %v881 = vunpack.c.l.b16 %v46
  %v882 = vunpack.c.h.b16 %v46
  %v883 = vunpack.c.l.b16 %v47
  %v884 = vunpack.c.h.b16 %v47
  %v885 = vunpack.c.l.b16 %v48
  %v886 = vunpack.c.h.b16 %v48
  %v887 = vunpack.c.l.b16 %v49
  %v888 = vunpack.c.h.b16 %v49
  %v889 = vunpack.c.l.b16 %v50
  %v890 = vunpack.c.h.b16 %v50
  %v891 = vunpack.c.l.b16 %v51
  %v892 = vunpack.c.h.b16 %v51
  %v893 = vunpack.c.l.b16 %v52
  %v894 = vunpack.c.h.b16 %v52
  %v895 = vunpack.c.l.b16 %v53
  %v896 = vunpack.c.h.b16 %v53
  %v897 = vunpack.c.l.b16 %v54
  %v898 = vunpack.c.h.b16 %v54
  %v899 = vunpack.c.l.b16 %v55
  %v900 = vunpack.c.h.b16 %v55
  %v901 = vunpack.c.l.b16 %v56
  %v902 = vunpack.c.h.b16 %v56
  %v903 = vunpack.c.l.b16 %v57
  %v904 = vunpack.c.h.b16 %v57
  %v905 = vunpack.c.l.b16 %v58
  %v906 = vunpack.c.h.b16 %v58
  %v907 = vunpack.c.l.b16 %v59
  %v908 = vunpack.c.h.b16 %v59
  %v909 = vunpack.c.l.b16 %v60
  %v910 = vunpack.c.h.b16 %v60
  %v911 = vunpack.c.l.b16 %v61
  %v912 = vunpack.c.h.b16 %v61
  %v913 = vunpack.c.l.b16 %v62
  %v914 = vunpack.c.h.b16 %v62
  %v915 = vunpack.c.l.b16 %v63
  %v916 = vunpack.c.h.b16 %v63
  %v917 = vunpack.c.l.b16 %v64
  %v918 = vunpack.c.h.b16 %v64
  %v919 = vunpack.c.l.b16 %v65
  %v920 = vunpack.c.h.b16 %v65
  %v921 = vunpack.c.l.b16 %v66
  %v922 = vunpack.c.h.b16 %v66
  %v923 = vunpack.c.l.b16 %v67
  %v924 = vunpack.c.h.b16 %v67
  %v925 = vunpack.c.l.b16 %v68
  %v926 = vunpack.c.h.b16 %v68
  %v927 = vunpack.c.l.b16 %v69
  %v928 = vunpack.c.h.b16 %v69
  %v929 = vunpack.c.l.b16 %v70
  %v930 = vunpack.c.h.b16 %v70
  %v931 = vunpack.c.l.b16 %v71
  %v932 = vunpack.c.h.b16 %v71
  %v933 = vunpack.c.l.b16 %v72
  %v934 = vunpack.c.h.b16 %v72
  %v935 = vunpack.c.l.b16 %v73
  %v936 = vunpack.c.h.b16 %v73
  %v937 = vunpack.c.l.b16 %v74
  %v938 = vunpack.c.h.b16 %v74
  %v939 = vunpack.c.l.b16 %v75
  %v940 = vunpack.c.h.b16 %v75
  %v941 = vunpack.c.l.b16 %v76
  %v942 = vunpack.c.h.b16 %v76
  %v943 = vunpack.c.l.b16 %v77
  %v944 = vunpack.c.h.b16 %v77
  %v945 = vunpack.c.l.b16 %v78
  %v946 = vunpack.c.h.b16 %v78
  %v947 = vunpack.c.l.b16 %v79
  %v948 = vunpack.c.h.b16 %v79
  %v949 = vunpack.c.l.b16 %v80
  %v950 = vunpack.c.h.b16 %v80
  %v951 = vunpack.c.l.b16 %v81
  %v952 = vunpack.c.h.b16 %v81
  %v953 = vunpack.c.l.b16 %v82
  %v954 = vunpack.c.h.b16 %v82
  %v955 = vunpack.c.l.b16 %v83
  %v956 = vunpack.c.h.b16 %v83
  %v957 = vunpack.c.l.b16 %v84
  %v958 = vunpack.c.h.b16 %v84
  %v959 = vunpack.c.l.b16 %v85
  %v960 = vunpack.c.h.b16 %v85
  %v961 = vunpack.c.l.b16 %v86
  %v962 = vunpack.c.h.b16 %v86
  %v963 = vunpack.c.l.b16 %v87
  %v964 = vunpack.c.h.b16 %v87
  %v965 = vunpack.c.l.b16 %v88
  %v966 = vunpack.c.h.b16 %v88
  %v967 = vunpack.c.l.b16 %v89
  %v968 = vunpack.c.h.b16 %v89
  %v969 = vunpack.c.l.b16 %v90
  %v970 = vunpack.c.h.b16 %v90
  %v971 = vunpack.c.l.b16 %v91
  %v972 = vunpack.c.h.b16 %v91
  %v973 = vunpack.c.l.b16 %v92
  %v974 = vunpack.c.h.b16 %v92
  %v975 = vunpack.c.l.b16 %v93
  %v976 = vunpack.c.h.b16 %v93
  %v977 = vunpack.c.l.b16 %v94
  %v978 = vunpack.c.h.b16 %v94
  %v979 = vunpack.c.l.b16 %v95
  %v980 = vunpack.c.h.b16 %v95
  %v981 = vunpack.c.l.b16 %v96
  %v982 = vunpack.c.h.b16 %v96
  %v983 = vunpack.c.l.b16 %v97
  %v984 = vunpack.c.h.b16 %v97
  %v985 = vunpack.c.l.b16 %v98
  %v986 = vunpack.c.h.b16 %v98
  %v987 = vunpack.c.l.b16 %v99
  %v988 = vunpack.c.h.b16 %v99
  %v989 = vunpack.c.l.b16 %v100
  %v990 = vunpack.c.h.b16 %v100
  %v991 = vunpack.c.l.b16 %v101
  %v992 = vunpack.c.h.b16 %v101
  %v993 = vunpack.c.l.b16 %v102
  %v994 = vunpack.c.h.b16 %v102
  %v995 = vunpack.c.l.b16 %v103
  %v996 = vunpack.c.h.b16 %v103
  %v997 = vunpack.c.l.b16 %v104
  %v998 = vunpack.c.h.b16 %v104
  %v999 = vunpack.c.l.b16 %v105
  %v1000 = vunpack.c.h.b16 %v105
  %v1001 = vunpack.c.l.b16 %v106
  %v1002 = vunpack.c.h.b16 %v106
  %v1003 = vunpack.c.l.b16 %v107
  %v1004 = vunpack.c.h.b16 %v107
  %v1005 = vunpack.c.l.b16 %v108
  %v1006 = vunpack.c.h.b16 %v108
  %v1007 = vunpack.c.l.b16 %v109
  %v1008 = vunpack.c.h.b16 %v109
  %v1009 = vunpack.c.l.b16 %v110
  %v1010 = vunpack.c.h.b16 %v110
  %v1011 = vunpack.c.l.b16 %v111
  %v1012 = vunpack.c.h.b16 %v111
  %v1013 = vunpack.c.l.b16 %v112
  %v1014 = vunpack.c.h.b16 %v112
  %v1015 = vunpack.c.l.b16 %v113
  %v1016 = vunpack.c.h.b16 %v113
  %v1017 = vunpack.c.l.b16 %v114
  %v1018 = vunpack.c.h.b16 %v114
  %v1019 = vunpack.c.l.b16 %v115
  %v1020 = vunpack.c.h.b16 %v115
  %v1021 = vunpack.c.l.b16 %v116
  %v1022 = vunpack.c.h.b16 %v116
  %v1023 = vunpack.c.l.b16 %v117
  %v1024 = vunpack.c.h.b16 %v117
  %v1025 = vunpack.c.l.b16 %v118
  %v1026 = vunpack.c.h.b16 %v118
  %v1027 = vunpack.c.l.b16 %v119
  %v1028 = vunpack.c.h.b16 %v119
  %v1029 = vunpack.c.l.b16 %v120
  %v1030 = vunpack.c.h.b16 %v120
  %v1031 = vunpack.c.l.b16 %v121
  %v1032 = vunpack.c.h.b16 %v121
  %v1033 = vunpack.c.l.b16 %v122
  %v1034 = vunpack.c.h.b16 %v122
  %v1035 = vunpack.c.l.b16 %v123
  %v1036 = vunpack.c.h.b16 %v123
  %v1037 = vunpack.c.l.b16 %v124
  %v1038 = vunpack.c.h.b16 %v124
  %v1039 = vunpack.c.l.b16 %v125
  %v1040 = vunpack.c.h.b16 %v125
  %v1041 = vunpack.c.l.b16 %v126
  %v1042 = vunpack.c.h.b16 %v126
  %v1043 = vunpack.c.l.b16 %v127
  %v1044 = vunpack.c.h.b16 %v127
  %v1045 = vunpack.c.l.b16 %v128
  %v1046 = vunpack.c.h.b16 %v128
  %v1047 = vunpack.c.l.b16 %v129
  %v1048 = vunpack.c.h.b16 %v129
  %v1049 = vunpack.c.l.b16 %v130
  %v1050 = vunpack.c.h.b16 %v130
  %v1051 = vunpack.c.l.b16 %v131
  %v1052 = vunpack.c.h.b16 %v131
  %v1053 = vunpack.c.l.b16 %v132
  %v1054 = vunpack.c.h.b16 %v132
  %v1055 = vunpack.c.l.b16 %v133
  %v1056 = vunpack.c.h.b16 %v133
  %v1057 = vunpack.c.l.b16 %v134
  %v1058 = vunpack.c.h.b16 %v134
  %v1059 = vunpack.c.l.b16 %v135
  %v1060 = vunpack.c.h.b16 %v135
  %v1061 = vunpack.c.l.b16 %v136
  %v1062 = vunpack.c.h.b16 %v136
  %v1063 = vunpack.c.l.b16 %v137
  %v1064 = vunpack.c.h.b16 %v137
  %v1065 = vunpack.c.l.b16 %v138
  %v1066 = vunpack.c.h.b16 %v138
  %v1067 = vunpack.c.l.b16 %v139
  %v1068 = vunpack.c.h.b16 %v139
  %v1069 = vunpack.c.l.b16 %v140
  %v1070 = vunpack.c.h.b16 %v140
  %v1071 = vunpack.c.l.b16 %v141
  %v1072 = vunpack.c.h.b16 %v141
  %v1073 = vunpack.c.l.b16 %v142
  %v1074 = vunpack.c.h.b16 %v142
  %v1075 = vunpack.c.l.b16 %v143
  %v1076 = vunpack.c.h.b16 %v143
  %v1077 = vunpack.c.l.b16 %v144
  %v1078 = vunpack.c.h.b16 %v144
  %v1079 = vunpack.c.l.b16 %v145
  %v1080 = vunpack.c.h.b16 %v145
  %v1081 = vunpack.c.l.b16 %v146
  %v1082 = vunpack.c.h.b16 %v146
  %v1083 = vunpack.c.l.b16 %v147
  %v1084 = vunpack.c.h.b16 %v147
  %v1085 = vunpack.c.l.b16 %v148
  %v1086 = vunpack.c.h.b16 %v148
  %v1087 = vunpack.c.l.b16 %v149
  %v1088 = vunpack.c.h.b16 %v149
  %v1089 = vunpack.c.l.b16 %v150
  %v1090 = vunpack.c.h.b16 %v150
  %v1091 = vunpack.c.l.b16 %v151
  %v1092 = vunpack.c.h.b16 %v151
  %v1093 = vunpack.c.l.b16 %v152
  %v1094 = vunpack.c.h.b16 %v152
  %v1095 = vunpack.c.l.b16 %v153
  %v1096 = vunpack.c.h.b16 %v153
  %v1097 = vunpack.c.l.b16 %v154
  %v1098 = vunpack.c.h.b16 %v154
  %v1099 = vpack.c.b16 %v843, %v811
  %v1100 = vpack.c.b16 %v844, %v812
  %v1101 = vpack.c.b16 %v845, %v813
  %v1102 = vpack.c.b16 %v846, %v814
  %v1103 = vpack.c.b16 %v847, %v815
  %v1104 = vpack.c.b16 %v848, %v816
  %v1105 = vpack.c.b16 %v849, %v817
  %v1106 = vpack.c.b16 %v850, %v818
  %v1107 = vpack.c.b16 %v851, %v819
  %v1108 = vpack.c.b16 %v852, %v820
  %v1109 = vpack.c.b16 %v853, %v821
  %v1110 = vpack.c.b16 %v854, %v822
  %v1111 = vpack.c.b16 %v855, %v823
  %v1112 = vpack.c.b16 %v856, %v824
  %v1113 = vpack.c.b16 %v857, %v825
  %v1114 = vpack.c.b16 %v858, %v826
  %v1115 = vpack.c.b16 %v859, %v827
  %v1116 = vpack.c.b16 %v860, %v828
  %v1117 = vpack.c.b16 %v861, %v829
  %v1118 = vpack.c.b16 %v862, %v830
  %v1119 = vpack.c.b16 %v863, %v831
  %v1120 = vpack.c.b16 %v864, %v832
  %v1121 = vpack.c.b16 %v865, %v833
  %v1122 = vpack.c.b16 %v866, %v834
  %v1123 = vpack.c.b16 %v867, %v835
  %v1124 = vpack.c.b16 %v868, %v836
  %v1125 = vpack.c.b16 %v869, %v837
  %v1126 = vpack.c.b16 %v870, %v838
  %v1127 = vpack.c.b16 %v871, %v839
  %v1128 = vpack.c.b16 %v872, %v840
  %v1129 = vpack.c.b16 %v873, %v841
  %v1130 = vpack.c.b16 %v874, %v842
  %v1131 = vpack.c.b16 %v907, %v875
  %v1132 = vpack.c.b16 %v908, %v876
  %v1133 = vpack.c.b16 %v909, %v877
  %v1134 = vpack.c.b16 %v910, %v878
  %v1135 = vpack.c.b16 %v911, %v879
  %v1136 = vpack.c.b16 %v912, %v880
  %v1137 = vpack.c.b16 %v913, %v881
  %v1138 = vpack.c.b16 %v914, %v882
  %v1139 = vpack.c.b16 %v915, %v883
  %v1140 = vpack.c.b16 %v916, %v884
  %v1141 = vpack.c.b16 %v917, %v885
  %v1142 = vpack.c.b16 %v918, %v886
  %v1143 = vpack.c.b16 %v919, %v887
  %v1144 = vpack.c.b16 %v920, %v888
  %v1145 = vpack.c.b16 %v921, %v889
  %v1146 = vpack.c.b16 %v922, %v890
  %v1147 = vpack.c.b16 %v923, %v891
  %v1148 = vpack.c.b16 %v924, %v892
  %v1149 = vpack.c.b16 %v925, %v893
  %v1150 = vpack.c.b16 %v926, %v894
  %v1151 = vpack.c.b16 %v927, %v895
  %v1152 = vpack.c.b16 %v928, %v896
  %v1153 = vpack.c.b16 %v929, %v897
  %v1154 = vpack.c.b16 %v930, %v898
  %v1155 = vpack.c.b16 %v931, %v899
  %v1156 = vpack.c.b16 %v932, %v900
  %v1157 = vpack.c.b16 %v933, %v901
  %v1158 = vpack.c.b16 %v934, %v902
  %v1159 = vpack.c.b16 %v935, %v903
  %v1160 = vpack.c.b16 %v936, %v904
  %v1161 = vpack.c.b16 %v937, %v905
  %v1162 = vpack.c.b16 %v938, %v906
  %v1163 = vpack.c.b16 %v971, %v939
  %v1164 = vpack.c.b16 %v972, %v940
  %v1165 = vpack.c.b16 %v973, %v941
  %v1166 = vpack.c.b16 %v974, %v942
  %v1167 = vpack.c.b16 %v975, %v943
  %v1168 = vpack.c.b16 %v976, %v944
  %v1169 = vpack.c.b16 %v977, %v945
  %v1170 = vpack.c.b16 %v978, %v946
  %v1171 = vpack.c.b16 %v979, %v947
  %v1172 = vpack.c.b16 %v980, %v948
  %v1173 = vpack.c.b16 %v981, %v949
  %v1174 = vpack.c.b16 %v982, %v950
  %v1175 = vpack.c.b16 %v983, %v951
  %v1176 = vpack.c.b16 %v984, %v952
  %v1177 = vpack.c.b16 %v985, %v953
  %v1178 = vpack.c.b16 %v986, %v954
  %v1179 = vpack.c.b16 %v987, %v955
  %v1180 = vpack.c.b16 %v988, %v956
  %v1181 = vpack.c.b16 %v989, %v957
  %v1182 = vpack.c.b16 %v990, %v958
  %v1183 = vpack.c.b16 %v991, %v959
  %v1184 = vpack.c.b16 %v992, %v960
  %v1185 = vpack.c.b16 %v993, %v961
  %v1186 = vpack.c.b16 %v994, %v962
  %v1187 = vpack.c.b16 %v995, %v963
  %v1188 = vpack.c.b16 %v996, %v964
  %v1189 = vpack.c.b16 %v997, %v965
  %v1190 = vpack.c.b16 %v998, %v966
  %v1191 = vpack.c.b16 %v999, %v967
  %v1192 = vpack.c.b16 %v1000, %v968
  %v1193 = vpack.c.b16 %v1001, %v969
  %v1194 = vpack.c.b16 %v1002, %v970
  %v1195 = vpack.c.b16 %v1035, %v1003
  %v1196 = vpack.c.b16 %v1036, %v1004
  %v1197 = vpack.c.b16 %v1037, %v1005
  %v1198 = vpack.c.b16 %v1038, %v1006
  %v1199 = vpack.c.b16 %v1039, %v1007
  %v1200 = vpack.c.b16 %v1040, %v1008
  %v1201 = vpack.c.b16 %v1041, %v1009
  %v1202 = vpack.c.b16 %v1042, %v1010
  %v1203 = vpack.c.b16 %v1043, %v1011
  %v1204 = vpack.c.b16 %v1044, %v1012
  %v1205 = vpack.c.b16 %v1045, %v1013
  %v1206 = vpack.c.b16 %v1046, %v1014
  %v1207 = vpack.c.b16 %v1047, %v1015
  %v1208 = vpack.c.b16 %v1048, %v1016
  %v1209 = vpack.c.b16 %v1049, %v1017
  %v1210 = vpack.c.b16 %v1050, %v1018
  %v1211 = vpack.c.b16 %v1051, %v1019
  %v1212 = vpack.c.b16 %v1052, %v1020
  %v1213 = vpack.c.b16 %v1053, %v1021
  %v1214 = vpack.c.b16 %v1054, %v1022
  %v1215 = vpack.c.b16 %v1055, %v1023
  %v1216 = vpack.c.b16 %v1056, %v1024
  %v1217 = vpack.c.b16 %v1057, %v1025
  %v1218 = vpack.c.b16 %v1058, %v1026
  %v1219 = vpack.c.b16 %v1059, %v1027
  %v1220 = vpack.c.b16 %v1060, %v1028
  %v1221 = vpack.c.b16 %v1061, %v1029
  %v1222 = vpack.c.b16 %v1062, %v1030
  %v1223 = vpack.c.b16 %v1063, %v1031
  %v1224 = vpack.c.b16 %v1064, %v1032
  %v1225 = vpack.c.b16 %v1065, %v1033
  %v1226 = vpack.c.b16 %v1066, %v1034
  %v1227 = vpack.c.b16 %v1067, %v1067
  %v1228 = vpack.c.b16 %v1068, %v1068
  %v1229 = vpack.c.b16 %v1069, %v1069
  %v1230 = vpack.c.b16 %v1070, %v1070
  %v1231 = vpack.c.b16 %v1071, %v1071
  %v1232 = vpack.c.b16 %v1072, %v1072
  %v1233 = vpack.c.b16 %v1073, %v1073
  %v1234 = vpack.c.b16 %v1074, %v1074
  %v1235 = vpack.c.b16 %v1075, %v1075
  %v1236 = vpack.c.b16 %v1076, %v1076
  %v1237 = vpack.c.b16 %v1077, %v1077
  %v1238 = vpack.c.b16 %v1078, %v1078
  %v1239 = vpack.c.b16 %v1079, %v1079
  %v1240 = vpack.c.b16 %v1080, %v1080
  %v1241 = vpack.c.b16 %v1081, %v1081
  %v1242 = vpack.c.b16 %v1082, %v1082
  %v1243 = vpack.c.b16 %v1083, %v1083
  %v1244 = vpack.c.b16 %v1084, %v1084
  %v1245 = vpack.c.b16 %v1085, %v1085
  %v1246 = vpack.c.b16 %v1086, %v1086
  %v1247 = vpack.c.b16 %v1087, %v1087
  %v1248 = vpack.c.b16 %v1088, %v1088
  %v1249 = vpack.c.b16 %v1089, %v1089
  %v1250 = vpack.c.b16 %v1090, %v1090
  %v1251 = vpack.c.b16 %v1091, %v1091
  %v1252 = vpack.c.b16 %v1092, %v1092
  %v1253 = vpack.c.b16 %v1093, %v1093
  %v1254 = vpack.c.b16 %v1094, %v1094
  %v1255 = vpack.c.b16 %v1095, %v1095
  %v1256 = vpack.c.b16 %v1096, %v1096
  %v1257 = vpack.c.b16 %v1097, %v1097
  %v1258 = vpack.c.b16 %v1098, %v1098
  %v1931 = vunpack.c.l.b16 %v155
  %v1932 = vunpack.c.l.b16 %v156
  %v1933 = vunpack.c.l.b16 %v157
  %v1934 = vunpack.c.l.b16 %v158
  %v1935 = vunpack.c.l.b16 %v159
  %v1936 = vunpack.c.l.b16 %v160
  %v1937 = vunpack.c.l.b16 %v161
  %v1938 = vunpack.c.l.b16 %v162
  %v1939 = vunpack.c.l.b16 %v163
  %v1940 = vunpack.c.l.b16 %v164
  %v1941 = vunpack.c.l.b16 %v165
  %v1942 = vunpack.c.l.b16 %v166
  %v1943 = vunpack.c.l.b16 %v167
  %v1944 = vunpack.c.l.b16 %v168
  %v1945 = vunpack.c.l.b16 %v169
  %v1946 = vunpack.c.l.b16 %v170
  %v1947 = vunpack.c.l.b16 %v171
  %v1948 = vunpack.c.l.b16 %v172
  %v1949 = vunpack.c.l.b16 %v173
  %v1950 = vunpack.c.l.b16 %v174
  %v1951 = vunpack.c.l.b16 %v175
  %v1952 = vunpack.c.l.b16 %v176
  %v1953 = vunpack.c.l.b16 %v177
  %v1954 = vunpack.c.l.b16 %v178
  %v1955 = vunpack.c.l.b16 %v179
  %v1956 = vunpack.c.l.b16 %v180
  %v1957 = vunpack.c.l.b16 %v181
  %v1958 = vunpack.c.l.b16 %v182
  %v1959 = vunpack.c.l.b16 %v183
  %v1960 = vunpack.c.l.b16 %v184
  %v1961 = vunpack.c.l.b16 %v185
  %v1962 = vunpack.c.l.b16 %v186
  %v1963 = vunpack.c.l.b16 %v187
  %v1964 = vunpack.c.l.b16 %v188
  %v1965 = vunpack.c.l.b16 %v189
  %v1966 = vunpack.c.l.b16 %v190
  %v1967 = vunpack.c.l.b16 %v191
  %v1968 = vunpack.c.l.b16 %v192
  %v1969 = vunpack.c.l.b16 %v193
  %v1970 = vunpack.c.l.b16 %v194
  %v1971 = vunpack.c.l.b16 %v195
  %v1972 = vunpack.c.l.b16 %v196
  %v1973 = vunpack.c.l.b16 %v197
  %v1974 = vunpack.c.l.b16 %v198
  %v1975 = vunpack.c.l.b16 %v199
  %v1976 = vunpack.c.l.b16 %v200
  %v1977 = vunpack.c.l.b16 %v201
  %v1978 = vunpack.c.l.b16 %v202
  %v1979 = vunpack.c.l.b16 %v203
  %v1980 = vunpack.c.l.b16 %v204
  %v1981 = vunpack.c.l.b16 %v205
  %v1982 = vunpack.c.l.b16 %v206
  %v1983 = vunpack.c.l.b16 %v207
  %v1984 = vunpack.c.l.b16 %v208
  %v1985 = vunpack.c.l.b16 %v209
  %v1986 = vunpack.c.l.b16 %v210
  %v1987 = vunpack.c.l.b16 %v211
  %v1988 = vunpack.c.l.b16 %v212
  %v1989 = vunpack.c.l.b16 %v213
  %v1990 = vunpack.c.l.b16 %v214
  %v1991 = vunpack.c.l.b16 %v215
  %v1992 = vunpack.c.l.b16 %v216
  %v1993 = vunpack.c.l.b16 %v217
  %v1994 = vunpack.c.l.b16 %v218
  %v1995 = vunpack.c.l.b16 %v219
  %v1996 = vunpack.c.l.b16 %v220
  %v1997 = vunpack.c.l.b16 %v221
  %v1998 = vunpack.c.l.b16 %v222
  %v1999 = vunpack.c.l.b16 %v223
  %v2000 = vunpack.c.l.b16 %v224
  %v2001 = vunpack.c.l.b16 %v225
  %v2002 = vunpack.c.l.b16 %v226
  %v2003 = vunpack.c.l.b16 %v227
  %v2004 = vunpack.c.l.b16 %v228
  %v2005 = vunpack.c.l.b16 %v229
  %v2006 = vunpack.c.l.b16 %v230
  %v2007 = vunpack.c.l.b16 %v231
  %v2008 = vunpack.c.l.b16 %v232
  %v2009 = vunpack.c.l.b16 %v233
  %v2010 = vunpack.c.l.b16 %v234
  %v2011 = vunpack.c.l.b16 %v235
  %v2012 = vunpack.c.l.b16 %v236
  %v2013 = vunpack.c.l.b16 %v237
  %v2014 = vunpack.c.l.b16 %v238
  %v2015 = vunpack.c.l.b16 %v239
  %v2016 = vunpack.c.l.b16 %v240
  %v2017 = vunpack.c.l.b16 %v241
  %v2018 = vunpack.c.l.b16 %v242
  %v2019 = vunpack.c.l.b16 %v243
  %v2020 = vunpack.c.l.b16 %v244
  %v2021 = vunpack.c.l.b16 %v245
  %v2022 = vunpack.c.l.b16 %v246
  %v2023 = vunpack.c.l.b16 %v247
  %v2024 = vunpack.c.l.b16 %v248
  %v2025 = vunpack.c.l.b16 %v249
  %v2026 = vunpack.c.l.b16 %v250
  %v2027 = vunpack.c.l.b16 %v251
  %v2028 = vunpack.c.l.b16 %v252
  %v2029 = vunpack.c.l.b16 %v253
  %v2030 = vunpack.c.l.b16 %v254
  %v2031 = vunpack.c.l.b16 %v255
  %v2032 = vunpack.c.l.b16 %v256
  %v2033 = vunpack.c.l.b16 %v257
  %v2034 = vunpack.c.l.b16 %v258
  %v2035 = vunpack.c.l.b16 %v259
  %v2036 = vunpack.c.l.b16 %v260
  %v2037 = vunpack.c.l.b16 %v261
  %v2038 = vunpack.c.l.b16 %v262
  %v2039 = vunpack.c.l.b16 %v263
  %v2040 = vunpack.c.l.b16 %v264
  %v2041 = vunpack.c.l.b16 %v265
  %v2042 = vunpack.c.l.b16 %v266
  %v2043 = vunpack.c.l.b16 %v267
  %v2044 = vunpack.c.l.b16 %v268
  %v2045 = vunpack.c.l.b16 %v269
  %v2046 = vunpack.c.l.b16 %v270
  %v2047 = vunpack.c.l.b16 %v271
  %v2048 = vunpack.c.l.b16 %v272
  %v2049 = vunpack.c.l.b16 %v273
  %v2050 = vunpack.c.l.b16 %v274
  %v2051 = vunpack.c.l.b16 %v275
  %v2052 = vunpack.c.l.b16 %v276
  %v2053 = vunpack.c.l.b16 %v277
  %v2054 = vunpack.c.l.b16 %v278
  %v2055 = vunpack.c.l.b16 %v279
  %v2056 = vunpack.c.l.b16 %v280
  %v2057 = vunpack.c.l.b16 %v281
  %v2058 = vunpack.c.l.b16 %v282
  %v2059 = vunpack.c.l.b16 %v283
  %v2060 = vunpack.c.l.b16 %v284
  %v2061 = vunpack.c.l.b16 %v285
  %v2062 = vunpack.c.l.b16 %v286
  %v2063 = vunpack.c.l.b16 %v287
  %v2064 = vunpack.c.l.b16 %v288
  %v2065 = vunpack.c.l.b16 %v289
  %v2066 = vunpack.c.l.b16 %v290
  %v2067 = vunpack.c.l.b16 %v291
  %v2068 = vunpack.c.l.b16 %v292
  %v2069 = vunpack.c.l.b16 %v293
  %v2070 = vunpack.c.l.b16 %v294
  %v2071 = vunpack.c.l.b16 %v295
  %v2072 = vunpack.c.l.b16 %v296
  %v2073 = vunpack.c.l.b16 %v297
  %v2074 = vunpack.c.l.b16 %v298
  %v2075 = vunpack.c.l.b16 %v299
  %v2076 = vunpack.c.l.b16 %v300
  %v2077 = vunpack.c.l.b16 %v301
  %v2078 = vunpack.c.l.b16 %v302
  %v2079 = vunpack.c.l.b16 %v303
  %v2080 = vunpack.c.l.b16 %v304
  %v2081 = vunpack.c.l.b16 %v305
  %v2082 = vunpack.c.l.b16 %v306
  %v2083 = vunpack.c.l.b16 %v307
  %v2084 = vunpack.c.l.b16 %v308
  %v2085 = vunpack.c.l.b16 %v309
  %v2086 = vunpack.c.l.b16 %v310
  %v2087 = vunpack.c.l.b16 %v311
  %v2088 = vunpack.c.l.b16 %v312
  %v2089 = vunpack.c.l.b16 %v313
  %v2090 = vunpack.c.l.b16 %v314
  %v2091 = vunpack.c.l.b16 %v315
  %v2092 = vunpack.c.l.b16 %v316
  %v2093 = vunpack.c.l.b16 %v317
  %v2094 = vunpack.c.l.b16 %v318
  %v2095 = vunpack.c.l.b16 %v319
  %v2096 = vunpack.c.l.b16 %v320
  %v2097 = vunpack.c.l.b16 %v321
  %v2098 = vunpack.c.l.b16 %v322
  %v2099 = vunpack.c.l.b16 %v323
  %v2100 = vunpack.c.l.b16 %v324
  %v2101 = vunpack.c.l.b16 %v325
  %v2102 = vunpack.c.l.b16 %v326
  %v2103 = vunpack.c.l.b16 %v327
  %v2104 = vunpack.c.l.b16 %v328
  %v2105 = vunpack.c.l.b16 %v329
  %v2106 = vunpack.c.l.b16 %v330
  %v2107 = vunpack.c.l.b16 %v331
  %v2108 = vunpack.c.l.b16 %v332
  %v2109 = vunpack.c.l.b16 %v333
  %v2110 = vunpack.c.l.b16 %v334
  %v2111 = vunpack.c.l.b16 %v335
  %v2112 = vunpack.c.l.b16 %v336
  %v2113 = vunpack.c.l.b16 %v337
  %v2114 = vunpack.c.l.b16 %v338
  %v2115 = vunpack.c.l.b16 %v339
  %v2116 = vunpack.c.l.b16 %v340
  %v2117 = vunpack.c.l.b16 %v341
  %v2118 = vunpack.c.l.b16 %v342
  %v2119 = vunpack.c.l.b16 %v343
  %v2120 = vunpack.c.l.b16 %v344
  %v2121 = vunpack.c.l.b16 %v345
  %v2122 = vunpack.c.l.b16 %v346
  %v2123 = vunpack.c.l.b16 %v347
  %v2124 = vunpack.c.l.b16 %v348
  %v2125 = vunpack.c.l.b16 %v349
  %v2126 = vunpack.c.l.b16 %v350
  %v2127 = vunpack.c.l.b16 %v351
  %v2128 = vunpack.c.l.b16 %v352
  %v2129 = vunpack.c.l.b16 %v353
  %v2130 = vunpack.c.l.b16 %v354
  %v2131 = vunpack.c.l.b16 %v355
  %v2132 = vunpack.c.l.b16 %v356
  %v2133 = vunpack.c.l.b16 %v357
  %v2134 = vunpack.c.l.b16 %v358
  %v2135 = vunpack.c.l.b16 %v359
  %v2136 = vunpack.c.l.b16 %v360
  %v2137 = vunpack.c.l.b16 %v361
  %v2138 = vunpack.c.l.b16 %v362
  %v2139 = vunpack.c.l.b16 %v363
  %v2140 = vunpack.c.l.b16 %v364
  %v2141 = vunpack.c.l.b16 %v365
  %v2142 = vunpack.c.l.b16 %v366
  %v2143 = vunpack.c.l.b16 %v367
  %v2144 = vunpack.c.l.b16 %v368
  %v2145 = vunpack.c.l.b16 %v369
  %v2146 = vunpack.c.l.b16 %v370
  %v2147 = vunpack.c.l.b16 %v371
  %v2148 = vunpack.c.l.b16 %v372
  %v2149 = vunpack.c.l.b16 %v373
  %v2150 = vunpack.c.l.b16 %v374
  %v2151 = vunpack.c.l.b16 %v375
  %v2152 = vunpack.c.l.b16 %v376
  %v2153 = vunpack.c.l.b16 %v377
  %v2154 = vunpack.c.l.b16 %v378
  %v2155 = vunpack.c.l.b16 %v379
  %v2156 = vunpack.c.l.b16 %v380
  %v2157 = vunpack.c.l.b16 %v381
  %v2158 = vunpack.c.l.b16 %v382
  %v2159 = vunpack.c.l.b16 %v383
  %v2160 = vunpack.c.l.b16 %v384
  %v2161 = vunpack.c.l.b16 %v385
  %v2162 = vunpack.c.l.b16 %v386
  %v2163 = vunpack.c.l.b16 %v387
  %v2164 = vunpack.c.l.b16 %v388
  %v2165 = vunpack.c.l.b16 %v389
  %v2166 = vunpack.c.l.b16 %v390
  %v2167 = vunpack.c.l.b16 %v391
  %v2168 = vunpack.c.l.b16 %v392
  %v2169 = vunpack.c.l.b16 %v393
  %v2170 = vunpack.c.l.b16 %v394
  %v2171 = vunpack.c.l.b16 %v395
  %v2172 = vunpack.c.l.b16 %v396
  %v2173 = vunpack.c.l.b16 %v397
  %v2174 = vunpack.c.l.b16 %v398
  %v2175 = vunpack.c.l.b16 %v399
  %v2176 = vunpack.c.l.b16 %v400
  %v2177 = vunpack.c.l.b16 %v401
  %v2178 = vunpack.c.l.b16 %v402
  %v2179 = vunpack.c.l.b16 %v403
  %v2180 = vunpack.c.l.b16 %v404
  %v2181 = vunpack.c.l.b16 %v405
  %v2182 = vunpack.c.l.b16 %v406
  %v2183 = vunpack.c.l.b16 %v407
  %v2184 = vunpack.c.l.b16 %v408
  %v2185 = vunpack.c.l.b16 %v409
  %v2186 = vunpack.c.l.b16 %v410
  %v2187 = vunpack.c.l.b16 %v411
  %v2188 = vunpack.c.l.b16 %v412
  %v2189 = vunpack.c.l.b16 %v413
  %v2190 = vunpack.c.l.b16 %v414
  %v2191 = vunpack.c.l.b16 %v415
  %v2192 = vunpack.c.l.b16 %v416
  %v2193 = vunpack.c.l.b16 %v417
  %v2194 = vunpack.c.l.b16 %v418
  %v2195 = vunpack.c.l.b16 %v419
  %v2196 = vunpack.c.l.b16 %v420
  %v2197 = vunpack.c.l.b16 %v421
  %v2198 = vunpack.c.l.b16 %v422
  %v2199 = vunpack.c.l.b16 %v423
  %v2200 = vunpack.c.l.b16 %v424
  %v2201 = vunpack.c.l.b16 %v425
  %v2202 = vunpack.c.l.b16 %v426
  %v2203 = vunpack.c.l.b16 %v427
  %v2204 = vunpack.c.l.b16 %v428
  %v2205 = vunpack.c.l.b16 %v429
  %v2206 = vunpack.c.l.b16 %v430
  %v2207 = vunpack.c.l.b16 %v431
  %v2208 = vunpack.c.l.b16 %v432
  %v2209 = vunpack.c.l.b16 %v433
  %v2210 = vunpack.c.l.b16 %v434
  %v2211 = vunpack.c.l.b16 %v435
  %v2212 = vunpack.c.l.b16 %v436
  %v2213 = vunpack.c.l.b16 %v437
  %v2214 = vunpack.c.l.b16 %v438
  %v2215 = vunpack.c.l.b16 %v439
  %v2216 = vunpack.c.l.b16 %v440
  %v2217 = vunpack.c.l.b16 %v441
  %v2218 = vunpack.c.l.b16 %v442
  %v2219 = vunpack.c.l.b16 %v443
  %v2220 = vunpack.c.l.b16 %v444
  %v2221 = vunpack.c.l.b16 %v445
  %v2222 = vunpack.c.l.b16 %v446
  %v2223 = vunpack.c.l.b16 %v447
  %v2224 = vunpack.c.l.b16 %v448
  %v2225 = vunpack.c.l.b16 %v449
  %v2226 = vunpack.c.l.b16 %v450
  %v2227 = vunpack.c.l.b16 %v451
  %v2228 = vunpack.c.l.b16 %v452
  %v2229 = vunpack.c.l.b16 %v453
  %v2230 = vunpack.c.l.b16 %v454
  %v2231 = vunpack.c.l.b16 %v455
  %v2232 = vunpack.c.l.b16 %v456
  %v2233 = vunpack.c.l.b16 %v457
  %v2234 = vunpack.c.l.b16 %v458
  %v2235 = vunpack.c.l.b16 %v459
  %v2236 = vunpack.c.l.b16 %v460
  %v2237 = vunpack.c.l.b16 %v461
  %v2238 = vunpack.c.l.b16 %v462
  %v2239 = vunpack.c.l.b16 %v463
  %v2240 = vunpack.c.l.b16 %v464
  %v2241 = vunpack.c.l.b16 %v465
  %v2242 = vunpack.c.l.b16 %v466
  %v2243 = vunpack.c.l.b16 %v467
  %v2244 = vunpack.c.l.b16 %v468
  %v2245 = vunpack.c.l.b16 %v469
  %v2246 = vunpack.c.l.b16 %v470
  %v2247 = vunpack.c.l.b16 %v471
  %v2248 = vunpack.c.l.b16 %v472
  %v2249 = vunpack.c.l.b16 %v473
  %v2250 = vunpack.c.l.b16 %v474
  %v2251 = vunpack.c.l.b16 %v475
  %v2252 = vunpack.c.l.b16 %v476
  %v2253 = vunpack.c.l.b16 %v477
  %v2254 = vunpack.c.l.b16 %v478
  %v2255 = vunpack.c.l.b16 %v479
  %v2256 = vunpack.c.l.b16 %v480
  %v2257 = vunpack.c.l.b16 %v481
  %v2258 = vunpack.c.l.b16 %v482
  %v2259 = vunpack.c.l.b16 %v483
  %v2260 = vunpack.c.l.b16 %v484
  %v2261 = vunpack.c.l.b16 %v485
  %v2262 = vunpack.c.l.b16 %v486
  %v2263 = vunpack.c.l.b16 %v487
  %v2264 = vunpack.c.l.b16 %v488
  %v2265 = vunpack.c.l.b16 %v489
  %v2266 = vunpack.c.l.b16 %v490
  %v2267 = vunpack.c.l.b16 %v491
  %v2268 = vunpack.c.l.b16 %v492
  %v2269 = vunpack.c.l.b16 %v493
  %v2270 = vunpack.c.l.b16 %v494
  %v2271 = vunpack.c.l.b16 %v495
  %v2272 = vunpack.c.l.b16 %v496
  %v2273 = vunpack.c.l.b16 %v497
  %v2274 = vunpack.c.l.b16 %v498
  %v2275 = vunpack.c.l.b16 %v499
  %v2276 = vunpack.c.l.b16 %v500
  %v2277 = vunpack.c.l.b16 %v501
  %v2278 = vunpack.c.l.b16 %v502
  %v2279 = vunpack.c.l.b16 %v503
  %v2280 = vunpack.c.l.b16 %v504
  %v2281 = vunpack.c.l.b16 %v505
  %v2282 = vunpack.c.l.b16 %v506
  %v2283 = vunpack.c.l.b16 %v507
  %v2284 = vunpack.c.l.b16 %v508
  %v2285 = vunpack.c.l.b16 %v509
  %v2286 = vunpack.c.l.b16 %v510
  %v2287 = vunpack.c.l.b16 %v511
  %v2288 = vunpack.c.l.b16 %v512
  %v2289 = vunpack.c.l.b16 %v513
  %v2290 = vunpack.c.l.b16 %v514
  %v2291 = vunpack.c.l.b16 %v515
  %v2292 = vunpack.c.l.b16 %v516
  %v2293 = vunpack.c.l.b16 %v517
  %v2294 = vunpack.c.l.b16 %v518
  %v2295 = vunpack.c.l.b16 %v519
  %v2296 = vunpack.c.l.b16 %v520
  %v2297 = vunpack.c.l.b16 %v521
  %v2298 = vunpack.c.l.b16 %v522
  %v2299 = vunpack.c.l.b16 %v523
  %v2300 = vunpack.c.l.b16 %v524
  %v2301 = vunpack.c.l.b16 %v525
  %v2302 = vunpack.c.l.b16 %v526
  %v2303 = vunpack.c.l.b16 %v527
  %v2304 = vunpack.c.l.b16 %v528
  %v2305 = vunpack.c.l.b16 %v529
  %v2306 = vunpack.c.l.b16 %v530
  %v2307 = vunpack.c.l.b16 %v531
  %v2308 = vunpack.c.l.b16 %v532
  %v2309 = vunpack.c.l.b16 %v533
  %v2310 = vunpack.c.l.b16 %v534
  %v2311 = vunpack.c.l.b16 %v535
  %v2312 = vunpack.c.l.b16 %v536
  %v2313 = vunpack.c.l.b16 %v537
  %v2314 = vunpack.c.l.b16 %v538
  %v2315 = vunpack.c.l.b16 %v539
  %v2316 = vunpack.c.l.b16 %v540
  %v2317 = vunpack.c.l.b16 %v541
  %v2318 = vunpack.c.l.b16 %v542
  %v2319 = vunpack.c.l.b16 %v543
  %v2320 = vunpack.c.l.b16 %v544
  %v2321 = vunpack.c.l.b16 %v545
  %v2322 = vunpack.c.l.b16 %v546
  %v2323 = vunpack.c.l.b16 %v547
  %v2324 = vunpack.c.l.b16 %v548
  %v2325 = vunpack.c.l.b16 %v549
  %v2326 = vunpack.c.l.b16 %v550
  %v2327 = vunpack.c.l.b16 %v551
  %v2328 = vunpack.c.l.b16 %v552
  %v2329 = vunpack.c.l.b16 %v553
  %v2330 = vunpack.c.l.b16 %v554
  %v2331 = vunpack.c.l.b16 %v555
  %v2332 = vunpack.c.l.b16 %v556
  %v2333 = vunpack.c.l.b16 %v557
  %v2334 = vunpack.c.l.b16 %v558
  %v2335 = vunpack.c.l.b16 %v559
  %v2336 = vunpack.c.l.b16 %v560
  %v2337 = vunpack.c.l.b16 %v561
  %v2338 = vunpack.c.l.b16 %v562
  %v2339 = vunpack.c.l.b16 %v563
  %v2340 = vunpack.c.l.b16 %v564
  %v2341 = vunpack.c.l.b16 %v565
  %v2342 = vunpack.c.l.b16 %v566
  %v2343 = vunpack.c.l.b16 %v567
  %v2344 = vunpack.c.l.b16 %v568
  %v2345 = vunpack.c.l.b16 %v569
  %v2346 = vunpack.c.l.b16 %v570
  %v2347 = vunpack.c.l.b16 %v571
  %v2348 = vunpack.c.l.b16 %v572
  %v2349 = vunpack.c.l.b16 %v573
  %v2350 = vunpack.c.l.b16 %v574
  %v2351 = vunpack.c.l.b16 %v575
  %v2352 = vunpack.c.l.b16 %v576
  %v2353 = vunpack.c.l.b16 %v577
  %v2354 = vunpack.c.l.b16 %v578
  %v2355 = vunpack.c.l.b16 %v579
  %v2356 = vunpack.c.l.b16 %v580
  %v2357 = vunpack.c.l.b16 %v581
  %v2358 = vunpack.c.l.b16 %v582
  %v2359 = vunpack.c.l.b16 %v583
  %v2360 = vunpack.c.l.b16 %v584
  %v2361 = vunpack.c.l.b16 %v585
  %v2362 = vunpack.c.l.b16 %v586
  %v2363 = vunpack.c.l.b16 %v587
  %v2364 = vunpack.c.l.b16 %v588
  %v2365 = vunpack.c.l.b16 %v589
  %v2366 = vunpack.c.l.b16 %v590
  %v2367 = vunpack.c.l.b16 %v591
  %v2368 = vunpack.c.l.b16 %v592
  %v2369 = vunpack.c.l.b16 %v593
  %v2370 = vunpack.c.l.b16 %v594
  %v2371 = vunpack.c.l.b16 %v595
  %v2372 = vunpack.c.l.b16 %v596
  %v2373 = vunpack.c.l.b16 %v597
  %v2374 = vunpack.c.l.b16 %v598
  %v2375 = vunpack.c.l.b16 %v599
  %v2376 = vunpack.c.l.b16 %v600
  %v2377 = vunpack.c.l.b16 %v601
  %v2378 = vunpack.c.l.b16 %v602
  %v2379 = vunpack.c.l.b16 %v603
  %v2380 = vunpack.c.l.b16 %v604
  %v2381 = vunpack.c.l.b16 %v605
  %v2382 = vunpack.c.l.b16 %v606
  %v2383 = vunpack.c.l.b16 %v607
  %v2384 = vunpack.c.l.b16 %v608
  %v2385 = vunpack.c.l.b16 %v609
  %v2386 = vunpack.c.l.b16 %v610
  %v2387 = vunpack.c.l.b16 %v611
  %v2388 = vunpack.c.l.b16 %v612
  %v2389 = vunpack.c.l.b16 %v613
  %v2390 = vunpack.c.l.b16 %v614
  %v2391 = vunpack.c.l.b16 %v615
  %v2392 = vunpack.c.l.b16 %v616
  %v2393 = vunpack.c.l.b16 %v617
  %v2394 = vunpack.c.l.b16 %v618
  %v2395 = vunpack.c.l.b16 %v619
  %v2396 = vunpack.c.l.b16 %v620
  %v2397 = vunpack.c.l.b16 %v621
  %v2398 = vunpack.c.l.b16 %v622
  %v2399 = vunpack.c.l.b16 %v623
  %v2400 = vunpack.c.l.b16 %v624
  %v2401 = vunpack.c.l.b16 %v625
  %v2402 = vunpack.c.l.b16 %v626
  %v2403 = vunpack.c.l.b16 %v627
  %v2404 = vunpack.c.l.b16 %v628
  %v2405 = vunpack.c.l.b16 %v629
  %v2406 = vunpack.c.l.b16 %v630
  %v2407 = vunpack.c.l.b16 %v631
  %v2408 = vunpack.c.l.b16 %v632
  %v2409 = vunpack.c.l.b16 %v633
  %v2410 = vunpack.c.l.b16 %v634
  %v2411 = vunpack.c.l.b16 %v635
  %v2412 = vunpack.c.l.b16 %v636
  %v2413 = vunpack.c.l.b16 %v637
  %v2414 = vunpack.c.l.b16 %v638
  %v2415 = vunpack.c.l.b16 %v639
  %v2416 = vunpack.c.l.b16 %v640
  %v2417 = vunpack.c.l.b16 %v641
  %v2418 = vunpack.c.l.b16 %v642
  %v2419 = vunpack.c.l.b16 %v643
  %v2420 = vunpack.c.l.b16 %v644
  %v2421 = vunpack.c.l.b16 %v645
  %v2422 = vunpack.c.l.b16 %v646
  %v2423 = vunpack.c.l.b16 %v647
  %v2424 = vunpack.c.l.b16 %v648
  %v2425 = vunpack.c.l.b16 %v649
  %v2426 = vunpack.c.l.b16 %v650
  %v2427 = vunpack.c.l.b16 %v651
  %v2428 = vunpack.c.l.b16 %v652
  %v2429 = vunpack.c.l.b16 %v653
  %v2430 = vunpack.c.l.b16 %v654
  %v2431 = vunpack.c.l.b16 %v655
  %v2432 = vunpack.c.l.b16 %v656
  %v2433 = vunpack.c.l.b16 %v657
  %v2434 = vunpack.c.l.b16 %v658
  %v2435 = vunpack.c.l.b16 %v659
  %v2436 = vunpack.c.l.b16 %v660
  %v2437 = vunpack.c.l.b16 %v661
  %v2438 = vunpack.c.l.b16 %v662
  %v2439 = vunpack.c.l.b16 %v663
  %v2440 = vunpack.c.l.b16 %v664
  %v2441 = vunpack.c.l.b16 %v665
  %v2442 = vunpack.c.l.b16 %v666
  %v2443 = vpack.c.b16 %v1932, %v1931
  %v2444 = vpack.c.b16 %v1934, %v1933
  %v2445 = vpack.c.b16 %v1936, %v1935
  %v2446 = vpack.c.b16 %v1938, %v1937
  %v2447 = vpack.c.b16 %v1940, %v1939
  %v2448 = vpack.c.b16 %v1942, %v1941
  %v2449 = vpack.c.b16 %v1944, %v1943
  %v2450 = vpack.c.b16 %v1946, %v1945
  %v2451 = vpack.c.b16 %v1948, %v1947
  %v2452 = vpack.c.b16 %v1950, %v1949
  %v2453 = vpack.c.b16 %v1952, %v1951
  %v2454 = vpack.c.b16 %v1954, %v1953
  %v2455 = vpack.c.b16 %v1956, %v1955
  %v2456 = vpack.c.b16 %v1958, %v1957
  %v2457 = vpack.c.b16 %v1960, %v1959
  %v2458 = vpack.c.b16 %v1962, %v1961
  %v2459 = vpack.c.b16 %v1964, %v1963
  %v2460 = vpack.c.b16 %v1966, %v1965
  %v2461 = vpack.c.b16 %v1968, %v1967
  %v2462 = vpack.c.b16 %v1970, %v1969
  %v2463 = vpack.c.b16 %v1972, %v1971
  %v2464 = vpack.c.b16 %v1974, %v1973
  %v2465 = vpack.c.b16 %v1976, %v1975
  %v2466 = vpack.c.b16 %v1978, %v1977
  %v2467 = vpack.c.b16 %v1980, %v1979
  %v2468 = vpack.c.b16 %v1982, %v1981
  %v2469 = vpack.c.b16 %v1984, %v1983
  %v2470 = vpack.c.b16 %v1986, %v1985
  %v2471 = vpack.c.b16 %v1988, %v1987
  %v2472 = vpack.c.b16 %v1990, %v1989
  %v2473 = vpack.c.b16 %v1992, %v1991
  %v2474 = vpack.c.b16 %v1994, %v1993
  %v2475 = vpack.c.b16 %v1996, %v1995
  %v2476 = vpack.c.b16 %v1998, %v1997
  %v2477 = vpack.c.b16 %v2000, %v1999
  %v2478 = vpack.c.b16 %v2002, %v2001
  %v2479 = vpack.c.b16 %v2004, %v2003
  %v2480 = vpack.c.b16 %v2006, %v2005
  %v2481 = vpack.c.b16 %v2008, %v2007
  %v2482 = vpack.c.b16 %v2010, %v2009
  %v2483 = vpack.c.b16 %v2012, %v2011
  %v2484 = vpack.c.b16 %v2014, %v2013
  %v2485 = vpack.c.b16 %v2016, %v2015
  %v2486 = vpack.c.b16 %v2018, %v2017
  %v2487 = vpack.c.b16 %v2020, %v2019
  %v2488 = vpack.c.b16 %v2022, %v2021
  %v2489 = vpack.c.b16 %v2024, %v2023
  %v2490 = vpack.c.b16 %v2026, %v2025
  %v2491 = vpack.c.b16 %v2028, %v2027
  %v2492 = vpack.c.b16 %v2030, %v2029
  %v2493 = vpack.c.b16 %v2032, %v2031
  %v2494 = vpack.c.b16 %v2034, %v2033
  %v2495 = vpack.c.b16 %v2036, %v2035
  %v2496 = vpack.c.b16 %v2038, %v2037
  %v2497 = vpack.c.b16 %v2040, %v2039
  %v2498 = vpack.c.b16 %v2042, %v2041
  %v2499 = vpack.c.b16 %v2044, %v2043
  %v2500 = vpack.c.b16 %v2046, %v2045
  %v2501 = vpack.c.b16 %v2048, %v2047
  %v2502 = vpack.c.b16 %v2050, %v2049
  %v2503 = vpack.c.b16 %v2052, %v2051
  %v2504 = vpack.c.b16 %v2054, %v2053
  %v2505 = vpack.c.b16 %v2056, %v2055
  %v2506 = vpack.c.b16 %v2058, %v2057
  %v2507 = vpack.c.b16 %v2060, %v2059
  %v2508 = vpack.c.b16 %v2062, %v2061
  %v2509 = vpack.c.b16 %v2064, %v2063
  %v2510 = vpack.c.b16 %v2066, %v2065
  %v2511 = vpack.c.b16 %v2068, %v2067
  %v2512 = vpack.c.b16 %v2070, %v2069
  %v2513 = vpack.c.b16 %v2072, %v2071
  %v2514 = vpack.c.b16 %v2074, %v2073
  %v2515 = vpack.c.b16 %v2076, %v2075
  %v2516 = vpack.c.b16 %v2078, %v2077
  %v2517 = vpack.c.b16 %v2080, %v2079
  %v2518 = vpack.c.b16 %v2082, %v2081
  %v2519 = vpack.c.b16 %v2084, %v2083
  %v2520 = vpack.c.b16 %v2086, %v2085
  %v2521 = vpack.c.b16 %v2088, %v2087
  %v2522 = vpack.c.b16 %v2090, %v2089
  %v2523 = vpack.c.b16 %v2092, %v2091
  %v2524 = vpack.c.b16 %v2094, %v2093
  %v2525 = vpack.c.b16 %v2096, %v2095
  %v2526 = vpack.c.b16 %v2098, %v2097
  %v2527 = vpack.c.b16 %v2100, %v2099
  %v2528 = vpack.c.b16 %v2102, %v2101
  %v2529 = vpack.c.b16 %v2104, %v2103
  %v2530 = vpack.c.b16 %v2106, %v2105
  %v2531 = vpack.c.b16 %v2108, %v2107
  %v2532 = vpack.c.b16 %v2110, %v2109
  %v2533 = vpack.c.b16 %v2112, %v2111
  %v2534 = vpack.c.b16 %v2114, %v2113
  %v2535 = vpack.c.b16 %v2116, %v2115
  %v2536 = vpack.c.b16 %v2118, %v2117
  %v2537 = vpack.c.b16 %v2120, %v2119
  %v2538 = vpack.c.b16 %v2122, %v2121
  %v2539 = vpack.c.b16 %v2124, %v2123
  %v2540 = vpack.c.b16 %v2126, %v2125
  %v2541 = vpack.c.b16 %v2128, %v2127
  %v2542 = vpack.c.b16 %v2130, %v2129
  %v2543 = vpack.c.b16 %v2132, %v2131
  %v2544 = vpack.c.b16 %v2134, %v2133
  %v2545 = vpack.c.b16 %v2136, %v2135
  %v2546 = vpack.c.b16 %v2138, %v2137
  %v2547 = vpack.c.b16 %v2140, %v2139
  %v2548 = vpack.c.b16 %v2142, %v2141
  %v2549 = vpack.c.b16 %v2144, %v2143
  %v2550 = vpack.c.b16 %v2146, %v2145
  %v2551 = vpack.c.b16 %v2148, %v2147
  %v2552 = vpack.c.b16 %v2150, %v2149
  %v2553 = vpack.c.b16 %v2152, %v2151
  %v2554 = vpack.c.b16 %v2154, %v2153
  %v2555 = vpack.c.b16 %v2156, %v2155
  %v2556 = vpack.c.b16 %v2158, %v2157
  %v2557 = vpack.c.b16 %v2160, %v2159
  %v2558 = vpack.c.b16 %v2162, %v2161
  %v2559 = vpack.c.b16 %v2164, %v2163
  %v2560 = vpack.c.b16 %v2166, %v2165
  %v2561 = vpack.c.b16 %v2168, %v2167
  %v2562 = vpack.c.b16 %v2170, %v2169
  %v2563 = vpack.c.b16 %v2172, %v2171
  %v2564 = vpack.c.b16 %v2174, %v2173
  %v2565 = vpack.c.b16 %v2176, %v2175
  %v2566 = vpack.c.b16 %v2178, %v2177
  %v2567 = vpack.c.b16 %v2180, %v2179
  %v2568 = vpack.c.b16 %v2182, %v2181
  %v2569 = vpack.c.b16 %v2184, %v2183
  %v2570 = vpack.c.b16 %v2186, %v2185
  %v2571 = vpack.c.b16 %v2188, %v2187
  %v2572 = vpack.c.b16 %v2190, %v2189
  %v2573 = vpack.c.b16 %v2192, %v2191
  %v2574 = vpack.c.b16 %v2194, %v2193
  %v2575 = vpack.c.b16 %v2196, %v2195
  %v2576 = vpack.c.b16 %v2198, %v2197
  %v2577 = vpack.c.b16 %v2200, %v2199
  %v2578 = vpack.c.b16 %v2202, %v2201
  %v2579 = vpack.c.b16 %v2204, %v2203
  %v2580 = vpack.c.b16 %v2206, %v2205
  %v2581 = vpack.c.b16 %v2208, %v2207
  %v2582 = vpack.c.b16 %v2210, %v2209
  %v2583 = vpack.c.b16 %v2212, %v2211
  %v2584 = vpack.c.b16 %v2214, %v2213
  %v2585 = vpack.c.b16 %v2216, %v2215
  %v2586 = vpack.c.b16 %v2218, %v2217
  %v2587 = vpack.c.b16 %v2220, %v2219
  %v2588 = vpack.c.b16 %v2222, %v2221
  %v2589 = vpack.c.b16 %v2224, %v2223
  %v2590 = vpack.c.b16 %v2226, %v2225
  %v2591 = vpack.c.b16 %v2228, %v2227
  %v2592 = vpack.c.b16 %v2230, %v2229
  %v2593 = vpack.c.b16 %v2232, %v2231
  %v2594 = vpack.c.b16 %v2234, %v2233
  %v2595 = vpack.c.b16 %v2236, %v2235
  %v2596 = vpack.c.b16 %v2238, %v2237
  %v2597 = vpack.c.b16 %v2240, %v2239
  %v2598 = vpack.c.b16 %v2242, %v2241
  %v2599 = vpack.c.b16 %v2244, %v2243
  %v2600 = vpack.c.b16 %v2246, %v2245
  %v2601 = vpack.c.b16 %v2248, %v2247
  %v2602 = vpack.c.b16 %v2250, %v2249
  %v2603 = vpack.c.b16 %v2252, %v2251
  %v2604 = vpack.c.b16 %v2254, %v2253
  %v2605 = vpack.c.b16 %v2256, %v2255
  %v2606 = vpack.c.b16 %v2258, %v2257
  %v2607 = vpack.c.b16 %v2260, %v2259
  %v2608 = vpack.c.b16 %v2262, %v2261
  %v2609 = vpack.c.b16 %v2264, %v2263
  %v2610 = vpack.c.b16 %v2266, %v2265
  %v2611 = vpack.c.b16 %v2268, %v2267
  %v2612 = vpack.c.b16 %v2270, %v2269
  %v2613 = vpack.c.b16 %v2272, %v2271
  %v2614 = vpack.c.b16 %v2274, %v2273
  %v2615 = vpack.c.b16 %v2276, %v2275
  %v2616 = vpack.c.b16 %v2278, %v2277
  %v2617 = vpack.c.b16 %v2280, %v2279
  %v2618 = vpack.c.b16 %v2282, %v2281
  %v2619 = vpack.c.b16 %v2284, %v2283
  %v2620 = vpack.c.b16 %v2286, %v2285
  %v2621 = vpack.c.b16 %v2288, %v2287
  %v2622 = vpack.c.b16 %v2290, %v2289
  %v2623 = vpack.c.b16 %v2292, %v2291
  %v2624 = vpack.c.b16 %v2294, %v2293
  %v2625 = vpack.c.b16 %v2296, %v2295
  %v2626 = vpack.c.b16 %v2298, %v2297
  %v2627 = vpack.c.b16 %v2300, %v2299
  %v2628 = vpack.c.b16 %v2302, %v2301
  %v2629 = vpack.c.b16 %v2304, %v2303
  %v2630 = vpack.c.b16 %v2306, %v2305
  %v2631 = vpack.c.b16 %v2308, %v2307
  %v2632 = vpack.c.b16 %v2310, %v2309
  %v2633 = vpack.c.b16 %v2312, %v2311
  %v2634 = vpack.c.b16 %v2314, %v2313
  %v2635 = vpack.c.b16 %v2316, %v2315
  %v2636 = vpack.c.b16 %v2318, %v2317
  %v2637 = vpack.c.b16 %v2320, %v2319
  %v2638 = vpack.c.b16 %v2322, %v2321
  %v2639 = vpack.c.b16 %v2324, %v2323
  %v2640 = vpack.c.b16 %v2326, %v2325
  %v2641 = vpack.c.b16 %v2328, %v2327
  %v2642 = vpack.c.b16 %v2330, %v2329
  %v2643 = vpack.c.b16 %v2332, %v2331
  %v2644 = vpack.c.b16 %v2334, %v2333
  %v2645 = vpack.c.b16 %v2336, %v2335
  %v2646 = vpack.c.b16 %v2338, %v2337
  %v2647 = vpack.c.b16 %v2340, %v2339
  %v2648 = vpack.c.b16 %v2342, %v2341
  %v2649 = vpack.c.b16 %v2344, %v2343
  %v2650 = vpack.c.b16 %v2346, %v2345
  %v2651 = vpack.c.b16 %v2348, %v2347
  %v2652 = vpack.c.b16 %v2350, %v2349
  %v2653 = vpack.c.b16 %v2352, %v2351
  %v2654 = vpack.c.b16 %v2354, %v2353
  %v2655 = vpack.c.b16 %v2356, %v2355
  %v2656 = vpack.c.b16 %v2358, %v2357
  %v2657 = vpack.c.b16 %v2360, %v2359
  %v2658 = vpack.c.b16 %v2362, %v2361
  %v2659 = vpack.c.b16 %v2364, %v2363
  %v2660 = vpack.c.b16 %v2366, %v2365
  %v2661 = vpack.c.b16 %v2368, %v2367
  %v2662 = vpack.c.b16 %v2370, %v2369
  %v2663 = vpack.c.b16 %v2372, %v2371
  %v2664 = vpack.c.b16 %v2374, %v2373
  %v2665 = vpack.c.b16 %v2376, %v2375
  %v2666 = vpack.c.b16 %v2378, %v2377
  %v2667 = vpack.c.b16 %v2380, %v2379
  %v2668 = vpack.c.b16 %v2382, %v2381
  %v2669 = vpack.c.b16 %v2384, %v2383
  %v2670 = vpack.c.b16 %v2386, %v2385
  %v2671 = vpack.c.b16 %v2388, %v2387
  %v2672 = vpack.c.b16 %v2390, %v2389
  %v2673 = vpack.c.b16 %v2392, %v2391
  %v2674 = vpack.c.b16 %v2394, %v2393
  %v2675 = vpack.c.b16 %v2396, %v2395
  %v2676 = vpack.c.b16 %v2398, %v2397
  %v2677 = vpack.c.b16 %v2400, %v2399
  %v2678 = vpack.c.b16 %v2402, %v2401
  %v2679 = vpack.c.b16 %v2404, %v2403
  %v2680 = vpack.c.b16 %v2406, %v2405
  %v2681 = vpack.c.b16 %v2408, %v2407
  %v2682 = vpack.c.b16 %v2410, %v2409
  %v2683 = vpack.c.b16 %v2412, %v2411
  %v2684 = vpack.c.b16 %v2414, %v2413
  %v2685 = vpack.c.b16 %v2416, %v2415
  %v2686 = vpack.c.b16 %v2418, %v2417
  %v2687 = vpack.c.b16 %v2420, %v2419
  %v2688 = vpack.c.b16 %v2422, %v2421
  %v2689 = vpack.c.b16 %v2424, %v2423
  %v2690 = vpack.c.b16 %v2426, %v2425
  %v2691 = vpack.c.b16 %v2428, %v2427
  %v2692 = vpack.c.b16 %v2430, %v2429
  %v2693 = vpack.c.b16 %v2432, %v2431
  %v2694 = vpack.c.b16 %v2434, %v2433
  %v2695 = vpack.c.b16 %v2436, %v2435
  %v2696 = vpack.c.b16 %v2438, %v2437
  %v2697 = vpack.c.b16 %v2440, %v2439
  %v2698 = vpack.c.b16 %v2442, %v2441
  %2955 = vmatpush.bf16.msra.mxu0 %v2450
  %2956 = vmatpush.bf16.msra.mxu0 %v2449
  %2957 = vmatpush.bf16.msra.mxu0 %v2448
  %2958 = vmatpush.bf16.msra.mxu0 %v2447
  %2959 = vmatpush.bf16.msra.mxu0 %v2446
  %2960 = vmatpush.bf16.msra.mxu0 %v2445
  %2961 = vmatpush.bf16.msra.mxu0 %v2444
  %2962 = vmatpush.bf16.msra.mxu0 %v2443
  %2963 = vmatmul.bf16.gmra.mxu0 %v1099
  %v2964 = vpop.f32.mrf.mxu0
  %v2965 = vadd.f32 0.0, %v2964
  %v2966 = vpop.f32.mrf.mxu0
  %v2967 = vadd.f32 0.0, %v2966
  %2968 = vmatmul.bf16.gmra.mxu0 %v1131
  %v2969 = vpop.f32.mrf.mxu0
  %v2970 = vadd.f32 0.0, %v2969
  %v2971 = vpop.f32.mrf.mxu0
  %v2972 = vadd.f32 0.0, %v2971
  %2973 = vmatmul.bf16.gmra.mxu0 %v1163
  %v2974 = vpop.f32.mrf.mxu0
  %v2975 = vadd.f32 0.0, %v2974
  %v2976 = vpop.f32.mrf.mxu0
  %v2977 = vadd.f32 0.0, %v2976
  %2978 = vmatmul.bf16.gmra.mxu0 %v1195
  %v2979 = vpop.f32.mrf.mxu0
  %v2980 = vadd.f32 0.0, %v2979
  %v2981 = vpop.f32.mrf.mxu0
  %v2982 = vadd.f32 0.0, %v2981
  %2983 = vmatmul.bf16.gmra.mxu0 %v1227
  %v2984 = vpop.f32.mrf.mxu0
  %v2985 = vadd.f32 0.0, %v2984
  %v2986 = vpop.f32.mrf.mxu0
  %2987 = vdwg.mxu0
  %2988 = vmatpush.bf16.msra.mxu0 %v2458
  %2989 = vmatpush.bf16.msra.mxu0 %v2457
  %2990 = vmatpush.bf16.msra.mxu0 %v2456
  %2991 = vmatpush.bf16.msra.mxu0 %v2455
  %2992 = vmatpush.bf16.msra.mxu0 %v2454
  %2993 = vmatpush.bf16.msra.mxu0 %v2453
  %2994 = vmatpush.bf16.msra.mxu0 %v2452
  %2995 = vmatpush.bf16.msra.mxu0 %v2451
  %2996 = vmatmul.bf16.gmra.mxu0 %v1100
  %v2997 = vpop.f32.mrf.mxu0
  %v2998 = vadd.f32 %v2965, %v2997
  %v2999 = vpop.f32.mrf.mxu0
  %v3000 = vadd.f32 %v2967, %v2999
  %3001 = vmatmul.bf16.gmra.mxu0 %v1132
  %v3002 = vpop.f32.mrf.mxu0
  %v3003 = vadd.f32 %v2970, %v3002
  %v3004 = vpop.f32.mrf.mxu0
  %v3005 = vadd.f32 %v2972, %v3004
  %3006 = vmatmul.bf16.gmra.mxu0 %v1164
  %v3007 = vpop.f32.mrf.mxu0
  %v3008 = vadd.f32 %v2975, %v3007
  %v3009 = vpop.f32.mrf.mxu0
  %v3010 = vadd.f32 %v2977, %v3009
  %3011 = vmatmul.bf16.gmra.mxu0 %v1196
  %v3012 = vpop.f32.mrf.mxu0
  %v3013 = vadd.f32 %v2980, %v3012
  %v3014 = vpop.f32.mrf.mxu0
  %v3015 = vadd.f32 %v2982, %v3014
  %3016 = vmatmul.bf16.gmra.mxu0 %v1228
  %v3017 = vpop.f32.mrf.mxu0
  %v3018 = vadd.f32 %v2985, %v3017
  %v3019 = vpop.f32.mrf.mxu0
  %3020 = vdwg.mxu0
  %3021 = vmatpush.bf16.msra.mxu0 %v2466
  %3022 = vmatpush.bf16.msra.mxu0 %v2465
  %3023 = vmatpush.bf16.msra.mxu0 %v2464
  %3024 = vmatpush.bf16.msra.mxu0 %v2463
  %3025 = vmatpush.bf16.msra.mxu0 %v2462
  %3026 = vmatpush.bf16.msra.mxu0 %v2461
  %3027 = vmatpush.bf16.msra.mxu0 %v2460
  %3028 = vmatpush.bf16.msra.mxu0 %v2459
  %3029 = vmatmul.bf16.gmra.mxu0 %v1101
  %v3030 = vpop.f32.mrf.mxu0
  %v3031 = vadd.f32 %v2998, %v3030
  %v3032 = vpop.f32.mrf.mxu0
  %v3033 = vadd.f32 %v3000, %v3032
  %3034 = vmatmul.bf16.gmra.mxu0 %v1133
  %v3035 = vpop.f32.mrf.mxu0
  %v3036 = vadd.f32 %v3003, %v3035
  %v3037 = vpop.f32.mrf.mxu0
  %v3038 = vadd.f32 %v3005, %v3037
  %3039 = vmatmul.bf16.gmra.mxu0 %v1165
  %v3040 = vpop.f32.mrf.mxu0
  %v3041 = vadd.f32 %v3008, %v3040
  %v3042 = vpop.f32.mrf.mxu0
  %v3043 = vadd.f32 %v3010, %v3042
  %3044 = vmatmul.bf16.gmra.mxu0 %v1197
  %v3045 = vpop.f32.mrf.mxu0
  %v3046 = vadd.f32 %v3013, %v3045
  %v3047 = vpop.f32.mrf.mxu0
  %v3048 = vadd.f32 %v3015, %v3047
  %3049 = vmatmul.bf16.gmra.mxu0 %v1229
  %v3050 = vpop.f32.mrf.mxu0
  %v3051 = vadd.f32 %v3018, %v3050
  %v3052 = vpop.f32.mrf.mxu0
  %3053 = vdwg.mxu0
  %3054 = vmatpush.bf16.msra.mxu0 %v2474
  %3055 = vmatpush.bf16.msra.mxu0 %v2473
  %3056 = vmatpush.bf16.msra.mxu0 %v2472
  %3057 = vmatpush.bf16.msra.mxu0 %v2471
  %3058 = vmatpush.bf16.msra.mxu0 %v2470
  %3059 = vmatpush.bf16.msra.mxu0 %v2469
  %3060 = vmatpush.bf16.msra.mxu0 %v2468
  %3061 = vmatpush.bf16.msra.mxu0 %v2467
  %3062 = vmatmul.bf16.gmra.mxu0 %v1102
  %v3063 = vpop.f32.mrf.mxu0
  %v3064 = vadd.f32 %v3031, %v3063
  %v3065 = vpop.f32.mrf.mxu0
  %v3066 = vadd.f32 %v3033, %v3065
  %3067 = vmatmul.bf16.gmra.mxu0 %v1134
  %v3068 = vpop.f32.mrf.mxu0
  %v3069 = vadd.f32 %v3036, %v3068
  %v3070 = vpop.f32.mrf.mxu0
  %v3071 = vadd.f32 %v3038, %v3070
  %3072 = vmatmul.bf16.gmra.mxu0 %v1166
  %v3073 = vpop.f32.mrf.mxu0
  %v3074 = vadd.f32 %v3041, %v3073
  %v3075 = vpop.f32.mrf.mxu0
  %v3076 = vadd.f32 %v3043, %v3075
  %3077 = vmatmul.bf16.gmra.mxu0 %v1198
  %v3078 = vpop.f32.mrf.mxu0
  %v3079 = vadd.f32 %v3046, %v3078
  %v3080 = vpop.f32.mrf.mxu0
  %v3081 = vadd.f32 %v3048, %v3080
  %3082 = vmatmul.bf16.gmra.mxu0 %v1230
  %v3083 = vpop.f32.mrf.mxu0
  %v3084 = vadd.f32 %v3051, %v3083
  %v3085 = vpop.f32.mrf.mxu0
  %3086 = vdwg.mxu0
  %3087 = vmatpush.bf16.msra.mxu0 %v2482
  %3088 = vmatpush.bf16.msra.mxu0 %v2481
  %3089 = vmatpush.bf16.msra.mxu0 %v2480
  %3090 = vmatpush.bf16.msra.mxu0 %v2479
  %3091 = vmatpush.bf16.msra.mxu0 %v2478
  %3092 = vmatpush.bf16.msra.mxu0 %v2477
  %3093 = vmatpush.bf16.msra.mxu0 %v2476
  %3094 = vmatpush.bf16.msra.mxu0 %v2475
  %3095 = vmatmul.bf16.gmra.mxu0 %v1103
  %v3096 = vpop.f32.mrf.mxu0
  %v3097 = vadd.f32 %v3064, %v3096
  %v3098 = vpop.f32.mrf.mxu0
  %v3099 = vadd.f32 %v3066, %v3098
  %3100 = vmatmul.bf16.gmra.mxu0 %v1135
  %v3101 = vpop.f32.mrf.mxu0
  %v3102 = vadd.f32 %v3069, %v3101
  %v3103 = vpop.f32.mrf.mxu0
  %v3104 = vadd.f32 %v3071, %v3103
  %3105 = vmatmul.bf16.gmra.mxu0 %v1167
  %v3106 = vpop.f32.mrf.mxu0
  %v3107 = vadd.f32 %v3074, %v3106
  %v3108 = vpop.f32.mrf.mxu0
  %v3109 = vadd.f32 %v3076, %v3108
  %3110 = vmatmul.bf16.gmra.mxu0 %v1199
  %v3111 = vpop.f32.mrf.mxu0
  %v3112 = vadd.f32 %v3079, %v3111
  %v3113 = vpop.f32.mrf.mxu0
  %v3114 = vadd.f32 %v3081, %v3113
  %3115 = vmatmul.bf16.gmra.mxu0 %v1231
  %v3116 = vpop.f32.mrf.mxu0
  %v3117 = vadd.f32 %v3084, %v3116
  %v3118 = vpop.f32.mrf.mxu0
  %3119 = vdwg.mxu0
  %3120 = vmatpush.bf16.msra.mxu0 %v2490
  %3121 = vmatpush.bf16.msra.mxu0 %v2489
  %3122 = vmatpush.bf16.msra.mxu0 %v2488
  %3123 = vmatpush.bf16.msra.mxu0 %v2487
  %3124 = vmatpush.bf16.msra.mxu0 %v2486
  %3125 = vmatpush.bf16.msra.mxu0 %v2485
  %3126 = vmatpush.bf16.msra.mxu0 %v2484
  %3127 = vmatpush.bf16.msra.mxu0 %v2483
  %3128 = vmatmul.bf16.gmra.mxu0 %v1104
  %v3129 = vpop.f32.mrf.mxu0
  %v3130 = vadd.f32 %v3097, %v3129
  %v3131 = vpop.f32.mrf.mxu0
  %v3132 = vadd.f32 %v3099, %v3131
  %3133 = vmatmul.bf16.gmra.mxu0 %v1136
  %v3134 = vpop.f32.mrf.mxu0
  %v3135 = vadd.f32 %v3102, %v3134
  %v3136 = vpop.f32.mrf.mxu0
  %v3137 = vadd.f32 %v3104, %v3136
  %3138 = vmatmul.bf16.gmra.mxu0 %v1168
  %v3139 = vpop.f32.mrf.mxu0
  %v3140 = vadd.f32 %v3107, %v3139
  %v3141 = vpop.f32.mrf.mxu0
  %v3142 = vadd.f32 %v3109, %v3141
  %3143 = vmatmul.bf16.gmra.mxu0 %v1200
  %v3144 = vpop.f32.mrf.mxu0
  %v3145 = vadd.f32 %v3112, %v3144
  %v3146 = vpop.f32.mrf.mxu0
  %v3147 = vadd.f32 %v3114, %v3146
  %3148 = vmatmul.bf16.gmra.mxu0 %v1232
  %v3149 = vpop.f32.mrf.mxu0
  %v3150 = vadd.f32 %v3117, %v3149
  %v3151 = vpop.f32.mrf.mxu0
  %3152 = vdwg.mxu0
  %3153 = vmatpush.bf16.msra.mxu0 %v2498
  %3154 = vmatpush.bf16.msra.mxu0 %v2497
  %3155 = vmatpush.bf16.msra.mxu0 %v2496
  %3156 = vmatpush.bf16.msra.mxu0 %v2495
  %3157 = vmatpush.bf16.msra.mxu0 %v2494
  %3158 = vmatpush.bf16.msra.mxu0 %v2493
  %3159 = vmatpush.bf16.msra.mxu0 %v2492
  %3160 = vmatpush.bf16.msra.mxu0 %v2491
  %3161 = vmatmul.bf16.gmra.mxu0 %v1105
  %v3162 = vpop.f32.mrf.mxu0
  %v3163 = vadd.f32 %v3130, %v3162
  %v3164 = vpop.f32.mrf.mxu0
  %v3165 = vadd.f32 %v3132, %v3164
  %3166 = vmatmul.bf16.gmra.mxu0 %v1137
  %v3167 = vpop.f32.mrf.mxu0
  %v3168 = vadd.f32 %v3135, %v3167
  %v3169 = vpop.f32.mrf.mxu0
  %v3170 = vadd.f32 %v3137, %v3169
  %3171 = vmatmul.bf16.gmra.mxu0 %v1169
  %v3172 = vpop.f32.mrf.mxu0
  %v3173 = vadd.f32 %v3140, %v3172
  %v3174 = vpop.f32.mrf.mxu0
  %v3175 = vadd.f32 %v3142, %v3174
  %3176 = vmatmul.bf16.gmra.mxu0 %v1201
  %v3177 = vpop.f32.mrf.mxu0
  %v3178 = vadd.f32 %v3145, %v3177
  %v3179 = vpop.f32.mrf.mxu0
  %v3180 = vadd.f32 %v3147, %v3179
  %3181 = vmatmul.bf16.gmra.mxu0 %v1233
  %v3182 = vpop.f32.mrf.mxu0
  %v3183 = vadd.f32 %v3150, %v3182
  %v3184 = vpop.f32.mrf.mxu0
  %3185 = vdwg.mxu0
  %3186 = vmatpush.bf16.msra.mxu0 %v2506
  %3187 = vmatpush.bf16.msra.mxu0 %v2505
  %3188 = vmatpush.bf16.msra.mxu0 %v2504
  %3189 = vmatpush.bf16.msra.mxu0 %v2503
  %3190 = vmatpush.bf16.msra.mxu0 %v2502
  %3191 = vmatpush.bf16.msra.mxu0 %v2501
  %3192 = vmatpush.bf16.msra.mxu0 %v2500
  %3193 = vmatpush.bf16.msra.mxu0 %v2499
  %3194 = vmatmul.bf16.gmra.mxu0 %v1106
  %v3195 = vpop.f32.mrf.mxu0
  %v3196 = vadd.f32 %v3163, %v3195
  %v3197 = vpop.f32.mrf.mxu0
  %v3198 = vadd.f32 %v3165, %v3197
  %3199 = vmatmul.bf16.gmra.mxu0 %v1138
  %v3200 = vpop.f32.mrf.mxu0
  %v3201 = vadd.f32 %v3168, %v3200
  %v3202 = vpop.f32.mrf.mxu0
  %v3203 = vadd.f32 %v3170, %v3202
  %3204 = vmatmul.bf16.gmra.mxu0 %v1170
  %v3205 = vpop.f32.mrf.mxu0
  %v3206 = vadd.f32 %v3173, %v3205
  %v3207 = vpop.f32.mrf.mxu0
  %v3208 = vadd.f32 %v3175, %v3207
  %3209 = vmatmul.bf16.gmra.mxu0 %v1202
  %v3210 = vpop.f32.mrf.mxu0
  %v3211 = vadd.f32 %v3178, %v3210
  %v3212 = vpop.f32.mrf.mxu0
  %v3213 = vadd.f32 %v3180, %v3212
  %3214 = vmatmul.bf16.gmra.mxu0 %v1234
  %v3215 = vpop.f32.mrf.mxu0
  %v3216 = vadd.f32 %v3183, %v3215
  %v3217 = vpop.f32.mrf.mxu0
  %3218 = vdwg.mxu0
  %3219 = vmatpush.bf16.msra.mxu0 %v2514
  %3220 = vmatpush.bf16.msra.mxu0 %v2513
  %3221 = vmatpush.bf16.msra.mxu0 %v2512
  %3222 = vmatpush.bf16.msra.mxu0 %v2511
  %3223 = vmatpush.bf16.msra.mxu0 %v2510
  %3224 = vmatpush.bf16.msra.mxu0 %v2509
  %3225 = vmatpush.bf16.msra.mxu0 %v2508
  %3226 = vmatpush.bf16.msra.mxu0 %v2507
  %3227 = vmatmul.bf16.gmra.mxu0 %v1107
  %v3228 = vpop.f32.mrf.mxu0
  %v3229 = vadd.f32 %v3196, %v3228
  %v3230 = vpop.f32.mrf.mxu0
  %v3231 = vadd.f32 %v3198, %v3230
  %3232 = vmatmul.bf16.gmra.mxu0 %v1139
  %v3233 = vpop.f32.mrf.mxu0
  %v3234 = vadd.f32 %v3201, %v3233
  %v3235 = vpop.f32.mrf.mxu0
  %v3236 = vadd.f32 %v3203, %v3235
  %3237 = vmatmul.bf16.gmra.mxu0 %v1171
  %v3238 = vpop.f32.mrf.mxu0
  %v3239 = vadd.f32 %v3206, %v3238
  %v3240 = vpop.f32.mrf.mxu0
  %v3241 = vadd.f32 %v3208, %v3240
  %3242 = vmatmul.bf16.gmra.mxu0 %v1203
  %v3243 = vpop.f32.mrf.mxu0
  %v3244 = vadd.f32 %v3211, %v3243
  %v3245 = vpop.f32.mrf.mxu0
  %v3246 = vadd.f32 %v3213, %v3245
  %3247 = vmatmul.bf16.gmra.mxu0 %v1235
  %v3248 = vpop.f32.mrf.mxu0
  %v3249 = vadd.f32 %v3216, %v3248
  %v3250 = vpop.f32.mrf.mxu0
  %3251 = vdwg.mxu0
  %3252 = vmatpush.bf16.msra.mxu0 %v2522
  %3253 = vmatpush.bf16.msra.mxu0 %v2521
  %3254 = vmatpush.bf16.msra.mxu0 %v2520
  %3255 = vmatpush.bf16.msra.mxu0 %v2519
  %3256 = vmatpush.bf16.msra.mxu0 %v2518
  %3257 = vmatpush.bf16.msra.mxu0 %v2517
  %3258 = vmatpush.bf16.msra.mxu0 %v2516
  %3259 = vmatpush.bf16.msra.mxu0 %v2515
  %3260 = vmatmul.bf16.gmra.mxu0 %v1108
  %v3261 = vpop.f32.mrf.mxu0
  %v3262 = vadd.f32 %v3229, %v3261
  %v3263 = vpop.f32.mrf.mxu0
  %v3264 = vadd.f32 %v3231, %v3263
  %3265 = vmatmul.bf16.gmra.mxu0 %v1140
  %v3266 = vpop.f32.mrf.mxu0
  %v3267 = vadd.f32 %v3234, %v3266
  %v3268 = vpop.f32.mrf.mxu0
  %v3269 = vadd.f32 %v3236, %v3268
  %3270 = vmatmul.bf16.gmra.mxu0 %v1172
  %v3271 = vpop.f32.mrf.mxu0
  %v3272 = vadd.f32 %v3239, %v3271
  %v3273 = vpop.f32.mrf.mxu0
  %v3274 = vadd.f32 %v3241, %v3273
  %3275 = vmatmul.bf16.gmra.mxu0 %v1204
  %v3276 = vpop.f32.mrf.mxu0
  %v3277 = vadd.f32 %v3244, %v3276
  %v3278 = vpop.f32.mrf.mxu0
  %v3279 = vadd.f32 %v3246, %v3278
  %3280 = vmatmul.bf16.gmra.mxu0 %v1236
  %v3281 = vpop.f32.mrf.mxu0
  %v3282 = vadd.f32 %v3249, %v3281
  %v3283 = vpop.f32.mrf.mxu0
  %3284 = vdwg.mxu0
  %3285 = vmatpush.bf16.msra.mxu0 %v2530
  %3286 = vmatpush.bf16.msra.mxu0 %v2529
  %3287 = vmatpush.bf16.msra.mxu0 %v2528
  %3288 = vmatpush.bf16.msra.mxu0 %v2527
  %3289 = vmatpush.bf16.msra.mxu0 %v2526
  %3290 = vmatpush.bf16.msra.mxu0 %v2525
  %3291 = vmatpush.bf16.msra.mxu0 %v2524
  %3292 = vmatpush.bf16.msra.mxu0 %v2523
  %3293 = vmatmul.bf16.gmra.mxu0 %v1109
  %v3294 = vpop.f32.mrf.mxu0
  %v3295 = vadd.f32 %v3262, %v3294
  %v3296 = vpop.f32.mrf.mxu0
  %v3297 = vadd.f32 %v3264, %v3296
  %3298 = vmatmul.bf16.gmra.mxu0 %v1141
  %v3299 = vpop.f32.mrf.mxu0
  %v3300 = vadd.f32 %v3267, %v3299
  %v3301 = vpop.f32.mrf.mxu0
  %v3302 = vadd.f32 %v3269, %v3301
  %3303 = vmatmul.bf16.gmra.mxu0 %v1173
  %v3304 = vpop.f32.mrf.mxu0
  %v3305 = vadd.f32 %v3272, %v3304
  %v3306 = vpop.f32.mrf.mxu0
  %v3307 = vadd.f32 %v3274, %v3306
  %3308 = vmatmul.bf16.gmra.mxu0 %v1205
  %v3309 = vpop.f32.mrf.mxu0
  %v3310 = vadd.f32 %v3277, %v3309
  %v3311 = vpop.f32.mrf.mxu0
  %v3312 = vadd.f32 %v3279, %v3311
  %3313 = vmatmul.bf16.gmra.mxu0 %v1237
  %v3314 = vpop.f32.mrf.mxu0
  %v3315 = vadd.f32 %v3282, %v3314
  %v3316 = vpop.f32.mrf.mxu0
  %3317 = vdwg.mxu0
  %3318 = vmatpush.bf16.msra.mxu0 %v2538
  %3319 = vmatpush.bf16.msra.mxu0 %v2537
  %3320 = vmatpush.bf16.msra.mxu0 %v2536
  %3321 = vmatpush.bf16.msra.mxu0 %v2535
  %3322 = vmatpush.bf16.msra.mxu0 %v2534
  %3323 = vmatpush.bf16.msra.mxu0 %v2533
  %3324 = vmatpush.bf16.msra.mxu0 %v2532
  %3325 = vmatpush.bf16.msra.mxu0 %v2531
  %3326 = vmatmul.bf16.gmra.mxu0 %v1110
  %v3327 = vpop.f32.mrf.mxu0
  %v3328 = vadd.f32 %v3295, %v3327
  %v3329 = vpop.f32.mrf.mxu0
  %v3330 = vadd.f32 %v3297, %v3329
  %3331 = vmatmul.bf16.gmra.mxu0 %v1142
  %v3332 = vpop.f32.mrf.mxu0
  %v3333 = vadd.f32 %v3300, %v3332
  %v3334 = vpop.f32.mrf.mxu0
  %v3335 = vadd.f32 %v3302, %v3334
  %3336 = vmatmul.bf16.gmra.mxu0 %v1174
  %v3337 = vpop.f32.mrf.mxu0
  %v3338 = vadd.f32 %v3305, %v3337
  %v3339 = vpop.f32.mrf.mxu0
  %v3340 = vadd.f32 %v3307, %v3339
  %3341 = vmatmul.bf16.gmra.mxu0 %v1206
  %v3342 = vpop.f32.mrf.mxu0
  %v3343 = vadd.f32 %v3310, %v3342
  %v3344 = vpop.f32.mrf.mxu0
  %v3345 = vadd.f32 %v3312, %v3344
  %3346 = vmatmul.bf16.gmra.mxu0 %v1238
  %v3347 = vpop.f32.mrf.mxu0
  %v3348 = vadd.f32 %v3315, %v3347
  %v3349 = vpop.f32.mrf.mxu0
  %3350 = vdwg.mxu0
  %3351 = vmatpush.bf16.msra.mxu0 %v2546
  %3352 = vmatpush.bf16.msra.mxu0 %v2545
  %3353 = vmatpush.bf16.msra.mxu0 %v2544
  %3354 = vmatpush.bf16.msra.mxu0 %v2543
  %3355 = vmatpush.bf16.msra.mxu0 %v2542
  %3356 = vmatpush.bf16.msra.mxu0 %v2541
  %3357 = vmatpush.bf16.msra.mxu0 %v2540
  %3358 = vmatpush.bf16.msra.mxu0 %v2539
  %3359 = vmatmul.bf16.gmra.mxu0 %v1111
  %v3360 = vpop.f32.mrf.mxu0
  %v3361 = vadd.f32 %v3328, %v3360
  %v3362 = vpop.f32.mrf.mxu0
  %v3363 = vadd.f32 %v3330, %v3362
  %3364 = vmatmul.bf16.gmra.mxu0 %v1143
  %v3365 = vpop.f32.mrf.mxu0
  %v3366 = vadd.f32 %v3333, %v3365
  %v3367 = vpop.f32.mrf.mxu0
  %v3368 = vadd.f32 %v3335, %v3367
  %3369 = vmatmul.bf16.gmra.mxu0 %v1175
  %v3370 = vpop.f32.mrf.mxu0
  %v3371 = vadd.f32 %v3338, %v3370
  %v3372 = vpop.f32.mrf.mxu0
  %v3373 = vadd.f32 %v3340, %v3372
  %3374 = vmatmul.bf16.gmra.mxu0 %v1207
  %v3375 = vpop.f32.mrf.mxu0
  %v3376 = vadd.f32 %v3343, %v3375
  %v3377 = vpop.f32.mrf.mxu0
  %v3378 = vadd.f32 %v3345, %v3377
  %3379 = vmatmul.bf16.gmra.mxu0 %v1239
  %v3380 = vpop.f32.mrf.mxu0
  %v3381 = vadd.f32 %v3348, %v3380
  %v3382 = vpop.f32.mrf.mxu0
  %3383 = vdwg.mxu0
  %3384 = vmatpush.bf16.msra.mxu0 %v2554
  %3385 = vmatpush.bf16.msra.mxu0 %v2553
  %3386 = vmatpush.bf16.msra.mxu0 %v2552
  %3387 = vmatpush.bf16.msra.mxu0 %v2551
  %3388 = vmatpush.bf16.msra.mxu0 %v2550
  %3389 = vmatpush.bf16.msra.mxu0 %v2549
  %3390 = vmatpush.bf16.msra.mxu0 %v2548
  %3391 = vmatpush.bf16.msra.mxu0 %v2547
  %3392 = vmatmul.bf16.gmra.mxu0 %v1112
  %v3393 = vpop.f32.mrf.mxu0
  %v3394 = vadd.f32 %v3361, %v3393
  %v3395 = vpop.f32.mrf.mxu0
  %v3396 = vadd.f32 %v3363, %v3395
  %3397 = vmatmul.bf16.gmra.mxu0 %v1144
  %v3398 = vpop.f32.mrf.mxu0
  %v3399 = vadd.f32 %v3366, %v3398
  %v3400 = vpop.f32.mrf.mxu0
  %v3401 = vadd.f32 %v3368, %v3400
  %3402 = vmatmul.bf16.gmra.mxu0 %v1176
  %v3403 = vpop.f32.mrf.mxu0
  %v3404 = vadd.f32 %v3371, %v3403
  %v3405 = vpop.f32.mrf.mxu0
  %v3406 = vadd.f32 %v3373, %v3405
  %3407 = vmatmul.bf16.gmra.mxu0 %v1208
  %v3408 = vpop.f32.mrf.mxu0
  %v3409 = vadd.f32 %v3376, %v3408
  %v3410 = vpop.f32.mrf.mxu0
  %v3411 = vadd.f32 %v3378, %v3410
  %3412 = vmatmul.bf16.gmra.mxu0 %v1240
  %v3413 = vpop.f32.mrf.mxu0
  %v3414 = vadd.f32 %v3381, %v3413
  %v3415 = vpop.f32.mrf.mxu0
  %3416 = vdwg.mxu0
  %3417 = vmatpush.bf16.msra.mxu0 %v2562
  %3418 = vmatpush.bf16.msra.mxu0 %v2561
  %3419 = vmatpush.bf16.msra.mxu0 %v2560
  %3420 = vmatpush.bf16.msra.mxu0 %v2559
  %3421 = vmatpush.bf16.msra.mxu0 %v2558
  %3422 = vmatpush.bf16.msra.mxu0 %v2557
  %3423 = vmatpush.bf16.msra.mxu0 %v2556
  %3424 = vmatpush.bf16.msra.mxu0 %v2555
  %3425 = vmatmul.bf16.gmra.mxu0 %v1113
  %v3426 = vpop.f32.mrf.mxu0
  %v3427 = vadd.f32 %v3394, %v3426
  %v3428 = vpop.f32.mrf.mxu0
  %v3429 = vadd.f32 %v3396, %v3428
  %3430 = vmatmul.bf16.gmra.mxu0 %v1145
  %v3431 = vpop.f32.mrf.mxu0
  %v3432 = vadd.f32 %v3399, %v3431
  %v3433 = vpop.f32.mrf.mxu0
  %v3434 = vadd.f32 %v3401, %v3433
  %3435 = vmatmul.bf16.gmra.mxu0 %v1177
  %v3436 = vpop.f32.mrf.mxu0
  %v3437 = vadd.f32 %v3404, %v3436
  %v3438 = vpop.f32.mrf.mxu0
  %v3439 = vadd.f32 %v3406, %v3438
  %3440 = vmatmul.bf16.gmra.mxu0 %v1209
  %v3441 = vpop.f32.mrf.mxu0
  %v3442 = vadd.f32 %v3409, %v3441
  %v3443 = vpop.f32.mrf.mxu0
  %v3444 = vadd.f32 %v3411, %v3443
  %3445 = vmatmul.bf16.gmra.mxu0 %v1241
  %v3446 = vpop.f32.mrf.mxu0
  %v3447 = vadd.f32 %v3414, %v3446
  %v3448 = vpop.f32.mrf.mxu0
  %3449 = vdwg.mxu0
  %3450 = vmatpush.bf16.msra.mxu0 %v2570
  %3451 = vmatpush.bf16.msra.mxu0 %v2569
  %3452 = vmatpush.bf16.msra.mxu0 %v2568
  %3453 = vmatpush.bf16.msra.mxu0 %v2567
  %3454 = vmatpush.bf16.msra.mxu0 %v2566
  %3455 = vmatpush.bf16.msra.mxu0 %v2565
  %3456 = vmatpush.bf16.msra.mxu0 %v2564
  %3457 = vmatpush.bf16.msra.mxu0 %v2563
  %3458 = vmatmul.bf16.gmra.mxu0 %v1114
  %v3459 = vpop.f32.mrf.mxu0
  %v3460 = vadd.f32 %v3427, %v3459
  %v3461 = vpop.f32.mrf.mxu0
  %v3462 = vadd.f32 %v3429, %v3461
  %3463 = vmatmul.bf16.gmra.mxu0 %v1146
  %v3464 = vpop.f32.mrf.mxu0
  %v3465 = vadd.f32 %v3432, %v3464
  %v3466 = vpop.f32.mrf.mxu0
  %v3467 = vadd.f32 %v3434, %v3466
  %3468 = vmatmul.bf16.gmra.mxu0 %v1178
  %v3469 = vpop.f32.mrf.mxu0
  %v3470 = vadd.f32 %v3437, %v3469
  %v3471 = vpop.f32.mrf.mxu0
  %v3472 = vadd.f32 %v3439, %v3471
  %3473 = vmatmul.bf16.gmra.mxu0 %v1210
  %v3474 = vpop.f32.mrf.mxu0
  %v3475 = vadd.f32 %v3442, %v3474
  %v3476 = vpop.f32.mrf.mxu0
  %v3477 = vadd.f32 %v3444, %v3476
  %3478 = vmatmul.bf16.gmra.mxu0 %v1242
  %v3479 = vpop.f32.mrf.mxu0
  %v3480 = vadd.f32 %v3447, %v3479
  %v3481 = vpop.f32.mrf.mxu0
  %3482 = vdwg.mxu0
  %3483 = vmatpush.bf16.msra.mxu0 %v2578
  %3484 = vmatpush.bf16.msra.mxu0 %v2577
  %3485 = vmatpush.bf16.msra.mxu0 %v2576
  %3486 = vmatpush.bf16.msra.mxu0 %v2575
  %3487 = vmatpush.bf16.msra.mxu0 %v2574
  %3488 = vmatpush.bf16.msra.mxu0 %v2573
  %3489 = vmatpush.bf16.msra.mxu0 %v2572
  %3490 = vmatpush.bf16.msra.mxu0 %v2571
  %3491 = vmatmul.bf16.gmra.mxu0 %v1115
  %v3492 = vpop.f32.mrf.mxu0
  %v3493 = vadd.f32 %v3460, %v3492
  %v3494 = vpop.f32.mrf.mxu0
  %v3495 = vadd.f32 %v3462, %v3494
  %3496 = vmatmul.bf16.gmra.mxu0 %v1147
  %v3497 = vpop.f32.mrf.mxu0
  %v3498 = vadd.f32 %v3465, %v3497
  %v3499 = vpop.f32.mrf.mxu0
  %v3500 = vadd.f32 %v3467, %v3499
  %3501 = vmatmul.bf16.gmra.mxu0 %v1179
  %v3502 = vpop.f32.mrf.mxu0
  %v3503 = vadd.f32 %v3470, %v3502
  %v3504 = vpop.f32.mrf.mxu0
  %v3505 = vadd.f32 %v3472, %v3504
  %3506 = vmatmul.bf16.gmra.mxu0 %v1211
  %v3507 = vpop.f32.mrf.mxu0
  %v3508 = vadd.f32 %v3475, %v3507
  %v3509 = vpop.f32.mrf.mxu0
  %v3510 = vadd.f32 %v3477, %v3509
  %3511 = vmatmul.bf16.gmra.mxu0 %v1243
  %v3512 = vpop.f32.mrf.mxu0
  %v3513 = vadd.f32 %v3480, %v3512
  %v3514 = vpop.f32.mrf.mxu0
  %3515 = vdwg.mxu0
  %3516 = vmatpush.bf16.msra.mxu0 %v2586
  %3517 = vmatpush.bf16.msra.mxu0 %v2585
  %3518 = vmatpush.bf16.msra.mxu0 %v2584
  %3519 = vmatpush.bf16.msra.mxu0 %v2583
  %3520 = vmatpush.bf16.msra.mxu0 %v2582
  %3521 = vmatpush.bf16.msra.mxu0 %v2581
  %3522 = vmatpush.bf16.msra.mxu0 %v2580
  %3523 = vmatpush.bf16.msra.mxu0 %v2579
  %3524 = vmatmul.bf16.gmra.mxu0 %v1116
  %v3525 = vpop.f32.mrf.mxu0
  %v3526 = vadd.f32 %v3493, %v3525
  %v3527 = vpop.f32.mrf.mxu0
  %v3528 = vadd.f32 %v3495, %v3527
  %3529 = vmatmul.bf16.gmra.mxu0 %v1148
  %v3530 = vpop.f32.mrf.mxu0
  %v3531 = vadd.f32 %v3498, %v3530
  %v3532 = vpop.f32.mrf.mxu0
  %v3533 = vadd.f32 %v3500, %v3532
  %3534 = vmatmul.bf16.gmra.mxu0 %v1180
  %v3535 = vpop.f32.mrf.mxu0
  %v3536 = vadd.f32 %v3503, %v3535
  %v3537 = vpop.f32.mrf.mxu0
  %v3538 = vadd.f32 %v3505, %v3537
  %3539 = vmatmul.bf16.gmra.mxu0 %v1212
  %v3540 = vpop.f32.mrf.mxu0
  %v3541 = vadd.f32 %v3508, %v3540
  %v3542 = vpop.f32.mrf.mxu0
  %v3543 = vadd.f32 %v3510, %v3542
  %3544 = vmatmul.bf16.gmra.mxu0 %v1244
  %v3545 = vpop.f32.mrf.mxu0
  %v3546 = vadd.f32 %v3513, %v3545
  %v3547 = vpop.f32.mrf.mxu0
  %3548 = vdwg.mxu0
  %3549 = vmatpush.bf16.msra.mxu0 %v2594
  %3550 = vmatpush.bf16.msra.mxu0 %v2593
  %3551 = vmatpush.bf16.msra.mxu0 %v2592
  %3552 = vmatpush.bf16.msra.mxu0 %v2591
  %3553 = vmatpush.bf16.msra.mxu0 %v2590
  %3554 = vmatpush.bf16.msra.mxu0 %v2589
  %3555 = vmatpush.bf16.msra.mxu0 %v2588
  %3556 = vmatpush.bf16.msra.mxu0 %v2587
  %3557 = vmatmul.bf16.gmra.mxu0 %v1117
  %v3558 = vpop.f32.mrf.mxu0
  %v3559 = vadd.f32 %v3526, %v3558
  %v3560 = vpop.f32.mrf.mxu0
  %v3561 = vadd.f32 %v3528, %v3560
  %3562 = vmatmul.bf16.gmra.mxu0 %v1149
  %v3563 = vpop.f32.mrf.mxu0
  %v3564 = vadd.f32 %v3531, %v3563
  %v3565 = vpop.f32.mrf.mxu0
  %v3566 = vadd.f32 %v3533, %v3565
  %3567 = vmatmul.bf16.gmra.mxu0 %v1181
  %v3568 = vpop.f32.mrf.mxu0
  %v3569 = vadd.f32 %v3536, %v3568
  %v3570 = vpop.f32.mrf.mxu0
  %v3571 = vadd.f32 %v3538, %v3570
  %3572 = vmatmul.bf16.gmra.mxu0 %v1213
  %v3573 = vpop.f32.mrf.mxu0
  %v3574 = vadd.f32 %v3541, %v3573
  %v3575 = vpop.f32.mrf.mxu0
  %v3576 = vadd.f32 %v3543, %v3575
  %3577 = vmatmul.bf16.gmra.mxu0 %v1245
  %v3578 = vpop.f32.mrf.mxu0
  %v3579 = vadd.f32 %v3546, %v3578
  %v3580 = vpop.f32.mrf.mxu0
  %3581 = vdwg.mxu0
  %3582 = vmatpush.bf16.msra.mxu0 %v2602
  %3583 = vmatpush.bf16.msra.mxu0 %v2601
  %3584 = vmatpush.bf16.msra.mxu0 %v2600
  %3585 = vmatpush.bf16.msra.mxu0 %v2599
  %3586 = vmatpush.bf16.msra.mxu0 %v2598
  %3587 = vmatpush.bf16.msra.mxu0 %v2597
  %3588 = vmatpush.bf16.msra.mxu0 %v2596
  %3589 = vmatpush.bf16.msra.mxu0 %v2595
  %3590 = vmatmul.bf16.gmra.mxu0 %v1118
  %v3591 = vpop.f32.mrf.mxu0
  %v3592 = vadd.f32 %v3559, %v3591
  %v3593 = vpop.f32.mrf.mxu0
  %v3594 = vadd.f32 %v3561, %v3593
  %3595 = vmatmul.bf16.gmra.mxu0 %v1150
  %v3596 = vpop.f32.mrf.mxu0
  %v3597 = vadd.f32 %v3564, %v3596
  %v3598 = vpop.f32.mrf.mxu0
  %v3599 = vadd.f32 %v3566, %v3598
  %3600 = vmatmul.bf16.gmra.mxu0 %v1182
  %v3601 = vpop.f32.mrf.mxu0
  %v3602 = vadd.f32 %v3569, %v3601
  %v3603 = vpop.f32.mrf.mxu0
  %v3604 = vadd.f32 %v3571, %v3603
  %3605 = vmatmul.bf16.gmra.mxu0 %v1214
  %v3606 = vpop.f32.mrf.mxu0
  %v3607 = vadd.f32 %v3574, %v3606
  %v3608 = vpop.f32.mrf.mxu0
  %v3609 = vadd.f32 %v3576, %v3608
  %3610 = vmatmul.bf16.gmra.mxu0 %v1246
  %v3611 = vpop.f32.mrf.mxu0
  %v3612 = vadd.f32 %v3579, %v3611
  %v3613 = vpop.f32.mrf.mxu0
  %3614 = vdwg.mxu0
  %3615 = vmatpush.bf16.msra.mxu0 %v2610
  %3616 = vmatpush.bf16.msra.mxu0 %v2609
  %3617 = vmatpush.bf16.msra.mxu0 %v2608
  %3618 = vmatpush.bf16.msra.mxu0 %v2607
  %3619 = vmatpush.bf16.msra.mxu0 %v2606
  %3620 = vmatpush.bf16.msra.mxu0 %v2605
  %3621 = vmatpush.bf16.msra.mxu0 %v2604
  %3622 = vmatpush.bf16.msra.mxu0 %v2603
  %3623 = vmatmul.bf16.gmra.mxu0 %v1119
  %v3624 = vpop.f32.mrf.mxu0
  %v3625 = vadd.f32 %v3592, %v3624
  %v3626 = vpop.f32.mrf.mxu0
  %v3627 = vadd.f32 %v3594, %v3626
  %3628 = vmatmul.bf16.gmra.mxu0 %v1151
  %v3629 = vpop.f32.mrf.mxu0
  %v3630 = vadd.f32 %v3597, %v3629
  %v3631 = vpop.f32.mrf.mxu0
  %v3632 = vadd.f32 %v3599, %v3631
  %3633 = vmatmul.bf16.gmra.mxu0 %v1183
  %v3634 = vpop.f32.mrf.mxu0
  %v3635 = vadd.f32 %v3602, %v3634
  %v3636 = vpop.f32.mrf.mxu0
  %v3637 = vadd.f32 %v3604, %v3636
  %3638 = vmatmul.bf16.gmra.mxu0 %v1215
  %v3639 = vpop.f32.mrf.mxu0
  %v3640 = vadd.f32 %v3607, %v3639
  %v3641 = vpop.f32.mrf.mxu0
  %v3642 = vadd.f32 %v3609, %v3641
  %3643 = vmatmul.bf16.gmra.mxu0 %v1247
  %v3644 = vpop.f32.mrf.mxu0
  %v3645 = vadd.f32 %v3612, %v3644
  %v3646 = vpop.f32.mrf.mxu0
  %3647 = vdwg.mxu0
  %3648 = vmatpush.bf16.msra.mxu0 %v2618
  %3649 = vmatpush.bf16.msra.mxu0 %v2617
  %3650 = vmatpush.bf16.msra.mxu0 %v2616
  %3651 = vmatpush.bf16.msra.mxu0 %v2615
  %3652 = vmatpush.bf16.msra.mxu0 %v2614
  %3653 = vmatpush.bf16.msra.mxu0 %v2613
  %3654 = vmatpush.bf16.msra.mxu0 %v2612
  %3655 = vmatpush.bf16.msra.mxu0 %v2611
  %3656 = vmatmul.bf16.gmra.mxu0 %v1120
  %v3657 = vpop.f32.mrf.mxu0
  %v3658 = vadd.f32 %v3625, %v3657
  %v3659 = vpop.f32.mrf.mxu0
  %v3660 = vadd.f32 %v3627, %v3659
  %3661 = vmatmul.bf16.gmra.mxu0 %v1152
  %v3662 = vpop.f32.mrf.mxu0
  %v3663 = vadd.f32 %v3630, %v3662
  %v3664 = vpop.f32.mrf.mxu0
  %v3665 = vadd.f32 %v3632, %v3664
  %3666 = vmatmul.bf16.gmra.mxu0 %v1184
  %v3667 = vpop.f32.mrf.mxu0
  %v3668 = vadd.f32 %v3635, %v3667
  %v3669 = vpop.f32.mrf.mxu0
  %v3670 = vadd.f32 %v3637, %v3669
  %3671 = vmatmul.bf16.gmra.mxu0 %v1216
  %v3672 = vpop.f32.mrf.mxu0
  %v3673 = vadd.f32 %v3640, %v3672
  %v3674 = vpop.f32.mrf.mxu0
  %v3675 = vadd.f32 %v3642, %v3674
  %3676 = vmatmul.bf16.gmra.mxu0 %v1248
  %v3677 = vpop.f32.mrf.mxu0
  %v3678 = vadd.f32 %v3645, %v3677
  %v3679 = vpop.f32.mrf.mxu0
  %3680 = vdwg.mxu0
  %3681 = vmatpush.bf16.msra.mxu0 %v2626
  %3682 = vmatpush.bf16.msra.mxu0 %v2625
  %3683 = vmatpush.bf16.msra.mxu0 %v2624
  %3684 = vmatpush.bf16.msra.mxu0 %v2623
  %3685 = vmatpush.bf16.msra.mxu0 %v2622
  %3686 = vmatpush.bf16.msra.mxu0 %v2621
  %3687 = vmatpush.bf16.msra.mxu0 %v2620
  %3688 = vmatpush.bf16.msra.mxu0 %v2619
  %3689 = vmatmul.bf16.gmra.mxu0 %v1121
  %v3690 = vpop.f32.mrf.mxu0
  %v3691 = vadd.f32 %v3658, %v3690
  %v3692 = vpop.f32.mrf.mxu0
  %v3693 = vadd.f32 %v3660, %v3692
  %3694 = vmatmul.bf16.gmra.mxu0 %v1153
  %v3695 = vpop.f32.mrf.mxu0
  %v3696 = vadd.f32 %v3663, %v3695
  %v3697 = vpop.f32.mrf.mxu0
  %v3698 = vadd.f32 %v3665, %v3697
  %3699 = vmatmul.bf16.gmra.mxu0 %v1185
  %v3700 = vpop.f32.mrf.mxu0
  %v3701 = vadd.f32 %v3668, %v3700
  %v3702 = vpop.f32.mrf.mxu0
  %v3703 = vadd.f32 %v3670, %v3702
  %3704 = vmatmul.bf16.gmra.mxu0 %v1217
  %v3705 = vpop.f32.mrf.mxu0
  %v3706 = vadd.f32 %v3673, %v3705
  %v3707 = vpop.f32.mrf.mxu0
  %v3708 = vadd.f32 %v3675, %v3707
  %3709 = vmatmul.bf16.gmra.mxu0 %v1249
  %v3710 = vpop.f32.mrf.mxu0
  %v3711 = vadd.f32 %v3678, %v3710
  %v3712 = vpop.f32.mrf.mxu0
  %3713 = vdwg.mxu0
  %3714 = vmatpush.bf16.msra.mxu0 %v2634
  %3715 = vmatpush.bf16.msra.mxu0 %v2633
  %3716 = vmatpush.bf16.msra.mxu0 %v2632
  %3717 = vmatpush.bf16.msra.mxu0 %v2631
  %3718 = vmatpush.bf16.msra.mxu0 %v2630
  %3719 = vmatpush.bf16.msra.mxu0 %v2629
  %3720 = vmatpush.bf16.msra.mxu0 %v2628
  %3721 = vmatpush.bf16.msra.mxu0 %v2627
  %3722 = vmatmul.bf16.gmra.mxu0 %v1122
  %v3723 = vpop.f32.mrf.mxu0
  %v3724 = vadd.f32 %v3691, %v3723
  %v3725 = vpop.f32.mrf.mxu0
  %v3726 = vadd.f32 %v3693, %v3725
  %3727 = vmatmul.bf16.gmra.mxu0 %v1154
  %v3728 = vpop.f32.mrf.mxu0
  %v3729 = vadd.f32 %v3696, %v3728
  %v3730 = vpop.f32.mrf.mxu0
  %v3731 = vadd.f32 %v3698, %v3730
  %3732 = vmatmul.bf16.gmra.mxu0 %v1186
  %v3733 = vpop.f32.mrf.mxu0
  %v3734 = vadd.f32 %v3701, %v3733
  %v3735 = vpop.f32.mrf.mxu0
  %v3736 = vadd.f32 %v3703, %v3735
  %3737 = vmatmul.bf16.gmra.mxu0 %v1218
  %v3738 = vpop.f32.mrf.mxu0
  %v3739 = vadd.f32 %v3706, %v3738
  %v3740 = vpop.f32.mrf.mxu0
  %v3741 = vadd.f32 %v3708, %v3740
  %3742 = vmatmul.bf16.gmra.mxu0 %v1250
  %v3743 = vpop.f32.mrf.mxu0
  %v3744 = vadd.f32 %v3711, %v3743
  %v3745 = vpop.f32.mrf.mxu0
  %3746 = vdwg.mxu0
  %3747 = vmatpush.bf16.msra.mxu0 %v2642
  %3748 = vmatpush.bf16.msra.mxu0 %v2641
  %3749 = vmatpush.bf16.msra.mxu0 %v2640
  %3750 = vmatpush.bf16.msra.mxu0 %v2639
  %3751 = vmatpush.bf16.msra.mxu0 %v2638
  %3752 = vmatpush.bf16.msra.mxu0 %v2637
  %3753 = vmatpush.bf16.msra.mxu0 %v2636
  %3754 = vmatpush.bf16.msra.mxu0 %v2635
  %3755 = vmatmul.bf16.gmra.mxu0 %v1123
  %v3756 = vpop.f32.mrf.mxu0
  %v3757 = vadd.f32 %v3724, %v3756
  %v3758 = vpop.f32.mrf.mxu0
  %v3759 = vadd.f32 %v3726, %v3758
  %3760 = vmatmul.bf16.gmra.mxu0 %v1155
  %v3761 = vpop.f32.mrf.mxu0
  %v3762 = vadd.f32 %v3729, %v3761
  %v3763 = vpop.f32.mrf.mxu0
  %v3764 = vadd.f32 %v3731, %v3763
  %3765 = vmatmul.bf16.gmra.mxu0 %v1187
  %v3766 = vpop.f32.mrf.mxu0
  %v3767 = vadd.f32 %v3734, %v3766
  %v3768 = vpop.f32.mrf.mxu0
  %v3769 = vadd.f32 %v3736, %v3768
  %3770 = vmatmul.bf16.gmra.mxu0 %v1219
  %v3771 = vpop.f32.mrf.mxu0
  %v3772 = vadd.f32 %v3739, %v3771
  %v3773 = vpop.f32.mrf.mxu0
  %v3774 = vadd.f32 %v3741, %v3773
  %3775 = vmatmul.bf16.gmra.mxu0 %v1251
  %v3776 = vpop.f32.mrf.mxu0
  %v3777 = vadd.f32 %v3744, %v3776
  %v3778 = vpop.f32.mrf.mxu0
  %3779 = vdwg.mxu0
  %3780 = vmatpush.bf16.msra.mxu0 %v2650
  %3781 = vmatpush.bf16.msra.mxu0 %v2649
  %3782 = vmatpush.bf16.msra.mxu0 %v2648
  %3783 = vmatpush.bf16.msra.mxu0 %v2647
  %3784 = vmatpush.bf16.msra.mxu0 %v2646
  %3785 = vmatpush.bf16.msra.mxu0 %v2645
  %3786 = vmatpush.bf16.msra.mxu0 %v2644
  %3787 = vmatpush.bf16.msra.mxu0 %v2643
  %3788 = vmatmul.bf16.gmra.mxu0 %v1124
  %v3789 = vpop.f32.mrf.mxu0
  %v3790 = vadd.f32 %v3757, %v3789
  %v3791 = vpop.f32.mrf.mxu0
  %v3792 = vadd.f32 %v3759, %v3791
  %3793 = vmatmul.bf16.gmra.mxu0 %v1156
  %v3794 = vpop.f32.mrf.mxu0
  %v3795 = vadd.f32 %v3762, %v3794
  %v3796 = vpop.f32.mrf.mxu0
  %v3797 = vadd.f32 %v3764, %v3796
  %3798 = vmatmul.bf16.gmra.mxu0 %v1188
  %v3799 = vpop.f32.mrf.mxu0
  %v3800 = vadd.f32 %v3767, %v3799
  %v3801 = vpop.f32.mrf.mxu0
  %v3802 = vadd.f32 %v3769, %v3801
  %3803 = vmatmul.bf16.gmra.mxu0 %v1220
  %v3804 = vpop.f32.mrf.mxu0
  %v3805 = vadd.f32 %v3772, %v3804
  %v3806 = vpop.f32.mrf.mxu0
  %v3807 = vadd.f32 %v3774, %v3806
  %3808 = vmatmul.bf16.gmra.mxu0 %v1252
  %v3809 = vpop.f32.mrf.mxu0
  %v3810 = vadd.f32 %v3777, %v3809
  %v3811 = vpop.f32.mrf.mxu0
  %3812 = vdwg.mxu0
  %3813 = vmatpush.bf16.msra.mxu0 %v2658
  %3814 = vmatpush.bf16.msra.mxu0 %v2657
  %3815 = vmatpush.bf16.msra.mxu0 %v2656
  %3816 = vmatpush.bf16.msra.mxu0 %v2655
  %3817 = vmatpush.bf16.msra.mxu0 %v2654
  %3818 = vmatpush.bf16.msra.mxu0 %v2653
  %3819 = vmatpush.bf16.msra.mxu0 %v2652
  %3820 = vmatpush.bf16.msra.mxu0 %v2651
  %3821 = vmatmul.bf16.gmra.mxu0 %v1125
  %v3822 = vpop.f32.mrf.mxu0
  %v3823 = vadd.f32 %v3790, %v3822
  %v3824 = vpop.f32.mrf.mxu0
  %v3825 = vadd.f32 %v3792, %v3824
  %3826 = vmatmul.bf16.gmra.mxu0 %v1157
  %v3827 = vpop.f32.mrf.mxu0
  %v3828 = vadd.f32 %v3795, %v3827
  %v3829 = vpop.f32.mrf.mxu0
  %v3830 = vadd.f32 %v3797, %v3829
  %3831 = vmatmul.bf16.gmra.mxu0 %v1189
  %v3832 = vpop.f32.mrf.mxu0
  %v3833 = vadd.f32 %v3800, %v3832
  %v3834 = vpop.f32.mrf.mxu0
  %v3835 = vadd.f32 %v3802, %v3834
  %3836 = vmatmul.bf16.gmra.mxu0 %v1221
  %v3837 = vpop.f32.mrf.mxu0
  %v3838 = vadd.f32 %v3805, %v3837
  %v3839 = vpop.f32.mrf.mxu0
  %v3840 = vadd.f32 %v3807, %v3839
  %3841 = vmatmul.bf16.gmra.mxu0 %v1253
  %v3842 = vpop.f32.mrf.mxu0
  %v3843 = vadd.f32 %v3810, %v3842
  %v3844 = vpop.f32.mrf.mxu0
  %3845 = vdwg.mxu0
  %3846 = vmatpush.bf16.msra.mxu0 %v2666
  %3847 = vmatpush.bf16.msra.mxu0 %v2665
  %3848 = vmatpush.bf16.msra.mxu0 %v2664
  %3849 = vmatpush.bf16.msra.mxu0 %v2663
  %3850 = vmatpush.bf16.msra.mxu0 %v2662
  %3851 = vmatpush.bf16.msra.mxu0 %v2661
  %3852 = vmatpush.bf16.msra.mxu0 %v2660
  %3853 = vmatpush.bf16.msra.mxu0 %v2659
  %3854 = vmatmul.bf16.gmra.mxu0 %v1126
  %v3855 = vpop.f32.mrf.mxu0
  %v3856 = vadd.f32 %v3823, %v3855
  %v3857 = vpop.f32.mrf.mxu0
  %v3858 = vadd.f32 %v3825, %v3857
  %3859 = vmatmul.bf16.gmra.mxu0 %v1158
  %v3860 = vpop.f32.mrf.mxu0
  %v3861 = vadd.f32 %v3828, %v3860
  %v3862 = vpop.f32.mrf.mxu0
  %v3863 = vadd.f32 %v3830, %v3862
  %3864 = vmatmul.bf16.gmra.mxu0 %v1190
  %v3865 = vpop.f32.mrf.mxu0
  %v3866 = vadd.f32 %v3833, %v3865
  %v3867 = vpop.f32.mrf.mxu0
  %v3868 = vadd.f32 %v3835, %v3867
  %3869 = vmatmul.bf16.gmra.mxu0 %v1222
  %v3870 = vpop.f32.mrf.mxu0
  %v3871 = vadd.f32 %v3838, %v3870
  %v3872 = vpop.f32.mrf.mxu0
  %v3873 = vadd.f32 %v3840, %v3872
  %3874 = vmatmul.bf16.gmra.mxu0 %v1254
  %v3875 = vpop.f32.mrf.mxu0
  %v3876 = vadd.f32 %v3843, %v3875
  %v3877 = vpop.f32.mrf.mxu0
  %3878 = vdwg.mxu0
  %3879 = vmatpush.bf16.msra.mxu0 %v2674
  %3880 = vmatpush.bf16.msra.mxu0 %v2673
  %3881 = vmatpush.bf16.msra.mxu0 %v2672
  %3882 = vmatpush.bf16.msra.mxu0 %v2671
  %3883 = vmatpush.bf16.msra.mxu0 %v2670
  %3884 = vmatpush.bf16.msra.mxu0 %v2669
  %3885 = vmatpush.bf16.msra.mxu0 %v2668
  %3886 = vmatpush.bf16.msra.mxu0 %v2667
  %3887 = vmatmul.bf16.gmra.mxu0 %v1127
  %v3888 = vpop.f32.mrf.mxu0
  %v3889 = vadd.f32 %v3856, %v3888
  %v3890 = vpop.f32.mrf.mxu0
  %v3891 = vadd.f32 %v3858, %v3890
  %3892 = vmatmul.bf16.gmra.mxu0 %v1159
  %v3893 = vpop.f32.mrf.mxu0
  %v3894 = vadd.f32 %v3861, %v3893
  %v3895 = vpop.f32.mrf.mxu0
  %v3896 = vadd.f32 %v3863, %v3895
  %3897 = vmatmul.bf16.gmra.mxu0 %v1191
  %v3898 = vpop.f32.mrf.mxu0
  %v3899 = vadd.f32 %v3866, %v3898
  %v3900 = vpop.f32.mrf.mxu0
  %v3901 = vadd.f32 %v3868, %v3900
  %3902 = vmatmul.bf16.gmra.mxu0 %v1223
  %v3903 = vpop.f32.mrf.mxu0
  %v3904 = vadd.f32 %v3871, %v3903
  %v3905 = vpop.f32.mrf.mxu0
  %v3906 = vadd.f32 %v3873, %v3905
  %3907 = vmatmul.bf16.gmra.mxu0 %v1255
  %v3908 = vpop.f32.mrf.mxu0
  %v3909 = vadd.f32 %v3876, %v3908
  %v3910 = vpop.f32.mrf.mxu0
  %3911 = vdwg.mxu0
  %3912 = vmatpush.bf16.msra.mxu0 %v2682
  %3913 = vmatpush.bf16.msra.mxu0 %v2681
  %3914 = vmatpush.bf16.msra.mxu0 %v2680
  %3915 = vmatpush.bf16.msra.mxu0 %v2679
  %3916 = vmatpush.bf16.msra.mxu0 %v2678
  %3917 = vmatpush.bf16.msra.mxu0 %v2677
  %3918 = vmatpush.bf16.msra.mxu0 %v2676
  %3919 = vmatpush.bf16.msra.mxu0 %v2675
  %3920 = vmatmul.bf16.gmra.mxu0 %v1128
  %v3921 = vpop.f32.mrf.mxu0
  %v3922 = vadd.f32 %v3889, %v3921
  %v3923 = vpop.f32.mrf.mxu0
  %v3924 = vadd.f32 %v3891, %v3923
  %3925 = vmatmul.bf16.gmra.mxu0 %v1160
  %v3926 = vpop.f32.mrf.mxu0
  %v3927 = vadd.f32 %v3894, %v3926
  %v3928 = vpop.f32.mrf.mxu0
  %v3929 = vadd.f32 %v3896, %v3928
  %3930 = vmatmul.bf16.gmra.mxu0 %v1192
  %v3931 = vpop.f32.mrf.mxu0
  %v3932 = vadd.f32 %v3899, %v3931
  %v3933 = vpop.f32.mrf.mxu0
  %v3934 = vadd.f32 %v3901, %v3933
  %3935 = vmatmul.bf16.gmra.mxu0 %v1224
  %v3936 = vpop.f32.mrf.mxu0
  %v3937 = vadd.f32 %v3904, %v3936
  %v3938 = vpop.f32.mrf.mxu0
  %v3939 = vadd.f32 %v3906, %v3938
  %3940 = vmatmul.bf16.gmra.mxu0 %v1256
  %v3941 = vpop.f32.mrf.mxu0
  %v3942 = vadd.f32 %v3909, %v3941
  %v3943 = vpop.f32.mrf.mxu0
  %3944 = vdwg.mxu0
  %3945 = vmatpush.bf16.msra.mxu0 %v2690
  %3946 = vmatpush.bf16.msra.mxu0 %v2689
  %3947 = vmatpush.bf16.msra.mxu0 %v2688
  %3948 = vmatpush.bf16.msra.mxu0 %v2687
  %3949 = vmatpush.bf16.msra.mxu0 %v2686
  %3950 = vmatpush.bf16.msra.mxu0 %v2685
  %3951 = vmatpush.bf16.msra.mxu0 %v2684
  %3952 = vmatpush.bf16.msra.mxu0 %v2683
  %3953 = vmatmul.bf16.gmra.mxu0 %v1129
  %v3954 = vpop.f32.mrf.mxu0
  %v3955 = vadd.f32 %v3922, %v3954
  %v3956 = vpop.f32.mrf.mxu0
  %v3957 = vadd.f32 %v3924, %v3956
  %3958 = vmatmul.bf16.gmra.mxu0 %v1161
  %v3959 = vpop.f32.mrf.mxu0
  %v3960 = vadd.f32 %v3927, %v3959
  %v3961 = vpop.f32.mrf.mxu0
  %v3962 = vadd.f32 %v3929, %v3961
  %3963 = vmatmul.bf16.gmra.mxu0 %v1193
  %v3964 = vpop.f32.mrf.mxu0
  %v3965 = vadd.f32 %v3932, %v3964
  %v3966 = vpop.f32.mrf.mxu0
  %v3967 = vadd.f32 %v3934, %v3966
  %3968 = vmatmul.bf16.gmra.mxu0 %v1225
  %v3969 = vpop.f32.mrf.mxu0
  %v3970 = vadd.f32 %v3937, %v3969
  %v3971 = vpop.f32.mrf.mxu0
  %v3972 = vadd.f32 %v3939, %v3971
  %3973 = vmatmul.bf16.gmra.mxu0 %v1257
  %v3974 = vpop.f32.mrf.mxu0
  %v3975 = vadd.f32 %v3942, %v3974
  %v3976 = vpop.f32.mrf.mxu0
  %3977 = vdwg.mxu0
  %3978 = vmatpush.bf16.msra.mxu0 %v2698
  %3979 = vmatpush.bf16.msra.mxu0 %v2697
  %3980 = vmatpush.bf16.msra.mxu0 %v2696
  %3981 = vmatpush.bf16.msra.mxu0 %v2695
  %3982 = vmatpush.bf16.msra.mxu0 %v2694
  %3983 = vmatpush.bf16.msra.mxu0 %v2693
  %3984 = vmatpush.bf16.msra.mxu0 %v2692
  %3985 = vmatpush.bf16.msra.mxu0 %v2691
  %3986 = vmatmul.bf16.gmra.mxu0 %v1130
  %v3987 = vpop.f32.mrf.mxu0
  %v3988 = vadd.f32 %v3955, %v3987
  %v3989 = vpop.f32.mrf.mxu0
  %v3990 = vadd.f32 %v3957, %v3989
  %3991 = vmatmul.bf16.gmra.mxu0 %v1162
  %v3992 = vpop.f32.mrf.mxu0
  %v3993 = vadd.f32 %v3960, %v3992
  %v3994 = vpop.f32.mrf.mxu0
  %v3995 = vadd.f32 %v3962, %v3994
  %3996 = vmatmul.bf16.gmra.mxu0 %v1194
  %v3997 = vpop.f32.mrf.mxu0
  %v3998 = vadd.f32 %v3965, %v3997
  %v3999 = vpop.f32.mrf.mxu0
  %v4000 = vadd.f32 %v3967, %v3999
  %4001 = vmatmul.bf16.gmra.mxu0 %v1226
  %v4002 = vpop.f32.mrf.mxu0
  %v4003 = vadd.f32 %v3970, %v4002
  %v4004 = vpop.f32.mrf.mxu0
  %v4005 = vadd.f32 %v3972, %v4004
  %4006 = vmatmul.bf16.gmra.mxu0 %v1258
  %v4007 = vpop.f32.mrf.mxu0
  %v4008 = vadd.f32 %v3975, %v4007
  %v4009 = vpop.f32.mrf.mxu0
  %4010 = vdwg.mxu0
  %v4011 = vadd.f32 %v3988, %v3990
  %v4012 = vadd.f32 %v4011, %v3993
  %v4013 = vadd.f32 %v4012, %v3995
  %v4014 = vadd.f32 %v4013, %v3998
  %v4015 = vadd.f32 %v4014, %v4000
  %v4016 = vadd.f32 %v4015, %v4003
  %v4017 = vadd.f32 %v4016, %v4005
  %v4018 = vadd.f32 %v4017, %v4008
  %v4019 = vrot.slane %v4018, 4
  %v4020 = vadd.f32 %v4018, %v4019
  %v4021 = vrot.slane %v4020, 2
  %v4022 = vadd.f32 %v4020, %v4021
  %v4023 = vrot.slane %v4022, 1
  %v4024 = vadd.f32 %v4022, %v4023
  %v4025 = vmul.f32 %v4024, 0.013888889
  %v4026 = vlaneseq
  %v4027 = vshrl.u32 %v4026, 7
  %v4028 = vadd.s32 %v4027, 8
  %v4029 = vadd.s32 %v4027, 16
  %v4030 = vadd.s32 %v4027, 24
  %v4031 = vadd.s32 %v4027, 32
  %v4032 = vadd.s32 %v4027, 40
  %v4033 = vadd.s32 %v4027, 48
  %v4034 = vadd.s32 %v4027, 56
  %v4035 = vadd.s32 %v4027, 64
  %vm4036 = vcmp.lt.s32.totalorder %v4027, 72
  %vm4037 = vcmp.lt.s32.totalorder %v4028, 72
  %vm4038 = vcmp.lt.s32.totalorder %v4029, 72
  %vm4039 = vcmp.lt.s32.totalorder %v4030, 72
  %vm4040 = vcmp.lt.s32.totalorder %v4031, 72
  %vm4041 = vcmp.lt.s32.totalorder %v4032, 72
  %vm4042 = vcmp.lt.s32.totalorder %v4033, 72
  %vm4043 = vcmp.lt.s32.totalorder %v4034, 72
  %vm4044 = vcmp.lt.s32.totalorder %v4035, 72
  %v4045 = vsub.f32 %v3988, %v4025
  %v4046 = vsub.f32 %v3990, %v4025
  %v4047 = vsub.f32 %v3993, %v4025
  %v4048 = vsub.f32 %v3995, %v4025
  %v4049 = vsub.f32 %v3998, %v4025
  %v4050 = vsub.f32 %v4000, %v4025
  %v4051 = vsub.f32 %v4003, %v4025
  %v4052 = vsub.f32 %v4005, %v4025
  %v4053 = vsub.f32 %v4008, %v4025
  %v4054 = vsel %vm4036, %v4045, 0.0
  %v4055 = vsel %vm4037, %v4046, 0.0
  %v4056 = vsel %vm4038, %v4047, 0.0
  %v4057 = vsel %vm4039, %v4048, 0.0
  %v4058 = vsel %vm4040, %v4049, 0.0
  %v4059 = vsel %vm4041, %v4050, 0.0
  %v4060 = vsel %vm4042, %v4051, 0.0
  %v4061 = vsel %vm4043, %v4052, 0.0
  %v4062 = vsel %vm4044, %v4053, 0.0
  %v4063 = vmul.f32 %v4054, %v4054
  %v4064 = vmul.f32 %v4055, %v4055
  %v4065 = vmul.f32 %v4056, %v4056
  %v4066 = vmul.f32 %v4057, %v4057
  %v4067 = vmul.f32 %v4058, %v4058
  %v4068 = vmul.f32 %v4059, %v4059
  %v4069 = vmul.f32 %v4060, %v4060
  %v4070 = vmul.f32 %v4061, %v4061
  %v4071 = vmul.f32 %v4062, %v4062
  %v4072 = vadd.f32 %v4063, %v4064
  %v4073 = vadd.f32 %v4072, %v4065
  %v4074 = vadd.f32 %v4073, %v4066
  %v4075 = vadd.f32 %v4074, %v4067
  %v4076 = vadd.f32 %v4075, %v4068
  %v4077 = vadd.f32 %v4076, %v4069
  %v4078 = vadd.f32 %v4077, %v4070
  %v4079 = vadd.f32 %v4078, %v4071
  %v4080 = vrot.slane %v4079, 4
  %v4081 = vadd.f32 %v4079, %v4080
  %v4082 = vrot.slane %v4081, 2
  %v4083 = vadd.f32 %v4081, %v4082
  %v4084 = vrot.slane %v4083, 1
  %v4085 = vadd.f32 %v4083, %v4084
  %v4086 = vmul.f32 %v4085, 0.013888889
  %v4087 = vadd.f32 %v4086, 1e-05
  %v4088 = vrsqrt.pop %v4087
  %v4089 = vmul.f32 %v4088, %v4087
  %v4090 = vmul.f32 %v4089, %v4088
  %v4091 = vmul.f32 0.5, %v4090
  %v4092 = vsub.f32 1.5, %v4091
  %v4093 = vmul.f32 %v4088, %v4092
  %vm4094 = vweird.f32 %v4087
  %vm4095 = vweird.f32 %v4088
  %vm4096 = vmor %vm4094, %vm4095
  %v4097 = vsel %vm4096, %v4088, %v4093
  %v4098 = vmul.f32 %v4045, %v4097
  %v4099 = vmul.f32 %v4046, %v4097
  %v4100 = vmul.f32 %v4047, %v4097
  %v4101 = vmul.f32 %v4048, %v4097
  %v4102 = vmul.f32 %v4049, %v4097
  %v4103 = vmul.f32 %v4050, %v4097
  %v4104 = vmul.f32 %v4051, %v4097
  %v4105 = vmul.f32 %v4052, %v4097
  %v4106 = vmul.f32 %v4053, %v4097
  %vm4107 = vcmp.ge.f32.partialorder %v4098, 0.0
  %vm4108 = vcmp.ge.f32.partialorder %v4099, 0.0
  %vm4109 = vcmp.ge.f32.partialorder %v4100, 0.0
  %vm4110 = vcmp.ge.f32.partialorder %v4101, 0.0
  %vm4111 = vcmp.ge.f32.partialorder %v4102, 0.0
  %vm4112 = vcmp.ge.f32.partialorder %v4103, 0.0
  %vm4113 = vcmp.ge.f32.partialorder %v4104, 0.0
  %vm4114 = vcmp.ge.f32.partialorder %v4105, 0.0
  %vm4115 = vcmp.ge.f32.partialorder %v4106, 0.0
  %v4116 = vmul.f32 %v4098, 0.2
  %v4117 = vmul.f32 %v4099, 0.2
  %v4118 = vmul.f32 %v4100, 0.2
  %v4119 = vmul.f32 %v4101, 0.2
  %v4120 = vmul.f32 %v4102, 0.2
  %v4121 = vmul.f32 %v4103, 0.2
  %v4122 = vmul.f32 %v4104, 0.2
  %v4123 = vmul.f32 %v4105, 0.2
  %v4124 = vmul.f32 %v4106, 0.2
  %v4125 = vsel %vm4107, %v4098, %v4116
  %v4126 = vsel %vm4108, %v4099, %v4117
  %v4127 = vsel %vm4109, %v4100, %v4118
  %v4128 = vsel %vm4110, %v4101, %v4119
  %v4129 = vsel %vm4111, %v4102, %v4120
  %v4130 = vsel %vm4112, %v4103, %v4121
  %v4131 = vsel %vm4113, %v4104, %v4122
  %v4132 = vsel %vm4114, %v4105, %v4123
  %v4133 = vsel %vm4115, %v4106, %v4124
  %v4134 = vpack.c.bf16 %v4125, %v4125
  %v4135 = vpack.c.bf16 %v4126, %v4126
  %v4136 = vpack.c.bf16 %v4127, %v4127
  %v4137 = vpack.c.bf16 %v4128, %v4128
  %v4138 = vpack.c.bf16 %v4129, %v4129
  %v4139 = vpack.c.bf16 %v4130, %v4130
  %v4140 = vpack.c.bf16 %v4131, %v4131
  %v4141 = vpack.c.bf16 %v4132, %v4132
  %v4142 = vpack.c.bf16 %v4133, %v4133
  %4143 = vst [vmem:[%s2] sm:$0xf] %v4134
  %4144 = vst [vmem:[%s2 + $0x4] sm:$0xf] %v4135
  %4145 = vst [vmem:[%s2 + $0x8] sm:$0xf] %v4136
  %4146 = vst [vmem:[%s2 + $0xc] sm:$0xf] %v4137
  %4147 = vst [vmem:[%s2 + $0x10] sm:$0xf] %v4138
  %4148 = vst [vmem:[%s2 + $0x14] sm:$0xf] %v4139
  %4149 = vst [vmem:[%s2 + $0x18] sm:$0xf] %v4140
  %4150 = vst [vmem:[%s2 + $0x1c] sm:$0xf] %v4141
  %4151 = vst [vmem:[%s2 + $0x20] sm:$0xf] %v4142
  // Predicated region
  $region10: #{dc_discriminator.4} parent=0 // pred_check
    _
  $region11: #{dc_discriminator.4} parent=0 // pred_check_branch
    %4153 = sbr.rel (0) target = $region13
  $region12: #{dc_discriminator.4} parent=0 // pred_region
    _
  $region13: #{dc_discriminator.4} parent=0 // pred_fallthru
    _
  // Predicated region
  $region14: #{dc_discriminator.4} parent=0 // pred_check
    _
  $region15: #{dc_discriminator.4} parent=0 // pred_check_branch
    %4155 = sbr.rel (0) target = $region17
  $region16: #{dc_discriminator.4} parent=0 // pred_region
    _
  $region17: #{dc_discriminator.4} parent=0 // pred_fallthru
    _

// kernel: dc_discriminator.5
$region0: #{dc_discriminator.5}
  #allocation0 [shape = 'u32[]', space=smem, size = 0x4, offset = 0x4, fixed_abs, tag = 'smem constant byte address 0x4 - core index']
  #allocation1 [shape = 'u32[72,128]{1,0:T(1,128)}', space=vmem, size = 0x9000, scoped, tag = 'internal scratch']
  %s0 = inlined_call_operand.vmem [shape: bf16[8,8192], index: 0, kind: input, shape index: {}]
  %s1 = inlined_call_operand.vmem [shape: bf16[8192,256], index: 1, kind: input, shape index: {}]
  %s2 = inlined_call_operand.vmem [shape: bf16[256,128], index: 2, kind: input, shape index: {}]
  %s3 = inlined_call_operand.vmem [shape: f32[8,128], index: 3, kind: output, shape index: {}]
  %s4 = sld [smem:[#allocation0]]
  $region22: #{dc_discriminator.5} parent=0
    _
  %s6 = ssub.s32 1, %s4
  %s7 = scalar_select 0, %s6, %s4
  // Predicated region
  $region2: #{dc_discriminator.5} parent=0 // pred_check
    _
  $region3: #{dc_discriminator.5} parent=0 // pred_check_branch
    %9 = sbr.rel (0) target = $region5
  $region4: #{dc_discriminator.5} parent=0 // pred_region
    _
  $region5: #{dc_discriminator.5} parent=0 // pred_fallthru
    _
  // Predicated region
  $region6: #{dc_discriminator.5} parent=0 // pred_check
    _
  $region7: #{dc_discriminator.5} parent=0 // pred_check_branch
    %11 = sbr.rel (0) target = $region9
  $region8: #{dc_discriminator.5} parent=0 // pred_region
    _
  $region9: #{dc_discriminator.5} parent=0 // pred_fallthru
    _
  // Predicated region
  $region10: #{dc_discriminator.5} parent=0 // pred_check
    _
  $region11: #{dc_discriminator.5} parent=0 // pred_check_branch
    %13 = sbr.rel (0) target = $region13
  $region12: #{dc_discriminator.5} parent=0 // pred_region
    _
  $region13: #{dc_discriminator.5} parent=0 // pred_fallthru
    _
  %v14 = vld [vmem:[%s0] sm:$0xff]
  %v15 = vld [vmem:[%s0 + $0x8] sm:$0xff]
  %v16 = vld [vmem:[%s0 + $0x10] sm:$0xff]
  %v17 = vld [vmem:[%s0 + $0x18] sm:$0xff]
  %v18 = vld [vmem:[%s0 + $0x20] sm:$0xff]
  %v19 = vld [vmem:[%s0 + $0x28] sm:$0xff]
  %v20 = vld [vmem:[%s0 + $0x30] sm:$0xff]
  %v21 = vld [vmem:[%s0 + $0x38] sm:$0xff]
  %v22 = vld [vmem:[%s0 + $0x40] sm:$0xff]
  %v23 = vld [vmem:[%s0 + $0x48] sm:$0xff]
  %v24 = vld [vmem:[%s0 + $0x50] sm:$0xff]
  %v25 = vld [vmem:[%s0 + $0x58] sm:$0xff]
  %v26 = vld [vmem:[%s0 + $0x60] sm:$0xff]
  %v27 = vld [vmem:[%s0 + $0x68] sm:$0xff]
  %v28 = vld [vmem:[%s0 + $0x70] sm:$0xff]
  %v29 = vld [vmem:[%s0 + $0x78] sm:$0xff]
  %v30 = vld [vmem:[%s0 + $0x80] sm:$0xff]
  %v31 = vld [vmem:[%s0 + $0x88] sm:$0xff]
  %v32 = vld [vmem:[%s0 + $0x90] sm:$0xff]
  %v33 = vld [vmem:[%s0 + $0x98] sm:$0xff]
  %v34 = vld [vmem:[%s0 + $0xa0] sm:$0xff]
  %v35 = vld [vmem:[%s0 + $0xa8] sm:$0xff]
  %v36 = vld [vmem:[%s0 + $0xb0] sm:$0xff]
  %v37 = vld [vmem:[%s0 + $0xb8] sm:$0xff]
  %v38 = vld [vmem:[%s0 + $0xc0] sm:$0xff]
  %v39 = vld [vmem:[%s0 + $0xc8] sm:$0xff]
  %v40 = vld [vmem:[%s0 + $0xd0] sm:$0xff]
  %v41 = vld [vmem:[%s0 + $0xd8] sm:$0xff]
  %v42 = vld [vmem:[%s0 + $0xe0] sm:$0xff]
  %v43 = vld [vmem:[%s0 + $0xe8] sm:$0xff]
  %v44 = vld [vmem:[%s0 + $0xf0] sm:$0xff]
  %v45 = vld [vmem:[%s0 + $0xf8] sm:$0xff]
  %v46 = vld [vmem:[%s1] sm:$0xff]
  %v47 = vld [vmem:[%s1 + $0x8] sm:$0xff]
  %v48 = vld [vmem:[%s1 + $0x10] sm:$0xff]
  %v49 = vld [vmem:[%s1 + $0x18] sm:$0xff]
  %v50 = vld [vmem:[%s1 + $0x20] sm:$0xff]
  %v51 = vld [vmem:[%s1 + $0x28] sm:$0xff]
  %v52 = vld [vmem:[%s1 + $0x30] sm:$0xff]
  %v53 = vld [vmem:[%s1 + $0x38] sm:$0xff]
  %v54 = vld [vmem:[%s1 + $0x40] sm:$0xff]
  %v55 = vld [vmem:[%s1 + $0x48] sm:$0xff]
  %v56 = vld [vmem:[%s1 + $0x50] sm:$0xff]
  %v57 = vld [vmem:[%s1 + $0x58] sm:$0xff]
  %v58 = vld [vmem:[%s1 + $0x60] sm:$0xff]
  %v59 = vld [vmem:[%s1 + $0x68] sm:$0xff]
  %v60 = vld [vmem:[%s1 + $0x70] sm:$0xff]
  %v61 = vld [vmem:[%s1 + $0x78] sm:$0xff]
  %v62 = vld [vmem:[%s1 + $0x80] sm:$0xff]
  %v63 = vld [vmem:[%s1 + $0x88] sm:$0xff]
  %v64 = vld [vmem:[%s1 + $0x90] sm:$0xff]
  %v65 = vld [vmem:[%s1 + $0x98] sm:$0xff]
  %v66 = vld [vmem:[%s1 + $0xa0] sm:$0xff]
  %v67 = vld [vmem:[%s1 + $0xa8] sm:$0xff]
  %v68 = vld [vmem:[%s1 + $0xb0] sm:$0xff]
  %v69 = vld [vmem:[%s1 + $0xb8] sm:$0xff]
  %v70 = vld [vmem:[%s1 + $0xc0] sm:$0xff]
  %v71 = vld [vmem:[%s1 + $0xc8] sm:$0xff]
  %v72 = vld [vmem:[%s1 + $0xd0] sm:$0xff]
  %v73 = vld [vmem:[%s1 + $0xd8] sm:$0xff]
  %v74 = vld [vmem:[%s1 + $0xe0] sm:$0xff]
  %v75 = vld [vmem:[%s1 + $0xe8] sm:$0xff]
  %v76 = vld [vmem:[%s1 + $0xf0] sm:$0xff]
  %v77 = vld [vmem:[%s1 + $0xf8] sm:$0xff]
  %v78 = vld [vmem:[%s1 + $0x100] sm:$0xff]
  %v79 = vld [vmem:[%s1 + $0x108] sm:$0xff]
  %v80 = vld [vmem:[%s1 + $0x110] sm:$0xff]
  %v81 = vld [vmem:[%s1 + $0x118] sm:$0xff]
  %v82 = vld [vmem:[%s1 + $0x120] sm:$0xff]
  %v83 = vld [vmem:[%s1 + $0x128] sm:$0xff]
  %v84 = vld [vmem:[%s1 + $0x130] sm:$0xff]
  %v85 = vld [vmem:[%s1 + $0x138] sm:$0xff]
  %v86 = vld [vmem:[%s1 + $0x140] sm:$0xff]
  %v87 = vld [vmem:[%s1 + $0x148] sm:$0xff]
  %v88 = vld [vmem:[%s1 + $0x150] sm:$0xff]
  %v89 = vld [vmem:[%s1 + $0x158] sm:$0xff]
  %v90 = vld [vmem:[%s1 + $0x160] sm:$0xff]
  %v91 = vld [vmem:[%s1 + $0x168] sm:$0xff]
  %v92 = vld [vmem:[%s1 + $0x170] sm:$0xff]
  %v93 = vld [vmem:[%s1 + $0x178] sm:$0xff]
  %v94 = vld [vmem:[%s1 + $0x180] sm:$0xff]
  %v95 = vld [vmem:[%s1 + $0x188] sm:$0xff]
  %v96 = vld [vmem:[%s1 + $0x190] sm:$0xff]
  %v97 = vld [vmem:[%s1 + $0x198] sm:$0xff]
  %v98 = vld [vmem:[%s1 + $0x1a0] sm:$0xff]
  %v99 = vld [vmem:[%s1 + $0x1a8] sm:$0xff]
  %v100 = vld [vmem:[%s1 + $0x1b0] sm:$0xff]
  %v101 = vld [vmem:[%s1 + $0x1b8] sm:$0xff]
  %v102 = vld [vmem:[%s1 + $0x1c0] sm:$0xff]
  %v103 = vld [vmem:[%s1 + $0x1c8] sm:$0xff]
  %v104 = vld [vmem:[%s1 + $0x1d0] sm:$0xff]
  %v105 = vld [vmem:[%s1 + $0x1d8] sm:$0xff]
  %v106 = vld [vmem:[%s1 + $0x1e0] sm:$0xff]
  %v107 = vld [vmem:[%s1 + $0x1e8] sm:$0xff]
  %v108 = vld [vmem:[%s1 + $0x1f0] sm:$0xff]
  %v109 = vld [vmem:[%s1 + $0x1f8] sm:$0xff]
  %v110 = vld [vmem:[%s1 + $0x200] sm:$0xff]
  %v111 = vld [vmem:[%s1 + $0x208] sm:$0xff]
  %v112 = vld [vmem:[%s1 + $0x210] sm:$0xff]
  %v113 = vld [vmem:[%s1 + $0x218] sm:$0xff]
  %v114 = vld [vmem:[%s1 + $0x220] sm:$0xff]
  %v115 = vld [vmem:[%s1 + $0x228] sm:$0xff]
  %v116 = vld [vmem:[%s1 + $0x230] sm:$0xff]
  %v117 = vld [vmem:[%s1 + $0x238] sm:$0xff]
  %v118 = vld [vmem:[%s1 + $0x240] sm:$0xff]
  %v119 = vld [vmem:[%s1 + $0x248] sm:$0xff]
  %v120 = vld [vmem:[%s1 + $0x250] sm:$0xff]
  %v121 = vld [vmem:[%s1 + $0x258] sm:$0xff]
  %v122 = vld [vmem:[%s1 + $0x260] sm:$0xff]
  %v123 = vld [vmem:[%s1 + $0x268] sm:$0xff]
  %v124 = vld [vmem:[%s1 + $0x270] sm:$0xff]
  %v125 = vld [vmem:[%s1 + $0x278] sm:$0xff]
  %v126 = vld [vmem:[%s1 + $0x280] sm:$0xff]
  %v127 = vld [vmem:[%s1 + $0x288] sm:$0xff]
  %v128 = vld [vmem:[%s1 + $0x290] sm:$0xff]
  %v129 = vld [vmem:[%s1 + $0x298] sm:$0xff]
  %v130 = vld [vmem:[%s1 + $0x2a0] sm:$0xff]
  %v131 = vld [vmem:[%s1 + $0x2a8] sm:$0xff]
  %v132 = vld [vmem:[%s1 + $0x2b0] sm:$0xff]
  %v133 = vld [vmem:[%s1 + $0x2b8] sm:$0xff]
  %v134 = vld [vmem:[%s1 + $0x2c0] sm:$0xff]
  %v135 = vld [vmem:[%s1 + $0x2c8] sm:$0xff]
  %v136 = vld [vmem:[%s1 + $0x2d0] sm:$0xff]
  %v137 = vld [vmem:[%s1 + $0x2d8] sm:$0xff]
  %v138 = vld [vmem:[%s1 + $0x2e0] sm:$0xff]
  %v139 = vld [vmem:[%s1 + $0x2e8] sm:$0xff]
  %v140 = vld [vmem:[%s1 + $0x2f0] sm:$0xff]
  %v141 = vld [vmem:[%s1 + $0x2f8] sm:$0xff]
  %v142 = vld [vmem:[%s1 + $0x300] sm:$0xff]
  %v143 = vld [vmem:[%s1 + $0x308] sm:$0xff]
  %v144 = vld [vmem:[%s1 + $0x310] sm:$0xff]
  %v145 = vld [vmem:[%s1 + $0x318] sm:$0xff]
  %v146 = vld [vmem:[%s1 + $0x320] sm:$0xff]
  %v147 = vld [vmem:[%s1 + $0x328] sm:$0xff]
  %v148 = vld [vmem:[%s1 + $0x330] sm:$0xff]
  %v149 = vld [vmem:[%s1 + $0x338] sm:$0xff]
  %v150 = vld [vmem:[%s1 + $0x340] sm:$0xff]
  %v151 = vld [vmem:[%s1 + $0x348] sm:$0xff]
  %v152 = vld [vmem:[%s1 + $0x350] sm:$0xff]
  %v153 = vld [vmem:[%s1 + $0x358] sm:$0xff]
  %v154 = vld [vmem:[%s1 + $0x360] sm:$0xff]
  %v155 = vld [vmem:[%s1 + $0x368] sm:$0xff]
  %v156 = vld [vmem:[%s1 + $0x370] sm:$0xff]
  %v157 = vld [vmem:[%s1 + $0x378] sm:$0xff]
  %v158 = vld [vmem:[%s1 + $0x380] sm:$0xff]
  %v159 = vld [vmem:[%s1 + $0x388] sm:$0xff]
  %v160 = vld [vmem:[%s1 + $0x390] sm:$0xff]
  %v161 = vld [vmem:[%s1 + $0x398] sm:$0xff]
  %v162 = vld [vmem:[%s1 + $0x3a0] sm:$0xff]
  %v163 = vld [vmem:[%s1 + $0x3a8] sm:$0xff]
  %v164 = vld [vmem:[%s1 + $0x3b0] sm:$0xff]
  %v165 = vld [vmem:[%s1 + $0x3b8] sm:$0xff]
  %v166 = vld [vmem:[%s1 + $0x3c0] sm:$0xff]
  %v167 = vld [vmem:[%s1 + $0x3c8] sm:$0xff]
  %v168 = vld [vmem:[%s1 + $0x3d0] sm:$0xff]
  %v169 = vld [vmem:[%s1 + $0x3d8] sm:$0xff]
  %v170 = vld [vmem:[%s1 + $0x3e0] sm:$0xff]
  %v171 = vld [vmem:[%s1 + $0x3e8] sm:$0xff]
  %v172 = vld [vmem:[%s1 + $0x3f0] sm:$0xff]
  %v173 = vld [vmem:[%s1 + $0x3f8] sm:$0xff]
  %v174 = vld [vmem:[%s1 + $0x400] sm:$0xff]
  %v175 = vld [vmem:[%s1 + $0x408] sm:$0xff]
  %v176 = vld [vmem:[%s1 + $0x410] sm:$0xff]
  %v177 = vld [vmem:[%s1 + $0x418] sm:$0xff]
  %v178 = vld [vmem:[%s1 + $0x420] sm:$0xff]
  %v179 = vld [vmem:[%s1 + $0x428] sm:$0xff]
  %v180 = vld [vmem:[%s1 + $0x430] sm:$0xff]
  %v181 = vld [vmem:[%s1 + $0x438] sm:$0xff]
  %v182 = vld [vmem:[%s1 + $0x440] sm:$0xff]
  %v183 = vld [vmem:[%s1 + $0x448] sm:$0xff]
  %v184 = vld [vmem:[%s1 + $0x450] sm:$0xff]
  %v185 = vld [vmem:[%s1 + $0x458] sm:$0xff]
  %v186 = vld [vmem:[%s1 + $0x460] sm:$0xff]
  %v187 = vld [vmem:[%s1 + $0x468] sm:$0xff]
  %v188 = vld [vmem:[%s1 + $0x470] sm:$0xff]
  %v189 = vld [vmem:[%s1 + $0x478] sm:$0xff]
  %v190 = vld [vmem:[%s1 + $0x480] sm:$0xff]
  %v191 = vld [vmem:[%s1 + $0x488] sm:$0xff]
  %v192 = vld [vmem:[%s1 + $0x490] sm:$0xff]
  %v193 = vld [vmem:[%s1 + $0x498] sm:$0xff]
  %v194 = vld [vmem:[%s1 + $0x4a0] sm:$0xff]
  %v195 = vld [vmem:[%s1 + $0x4a8] sm:$0xff]
  %v196 = vld [vmem:[%s1 + $0x4b0] sm:$0xff]
  %v197 = vld [vmem:[%s1 + $0x4b8] sm:$0xff]
  %v198 = vld [vmem:[%s1 + $0x4c0] sm:$0xff]
  %v199 = vld [vmem:[%s1 + $0x4c8] sm:$0xff]
  %v200 = vld [vmem:[%s1 + $0x4d0] sm:$0xff]
  %v201 = vld [vmem:[%s1 + $0x4d8] sm:$0xff]
  %v202 = vld [vmem:[%s1 + $0x4e0] sm:$0xff]
  %v203 = vld [vmem:[%s1 + $0x4e8] sm:$0xff]
  %v204 = vld [vmem:[%s1 + $0x4f0] sm:$0xff]
  %v205 = vld [vmem:[%s1 + $0x4f8] sm:$0xff]
  %v206 = vld [vmem:[%s1 + $0x500] sm:$0xff]
  %v207 = vld [vmem:[%s1 + $0x508] sm:$0xff]
  %v208 = vld [vmem:[%s1 + $0x510] sm:$0xff]
  %v209 = vld [vmem:[%s1 + $0x518] sm:$0xff]
  %v210 = vld [vmem:[%s1 + $0x520] sm:$0xff]
  %v211 = vld [vmem:[%s1 + $0x528] sm:$0xff]
  %v212 = vld [vmem:[%s1 + $0x530] sm:$0xff]
  %v213 = vld [vmem:[%s1 + $0x538] sm:$0xff]
  %v214 = vld [vmem:[%s1 + $0x540] sm:$0xff]
  %v215 = vld [vmem:[%s1 + $0x548] sm:$0xff]
  %v216 = vld [vmem:[%s1 + $0x550] sm:$0xff]
  %v217 = vld [vmem:[%s1 + $0x558] sm:$0xff]
  %v218 = vld [vmem:[%s1 + $0x560] sm:$0xff]
  %v219 = vld [vmem:[%s1 + $0x568] sm:$0xff]
  %v220 = vld [vmem:[%s1 + $0x570] sm:$0xff]
  %v221 = vld [vmem:[%s1 + $0x578] sm:$0xff]
  %v222 = vld [vmem:[%s1 + $0x580] sm:$0xff]
  %v223 = vld [vmem:[%s1 + $0x588] sm:$0xff]
  %v224 = vld [vmem:[%s1 + $0x590] sm:$0xff]
  %v225 = vld [vmem:[%s1 + $0x598] sm:$0xff]
  %v226 = vld [vmem:[%s1 + $0x5a0] sm:$0xff]
  %v227 = vld [vmem:[%s1 + $0x5a8] sm:$0xff]
  %v228 = vld [vmem:[%s1 + $0x5b0] sm:$0xff]
  %v229 = vld [vmem:[%s1 + $0x5b8] sm:$0xff]
  %v230 = vld [vmem:[%s1 + $0x5c0] sm:$0xff]
  %v231 = vld [vmem:[%s1 + $0x5c8] sm:$0xff]
  %v232 = vld [vmem:[%s1 + $0x5d0] sm:$0xff]
  %v233 = vld [vmem:[%s1 + $0x5d8] sm:$0xff]
  %v234 = vld [vmem:[%s1 + $0x5e0] sm:$0xff]
  %v235 = vld [vmem:[%s1 + $0x5e8] sm:$0xff]
  %v236 = vld [vmem:[%s1 + $0x5f0] sm:$0xff]
  %v237 = vld [vmem:[%s1 + $0x5f8] sm:$0xff]
  %v238 = vld [vmem:[%s1 + $0x600] sm:$0xff]
  %v239 = vld [vmem:[%s1 + $0x608] sm:$0xff]
  %v240 = vld [vmem:[%s1 + $0x610] sm:$0xff]
  %v241 = vld [vmem:[%s1 + $0x618] sm:$0xff]
  %v242 = vld [vmem:[%s1 + $0x620] sm:$0xff]
  %v243 = vld [vmem:[%s1 + $0x628] sm:$0xff]
  %v244 = vld [vmem:[%s1 + $0x630] sm:$0xff]
  %v245 = vld [vmem:[%s1 + $0x638] sm:$0xff]
  %v246 = vld [vmem:[%s1 + $0x640] sm:$0xff]
  %v247 = vld [vmem:[%s1 + $0x648] sm:$0xff]
  %v248 = vld [vmem:[%s1 + $0x650] sm:$0xff]
  %v249 = vld [vmem:[%s1 + $0x658] sm:$0xff]
  %v250 = vld [vmem:[%s1 + $0x660] sm:$0xff]
  %v251 = vld [vmem:[%s1 + $0x668] sm:$0xff]
  %v252 = vld [vmem:[%s1 + $0x670] sm:$0xff]
  %v253 = vld [vmem:[%s1 + $0x678] sm:$0xff]
  %v254 = vld [vmem:[%s1 + $0x680] sm:$0xff]
  %v255 = vld [vmem:[%s1 + $0x688] sm:$0xff]
  %v256 = vld [vmem:[%s1 + $0x690] sm:$0xff]
  %v257 = vld [vmem:[%s1 + $0x698] sm:$0xff]
  %v258 = vld [vmem:[%s1 + $0x6a0] sm:$0xff]
  %v259 = vld [vmem:[%s1 + $0x6a8] sm:$0xff]
  %v260 = vld [vmem:[%s1 + $0x6b0] sm:$0xff]
  %v261 = vld [vmem:[%s1 + $0x6b8] sm:$0xff]
  %v262 = vld [vmem:[%s1 + $0x6c0] sm:$0xff]
  %v263 = vld [vmem:[%s1 + $0x6c8] sm:$0xff]
  %v264 = vld [vmem:[%s1 + $0x6d0] sm:$0xff]
  %v265 = vld [vmem:[%s1 + $0x6d8] sm:$0xff]
  %v266 = vld [vmem:[%s1 + $0x6e0] sm:$0xff]
  %v267 = vld [vmem:[%s1 + $0x6e8] sm:$0xff]
  %v268 = vld [vmem:[%s1 + $0x6f0] sm:$0xff]
  %v269 = vld [vmem:[%s1 + $0x6f8] sm:$0xff]
  %v270 = vld [vmem:[%s1 + $0x700] sm:$0xff]
  %v271 = vld [vmem:[%s1 + $0x708] sm:$0xff]
  %v272 = vld [vmem:[%s1 + $0x710] sm:$0xff]
  %v273 = vld [vmem:[%s1 + $0x718] sm:$0xff]
  %v274 = vld [vmem:[%s1 + $0x720] sm:$0xff]
  %v275 = vld [vmem:[%s1 + $0x728] sm:$0xff]
  %v276 = vld [vmem:[%s1 + $0x730] sm:$0xff]
  %v277 = vld [vmem:[%s1 + $0x738] sm:$0xff]
  %v278 = vld [vmem:[%s1 + $0x740] sm:$0xff]
  %v279 = vld [vmem:[%s1 + $0x748] sm:$0xff]
  %v280 = vld [vmem:[%s1 + $0x750] sm:$0xff]
  %v281 = vld [vmem:[%s1 + $0x758] sm:$0xff]
  %v282 = vld [vmem:[%s1 + $0x760] sm:$0xff]
  %v283 = vld [vmem:[%s1 + $0x768] sm:$0xff]
  %v284 = vld [vmem:[%s1 + $0x770] sm:$0xff]
  %v285 = vld [vmem:[%s1 + $0x778] sm:$0xff]
  %v286 = vld [vmem:[%s1 + $0x780] sm:$0xff]
  %v287 = vld [vmem:[%s1 + $0x788] sm:$0xff]
  %v288 = vld [vmem:[%s1 + $0x790] sm:$0xff]
  %v289 = vld [vmem:[%s1 + $0x798] sm:$0xff]
  %v290 = vld [vmem:[%s1 + $0x7a0] sm:$0xff]
  %v291 = vld [vmem:[%s1 + $0x7a8] sm:$0xff]
  %v292 = vld [vmem:[%s1 + $0x7b0] sm:$0xff]
  %v293 = vld [vmem:[%s1 + $0x7b8] sm:$0xff]
  %v294 = vld [vmem:[%s1 + $0x7c0] sm:$0xff]
  %v295 = vld [vmem:[%s1 + $0x7c8] sm:$0xff]
  %v296 = vld [vmem:[%s1 + $0x7d0] sm:$0xff]
  %v297 = vld [vmem:[%s1 + $0x7d8] sm:$0xff]
  %v298 = vld [vmem:[%s1 + $0x7e0] sm:$0xff]
  %v299 = vld [vmem:[%s1 + $0x7e8] sm:$0xff]
  %v300 = vld [vmem:[%s1 + $0x7f0] sm:$0xff]
  %v301 = vld [vmem:[%s1 + $0x7f8] sm:$0xff]
  %v302 = vld [vmem:[%s1 + $0x800] sm:$0xff]
  %v303 = vld [vmem:[%s1 + $0x808] sm:$0xff]
  %v304 = vld [vmem:[%s1 + $0x810] sm:$0xff]
  %v305 = vld [vmem:[%s1 + $0x818] sm:$0xff]
  %v306 = vld [vmem:[%s1 + $0x820] sm:$0xff]
  %v307 = vld [vmem:[%s1 + $0x828] sm:$0xff]
  %v308 = vld [vmem:[%s1 + $0x830] sm:$0xff]
  %v309 = vld [vmem:[%s1 + $0x838] sm:$0xff]
  %v310 = vld [vmem:[%s1 + $0x840] sm:$0xff]
  %v311 = vld [vmem:[%s1 + $0x848] sm:$0xff]
  %v312 = vld [vmem:[%s1 + $0x850] sm:$0xff]
  %v313 = vld [vmem:[%s1 + $0x858] sm:$0xff]
  %v314 = vld [vmem:[%s1 + $0x860] sm:$0xff]
  %v315 = vld [vmem:[%s1 + $0x868] sm:$0xff]
  %v316 = vld [vmem:[%s1 + $0x870] sm:$0xff]
  %v317 = vld [vmem:[%s1 + $0x878] sm:$0xff]
  %v318 = vld [vmem:[%s1 + $0x880] sm:$0xff]
  %v319 = vld [vmem:[%s1 + $0x888] sm:$0xff]
  %v320 = vld [vmem:[%s1 + $0x890] sm:$0xff]
  %v321 = vld [vmem:[%s1 + $0x898] sm:$0xff]
  %v322 = vld [vmem:[%s1 + $0x8a0] sm:$0xff]
  %v323 = vld [vmem:[%s1 + $0x8a8] sm:$0xff]
  %v324 = vld [vmem:[%s1 + $0x8b0] sm:$0xff]
  %v325 = vld [vmem:[%s1 + $0x8b8] sm:$0xff]
  %v326 = vld [vmem:[%s1 + $0x8c0] sm:$0xff]
  %v327 = vld [vmem:[%s1 + $0x8c8] sm:$0xff]
  %v328 = vld [vmem:[%s1 + $0x8d0] sm:$0xff]
  %v329 = vld [vmem:[%s1 + $0x8d8] sm:$0xff]
  %v330 = vld [vmem:[%s1 + $0x8e0] sm:$0xff]
  %v331 = vld [vmem:[%s1 + $0x8e8] sm:$0xff]
  %v332 = vld [vmem:[%s1 + $0x8f0] sm:$0xff]
  %v333 = vld [vmem:[%s1 + $0x8f8] sm:$0xff]
  %v334 = vld [vmem:[%s1 + $0x900] sm:$0xff]
  %v335 = vld [vmem:[%s1 + $0x908] sm:$0xff]
  %v336 = vld [vmem:[%s1 + $0x910] sm:$0xff]
  %v337 = vld [vmem:[%s1 + $0x918] sm:$0xff]
  %v338 = vld [vmem:[%s1 + $0x920] sm:$0xff]
  %v339 = vld [vmem:[%s1 + $0x928] sm:$0xff]
  %v340 = vld [vmem:[%s1 + $0x930] sm:$0xff]
  %v341 = vld [vmem:[%s1 + $0x938] sm:$0xff]
  %v342 = vld [vmem:[%s1 + $0x940] sm:$0xff]
  %v343 = vld [vmem:[%s1 + $0x948] sm:$0xff]
  %v344 = vld [vmem:[%s1 + $0x950] sm:$0xff]
  %v345 = vld [vmem:[%s1 + $0x958] sm:$0xff]
  %v346 = vld [vmem:[%s1 + $0x960] sm:$0xff]
  %v347 = vld [vmem:[%s1 + $0x968] sm:$0xff]
  %v348 = vld [vmem:[%s1 + $0x970] sm:$0xff]
  %v349 = vld [vmem:[%s1 + $0x978] sm:$0xff]
  %v350 = vld [vmem:[%s1 + $0x980] sm:$0xff]
  %v351 = vld [vmem:[%s1 + $0x988] sm:$0xff]
  %v352 = vld [vmem:[%s1 + $0x990] sm:$0xff]
  %v353 = vld [vmem:[%s1 + $0x998] sm:$0xff]
  %v354 = vld [vmem:[%s1 + $0x9a0] sm:$0xff]
  %v355 = vld [vmem:[%s1 + $0x9a8] sm:$0xff]
  %v356 = vld [vmem:[%s1 + $0x9b0] sm:$0xff]
  %v357 = vld [vmem:[%s1 + $0x9b8] sm:$0xff]
  %v358 = vld [vmem:[%s1 + $0x9c0] sm:$0xff]
  %v359 = vld [vmem:[%s1 + $0x9c8] sm:$0xff]
  %v360 = vld [vmem:[%s1 + $0x9d0] sm:$0xff]
  %v361 = vld [vmem:[%s1 + $0x9d8] sm:$0xff]
  %v362 = vld [vmem:[%s1 + $0x9e0] sm:$0xff]
  %v363 = vld [vmem:[%s1 + $0x9e8] sm:$0xff]
  %v364 = vld [vmem:[%s1 + $0x9f0] sm:$0xff]
  %v365 = vld [vmem:[%s1 + $0x9f8] sm:$0xff]
  %v366 = vld [vmem:[%s1 + $0xa00] sm:$0xff]
  %v367 = vld [vmem:[%s1 + $0xa08] sm:$0xff]
  %v368 = vld [vmem:[%s1 + $0xa10] sm:$0xff]
  %v369 = vld [vmem:[%s1 + $0xa18] sm:$0xff]
  %v370 = vld [vmem:[%s1 + $0xa20] sm:$0xff]
  %v371 = vld [vmem:[%s1 + $0xa28] sm:$0xff]
  %v372 = vld [vmem:[%s1 + $0xa30] sm:$0xff]
  %v373 = vld [vmem:[%s1 + $0xa38] sm:$0xff]
  %v374 = vld [vmem:[%s1 + $0xa40] sm:$0xff]
  %v375 = vld [vmem:[%s1 + $0xa48] sm:$0xff]
  %v376 = vld [vmem:[%s1 + $0xa50] sm:$0xff]
  %v377 = vld [vmem:[%s1 + $0xa58] sm:$0xff]
  %v378 = vld [vmem:[%s1 + $0xa60] sm:$0xff]
  %v379 = vld [vmem:[%s1 + $0xa68] sm:$0xff]
  %v380 = vld [vmem:[%s1 + $0xa70] sm:$0xff]
  %v381 = vld [vmem:[%s1 + $0xa78] sm:$0xff]
  %v382 = vld [vmem:[%s1 + $0xa80] sm:$0xff]
  %v383 = vld [vmem:[%s1 + $0xa88] sm:$0xff]
  %v384 = vld [vmem:[%s1 + $0xa90] sm:$0xff]
  %v385 = vld [vmem:[%s1 + $0xa98] sm:$0xff]
  %v386 = vld [vmem:[%s1 + $0xaa0] sm:$0xff]
  %v387 = vld [vmem:[%s1 + $0xaa8] sm:$0xff]
  %v388 = vld [vmem:[%s1 + $0xab0] sm:$0xff]
  %v389 = vld [vmem:[%s1 + $0xab8] sm:$0xff]
  %v390 = vld [vmem:[%s1 + $0xac0] sm:$0xff]
  %v391 = vld [vmem:[%s1 + $0xac8] sm:$0xff]
  %v392 = vld [vmem:[%s1 + $0xad0] sm:$0xff]
  %v393 = vld [vmem:[%s1 + $0xad8] sm:$0xff]
  %v394 = vld [vmem:[%s1 + $0xae0] sm:$0xff]
  %v395 = vld [vmem:[%s1 + $0xae8] sm:$0xff]
  %v396 = vld [vmem:[%s1 + $0xaf0] sm:$0xff]
  %v397 = vld [vmem:[%s1 + $0xaf8] sm:$0xff]
  %v398 = vld [vmem:[%s1 + $0xb00] sm:$0xff]
  %v399 = vld [vmem:[%s1 + $0xb08] sm:$0xff]
  %v400 = vld [vmem:[%s1 + $0xb10] sm:$0xff]
  %v401 = vld [vmem:[%s1 + $0xb18] sm:$0xff]
  %v402 = vld [vmem:[%s1 + $0xb20] sm:$0xff]
  %v403 = vld [vmem:[%s1 + $0xb28] sm:$0xff]
  %v404 = vld [vmem:[%s1 + $0xb30] sm:$0xff]
  %v405 = vld [vmem:[%s1 + $0xb38] sm:$0xff]
  %v406 = vld [vmem:[%s1 + $0xb40] sm:$0xff]
  %v407 = vld [vmem:[%s1 + $0xb48] sm:$0xff]
  %v408 = vld [vmem:[%s1 + $0xb50] sm:$0xff]
  %v409 = vld [vmem:[%s1 + $0xb58] sm:$0xff]
  %v410 = vld [vmem:[%s1 + $0xb60] sm:$0xff]
  %v411 = vld [vmem:[%s1 + $0xb68] sm:$0xff]
  %v412 = vld [vmem:[%s1 + $0xb70] sm:$0xff]
  %v413 = vld [vmem:[%s1 + $0xb78] sm:$0xff]
  %v414 = vld [vmem:[%s1 + $0xb80] sm:$0xff]
  %v415 = vld [vmem:[%s1 + $0xb88] sm:$0xff]
  %v416 = vld [vmem:[%s1 + $0xb90] sm:$0xff]
  %v417 = vld [vmem:[%s1 + $0xb98] sm:$0xff]
  %v418 = vld [vmem:[%s1 + $0xba0] sm:$0xff]
  %v419 = vld [vmem:[%s1 + $0xba8] sm:$0xff]
  %v420 = vld [vmem:[%s1 + $0xbb0] sm:$0xff]
  %v421 = vld [vmem:[%s1 + $0xbb8] sm:$0xff]
  %v422 = vld [vmem:[%s1 + $0xbc0] sm:$0xff]
  %v423 = vld [vmem:[%s1 + $0xbc8] sm:$0xff]
  %v424 = vld [vmem:[%s1 + $0xbd0] sm:$0xff]
  %v425 = vld [vmem:[%s1 + $0xbd8] sm:$0xff]
  %v426 = vld [vmem:[%s1 + $0xbe0] sm:$0xff]
  %v427 = vld [vmem:[%s1 + $0xbe8] sm:$0xff]
  %v428 = vld [vmem:[%s1 + $0xbf0] sm:$0xff]
  %v429 = vld [vmem:[%s1 + $0xbf8] sm:$0xff]
  %v430 = vld [vmem:[%s1 + $0xc00] sm:$0xff]
  %v431 = vld [vmem:[%s1 + $0xc08] sm:$0xff]
  %v432 = vld [vmem:[%s1 + $0xc10] sm:$0xff]
  %v433 = vld [vmem:[%s1 + $0xc18] sm:$0xff]
  %v434 = vld [vmem:[%s1 + $0xc20] sm:$0xff]
  %v435 = vld [vmem:[%s1 + $0xc28] sm:$0xff]
  %v436 = vld [vmem:[%s1 + $0xc30] sm:$0xff]
  %v437 = vld [vmem:[%s1 + $0xc38] sm:$0xff]
  %v438 = vld [vmem:[%s1 + $0xc40] sm:$0xff]
  %v439 = vld [vmem:[%s1 + $0xc48] sm:$0xff]
  %v440 = vld [vmem:[%s1 + $0xc50] sm:$0xff]
  %v441 = vld [vmem:[%s1 + $0xc58] sm:$0xff]
  %v442 = vld [vmem:[%s1 + $0xc60] sm:$0xff]
  %v443 = vld [vmem:[%s1 + $0xc68] sm:$0xff]
  %v444 = vld [vmem:[%s1 + $0xc70] sm:$0xff]
  %v445 = vld [vmem:[%s1 + $0xc78] sm:$0xff]
  %v446 = vld [vmem:[%s1 + $0xc80] sm:$0xff]
  %v447 = vld [vmem:[%s1 + $0xc88] sm:$0xff]
  %v448 = vld [vmem:[%s1 + $0xc90] sm:$0xff]
  %v449 = vld [vmem:[%s1 + $0xc98] sm:$0xff]
  %v450 = vld [vmem:[%s1 + $0xca0] sm:$0xff]
  %v451 = vld [vmem:[%s1 + $0xca8] sm:$0xff]
  %v452 = vld [vmem:[%s1 + $0xcb0] sm:$0xff]
  %v453 = vld [vmem:[%s1 + $0xcb8] sm:$0xff]
  %v454 = vld [vmem:[%s1 + $0xcc0] sm:$0xff]
  %v455 = vld [vmem:[%s1 + $0xcc8] sm:$0xff]
  %v456 = vld [vmem:[%s1 + $0xcd0] sm:$0xff]
  %v457 = vld [vmem:[%s1 + $0xcd8] sm:$0xff]
  %v458 = vld [vmem:[%s1 + $0xce0] sm:$0xff]
  %v459 = vld [vmem:[%s1 + $0xce8] sm:$0xff]
  %v460 = vld [vmem:[%s1 + $0xcf0] sm:$0xff]
  %v461 = vld [vmem:[%s1 + $0xcf8] sm:$0xff]
  %v462 = vld [vmem:[%s1 + $0xd00] sm:$0xff]
  %v463 = vld [vmem:[%s1 + $0xd08] sm:$0xff]
  %v464 = vld [vmem:[%s1 + $0xd10] sm:$0xff]
  %v465 = vld [vmem:[%s1 + $0xd18] sm:$0xff]
  %v466 = vld [vmem:[%s1 + $0xd20] sm:$0xff]
  %v467 = vld [vmem:[%s1 + $0xd28] sm:$0xff]
  %v468 = vld [vmem:[%s1 + $0xd30] sm:$0xff]
  %v469 = vld [vmem:[%s1 + $0xd38] sm:$0xff]
  %v470 = vld [vmem:[%s1 + $0xd40] sm:$0xff]
  %v471 = vld [vmem:[%s1 + $0xd48] sm:$0xff]
  %v472 = vld [vmem:[%s1 + $0xd50] sm:$0xff]
  %v473 = vld [vmem:[%s1 + $0xd58] sm:$0xff]
  %v474 = vld [vmem:[%s1 + $0xd60] sm:$0xff]
  %v475 = vld [vmem:[%s1 + $0xd68] sm:$0xff]
  %v476 = vld [vmem:[%s1 + $0xd70] sm:$0xff]
  %v477 = vld [vmem:[%s1 + $0xd78] sm:$0xff]
  %v478 = vld [vmem:[%s1 + $0xd80] sm:$0xff]
  %v479 = vld [vmem:[%s1 + $0xd88] sm:$0xff]
  %v480 = vld [vmem:[%s1 + $0xd90] sm:$0xff]
  %v481 = vld [vmem:[%s1 + $0xd98] sm:$0xff]
  %v482 = vld [vmem:[%s1 + $0xda0] sm:$0xff]
  %v483 = vld [vmem:[%s1 + $0xda8] sm:$0xff]
  %v484 = vld [vmem:[%s1 + $0xdb0] sm:$0xff]
  %v485 = vld [vmem:[%s1 + $0xdb8] sm:$0xff]
  %v486 = vld [vmem:[%s1 + $0xdc0] sm:$0xff]
  %v487 = vld [vmem:[%s1 + $0xdc8] sm:$0xff]
  %v488 = vld [vmem:[%s1 + $0xdd0] sm:$0xff]
  %v489 = vld [vmem:[%s1 + $0xdd8] sm:$0xff]
  %v490 = vld [vmem:[%s1 + $0xde0] sm:$0xff]
  %v491 = vld [vmem:[%s1 + $0xde8] sm:$0xff]
  %v492 = vld [vmem:[%s1 + $0xdf0] sm:$0xff]
  %v493 = vld [vmem:[%s1 + $0xdf8] sm:$0xff]
  %v494 = vld [vmem:[%s1 + $0xe00] sm:$0xff]
  %v495 = vld [vmem:[%s1 + $0xe08] sm:$0xff]
  %v496 = vld [vmem:[%s1 + $0xe10] sm:$0xff]
  %v497 = vld [vmem:[%s1 + $0xe18] sm:$0xff]
  %v498 = vld [vmem:[%s1 + $0xe20] sm:$0xff]
  %v499 = vld [vmem:[%s1 + $0xe28] sm:$0xff]
  %v500 = vld [vmem:[%s1 + $0xe30] sm:$0xff]
  %v501 = vld [vmem:[%s1 + $0xe38] sm:$0xff]
  %v502 = vld [vmem:[%s1 + $0xe40] sm:$0xff]
  %v503 = vld [vmem:[%s1 + $0xe48] sm:$0xff]
  %v504 = vld [vmem:[%s1 + $0xe50] sm:$0xff]
  %v505 = vld [vmem:[%s1 + $0xe58] sm:$0xff]
  %v506 = vld [vmem:[%s1 + $0xe60] sm:$0xff]
  %v507 = vld [vmem:[%s1 + $0xe68] sm:$0xff]
  %v508 = vld [vmem:[%s1 + $0xe70] sm:$0xff]
  %v509 = vld [vmem:[%s1 + $0xe78] sm:$0xff]
  %v510 = vld [vmem:[%s1 + $0xe80] sm:$0xff]
  %v511 = vld [vmem:[%s1 + $0xe88] sm:$0xff]
  %v512 = vld [vmem:[%s1 + $0xe90] sm:$0xff]
  %v513 = vld [vmem:[%s1 + $0xe98] sm:$0xff]
  %v514 = vld [vmem:[%s1 + $0xea0] sm:$0xff]
  %v515 = vld [vmem:[%s1 + $0xea8] sm:$0xff]
  %v516 = vld [vmem:[%s1 + $0xeb0] sm:$0xff]
  %v517 = vld [vmem:[%s1 + $0xeb8] sm:$0xff]
  %v518 = vld [vmem:[%s1 + $0xec0] sm:$0xff]
  %v519 = vld [vmem:[%s1 + $0xec8] sm:$0xff]
  %v520 = vld [vmem:[%s1 + $0xed0] sm:$0xff]
  %v521 = vld [vmem:[%s1 + $0xed8] sm:$0xff]
  %v522 = vld [vmem:[%s1 + $0xee0] sm:$0xff]
  %v523 = vld [vmem:[%s1 + $0xee8] sm:$0xff]
  %v524 = vld [vmem:[%s1 + $0xef0] sm:$0xff]
  %v525 = vld [vmem:[%s1 + $0xef8] sm:$0xff]
  %v526 = vld [vmem:[%s1 + $0xf00] sm:$0xff]
  %v527 = vld [vmem:[%s1 + $0xf08] sm:$0xff]
  %v528 = vld [vmem:[%s1 + $0xf10] sm:$0xff]
  %v529 = vld [vmem:[%s1 + $0xf18] sm:$0xff]
  %v530 = vld [vmem:[%s1 + $0xf20] sm:$0xff]
  %v531 = vld [vmem:[%s1 + $0xf28] sm:$0xff]
  %v532 = vld [vmem:[%s1 + $0xf30] sm:$0xff]
  %v533 = vld [vmem:[%s1 + $0xf38] sm:$0xff]
  %v534 = vld [vmem:[%s1 + $0xf40] sm:$0xff]
  %v535 = vld [vmem:[%s1 + $0xf48] sm:$0xff]
  %v536 = vld [vmem:[%s1 + $0xf50] sm:$0xff]
  %v537 = vld [vmem:[%s1 + $0xf58] sm:$0xff]
  %v538 = vld [vmem:[%s1 + $0xf60] sm:$0xff]
  %v539 = vld [vmem:[%s1 + $0xf68] sm:$0xff]
  %v540 = vld [vmem:[%s1 + $0xf70] sm:$0xff]
  %v541 = vld [vmem:[%s1 + $0xf78] sm:$0xff]
  %v542 = vld [vmem:[%s1 + $0xf80] sm:$0xff]
  %v543 = vld [vmem:[%s1 + $0xf88] sm:$0xff]
  %v544 = vld [vmem:[%s1 + $0xf90] sm:$0xff]
  %v545 = vld [vmem:[%s1 + $0xf98] sm:$0xff]
  %v546 = vld [vmem:[%s1 + $0xfa0] sm:$0xff]
  %v547 = vld [vmem:[%s1 + $0xfa8] sm:$0xff]
  %v548 = vld [vmem:[%s1 + $0xfb0] sm:$0xff]
  %v549 = vld [vmem:[%s1 + $0xfb8] sm:$0xff]
  %v550 = vld [vmem:[%s1 + $0xfc0] sm:$0xff]
  %v551 = vld [vmem:[%s1 + $0xfc8] sm:$0xff]
  %v552 = vld [vmem:[%s1 + $0xfd0] sm:$0xff]
  %v553 = vld [vmem:[%s1 + $0xfd8] sm:$0xff]
  %v554 = vld [vmem:[%s1 + $0xfe0] sm:$0xff]
  %v555 = vld [vmem:[%s1 + $0xfe8] sm:$0xff]
  %v556 = vld [vmem:[%s1 + $0xff0] sm:$0xff]
  %v557 = vld [vmem:[%s1 + $0xff8] sm:$0xff]
  %v558 = vld [vmem:[%s1 + $0x1000] sm:$0xff]
  %v559 = vld [vmem:[%s1 + $0x1008] sm:$0xff]
  %v560 = vld [vmem:[%s1 + $0x1010] sm:$0xff]
  %v561 = vld [vmem:[%s1 + $0x1018] sm:$0xff]
  %v562 = vld [vmem:[%s1 + $0x1020] sm:$0xff]
  %v563 = vld [vmem:[%s1 + $0x1028] sm:$0xff]
  %v564 = vld [vmem:[%s1 + $0x1030] sm:$0xff]
  %v565 = vld [vmem:[%s1 + $0x1038] sm:$0xff]
  %v566 = vld [vmem:[%s1 + $0x1040] sm:$0xff]
  %v567 = vld [vmem:[%s1 + $0x1048] sm:$0xff]
  %v568 = vld [vmem:[%s1 + $0x1050] sm:$0xff]
  %v569 = vld [vmem:[%s1 + $0x1058] sm:$0xff]
  %v570 = vld [vmem:[%s1 + $0x1060] sm:$0xff]
  %v571 = vld [vmem:[%s1 + $0x1068] sm:$0xff]
  %v572 = vld [vmem:[%s1 + $0x1070] sm:$0xff]
  %v573 = vld [vmem:[%s1 + $0x1078] sm:$0xff]
  %v574 = vld [vmem:[%s1 + $0x1080] sm:$0xff]
  %v575 = vld [vmem:[%s1 + $0x1088] sm:$0xff]
  %v576 = vld [vmem:[%s1 + $0x1090] sm:$0xff]
  %v577 = vld [vmem:[%s1 + $0x1098] sm:$0xff]
  %v578 = vld [vmem:[%s1 + $0x10a0] sm:$0xff]
  %v579 = vld [vmem:[%s1 + $0x10a8] sm:$0xff]
  %v580 = vld [vmem:[%s1 + $0x10b0] sm:$0xff]
  %v581 = vld [vmem:[%s1 + $0x10b8] sm:$0xff]
  %v582 = vld [vmem:[%s1 + $0x10c0] sm:$0xff]
  %v583 = vld [vmem:[%s1 + $0x10c8] sm:$0xff]
  %v584 = vld [vmem:[%s1 + $0x10d0] sm:$0xff]
  %v585 = vld [vmem:[%s1 + $0x10d8] sm:$0xff]
  %v586 = vld [vmem:[%s1 + $0x10e0] sm:$0xff]
  %v587 = vld [vmem:[%s1 + $0x10e8] sm:$0xff]
  %v588 = vld [vmem:[%s1 + $0x10f0] sm:$0xff]
  %v589 = vld [vmem:[%s1 + $0x10f8] sm:$0xff]
  %v590 = vld [vmem:[%s1 + $0x1100] sm:$0xff]
  %v591 = vld [vmem:[%s1 + $0x1108] sm:$0xff]
  %v592 = vld [vmem:[%s1 + $0x1110] sm:$0xff]
  %v593 = vld [vmem:[%s1 + $0x1118] sm:$0xff]
  %v594 = vld [vmem:[%s1 + $0x1120] sm:$0xff]
  %v595 = vld [vmem:[%s1 + $0x1128] sm:$0xff]
  %v596 = vld [vmem:[%s1 + $0x1130] sm:$0xff]
  %v597 = vld [vmem:[%s1 + $0x1138] sm:$0xff]
  %v598 = vld [vmem:[%s1 + $0x1140] sm:$0xff]
  %v599 = vld [vmem:[%s1 + $0x1148] sm:$0xff]
  %v600 = vld [vmem:[%s1 + $0x1150] sm:$0xff]
  %v601 = vld [vmem:[%s1 + $0x1158] sm:$0xff]
  %v602 = vld [vmem:[%s1 + $0x1160] sm:$0xff]
  %v603 = vld [vmem:[%s1 + $0x1168] sm:$0xff]
  %v604 = vld [vmem:[%s1 + $0x1170] sm:$0xff]
  %v605 = vld [vmem:[%s1 + $0x1178] sm:$0xff]
  %v606 = vld [vmem:[%s1 + $0x1180] sm:$0xff]
  %v607 = vld [vmem:[%s1 + $0x1188] sm:$0xff]
  %v608 = vld [vmem:[%s1 + $0x1190] sm:$0xff]
  %v609 = vld [vmem:[%s1 + $0x1198] sm:$0xff]
  %v610 = vld [vmem:[%s1 + $0x11a0] sm:$0xff]
  %v611 = vld [vmem:[%s1 + $0x11a8] sm:$0xff]
  %v612 = vld [vmem:[%s1 + $0x11b0] sm:$0xff]
  %v613 = vld [vmem:[%s1 + $0x11b8] sm:$0xff]
  %v614 = vld [vmem:[%s1 + $0x11c0] sm:$0xff]
  %v615 = vld [vmem:[%s1 + $0x11c8] sm:$0xff]
  %v616 = vld [vmem:[%s1 + $0x11d0] sm:$0xff]
  %v617 = vld [vmem:[%s1 + $0x11d8] sm:$0xff]
  %v618 = vld [vmem:[%s1 + $0x11e0] sm:$0xff]
  %v619 = vld [vmem:[%s1 + $0x11e8] sm:$0xff]
  %v620 = vld [vmem:[%s1 + $0x11f0] sm:$0xff]
  %v621 = vld [vmem:[%s1 + $0x11f8] sm:$0xff]
  %v622 = vld [vmem:[%s1 + $0x1200] sm:$0xff]
  %v623 = vld [vmem:[%s1 + $0x1208] sm:$0xff]
  %v624 = vld [vmem:[%s1 + $0x1210] sm:$0xff]
  %v625 = vld [vmem:[%s1 + $0x1218] sm:$0xff]
  %v626 = vld [vmem:[%s1 + $0x1220] sm:$0xff]
  %v627 = vld [vmem:[%s1 + $0x1228] sm:$0xff]
  %v628 = vld [vmem:[%s1 + $0x1230] sm:$0xff]
  %v629 = vld [vmem:[%s1 + $0x1238] sm:$0xff]
  %v630 = vld [vmem:[%s1 + $0x1240] sm:$0xff]
  %v631 = vld [vmem:[%s1 + $0x1248] sm:$0xff]
  %v632 = vld [vmem:[%s1 + $0x1250] sm:$0xff]
  %v633 = vld [vmem:[%s1 + $0x1258] sm:$0xff]
  %v634 = vld [vmem:[%s1 + $0x1260] sm:$0xff]
  %v635 = vld [vmem:[%s1 + $0x1268] sm:$0xff]
  %v636 = vld [vmem:[%s1 + $0x1270] sm:$0xff]
  %v637 = vld [vmem:[%s1 + $0x1278] sm:$0xff]
  %v638 = vld [vmem:[%s1 + $0x1280] sm:$0xff]
  %v639 = vld [vmem:[%s1 + $0x1288] sm:$0xff]
  %v640 = vld [vmem:[%s1 + $0x1290] sm:$0xff]
  %v641 = vld [vmem:[%s1 + $0x1298] sm:$0xff]
  %v642 = vld [vmem:[%s1 + $0x12a0] sm:$0xff]
  %v643 = vld [vmem:[%s1 + $0x12a8] sm:$0xff]
  %v644 = vld [vmem:[%s1 + $0x12b0] sm:$0xff]
  %v645 = vld [vmem:[%s1 + $0x12b8] sm:$0xff]
  %v646 = vld [vmem:[%s1 + $0x12c0] sm:$0xff]
  %v647 = vld [vmem:[%s1 + $0x12c8] sm:$0xff]
  %v648 = vld [vmem:[%s1 + $0x12d0] sm:$0xff]
  %v649 = vld [vmem:[%s1 + $0x12d8] sm:$0xff]
  %v650 = vld [vmem:[%s1 + $0x12e0] sm:$0xff]
  %v651 = vld [vmem:[%s1 + $0x12e8] sm:$0xff]
  %v652 = vld [vmem:[%s1 + $0x12f0] sm:$0xff]
  %v653 = vld [vmem:[%s1 + $0x12f8] sm:$0xff]
  %v654 = vld [vmem:[%s1 + $0x1300] sm:$0xff]
  %v655 = vld [vmem:[%s1 + $0x1308] sm:$0xff]
  %v656 = vld [vmem:[%s1 + $0x1310] sm:$0xff]
  %v657 = vld [vmem:[%s1 + $0x1318] sm:$0xff]
  %v658 = vld [vmem:[%s1 + $0x1320] sm:$0xff]
  %v659 = vld [vmem:[%s1 + $0x1328] sm:$0xff]
  %v660 = vld [vmem:[%s1 + $0x1330] sm:$0xff]
  %v661 = vld [vmem:[%s1 + $0x1338] sm:$0xff]
  %v662 = vld [vmem:[%s1 + $0x1340] sm:$0xff]
  %v663 = vld [vmem:[%s1 + $0x1348] sm:$0xff]
  %v664 = vld [vmem:[%s1 + $0x1350] sm:$0xff]
  %v665 = vld [vmem:[%s1 + $0x1358] sm:$0xff]
  %v666 = vld [vmem:[%s1 + $0x1360] sm:$0xff]
  %v667 = vld [vmem:[%s1 + $0x1368] sm:$0xff]
  %v668 = vld [vmem:[%s1 + $0x1370] sm:$0xff]
  %v669 = vld [vmem:[%s1 + $0x1378] sm:$0xff]
  %v670 = vld [vmem:[%s1 + $0x1380] sm:$0xff]
  %v671 = vld [vmem:[%s1 + $0x1388] sm:$0xff]
  %v672 = vld [vmem:[%s1 + $0x1390] sm:$0xff]
  %v673 = vld [vmem:[%s1 + $0x1398] sm:$0xff]
  %v674 = vld [vmem:[%s1 + $0x13a0] sm:$0xff]
  %v675 = vld [vmem:[%s1 + $0x13a8] sm:$0xff]
  %v676 = vld [vmem:[%s1 + $0x13b0] sm:$0xff]
  %v677 = vld [vmem:[%s1 + $0x13b8] sm:$0xff]
  %v678 = vld [vmem:[%s1 + $0x13c0] sm:$0xff]
  %v679 = vld [vmem:[%s1 + $0x13c8] sm:$0xff]
  %v680 = vld [vmem:[%s1 + $0x13d0] sm:$0xff]
  %v681 = vld [vmem:[%s1 + $0x13d8] sm:$0xff]
  %v682 = vld [vmem:[%s1 + $0x13e0] sm:$0xff]
  %v683 = vld [vmem:[%s1 + $0x13e8] sm:$0xff]
  %v684 = vld [vmem:[%s1 + $0x13f0] sm:$0xff]
  %v685 = vld [vmem:[%s1 + $0x13f8] sm:$0xff]
  %v686 = vld [vmem:[%s1 + $0x1400] sm:$0xff]
  %v687 = vld [vmem:[%s1 + $0x1408] sm:$0xff]
  %v688 = vld [vmem:[%s1 + $0x1410] sm:$0xff]
  %v689 = vld [vmem:[%s1 + $0x1418] sm:$0xff]
  %v690 = vld [vmem:[%s1 + $0x1420] sm:$0xff]
  %v691 = vld [vmem:[%s1 + $0x1428] sm:$0xff]
  %v692 = vld [vmem:[%s1 + $0x1430] sm:$0xff]
  %v693 = vld [vmem:[%s1 + $0x1438] sm:$0xff]
  %v694 = vld [vmem:[%s1 + $0x1440] sm:$0xff]
  %v695 = vld [vmem:[%s1 + $0x1448] sm:$0xff]
  %v696 = vld [vmem:[%s1 + $0x1450] sm:$0xff]
  %v697 = vld [vmem:[%s1 + $0x1458] sm:$0xff]
  %v698 = vld [vmem:[%s1 + $0x1460] sm:$0xff]
  %v699 = vld [vmem:[%s1 + $0x1468] sm:$0xff]
  %v700 = vld [vmem:[%s1 + $0x1470] sm:$0xff]
  %v701 = vld [vmem:[%s1 + $0x1478] sm:$0xff]
  %v702 = vld [vmem:[%s1 + $0x1480] sm:$0xff]
  %v703 = vld [vmem:[%s1 + $0x1488] sm:$0xff]
  %v704 = vld [vmem:[%s1 + $0x1490] sm:$0xff]
  %v705 = vld [vmem:[%s1 + $0x1498] sm:$0xff]
  %v706 = vld [vmem:[%s1 + $0x14a0] sm:$0xff]
  %v707 = vld [vmem:[%s1 + $0x14a8] sm:$0xff]
  %v708 = vld [vmem:[%s1 + $0x14b0] sm:$0xff]
  %v709 = vld [vmem:[%s1 + $0x14b8] sm:$0xff]
  %v710 = vld [vmem:[%s1 + $0x14c0] sm:$0xff]
  %v711 = vld [vmem:[%s1 + $0x14c8] sm:$0xff]
  %v712 = vld [vmem:[%s1 + $0x14d0] sm:$0xff]
  %v713 = vld [vmem:[%s1 + $0x14d8] sm:$0xff]
  %v714 = vld [vmem:[%s1 + $0x14e0] sm:$0xff]
  %v715 = vld [vmem:[%s1 + $0x14e8] sm:$0xff]
  %v716 = vld [vmem:[%s1 + $0x14f0] sm:$0xff]
  %v717 = vld [vmem:[%s1 + $0x14f8] sm:$0xff]
  %v718 = vld [vmem:[%s1 + $0x1500] sm:$0xff]
  %v719 = vld [vmem:[%s1 + $0x1508] sm:$0xff]
  %v720 = vld [vmem:[%s1 + $0x1510] sm:$0xff]
  %v721 = vld [vmem:[%s1 + $0x1518] sm:$0xff]
  %v722 = vld [vmem:[%s1 + $0x1520] sm:$0xff]
  %v723 = vld [vmem:[%s1 + $0x1528] sm:$0xff]
  %v724 = vld [vmem:[%s1 + $0x1530] sm:$0xff]
  %v725 = vld [vmem:[%s1 + $0x1538] sm:$0xff]
  %v726 = vld [vmem:[%s1 + $0x1540] sm:$0xff]
  %v727 = vld [vmem:[%s1 + $0x1548] sm:$0xff]
  %v728 = vld [vmem:[%s1 + $0x1550] sm:$0xff]
  %v729 = vld [vmem:[%s1 + $0x1558] sm:$0xff]
  %v730 = vld [vmem:[%s1 + $0x1560] sm:$0xff]
  %v731 = vld [vmem:[%s1 + $0x1568] sm:$0xff]
  %v732 = vld [vmem:[%s1 + $0x1570] sm:$0xff]
  %v733 = vld [vmem:[%s1 + $0x1578] sm:$0xff]
  %v734 = vld [vmem:[%s1 + $0x1580] sm:$0xff]
  %v735 = vld [vmem:[%s1 + $0x1588] sm:$0xff]
  %v736 = vld [vmem:[%s1 + $0x1590] sm:$0xff]
  %v737 = vld [vmem:[%s1 + $0x1598] sm:$0xff]
  %v738 = vld [vmem:[%s1 + $0x15a0] sm:$0xff]
  %v739 = vld [vmem:[%s1 + $0x15a8] sm:$0xff]
  %v740 = vld [vmem:[%s1 + $0x15b0] sm:$0xff]
  %v741 = vld [vmem:[%s1 + $0x15b8] sm:$0xff]
  %v742 = vld [vmem:[%s1 + $0x15c0] sm:$0xff]
  %v743 = vld [vmem:[%s1 + $0x15c8] sm:$0xff]
  %v744 = vld [vmem:[%s1 + $0x15d0] sm:$0xff]
  %v745 = vld [vmem:[%s1 + $0x15d8] sm:$0xff]
  %v746 = vld [vmem:[%s1 + $0x15e0] sm:$0xff]
  %v747 = vld [vmem:[%s1 + $0x15e8] sm:$0xff]
  %v748 = vld [vmem:[%s1 + $0x15f0] sm:$0xff]
  %v749 = vld [vmem:[%s1 + $0x15f8] sm:$0xff]
  %v750 = vld [vmem:[%s1 + $0x1600] sm:$0xff]
  %v751 = vld [vmem:[%s1 + $0x1608] sm:$0xff]
  %v752 = vld [vmem:[%s1 + $0x1610] sm:$0xff]
  %v753 = vld [vmem:[%s1 + $0x1618] sm:$0xff]
  %v754 = vld [vmem:[%s1 + $0x1620] sm:$0xff]
  %v755 = vld [vmem:[%s1 + $0x1628] sm:$0xff]
  %v756 = vld [vmem:[%s1 + $0x1630] sm:$0xff]
  %v757 = vld [vmem:[%s1 + $0x1638] sm:$0xff]
  %v758 = vld [vmem:[%s1 + $0x1640] sm:$0xff]
  %v759 = vld [vmem:[%s1 + $0x1648] sm:$0xff]
  %v760 = vld [vmem:[%s1 + $0x1650] sm:$0xff]
  %v761 = vld [vmem:[%s1 + $0x1658] sm:$0xff]
  %v762 = vld [vmem:[%s1 + $0x1660] sm:$0xff]
  %v763 = vld [vmem:[%s1 + $0x1668] sm:$0xff]
  %v764 = vld [vmem:[%s1 + $0x1670] sm:$0xff]
  %v765 = vld [vmem:[%s1 + $0x1678] sm:$0xff]
  %v766 = vld [vmem:[%s1 + $0x1680] sm:$0xff]
  %v767 = vld [vmem:[%s1 + $0x1688] sm:$0xff]
  %v768 = vld [vmem:[%s1 + $0x1690] sm:$0xff]
  %v769 = vld [vmem:[%s1 + $0x1698] sm:$0xff]
  %v770 = vld [vmem:[%s1 + $0x16a0] sm:$0xff]
  %v771 = vld [vmem:[%s1 + $0x16a8] sm:$0xff]
  %v772 = vld [vmem:[%s1 + $0x16b0] sm:$0xff]
  %v773 = vld [vmem:[%s1 + $0x16b8] sm:$0xff]
  %v774 = vld [vmem:[%s1 + $0x16c0] sm:$0xff]
  %v775 = vld [vmem:[%s1 + $0x16c8] sm:$0xff]
  %v776 = vld [vmem:[%s1 + $0x16d0] sm:$0xff]
  %v777 = vld [vmem:[%s1 + $0x16d8] sm:$0xff]
  %v778 = vld [vmem:[%s1 + $0x16e0] sm:$0xff]
  %v779 = vld [vmem:[%s1 + $0x16e8] sm:$0xff]
  %v780 = vld [vmem:[%s1 + $0x16f0] sm:$0xff]
  %v781 = vld [vmem:[%s1 + $0x16f8] sm:$0xff]
  %v782 = vld [vmem:[%s1 + $0x1700] sm:$0xff]
  %v783 = vld [vmem:[%s1 + $0x1708] sm:$0xff]
  %v784 = vld [vmem:[%s1 + $0x1710] sm:$0xff]
  %v785 = vld [vmem:[%s1 + $0x1718] sm:$0xff]
  %v786 = vld [vmem:[%s1 + $0x1720] sm:$0xff]
  %v787 = vld [vmem:[%s1 + $0x1728] sm:$0xff]
  %v788 = vld [vmem:[%s1 + $0x1730] sm:$0xff]
  %v789 = vld [vmem:[%s1 + $0x1738] sm:$0xff]
  %v790 = vld [vmem:[%s1 + $0x1740] sm:$0xff]
  %v791 = vld [vmem:[%s1 + $0x1748] sm:$0xff]
  %v792 = vld [vmem:[%s1 + $0x1750] sm:$0xff]
  %v793 = vld [vmem:[%s1 + $0x1758] sm:$0xff]
  %v794 = vld [vmem:[%s1 + $0x1760] sm:$0xff]
  %v795 = vld [vmem:[%s1 + $0x1768] sm:$0xff]
  %v796 = vld [vmem:[%s1 + $0x1770] sm:$0xff]
  %v797 = vld [vmem:[%s1 + $0x1778] sm:$0xff]
  %v798 = vld [vmem:[%s1 + $0x1780] sm:$0xff]
  %v799 = vld [vmem:[%s1 + $0x1788] sm:$0xff]
  %v800 = vld [vmem:[%s1 + $0x1790] sm:$0xff]
  %v801 = vld [vmem:[%s1 + $0x1798] sm:$0xff]
  %v802 = vld [vmem:[%s1 + $0x17a0] sm:$0xff]
  %v803 = vld [vmem:[%s1 + $0x17a8] sm:$0xff]
  %v804 = vld [vmem:[%s1 + $0x17b0] sm:$0xff]
  %v805 = vld [vmem:[%s1 + $0x17b8] sm:$0xff]
  %v806 = vld [vmem:[%s1 + $0x17c0] sm:$0xff]
  %v807 = vld [vmem:[%s1 + $0x17c8] sm:$0xff]
  %v808 = vld [vmem:[%s1 + $0x17d0] sm:$0xff]
  %v809 = vld [vmem:[%s1 + $0x17d8] sm:$0xff]
  %v810 = vld [vmem:[%s1 + $0x17e0] sm:$0xff]
  %v811 = vld [vmem:[%s1 + $0x17e8] sm:$0xff]
  %v812 = vld [vmem:[%s1 + $0x17f0] sm:$0xff]
  %v813 = vld [vmem:[%s1 + $0x17f8] sm:$0xff]
  %v814 = vld [vmem:[%s1 + $0x1800] sm:$0xff]
  %v815 = vld [vmem:[%s1 + $0x1808] sm:$0xff]
  %v816 = vld [vmem:[%s1 + $0x1810] sm:$0xff]
  %v817 = vld [vmem:[%s1 + $0x1818] sm:$0xff]
  %v818 = vld [vmem:[%s1 + $0x1820] sm:$0xff]
  %v819 = vld [vmem:[%s1 + $0x1828] sm:$0xff]
  %v820 = vld [vmem:[%s1 + $0x1830] sm:$0xff]
  %v821 = vld [vmem:[%s1 + $0x1838] sm:$0xff]
  %v822 = vld [vmem:[%s1 + $0x1840] sm:$0xff]
  %v823 = vld [vmem:[%s1 + $0x1848] sm:$0xff]
  %v824 = vld [vmem:[%s1 + $0x1850] sm:$0xff]
  %v825 = vld [vmem:[%s1 + $0x1858] sm:$0xff]
  %v826 = vld [vmem:[%s1 + $0x1860] sm:$0xff]
  %v827 = vld [vmem:[%s1 + $0x1868] sm:$0xff]
  %v828 = vld [vmem:[%s1 + $0x1870] sm:$0xff]
  %v829 = vld [vmem:[%s1 + $0x1878] sm:$0xff]
  %v830 = vld [vmem:[%s1 + $0x1880] sm:$0xff]
  %v831 = vld [vmem:[%s1 + $0x1888] sm:$0xff]
  %v832 = vld [vmem:[%s1 + $0x1890] sm:$0xff]
  %v833 = vld [vmem:[%s1 + $0x1898] sm:$0xff]
  %v834 = vld [vmem:[%s1 + $0x18a0] sm:$0xff]
  %v835 = vld [vmem:[%s1 + $0x18a8] sm:$0xff]
  %v836 = vld [vmem:[%s1 + $0x18b0] sm:$0xff]
  %v837 = vld [vmem:[%s1 + $0x18b8] sm:$0xff]
  %v838 = vld [vmem:[%s1 + $0x18c0] sm:$0xff]
  %v839 = vld [vmem:[%s1 + $0x18c8] sm:$0xff]
  %v840 = vld [vmem:[%s1 + $0x18d0] sm:$0xff]
  %v841 = vld [vmem:[%s1 + $0x18d8] sm:$0xff]
  %v842 = vld [vmem:[%s1 + $0x18e0] sm:$0xff]
  %v843 = vld [vmem:[%s1 + $0x18e8] sm:$0xff]
  %v844 = vld [vmem:[%s1 + $0x18f0] sm:$0xff]
  %v845 = vld [vmem:[%s1 + $0x18f8] sm:$0xff]
  %v846 = vld [vmem:[%s1 + $0x1900] sm:$0xff]
  %v847 = vld [vmem:[%s1 + $0x1908] sm:$0xff]
  %v848 = vld [vmem:[%s1 + $0x1910] sm:$0xff]
  %v849 = vld [vmem:[%s1 + $0x1918] sm:$0xff]
  %v850 = vld [vmem:[%s1 + $0x1920] sm:$0xff]
  %v851 = vld [vmem:[%s1 + $0x1928] sm:$0xff]
  %v852 = vld [vmem:[%s1 + $0x1930] sm:$0xff]
  %v853 = vld [vmem:[%s1 + $0x1938] sm:$0xff]
  %v854 = vld [vmem:[%s1 + $0x1940] sm:$0xff]
  %v855 = vld [vmem:[%s1 + $0x1948] sm:$0xff]
  %v856 = vld [vmem:[%s1 + $0x1950] sm:$0xff]
  %v857 = vld [vmem:[%s1 + $0x1958] sm:$0xff]
  %v858 = vld [vmem:[%s1 + $0x1960] sm:$0xff]
  %v859 = vld [vmem:[%s1 + $0x1968] sm:$0xff]
  %v860 = vld [vmem:[%s1 + $0x1970] sm:$0xff]
  %v861 = vld [vmem:[%s1 + $0x1978] sm:$0xff]
  %v862 = vld [vmem:[%s1 + $0x1980] sm:$0xff]
  %v863 = vld [vmem:[%s1 + $0x1988] sm:$0xff]
  %v864 = vld [vmem:[%s1 + $0x1990] sm:$0xff]
  %v865 = vld [vmem:[%s1 + $0x1998] sm:$0xff]
  %v866 = vld [vmem:[%s1 + $0x19a0] sm:$0xff]
  %v867 = vld [vmem:[%s1 + $0x19a8] sm:$0xff]
  %v868 = vld [vmem:[%s1 + $0x19b0] sm:$0xff]
  %v869 = vld [vmem:[%s1 + $0x19b8] sm:$0xff]
  %v870 = vld [vmem:[%s1 + $0x19c0] sm:$0xff]
  %v871 = vld [vmem:[%s1 + $0x19c8] sm:$0xff]
  %v872 = vld [vmem:[%s1 + $0x19d0] sm:$0xff]
  %v873 = vld [vmem:[%s1 + $0x19d8] sm:$0xff]
  %v874 = vld [vmem:[%s1 + $0x19e0] sm:$0xff]
  %v875 = vld [vmem:[%s1 + $0x19e8] sm:$0xff]
  %v876 = vld [vmem:[%s1 + $0x19f0] sm:$0xff]
  %v877 = vld [vmem:[%s1 + $0x19f8] sm:$0xff]
  %v878 = vld [vmem:[%s1 + $0x1a00] sm:$0xff]
  %v879 = vld [vmem:[%s1 + $0x1a08] sm:$0xff]
  %v880 = vld [vmem:[%s1 + $0x1a10] sm:$0xff]
  %v881 = vld [vmem:[%s1 + $0x1a18] sm:$0xff]
  %v882 = vld [vmem:[%s1 + $0x1a20] sm:$0xff]
  %v883 = vld [vmem:[%s1 + $0x1a28] sm:$0xff]
  %v884 = vld [vmem:[%s1 + $0x1a30] sm:$0xff]
  %v885 = vld [vmem:[%s1 + $0x1a38] sm:$0xff]
  %v886 = vld [vmem:[%s1 + $0x1a40] sm:$0xff]
  %v887 = vld [vmem:[%s1 + $0x1a48] sm:$0xff]
  %v888 = vld [vmem:[%s1 + $0x1a50] sm:$0xff]
  %v889 = vld [vmem:[%s1 + $0x1a58] sm:$0xff]
  %v890 = vld [vmem:[%s1 + $0x1a60] sm:$0xff]
  %v891 = vld [vmem:[%s1 + $0x1a68] sm:$0xff]
  %v892 = vld [vmem:[%s1 + $0x1a70] sm:$0xff]
  %v893 = vld [vmem:[%s1 + $0x1a78] sm:$0xff]
  %v894 = vld [vmem:[%s1 + $0x1a80] sm:$0xff]
  %v895 = vld [vmem:[%s1 + $0x1a88] sm:$0xff]
  %v896 = vld [vmem:[%s1 + $0x1a90] sm:$0xff]
  %v897 = vld [vmem:[%s1 + $0x1a98] sm:$0xff]
  %v898 = vld [vmem:[%s1 + $0x1aa0] sm:$0xff]
  %v899 = vld [vmem:[%s1 + $0x1aa8] sm:$0xff]
  %v900 = vld [vmem:[%s1 + $0x1ab0] sm:$0xff]
  %v901 = vld [vmem:[%s1 + $0x1ab8] sm:$0xff]
  %v902 = vld [vmem:[%s1 + $0x1ac0] sm:$0xff]
  %v903 = vld [vmem:[%s1 + $0x1ac8] sm:$0xff]
  %v904 = vld [vmem:[%s1 + $0x1ad0] sm:$0xff]
  %v905 = vld [vmem:[%s1 + $0x1ad8] sm:$0xff]
  %v906 = vld [vmem:[%s1 + $0x1ae0] sm:$0xff]
  %v907 = vld [vmem:[%s1 + $0x1ae8] sm:$0xff]
  %v908 = vld [vmem:[%s1 + $0x1af0] sm:$0xff]
  %v909 = vld [vmem:[%s1 + $0x1af8] sm:$0xff]
  %v910 = vld [vmem:[%s1 + $0x1b00] sm:$0xff]
  %v911 = vld [vmem:[%s1 + $0x1b08] sm:$0xff]
  %v912 = vld [vmem:[%s1 + $0x1b10] sm:$0xff]
  %v913 = vld [vmem:[%s1 + $0x1b18] sm:$0xff]
  %v914 = vld [vmem:[%s1 + $0x1b20] sm:$0xff]
  %v915 = vld [vmem:[%s1 + $0x1b28] sm:$0xff]
  %v916 = vld [vmem:[%s1 + $0x1b30] sm:$0xff]
  %v917 = vld [vmem:[%s1 + $0x1b38] sm:$0xff]
  %v918 = vld [vmem:[%s1 + $0x1b40] sm:$0xff]
  %v919 = vld [vmem:[%s1 + $0x1b48] sm:$0xff]
  %v920 = vld [vmem:[%s1 + $0x1b50] sm:$0xff]
  %v921 = vld [vmem:[%s1 + $0x1b58] sm:$0xff]
  %v922 = vld [vmem:[%s1 + $0x1b60] sm:$0xff]
  %v923 = vld [vmem:[%s1 + $0x1b68] sm:$0xff]
  %v924 = vld [vmem:[%s1 + $0x1b70] sm:$0xff]
  %v925 = vld [vmem:[%s1 + $0x1b78] sm:$0xff]
  %v926 = vld [vmem:[%s1 + $0x1b80] sm:$0xff]
  %v927 = vld [vmem:[%s1 + $0x1b88] sm:$0xff]
  %v928 = vld [vmem:[%s1 + $0x1b90] sm:$0xff]
  %v929 = vld [vmem:[%s1 + $0x1b98] sm:$0xff]
  %v930 = vld [vmem:[%s1 + $0x1ba0] sm:$0xff]
  %v931 = vld [vmem:[%s1 + $0x1ba8] sm:$0xff]
  %v932 = vld [vmem:[%s1 + $0x1bb0] sm:$0xff]
  %v933 = vld [vmem:[%s1 + $0x1bb8] sm:$0xff]
  %v934 = vld [vmem:[%s1 + $0x1bc0] sm:$0xff]
  %v935 = vld [vmem:[%s1 + $0x1bc8] sm:$0xff]
  %v936 = vld [vmem:[%s1 + $0x1bd0] sm:$0xff]
  %v937 = vld [vmem:[%s1 + $0x1bd8] sm:$0xff]
  %v938 = vld [vmem:[%s1 + $0x1be0] sm:$0xff]
  %v939 = vld [vmem:[%s1 + $0x1be8] sm:$0xff]
  %v940 = vld [vmem:[%s1 + $0x1bf0] sm:$0xff]
  %v941 = vld [vmem:[%s1 + $0x1bf8] sm:$0xff]
  %v942 = vld [vmem:[%s1 + $0x1c00] sm:$0xff]
  %v943 = vld [vmem:[%s1 + $0x1c08] sm:$0xff]
  %v944 = vld [vmem:[%s1 + $0x1c10] sm:$0xff]
  %v945 = vld [vmem:[%s1 + $0x1c18] sm:$0xff]
  %v946 = vld [vmem:[%s1 + $0x1c20] sm:$0xff]
  %v947 = vld [vmem:[%s1 + $0x1c28] sm:$0xff]
  %v948 = vld [vmem:[%s1 + $0x1c30] sm:$0xff]
  %v949 = vld [vmem:[%s1 + $0x1c38] sm:$0xff]
  %v950 = vld [vmem:[%s1 + $0x1c40] sm:$0xff]
  %v951 = vld [vmem:[%s1 + $0x1c48] sm:$0xff]
  %v952 = vld [vmem:[%s1 + $0x1c50] sm:$0xff]
  %v953 = vld [vmem:[%s1 + $0x1c58] sm:$0xff]
  %v954 = vld [vmem:[%s1 + $0x1c60] sm:$0xff]
  %v955 = vld [vmem:[%s1 + $0x1c68] sm:$0xff]
  %v956 = vld [vmem:[%s1 + $0x1c70] sm:$0xff]
  %v957 = vld [vmem:[%s1 + $0x1c78] sm:$0xff]
  %v958 = vld [vmem:[%s1 + $0x1c80] sm:$0xff]
  %v959 = vld [vmem:[%s1 + $0x1c88] sm:$0xff]
  %v960 = vld [vmem:[%s1 + $0x1c90] sm:$0xff]
  %v961 = vld [vmem:[%s1 + $0x1c98] sm:$0xff]
  %v962 = vld [vmem:[%s1 + $0x1ca0] sm:$0xff]
  %v963 = vld [vmem:[%s1 + $0x1ca8] sm:$0xff]
  %v964 = vld [vmem:[%s1 + $0x1cb0] sm:$0xff]
  %v965 = vld [vmem:[%s1 + $0x1cb8] sm:$0xff]
  %v966 = vld [vmem:[%s1 + $0x1cc0] sm:$0xff]
  %v967 = vld [vmem:[%s1 + $0x1cc8] sm:$0xff]
  %v968 = vld [vmem:[%s1 + $0x1cd0] sm:$0xff]
  %v969 = vld [vmem:[%s1 + $0x1cd8] sm:$0xff]
  %v970 = vld [vmem:[%s1 + $0x1ce0] sm:$0xff]
  %v971 = vld [vmem:[%s1 + $0x1ce8] sm:$0xff]
  %v972 = vld [vmem:[%s1 + $0x1cf0] sm:$0xff]
  %v973 = vld [vmem:[%s1 + $0x1cf8] sm:$0xff]
  %v974 = vld [vmem:[%s1 + $0x1d00] sm:$0xff]
  %v975 = vld [vmem:[%s1 + $0x1d08] sm:$0xff]
  %v976 = vld [vmem:[%s1 + $0x1d10] sm:$0xff]
  %v977 = vld [vmem:[%s1 + $0x1d18] sm:$0xff]
  %v978 = vld [vmem:[%s1 + $0x1d20] sm:$0xff]
  %v979 = vld [vmem:[%s1 + $0x1d28] sm:$0xff]
  %v980 = vld [vmem:[%s1 + $0x1d30] sm:$0xff]
  %v981 = vld [vmem:[%s1 + $0x1d38] sm:$0xff]
  %v982 = vld [vmem:[%s1 + $0x1d40] sm:$0xff]
  %v983 = vld [vmem:[%s1 + $0x1d48] sm:$0xff]
  %v984 = vld [vmem:[%s1 + $0x1d50] sm:$0xff]
  %v985 = vld [vmem:[%s1 + $0x1d58] sm:$0xff]
  %v986 = vld [vmem:[%s1 + $0x1d60] sm:$0xff]
  %v987 = vld [vmem:[%s1 + $0x1d68] sm:$0xff]
  %v988 = vld [vmem:[%s1 + $0x1d70] sm:$0xff]
  %v989 = vld [vmem:[%s1 + $0x1d78] sm:$0xff]
  %v990 = vld [vmem:[%s1 + $0x1d80] sm:$0xff]
  %v991 = vld [vmem:[%s1 + $0x1d88] sm:$0xff]
  %v992 = vld [vmem:[%s1 + $0x1d90] sm:$0xff]
  %v993 = vld [vmem:[%s1 + $0x1d98] sm:$0xff]
  %v994 = vld [vmem:[%s1 + $0x1da0] sm:$0xff]
  %v995 = vld [vmem:[%s1 + $0x1da8] sm:$0xff]
  %v996 = vld [vmem:[%s1 + $0x1db0] sm:$0xff]
  %v997 = vld [vmem:[%s1 + $0x1db8] sm:$0xff]
  %v998 = vld [vmem:[%s1 + $0x1dc0] sm:$0xff]
  %v999 = vld [vmem:[%s1 + $0x1dc8] sm:$0xff]
  %v1000 = vld [vmem:[%s1 + $0x1dd0] sm:$0xff]
  %v1001 = vld [vmem:[%s1 + $0x1dd8] sm:$0xff]
  %v1002 = vld [vmem:[%s1 + $0x1de0] sm:$0xff]
  %v1003 = vld [vmem:[%s1 + $0x1de8] sm:$0xff]
  %v1004 = vld [vmem:[%s1 + $0x1df0] sm:$0xff]
  %v1005 = vld [vmem:[%s1 + $0x1df8] sm:$0xff]
  %v1006 = vld [vmem:[%s1 + $0x1e00] sm:$0xff]
  %v1007 = vld [vmem:[%s1 + $0x1e08] sm:$0xff]
  %v1008 = vld [vmem:[%s1 + $0x1e10] sm:$0xff]
  %v1009 = vld [vmem:[%s1 + $0x1e18] sm:$0xff]
  %v1010 = vld [vmem:[%s1 + $0x1e20] sm:$0xff]
  %v1011 = vld [vmem:[%s1 + $0x1e28] sm:$0xff]
  %v1012 = vld [vmem:[%s1 + $0x1e30] sm:$0xff]
  %v1013 = vld [vmem:[%s1 + $0x1e38] sm:$0xff]
  %v1014 = vld [vmem:[%s1 + $0x1e40] sm:$0xff]
  %v1015 = vld [vmem:[%s1 + $0x1e48] sm:$0xff]
  %v1016 = vld [vmem:[%s1 + $0x1e50] sm:$0xff]
  %v1017 = vld [vmem:[%s1 + $0x1e58] sm:$0xff]
  %v1018 = vld [vmem:[%s1 + $0x1e60] sm:$0xff]
  %v1019 = vld [vmem:[%s1 + $0x1e68] sm:$0xff]
  %v1020 = vld [vmem:[%s1 + $0x1e70] sm:$0xff]
  %v1021 = vld [vmem:[%s1 + $0x1e78] sm:$0xff]
  %v1022 = vld [vmem:[%s1 + $0x1e80] sm:$0xff]
  %v1023 = vld [vmem:[%s1 + $0x1e88] sm:$0xff]
  %v1024 = vld [vmem:[%s1 + $0x1e90] sm:$0xff]
  %v1025 = vld [vmem:[%s1 + $0x1e98] sm:$0xff]
  %v1026 = vld [vmem:[%s1 + $0x1ea0] sm:$0xff]
  %v1027 = vld [vmem:[%s1 + $0x1ea8] sm:$0xff]
  %v1028 = vld [vmem:[%s1 + $0x1eb0] sm:$0xff]
  %v1029 = vld [vmem:[%s1 + $0x1eb8] sm:$0xff]
  %v1030 = vld [vmem:[%s1 + $0x1ec0] sm:$0xff]
  %v1031 = vld [vmem:[%s1 + $0x1ec8] sm:$0xff]
  %v1032 = vld [vmem:[%s1 + $0x1ed0] sm:$0xff]
  %v1033 = vld [vmem:[%s1 + $0x1ed8] sm:$0xff]
  %v1034 = vld [vmem:[%s1 + $0x1ee0] sm:$0xff]
  %v1035 = vld [vmem:[%s1 + $0x1ee8] sm:$0xff]
  %v1036 = vld [vmem:[%s1 + $0x1ef0] sm:$0xff]
  %v1037 = vld [vmem:[%s1 + $0x1ef8] sm:$0xff]
  %v1038 = vld [vmem:[%s1 + $0x1f00] sm:$0xff]
  %v1039 = vld [vmem:[%s1 + $0x1f08] sm:$0xff]
  %v1040 = vld [vmem:[%s1 + $0x1f10] sm:$0xff]
  %v1041 = vld [vmem:[%s1 + $0x1f18] sm:$0xff]
  %v1042 = vld [vmem:[%s1 + $0x1f20] sm:$0xff]
  %v1043 = vld [vmem:[%s1 + $0x1f28] sm:$0xff]
  %v1044 = vld [vmem:[%s1 + $0x1f30] sm:$0xff]
  %v1045 = vld [vmem:[%s1 + $0x1f38] sm:$0xff]
  %v1046 = vld [vmem:[%s1 + $0x1f40] sm:$0xff]
  %v1047 = vld [vmem:[%s1 + $0x1f48] sm:$0xff]
  %v1048 = vld [vmem:[%s1 + $0x1f50] sm:$0xff]
  %v1049 = vld [vmem:[%s1 + $0x1f58] sm:$0xff]
  %v1050 = vld [vmem:[%s1 + $0x1f60] sm:$0xff]
  %v1051 = vld [vmem:[%s1 + $0x1f68] sm:$0xff]
  %v1052 = vld [vmem:[%s1 + $0x1f70] sm:$0xff]
  %v1053 = vld [vmem:[%s1 + $0x1f78] sm:$0xff]
  %v1054 = vld [vmem:[%s1 + $0x1f80] sm:$0xff]
  %v1055 = vld [vmem:[%s1 + $0x1f88] sm:$0xff]
  %v1056 = vld [vmem:[%s1 + $0x1f90] sm:$0xff]
  %v1057 = vld [vmem:[%s1 + $0x1f98] sm:$0xff]
  %v1058 = vld [vmem:[%s1 + $0x1fa0] sm:$0xff]
  %v1059 = vld [vmem:[%s1 + $0x1fa8] sm:$0xff]
  %v1060 = vld [vmem:[%s1 + $0x1fb0] sm:$0xff]
  %v1061 = vld [vmem:[%s1 + $0x1fb8] sm:$0xff]
  %v1062 = vld [vmem:[%s1 + $0x1fc0] sm:$0xff]
  %v1063 = vld [vmem:[%s1 + $0x1fc8] sm:$0xff]
  %v1064 = vld [vmem:[%s1 + $0x1fd0] sm:$0xff]
  %v1065 = vld [vmem:[%s1 + $0x1fd8] sm:$0xff]
  %v1066 = vld [vmem:[%s1 + $0x1fe0] sm:$0xff]
  %v1067 = vld [vmem:[%s1 + $0x1fe8] sm:$0xff]
  %v1068 = vld [vmem:[%s1 + $0x1ff0] sm:$0xff]
  %v1069 = vld [vmem:[%s1 + $0x1ff8] sm:$0xff]
  %v1102 = vunpack.c.l.b16 %v14
  %v1103 = vunpack.c.h.b16 %v14
  %v1104 = vunpack.c.l.b16 %v15
  %v1105 = vunpack.c.h.b16 %v15
  %v1106 = vunpack.c.l.b16 %v16
  %v1107 = vunpack.c.h.b16 %v16
  %v1108 = vunpack.c.l.b16 %v17
  %v1109 = vunpack.c.h.b16 %v17
  %v1110 = vunpack.c.l.b16 %v18
  %v1111 = vunpack.c.h.b16 %v18
  %v1112 = vunpack.c.l.b16 %v19
  %v1113 = vunpack.c.h.b16 %v19
  %v1114 = vunpack.c.l.b16 %v20
  %v1115 = vunpack.c.h.b16 %v20
  %v1116 = vunpack.c.l.b16 %v21
  %v1117 = vunpack.c.h.b16 %v21
  %v1118 = vunpack.c.l.b16 %v22
  %v1119 = vunpack.c.h.b16 %v22
  %v1120 = vunpack.c.l.b16 %v23
  %v1121 = vunpack.c.h.b16 %v23
  %v1122 = vunpack.c.l.b16 %v24
  %v1123 = vunpack.c.h.b16 %v24
  %v1124 = vunpack.c.l.b16 %v25
  %v1125 = vunpack.c.h.b16 %v25
  %v1126 = vunpack.c.l.b16 %v26
  %v1127 = vunpack.c.h.b16 %v26
  %v1128 = vunpack.c.l.b16 %v27
  %v1129 = vunpack.c.h.b16 %v27
  %v1130 = vunpack.c.l.b16 %v28
  %v1131 = vunpack.c.h.b16 %v28
  %v1132 = vunpack.c.l.b16 %v29
  %v1133 = vunpack.c.h.b16 %v29
  %v1134 = vunpack.c.l.b16 %v30
  %v1135 = vunpack.c.h.b16 %v30
  %v1136 = vunpack.c.l.b16 %v31
  %v1137 = vunpack.c.h.b16 %v31
  %v1138 = vunpack.c.l.b16 %v32
  %v1139 = vunpack.c.h.b16 %v32
  %v1140 = vunpack.c.l.b16 %v33
  %v1141 = vunpack.c.h.b16 %v33
  %v1142 = vunpack.c.l.b16 %v34
  %v1143 = vunpack.c.h.b16 %v34
  %v1144 = vunpack.c.l.b16 %v35
  %v1145 = vunpack.c.h.b16 %v35
  %v1146 = vunpack.c.l.b16 %v36
  %v1147 = vunpack.c.h.b16 %v36
  %v1148 = vunpack.c.l.b16 %v37
  %v1149 = vunpack.c.h.b16 %v37
  %v1150 = vunpack.c.l.b16 %v38
  %v1151 = vunpack.c.h.b16 %v38
  %v1152 = vunpack.c.l.b16 %v39
  %v1153 = vunpack.c.h.b16 %v39
  %v1154 = vunpack.c.l.b16 %v40
  %v1155 = vunpack.c.h.b16 %v40
  %v1156 = vunpack.c.l.b16 %v41
  %v1157 = vunpack.c.h.b16 %v41
  %v1158 = vunpack.c.l.b16 %v42
  %v1159 = vunpack.c.h.b16 %v42
  %v1160 = vunpack.c.l.b16 %v43
  %v1161 = vunpack.c.h.b16 %v43
  %v1162 = vunpack.c.l.b16 %v44
  %v1163 = vunpack.c.h.b16 %v44
  %v1164 = vunpack.c.l.b16 %v45
  %v1165 = vunpack.c.h.b16 %v45
  %v1166 = vpack.c.b16 %v1102, %v1102
  %v1167 = vpack.c.b16 %v1103, %v1103
  %v1168 = vpack.c.b16 %v1104, %v1104
  %v1169 = vpack.c.b16 %v1105, %v1105
  %v1170 = vpack.c.b16 %v1106, %v1106
  %v1171 = vpack.c.b16 %v1107, %v1107
  %v1172 = vpack.c.b16 %v1108, %v1108
  %v1173 = vpack.c.b16 %v1109, %v1109
  %v1174 = vpack.c.b16 %v1110, %v1110
  %v1175 = vpack.c.b16 %v1111, %v1111
  %v1176 = vpack.c.b16 %v1112, %v1112
  %v1177 = vpack.c.b16 %v1113, %v1113
  %v1178 = vpack.c.b16 %v1114, %v1114
  %v1179 = vpack.c.b16 %v1115, %v1115
  %v1180 = vpack.c.b16 %v1116, %v1116
  %v1181 = vpack.c.b16 %v1117, %v1117
  %v1182 = vpack.c.b16 %v1118, %v1118
  %v1183 = vpack.c.b16 %v1119, %v1119
  %v1184 = vpack.c.b16 %v1120, %v1120
  %v1185 = vpack.c.b16 %v1121, %v1121
  %v1186 = vpack.c.b16 %v1122, %v1122
  %v1187 = vpack.c.b16 %v1123, %v1123
  %v1188 = vpack.c.b16 %v1124, %v1124
  %v1189 = vpack.c.b16 %v1125, %v1125
  %v1190 = vpack.c.b16 %v1126, %v1126
  %v1191 = vpack.c.b16 %v1127, %v1127
  %v1192 = vpack.c.b16 %v1128, %v1128
  %v1193 = vpack.c.b16 %v1129, %v1129
  %v1194 = vpack.c.b16 %v1130, %v1130
  %v1195 = vpack.c.b16 %v1131, %v1131
  %v1196 = vpack.c.b16 %v1132, %v1132
  %v1197 = vpack.c.b16 %v1133, %v1133
  %v1198 = vpack.c.b16 %v1134, %v1134
  %v1199 = vpack.c.b16 %v1135, %v1135
  %v1200 = vpack.c.b16 %v1136, %v1136
  %v1201 = vpack.c.b16 %v1137, %v1137
  %v1202 = vpack.c.b16 %v1138, %v1138
  %v1203 = vpack.c.b16 %v1139, %v1139
  %v1204 = vpack.c.b16 %v1140, %v1140
  %v1205 = vpack.c.b16 %v1141, %v1141
  %v1206 = vpack.c.b16 %v1142, %v1142
  %v1207 = vpack.c.b16 %v1143, %v1143
  %v1208 = vpack.c.b16 %v1144, %v1144
  %v1209 = vpack.c.b16 %v1145, %v1145
  %v1210 = vpack.c.b16 %v1146, %v1146
  %v1211 = vpack.c.b16 %v1147, %v1147
  %v1212 = vpack.c.b16 %v1148, %v1148
  %v1213 = vpack.c.b16 %v1149, %v1149
  %v1214 = vpack.c.b16 %v1150, %v1150
  %v1215 = vpack.c.b16 %v1151, %v1151
  %v1216 = vpack.c.b16 %v1152, %v1152
  %v1217 = vpack.c.b16 %v1153, %v1153
  %v1218 = vpack.c.b16 %v1154, %v1154
  %v1219 = vpack.c.b16 %v1155, %v1155
  %v1220 = vpack.c.b16 %v1156, %v1156
  %v1221 = vpack.c.b16 %v1157, %v1157
  %v1222 = vpack.c.b16 %v1158, %v1158
  %v1223 = vpack.c.b16 %v1159, %v1159
  %v1224 = vpack.c.b16 %v1160, %v1160
  %v1225 = vpack.c.b16 %v1161, %v1161
  %v1226 = vpack.c.b16 %v1162, %v1162
  %v1227 = vpack.c.b16 %v1163, %v1163
  %v1228 = vpack.c.b16 %v1164, %v1164
  %v1229 = vpack.c.b16 %v1165, %v1165
  %v2318 = vunpack.c.l.b16 %v46
  %v2319 = vunpack.c.h.b16 %v46
  %v2320 = vunpack.c.l.b16 %v47
  %v2321 = vunpack.c.h.b16 %v47
  %v2322 = vunpack.c.l.b16 %v48
  %v2323 = vunpack.c.h.b16 %v48
  %v2324 = vunpack.c.l.b16 %v49
  %v2325 = vunpack.c.h.b16 %v49
  %v2326 = vunpack.c.l.b16 %v50
  %v2327 = vunpack.c.h.b16 %v50
  %v2328 = vunpack.c.l.b16 %v51
  %v2329 = vunpack.c.h.b16 %v51
  %v2330 = vunpack.c.l.b16 %v52
  %v2331 = vunpack.c.h.b16 %v52
  %v2332 = vunpack.c.l.b16 %v53
  %v2333 = vunpack.c.h.b16 %v53
  %v2334 = vunpack.c.l.b16 %v54
  %v2335 = vunpack.c.h.b16 %v54
  %v2336 = vunpack.c.l.b16 %v55
  %v2337 = vunpack.c.h.b16 %v55
  %v2338 = vunpack.c.l.b16 %v56
  %v2339 = vunpack.c.h.b16 %v56
  %v2340 = vunpack.c.l.b16 %v57
  %v2341 = vunpack.c.h.b16 %v57
  %v2342 = vunpack.c.l.b16 %v58
  %v2343 = vunpack.c.h.b16 %v58
  %v2344 = vunpack.c.l.b16 %v59
  %v2345 = vunpack.c.h.b16 %v59
  %v2346 = vunpack.c.l.b16 %v60
  %v2347 = vunpack.c.h.b16 %v60
  %v2348 = vunpack.c.l.b16 %v61
  %v2349 = vunpack.c.h.b16 %v61
  %v2350 = vunpack.c.l.b16 %v62
  %v2351 = vunpack.c.h.b16 %v62
  %v2352 = vunpack.c.l.b16 %v63
  %v2353 = vunpack.c.h.b16 %v63
  %v2354 = vunpack.c.l.b16 %v64
  %v2355 = vunpack.c.h.b16 %v64
  %v2356 = vunpack.c.l.b16 %v65
  %v2357 = vunpack.c.h.b16 %v65
  %v2358 = vunpack.c.l.b16 %v66
  %v2359 = vunpack.c.h.b16 %v66
  %v2360 = vunpack.c.l.b16 %v67
  %v2361 = vunpack.c.h.b16 %v67
  %v2362 = vunpack.c.l.b16 %v68
  %v2363 = vunpack.c.h.b16 %v68
  %v2364 = vunpack.c.l.b16 %v69
  %v2365 = vunpack.c.h.b16 %v69
  %v2366 = vunpack.c.l.b16 %v70
  %v2367 = vunpack.c.h.b16 %v70
  %v2368 = vunpack.c.l.b16 %v71
  %v2369 = vunpack.c.h.b16 %v71
  %v2370 = vunpack.c.l.b16 %v72
  %v2371 = vunpack.c.h.b16 %v72
  %v2372 = vunpack.c.l.b16 %v73
  %v2373 = vunpack.c.h.b16 %v73
  %v2374 = vunpack.c.l.b16 %v74
  %v2375 = vunpack.c.h.b16 %v74
  %v2376 = vunpack.c.l.b16 %v75
  %v2377 = vunpack.c.h.b16 %v75
  %v2378 = vunpack.c.l.b16 %v76
  %v2379 = vunpack.c.h.b16 %v76
  %v2380 = vunpack.c.l.b16 %v77
  %v2381 = vunpack.c.h.b16 %v77
  %v2382 = vunpack.c.l.b16 %v78
  %v2383 = vunpack.c.h.b16 %v78
  %v2384 = vunpack.c.l.b16 %v79
  %v2385 = vunpack.c.h.b16 %v79
  %v2386 = vunpack.c.l.b16 %v80
  %v2387 = vunpack.c.h.b16 %v80
  %v2388 = vunpack.c.l.b16 %v81
  %v2389 = vunpack.c.h.b16 %v81
  %v2390 = vunpack.c.l.b16 %v82
  %v2391 = vunpack.c.h.b16 %v82
  %v2392 = vunpack.c.l.b16 %v83
  %v2393 = vunpack.c.h.b16 %v83
  %v2394 = vunpack.c.l.b16 %v84
  %v2395 = vunpack.c.h.b16 %v84
  %v2396 = vunpack.c.l.b16 %v85
  %v2397 = vunpack.c.h.b16 %v85
  %v2398 = vunpack.c.l.b16 %v86
  %v2399 = vunpack.c.h.b16 %v86
  %v2400 = vunpack.c.l.b16 %v87
  %v2401 = vunpack.c.h.b16 %v87
  %v2402 = vunpack.c.l.b16 %v88
  %v2403 = vunpack.c.h.b16 %v88
  %v2404 = vunpack.c.l.b16 %v89
  %v2405 = vunpack.c.h.b16 %v89
  %v2406 = vunpack.c.l.b16 %v90
  %v2407 = vunpack.c.h.b16 %v90
  %v2408 = vunpack.c.l.b16 %v91
  %v2409 = vunpack.c.h.b16 %v91
  %v2410 = vunpack.c.l.b16 %v92
  %v2411 = vunpack.c.h.b16 %v92
  %v2412 = vunpack.c.l.b16 %v93
  %v2413 = vunpack.c.h.b16 %v93
  %v2414 = vunpack.c.l.b16 %v94
  %v2415 = vunpack.c.h.b16 %v94
  %v2416 = vunpack.c.l.b16 %v95
  %v2417 = vunpack.c.h.b16 %v95
  %v2418 = vunpack.c.l.b16 %v96
  %v2419 = vunpack.c.h.b16 %v96
  %v2420 = vunpack.c.l.b16 %v97
  %v2421 = vunpack.c.h.b16 %v97
  %v2422 = vunpack.c.l.b16 %v98
  %v2423 = vunpack.c.h.b16 %v98
  %v2424 = vunpack.c.l.b16 %v99
  %v2425 = vunpack.c.h.b16 %v99
  %v2426 = vunpack.c.l.b16 %v100
  %v2427 = vunpack.c.h.b16 %v100
  %v2428 = vunpack.c.l.b16 %v101
  %v2429 = vunpack.c.h.b16 %v101
  %v2430 = vunpack.c.l.b16 %v102
  %v2431 = vunpack.c.h.b16 %v102
  %v2432 = vunpack.c.l.b16 %v103
  %v2433 = vunpack.c.h.b16 %v103
  %v2434 = vunpack.c.l.b16 %v104
  %v2435 = vunpack.c.h.b16 %v104
  %v2436 = vunpack.c.l.b16 %v105
  %v2437 = vunpack.c.h.b16 %v105
  %v2438 = vunpack.c.l.b16 %v106
  %v2439 = vunpack.c.h.b16 %v106
  %v2440 = vunpack.c.l.b16 %v107
  %v2441 = vunpack.c.h.b16 %v107
  %v2442 = vunpack.c.l.b16 %v108
  %v2443 = vunpack.c.h.b16 %v108
  %v2444 = vunpack.c.l.b16 %v109
  %v2445 = vunpack.c.h.b16 %v109
  %v2446 = vunpack.c.l.b16 %v110
  %v2447 = vunpack.c.h.b16 %v110
  %v2448 = vunpack.c.l.b16 %v111
  %v2449 = vunpack.c.h.b16 %v111
  %v2450 = vunpack.c.l.b16 %v112
  %v2451 = vunpack.c.h.b16 %v112
  %v2452 = vunpack.c.l.b16 %v113
  %v2453 = vunpack.c.h.b16 %v113
  %v2454 = vunpack.c.l.b16 %v114
  %v2455 = vunpack.c.h.b16 %v114
  %v2456 = vunpack.c.l.b16 %v115
  %v2457 = vunpack.c.h.b16 %v115
  %v2458 = vunpack.c.l.b16 %v116
  %v2459 = vunpack.c.h.b16 %v116
  %v2460 = vunpack.c.l.b16 %v117
  %v2461 = vunpack.c.h.b16 %v117
  %v2462 = vunpack.c.l.b16 %v118
  %v2463 = vunpack.c.h.b16 %v118
  %v2464 = vunpack.c.l.b16 %v119
  %v2465 = vunpack.c.h.b16 %v119
  %v2466 = vunpack.c.l.b16 %v120
  %v2467 = vunpack.c.h.b16 %v120
  %v2468 = vunpack.c.l.b16 %v121
  %v2469 = vunpack.c.h.b16 %v121
  %v2470 = vunpack.c.l.b16 %v122
  %v2471 = vunpack.c.h.b16 %v122
  %v2472 = vunpack.c.l.b16 %v123
  %v2473 = vunpack.c.h.b16 %v123
  %v2474 = vunpack.c.l.b16 %v124
  %v2475 = vunpack.c.h.b16 %v124
  %v2476 = vunpack.c.l.b16 %v125
  %v2477 = vunpack.c.h.b16 %v125
  %v2478 = vunpack.c.l.b16 %v126
  %v2479 = vunpack.c.h.b16 %v126
  %v2480 = vunpack.c.l.b16 %v127
  %v2481 = vunpack.c.h.b16 %v127
  %v2482 = vunpack.c.l.b16 %v128
  %v2483 = vunpack.c.h.b16 %v128
  %v2484 = vunpack.c.l.b16 %v129
  %v2485 = vunpack.c.h.b16 %v129
  %v2486 = vunpack.c.l.b16 %v130
  %v2487 = vunpack.c.h.b16 %v130
  %v2488 = vunpack.c.l.b16 %v131
  %v2489 = vunpack.c.h.b16 %v131
  %v2490 = vunpack.c.l.b16 %v132
  %v2491 = vunpack.c.h.b16 %v132
  %v2492 = vunpack.c.l.b16 %v133
  %v2493 = vunpack.c.h.b16 %v133
  %v2494 = vunpack.c.l.b16 %v134
  %v2495 = vunpack.c.h.b16 %v134
  %v2496 = vunpack.c.l.b16 %v135
  %v2497 = vunpack.c.h.b16 %v135
  %v2498 = vunpack.c.l.b16 %v136
  %v2499 = vunpack.c.h.b16 %v136
  %v2500 = vunpack.c.l.b16 %v137
  %v2501 = vunpack.c.h.b16 %v137
  %v2502 = vunpack.c.l.b16 %v138
  %v2503 = vunpack.c.h.b16 %v138
  %v2504 = vunpack.c.l.b16 %v139
  %v2505 = vunpack.c.h.b16 %v139
  %v2506 = vunpack.c.l.b16 %v140
  %v2507 = vunpack.c.h.b16 %v140
  %v2508 = vunpack.c.l.b16 %v141
  %v2509 = vunpack.c.h.b16 %v141
  %v2510 = vunpack.c.l.b16 %v142
  %v2511 = vunpack.c.h.b16 %v142
  %v2512 = vunpack.c.l.b16 %v143
  %v2513 = vunpack.c.h.b16 %v143
  %v2514 = vunpack.c.l.b16 %v144
  %v2515 = vunpack.c.h.b16 %v144
  %v2516 = vunpack.c.l.b16 %v145
  %v2517 = vunpack.c.h.b16 %v145
  %v2518 = vunpack.c.l.b16 %v146
  %v2519 = vunpack.c.h.b16 %v146
  %v2520 = vunpack.c.l.b16 %v147
  %v2521 = vunpack.c.h.b16 %v147
  %v2522 = vunpack.c.l.b16 %v148
  %v2523 = vunpack.c.h.b16 %v148
  %v2524 = vunpack.c.l.b16 %v149
  %v2525 = vunpack.c.h.b16 %v149
  %v2526 = vunpack.c.l.b16 %v150
  %v2527 = vunpack.c.h.b16 %v150
  %v2528 = vunpack.c.l.b16 %v151
  %v2529 = vunpack.c.h.b16 %v151
  %v2530 = vunpack.c.l.b16 %v152
  %v2531 = vunpack.c.h.b16 %v152
  %v2532 = vunpack.c.l.b16 %v153
  %v2533 = vunpack.c.h.b16 %v153
  %v2534 = vunpack.c.l.b16 %v154
  %v2535 = vunpack.c.h.b16 %v154
  %v2536 = vunpack.c.l.b16 %v155
  %v2537 = vunpack.c.h.b16 %v155
  %v2538 = vunpack.c.l.b16 %v156
  %v2539 = vunpack.c.h.b16 %v156
  %v2540 = vunpack.c.l.b16 %v157
  %v2541 = vunpack.c.h.b16 %v157
  %v2542 = vunpack.c.l.b16 %v158
  %v2543 = vunpack.c.h.b16 %v158
  %v2544 = vunpack.c.l.b16 %v159
  %v2545 = vunpack.c.h.b16 %v159
  %v2546 = vunpack.c.l.b16 %v160
  %v2547 = vunpack.c.h.b16 %v160
  %v2548 = vunpack.c.l.b16 %v161
  %v2549 = vunpack.c.h.b16 %v161
  %v2550 = vunpack.c.l.b16 %v162
  %v2551 = vunpack.c.h.b16 %v162
  %v2552 = vunpack.c.l.b16 %v163
  %v2553 = vunpack.c.h.b16 %v163
  %v2554 = vunpack.c.l.b16 %v164
  %v2555 = vunpack.c.h.b16 %v164
  %v2556 = vunpack.c.l.b16 %v165
  %v2557 = vunpack.c.h.b16 %v165
  %v2558 = vunpack.c.l.b16 %v166
  %v2559 = vunpack.c.h.b16 %v166
  %v2560 = vunpack.c.l.b16 %v167
  %v2561 = vunpack.c.h.b16 %v167
  %v2562 = vunpack.c.l.b16 %v168
  %v2563 = vunpack.c.h.b16 %v168
  %v2564 = vunpack.c.l.b16 %v169
  %v2565 = vunpack.c.h.b16 %v169
  %v2566 = vunpack.c.l.b16 %v170
  %v2567 = vunpack.c.h.b16 %v170
  %v2568 = vunpack.c.l.b16 %v171
  %v2569 = vunpack.c.h.b16 %v171
  %v2570 = vunpack.c.l.b16 %v172
  %v2571 = vunpack.c.h.b16 %v172
  %v2572 = vunpack.c.l.b16 %v173
  %v2573 = vunpack.c.h.b16 %v173
  %v2574 = vunpack.c.l.b16 %v174
  %v2575 = vunpack.c.h.b16 %v174
  %v2576 = vunpack.c.l.b16 %v175
  %v2577 = vunpack.c.h.b16 %v175
  %v2578 = vunpack.c.l.b16 %v176
  %v2579 = vunpack.c.h.b16 %v176
  %v2580 = vunpack.c.l.b16 %v177
  %v2581 = vunpack.c.h.b16 %v177
  %v2582 = vunpack.c.l.b16 %v178
  %v2583 = vunpack.c.h.b16 %v178
  %v2584 = vunpack.c.l.b16 %v179
  %v2585 = vunpack.c.h.b16 %v179
  %v2586 = vunpack.c.l.b16 %v180
  %v2587 = vunpack.c.h.b16 %v180
  %v2588 = vunpack.c.l.b16 %v181
  %v2589 = vunpack.c.h.b16 %v181
  %v2590 = vunpack.c.l.b16 %v182
  %v2591 = vunpack.c.h.b16 %v182
  %v2592 = vunpack.c.l.b16 %v183
  %v2593 = vunpack.c.h.b16 %v183
  %v2594 = vunpack.c.l.b16 %v184
  %v2595 = vunpack.c.h.b16 %v184
  %v2596 = vunpack.c.l.b16 %v185
  %v2597 = vunpack.c.h.b16 %v185
  %v2598 = vunpack.c.l.b16 %v186
  %v2599 = vunpack.c.h.b16 %v186
  %v2600 = vunpack.c.l.b16 %v187
  %v2601 = vunpack.c.h.b16 %v187
  %v2602 = vunpack.c.l.b16 %v188
  %v2603 = vunpack.c.h.b16 %v188
  %v2604 = vunpack.c.l.b16 %v189
  %v2605 = vunpack.c.h.b16 %v189
  %v2606 = vunpack.c.l.b16 %v190
  %v2607 = vunpack.c.h.b16 %v190
  %v2608 = vunpack.c.l.b16 %v191
  %v2609 = vunpack.c.h.b16 %v191
  %v2610 = vunpack.c.l.b16 %v192
  %v2611 = vunpack.c.h.b16 %v192
  %v2612 = vunpack.c.l.b16 %v193
  %v2613 = vunpack.c.h.b16 %v193
  %v2614 = vunpack.c.l.b16 %v194
  %v2615 = vunpack.c.h.b16 %v194
  %v2616 = vunpack.c.l.b16 %v195
  %v2617 = vunpack.c.h.b16 %v195
  %v2618 = vunpack.c.l.b16 %v196
  %v2619 = vunpack.c.h.b16 %v196
  %v2620 = vunpack.c.l.b16 %v197
  %v2621 = vunpack.c.h.b16 %v197
  %v2622 = vunpack.c.l.b16 %v198
  %v2623 = vunpack.c.h.b16 %v198
  %v2624 = vunpack.c.l.b16 %v199
  %v2625 = vunpack.c.h.b16 %v199
  %v2626 = vunpack.c.l.b16 %v200
  %v2627 = vunpack.c.h.b16 %v200
  %v2628 = vunpack.c.l.b16 %v201
  %v2629 = vunpack.c.h.b16 %v201
  %v2630 = vunpack.c.l.b16 %v202
  %v2631 = vunpack.c.h.b16 %v202
  %v2632 = vunpack.c.l.b16 %v203
  %v2633 = vunpack.c.h.b16 %v203
  %v2634 = vunpack.c.l.b16 %v204
  %v2635 = vunpack.c.h.b16 %v204
  %v2636 = vunpack.c.l.b16 %v205
  %v2637 = vunpack.c.h.b16 %v205
  %v2638 = vunpack.c.l.b16 %v206
  %v2639 = vunpack.c.h.b16 %v206
  %v2640 = vunpack.c.l.b16 %v207
  %v2641 = vunpack.c.h.b16 %v207
  %v2642 = vunpack.c.l.b16 %v208
  %v2643 = vunpack.c.h.b16 %v208
  %v2644 = vunpack.c.l.b16 %v209
  %v2645 = vunpack.c.h.b16 %v209
  %v2646 = vunpack.c.l.b16 %v210
  %v2647 = vunpack.c.h.b16 %v210
  %v2648 = vunpack.c.l.b16 %v211
  %v2649 = vunpack.c.h.b16 %v211
  %v2650 = vunpack.c.l.b16 %v212
  %v2651 = vunpack.c.h.b16 %v212
  %v2652 = vunpack.c.l.b16 %v213
  %v2653 = vunpack.c.h.b16 %v213
  %v2654 = vunpack.c.l.b16 %v214
  %v2655 = vunpack.c.h.b16 %v214
  %v2656 = vunpack.c.l.b16 %v215
  %v2657 = vunpack.c.h.b16 %v215
  %v2658 = vunpack.c.l.b16 %v216
  %v2659 = vunpack.c.h.b16 %v216
  %v2660 = vunpack.c.l.b16 %v217
  %v2661 = vunpack.c.h.b16 %v217
  %v2662 = vunpack.c.l.b16 %v218
  %v2663 = vunpack.c.h.b16 %v218
  %v2664 = vunpack.c.l.b16 %v219
  %v2665 = vunpack.c.h.b16 %v219
  %v2666 = vunpack.c.l.b16 %v220
  %v2667 = vunpack.c.h.b16 %v220
  %v2668 = vunpack.c.l.b16 %v221
  %v2669 = vunpack.c.h.b16 %v221
  %v2670 = vunpack.c.l.b16 %v222
  %v2671 = vunpack.c.h.b16 %v222
  %v2672 = vunpack.c.l.b16 %v223
  %v2673 = vunpack.c.h.b16 %v223
  %v2674 = vunpack.c.l.b16 %v224
  %v2675 = vunpack.c.h.b16 %v224
  %v2676 = vunpack.c.l.b16 %v225
  %v2677 = vunpack.c.h.b16 %v225
  %v2678 = vunpack.c.l.b16 %v226
  %v2679 = vunpack.c.h.b16 %v226
  %v2680 = vunpack.c.l.b16 %v227
  %v2681 = vunpack.c.h.b16 %v227
  %v2682 = vunpack.c.l.b16 %v228
  %v2683 = vunpack.c.h.b16 %v228
  %v2684 = vunpack.c.l.b16 %v229
  %v2685 = vunpack.c.h.b16 %v229
  %v2686 = vunpack.c.l.b16 %v230
  %v2687 = vunpack.c.h.b16 %v230
  %v2688 = vunpack.c.l.b16 %v231
  %v2689 = vunpack.c.h.b16 %v231
  %v2690 = vunpack.c.l.b16 %v232
  %v2691 = vunpack.c.h.b16 %v232
  %v2692 = vunpack.c.l.b16 %v233
  %v2693 = vunpack.c.h.b16 %v233
  %v2694 = vunpack.c.l.b16 %v234
  %v2695 = vunpack.c.h.b16 %v234
  %v2696 = vunpack.c.l.b16 %v235
  %v2697 = vunpack.c.h.b16 %v235
  %v2698 = vunpack.c.l.b16 %v236
  %v2699 = vunpack.c.h.b16 %v236
  %v2700 = vunpack.c.l.b16 %v237
  %v2701 = vunpack.c.h.b16 %v237
  %v2702 = vunpack.c.l.b16 %v238
  %v2703 = vunpack.c.h.b16 %v238
  %v2704 = vunpack.c.l.b16 %v239
  %v2705 = vunpack.c.h.b16 %v239
  %v2706 = vunpack.c.l.b16 %v240
  %v2707 = vunpack.c.h.b16 %v240
  %v2708 = vunpack.c.l.b16 %v241
  %v2709 = vunpack.c.h.b16 %v241
  %v2710 = vunpack.c.l.b16 %v242
  %v2711 = vunpack.c.h.b16 %v242
  %v2712 = vunpack.c.l.b16 %v243
  %v2713 = vunpack.c.h.b16 %v243
  %v2714 = vunpack.c.l.b16 %v244
  %v2715 = vunpack.c.h.b16 %v244
  %v2716 = vunpack.c.l.b16 %v245
  %v2717 = vunpack.c.h.b16 %v245
  %v2718 = vunpack.c.l.b16 %v246
  %v2719 = vunpack.c.h.b16 %v246
  %v2720 = vunpack.c.l.b16 %v247
  %v2721 = vunpack.c.h.b16 %v247
  %v2722 = vunpack.c.l.b16 %v248
  %v2723 = vunpack.c.h.b16 %v248
  %v2724 = vunpack.c.l.b16 %v249
  %v2725 = vunpack.c.h.b16 %v249
  %v2726 = vunpack.c.l.b16 %v250
  %v2727 = vunpack.c.h.b16 %v250
  %v2728 = vunpack.c.l.b16 %v251
  %v2729 = vunpack.c.h.b16 %v251
  %v2730 = vunpack.c.l.b16 %v252
  %v2731 = vunpack.c.h.b16 %v252
  %v2732 = vunpack.c.l.b16 %v253
  %v2733 = vunpack.c.h.b16 %v253
  %v2734 = vunpack.c.l.b16 %v254
  %v2735 = vunpack.c.h.b16 %v254
  %v2736 = vunpack.c.l.b16 %v255
  %v2737 = vunpack.c.h.b16 %v255
  %v2738 = vunpack.c.l.b16 %v256
  %v2739 = vunpack.c.h.b16 %v256
  %v2740 = vunpack.c.l.b16 %v257
  %v2741 = vunpack.c.h.b16 %v257
  %v2742 = vunpack.c.l.b16 %v258
  %v2743 = vunpack.c.h.b16 %v258
  %v2744 = vunpack.c.l.b16 %v259
  %v2745 = vunpack.c.h.b16 %v259
  %v2746 = vunpack.c.l.b16 %v260
  %v2747 = vunpack.c.h.b16 %v260
  %v2748 = vunpack.c.l.b16 %v261
  %v2749 = vunpack.c.h.b16 %v261
  %v2750 = vunpack.c.l.b16 %v262
  %v2751 = vunpack.c.h.b16 %v262
  %v2752 = vunpack.c.l.b16 %v263
  %v2753 = vunpack.c.h.b16 %v263
  %v2754 = vunpack.c.l.b16 %v264
  %v2755 = vunpack.c.h.b16 %v264
  %v2756 = vunpack.c.l.b16 %v265
  %v2757 = vunpack.c.h.b16 %v265
  %v2758 = vunpack.c.l.b16 %v266
  %v2759 = vunpack.c.h.b16 %v266
  %v2760 = vunpack.c.l.b16 %v267
  %v2761 = vunpack.c.h.b16 %v267
  %v2762 = vunpack.c.l.b16 %v268
  %v2763 = vunpack.c.h.b16 %v268
  %v2764 = vunpack.c.l.b16 %v269
  %v2765 = vunpack.c.h.b16 %v269
  %v2766 = vunpack.c.l.b16 %v270
  %v2767 = vunpack.c.h.b16 %v270
  %v2768 = vunpack.c.l.b16 %v271
  %v2769 = vunpack.c.h.b16 %v271
  %v2770 = vunpack.c.l.b16 %v272
  %v2771 = vunpack.c.h.b16 %v272
  %v2772 = vunpack.c.l.b16 %v273
  %v2773 = vunpack.c.h.b16 %v273
  %v2774 = vunpack.c.l.b16 %v274
  %v2775 = vunpack.c.h.b16 %v274
  %v2776 = vunpack.c.l.b16 %v275
  %v2777 = vunpack.c.h.b16 %v275
  %v2778 = vunpack.c.l.b16 %v276
  %v2779 = vunpack.c.h.b16 %v276
  %v2780 = vunpack.c.l.b16 %v277
  %v2781 = vunpack.c.h.b16 %v277
  %v2782 = vunpack.c.l.b16 %v278
  %v2783 = vunpack.c.h.b16 %v278
  %v2784 = vunpack.c.l.b16 %v279
  %v2785 = vunpack.c.h.b16 %v279
  %v2786 = vunpack.c.l.b16 %v280
  %v2787 = vunpack.c.h.b16 %v280
  %v2788 = vunpack.c.l.b16 %v281
  %v2789 = vunpack.c.h.b16 %v281
  %v2790 = vunpack.c.l.b16 %v282
  %v2791 = vunpack.c.h.b16 %v282
  %v2792 = vunpack.c.l.b16 %v283
  %v2793 = vunpack.c.h.b16 %v283
  %v2794 = vunpack.c.l.b16 %v284
  %v2795 = vunpack.c.h.b16 %v284
  %v2796 = vunpack.c.l.b16 %v285
  %v2797 = vunpack.c.h.b16 %v285
  %v2798 = vunpack.c.l.b16 %v286
  %v2799 = vunpack.c.h.b16 %v286
  %v2800 = vunpack.c.l.b16 %v287
  %v2801 = vunpack.c.h.b16 %v287
  %v2802 = vunpack.c.l.b16 %v288
  %v2803 = vunpack.c.h.b16 %v288
  %v2804 = vunpack.c.l.b16 %v289
  %v2805 = vunpack.c.h.b16 %v289
  %v2806 = vunpack.c.l.b16 %v290
  %v2807 = vunpack.c.h.b16 %v290
  %v2808 = vunpack.c.l.b16 %v291
  %v2809 = vunpack.c.h.b16 %v291
  %v2810 = vunpack.c.l.b16 %v292
  %v2811 = vunpack.c.h.b16 %v292
  %v2812 = vunpack.c.l.b16 %v293
  %v2813 = vunpack.c.h.b16 %v293
  %v2814 = vunpack.c.l.b16 %v294
  %v2815 = vunpack.c.h.b16 %v294
  %v2816 = vunpack.c.l.b16 %v295
  %v2817 = vunpack.c.h.b16 %v295
  %v2818 = vunpack.c.l.b16 %v296
  %v2819 = vunpack.c.h.b16 %v296
  %v2820 = vunpack.c.l.b16 %v297
  %v2821 = vunpack.c.h.b16 %v297
  %v2822 = vunpack.c.l.b16 %v298
  %v2823 = vunpack.c.h.b16 %v298
  %v2824 = vunpack.c.l.b16 %v299
  %v2825 = vunpack.c.h.b16 %v299
  %v2826 = vunpack.c.l.b16 %v300
  %v2827 = vunpack.c.h.b16 %v300
  %v2828 = vunpack.c.l.b16 %v301
  %v2829 = vunpack.c.h.b16 %v301
  %v2830 = vunpack.c.l.b16 %v302
  %v2831 = vunpack.c.h.b16 %v302
  %v2832 = vunpack.c.l.b16 %v303
  %v2833 = vunpack.c.h.b16 %v303
  %v2834 = vunpack.c.l.b16 %v304
  %v2835 = vunpack.c.h.b16 %v304
  %v2836 = vunpack.c.l.b16 %v305
  %v2837 = vunpack.c.h.b16 %v305
  %v2838 = vunpack.c.l.b16 %v306
  %v2839 = vunpack.c.h.b16 %v306
  %v2840 = vunpack.c.l.b16 %v307
  %v2841 = vunpack.c.h.b16 %v307
  %v2842 = vunpack.c.l.b16 %v308
  %v2843 = vunpack.c.h.b16 %v308
  %v2844 = vunpack.c.l.b16 %v309
  %v2845 = vunpack.c.h.b16 %v309
  %v2846 = vunpack.c.l.b16 %v310
  %v2847 = vunpack.c.h.b16 %v310
  %v2848 = vunpack.c.l.b16 %v311
  %v2849 = vunpack.c.h.b16 %v311
  %v2850 = vunpack.c.l.b16 %v312
  %v2851 = vunpack.c.h.b16 %v312
  %v2852 = vunpack.c.l.b16 %v313
  %v2853 = vunpack.c.h.b16 %v313
  %v2854 = vunpack.c.l.b16 %v314
  %v2855 = vunpack.c.h.b16 %v314
  %v2856 = vunpack.c.l.b16 %v315
  %v2857 = vunpack.c.h.b16 %v315
  %v2858 = vunpack.c.l.b16 %v316
  %v2859 = vunpack.c.h.b16 %v316
  %v2860 = vunpack.c.l.b16 %v317
  %v2861 = vunpack.c.h.b16 %v317
  %v2862 = vunpack.c.l.b16 %v318
  %v2863 = vunpack.c.h.b16 %v318
  %v2864 = vunpack.c.l.b16 %v319
  %v2865 = vunpack.c.h.b16 %v319
  %v2866 = vunpack.c.l.b16 %v320
  %v2867 = vunpack.c.h.b16 %v320
  %v2868 = vunpack.c.l.b16 %v321
  %v2869 = vunpack.c.h.b16 %v321
  %v2870 = vunpack.c.l.b16 %v322
  %v2871 = vunpack.c.h.b16 %v322
  %v2872 = vunpack.c.l.b16 %v323
  %v2873 = vunpack.c.h.b16 %v323
  %v2874 = vunpack.c.l.b16 %v324
  %v2875 = vunpack.c.h.b16 %v324
  %v2876 = vunpack.c.l.b16 %v325
  %v2877 = vunpack.c.h.b16 %v325
  %v2878 = vunpack.c.l.b16 %v326
  %v2879 = vunpack.c.h.b16 %v326
  %v2880 = vunpack.c.l.b16 %v327
  %v2881 = vunpack.c.h.b16 %v327
  %v2882 = vunpack.c.l.b16 %v328
  %v2883 = vunpack.c.h.b16 %v328
  %v2884 = vunpack.c.l.b16 %v329
  %v2885 = vunpack.c.h.b16 %v329
  %v2886 = vunpack.c.l.b16 %v330
  %v2887 = vunpack.c.h.b16 %v330
  %v2888 = vunpack.c.l.b16 %v331
  %v2889 = vunpack.c.h.b16 %v331
  %v2890 = vunpack.c.l.b16 %v332
  %v2891 = vunpack.c.h.b16 %v332
  %v2892 = vunpack.c.l.b16 %v333
  %v2893 = vunpack.c.h.b16 %v333
  %v2894 = vunpack.c.l.b16 %v334
  %v2895 = vunpack.c.h.b16 %v334
  %v2896 = vunpack.c.l.b16 %v335
  %v2897 = vunpack.c.h.b16 %v335
  %v2898 = vunpack.c.l.b16 %v336
  %v2899 = vunpack.c.h.b16 %v336
  %v2900 = vunpack.c.l.b16 %v337
  %v2901 = vunpack.c.h.b16 %v337
  %v2902 = vunpack.c.l.b16 %v338
  %v2903 = vunpack.c.h.b16 %v338
  %v2904 = vunpack.c.l.b16 %v339
  %v2905 = vunpack.c.h.b16 %v339
  %v2906 = vunpack.c.l.b16 %v340
  %v2907 = vunpack.c.h.b16 %v340
  %v2908 = vunpack.c.l.b16 %v341
  %v2909 = vunpack.c.h.b16 %v341
  %v2910 = vunpack.c.l.b16 %v342
  %v2911 = vunpack.c.h.b16 %v342
  %v2912 = vunpack.c.l.b16 %v343
  %v2913 = vunpack.c.h.b16 %v343
  %v2914 = vunpack.c.l.b16 %v344
  %v2915 = vunpack.c.h.b16 %v344
  %v2916 = vunpack.c.l.b16 %v345
  %v2917 = vunpack.c.h.b16 %v345
  %v2918 = vunpack.c.l.b16 %v346
  %v2919 = vunpack.c.h.b16 %v346
  %v2920 = vunpack.c.l.b16 %v347
  %v2921 = vunpack.c.h.b16 %v347
  %v2922 = vunpack.c.l.b16 %v348
  %v2923 = vunpack.c.h.b16 %v348
  %v2924 = vunpack.c.l.b16 %v349
  %v2925 = vunpack.c.h.b16 %v349
  %v2926 = vunpack.c.l.b16 %v350
  %v2927 = vunpack.c.h.b16 %v350
  %v2928 = vunpack.c.l.b16 %v351
  %v2929 = vunpack.c.h.b16 %v351
  %v2930 = vunpack.c.l.b16 %v352
  %v2931 = vunpack.c.h.b16 %v352
  %v2932 = vunpack.c.l.b16 %v353
  %v2933 = vunpack.c.h.b16 %v353
  %v2934 = vunpack.c.l.b16 %v354
  %v2935 = vunpack.c.h.b16 %v354
  %v2936 = vunpack.c.l.b16 %v355
  %v2937 = vunpack.c.h.b16 %v355
  %v2938 = vunpack.c.l.b16 %v356
  %v2939 = vunpack.c.h.b16 %v356
  %v2940 = vunpack.c.l.b16 %v357
  %v2941 = vunpack.c.h.b16 %v357
  %v2942 = vunpack.c.l.b16 %v358
  %v2943 = vunpack.c.h.b16 %v358
  %v2944 = vunpack.c.l.b16 %v359
  %v2945 = vunpack.c.h.b16 %v359
  %v2946 = vunpack.c.l.b16 %v360
  %v2947 = vunpack.c.h.b16 %v360
  %v2948 = vunpack.c.l.b16 %v361
  %v2949 = vunpack.c.h.b16 %v361
  %v2950 = vunpack.c.l.b16 %v362
  %v2951 = vunpack.c.h.b16 %v362
  %v2952 = vunpack.c.l.b16 %v363
  %v2953 = vunpack.c.h.b16 %v363
  %v2954 = vunpack.c.l.b16 %v364
  %v2955 = vunpack.c.h.b16 %v364
  %v2956 = vunpack.c.l.b16 %v365
  %v2957 = vunpack.c.h.b16 %v365
  %v2958 = vunpack.c.l.b16 %v366
  %v2959 = vunpack.c.h.b16 %v366
  %v2960 = vunpack.c.l.b16 %v367
  %v2961 = vunpack.c.h.b16 %v367
  %v2962 = vunpack.c.l.b16 %v368
  %v2963 = vunpack.c.h.b16 %v368
  %v2964 = vunpack.c.l.b16 %v369
  %v2965 = vunpack.c.h.b16 %v369
  %v2966 = vunpack.c.l.b16 %v370
  %v2967 = vunpack.c.h.b16 %v370
  %v2968 = vunpack.c.l.b16 %v371
  %v2969 = vunpack.c.h.b16 %v371
  %v2970 = vunpack.c.l.b16 %v372
  %v2971 = vunpack.c.h.b16 %v372
  %v2972 = vunpack.c.l.b16 %v373
  %v2973 = vunpack.c.h.b16 %v373
  %v2974 = vunpack.c.l.b16 %v374
  %v2975 = vunpack.c.h.b16 %v374
  %v2976 = vunpack.c.l.b16 %v375
  %v2977 = vunpack.c.h.b16 %v375
  %v2978 = vunpack.c.l.b16 %v376
  %v2979 = vunpack.c.h.b16 %v376
  %v2980 = vunpack.c.l.b16 %v377
  %v2981 = vunpack.c.h.b16 %v377
  %v2982 = vunpack.c.l.b16 %v378
  %v2983 = vunpack.c.h.b16 %v378
  %v2984 = vunpack.c.l.b16 %v379
  %v2985 = vunpack.c.h.b16 %v379
  %v2986 = vunpack.c.l.b16 %v380
  %v2987 = vunpack.c.h.b16 %v380
  %v2988 = vunpack.c.l.b16 %v381
  %v2989 = vunpack.c.h.b16 %v381
  %v2990 = vunpack.c.l.b16 %v382
  %v2991 = vunpack.c.h.b16 %v382
  %v2992 = vunpack.c.l.b16 %v383
  %v2993 = vunpack.c.h.b16 %v383
  %v2994 = vunpack.c.l.b16 %v384
  %v2995 = vunpack.c.h.b16 %v384
  %v2996 = vunpack.c.l.b16 %v385
  %v2997 = vunpack.c.h.b16 %v385
  %v2998 = vunpack.c.l.b16 %v386
  %v2999 = vunpack.c.h.b16 %v386
  %v3000 = vunpack.c.l.b16 %v387
  %v3001 = vunpack.c.h.b16 %v387
  %v3002 = vunpack.c.l.b16 %v388
  %v3003 = vunpack.c.h.b16 %v388
  %v3004 = vunpack.c.l.b16 %v389
  %v3005 = vunpack.c.h.b16 %v389
  %v3006 = vunpack.c.l.b16 %v390
  %v3007 = vunpack.c.h.b16 %v390
  %v3008 = vunpack.c.l.b16 %v391
  %v3009 = vunpack.c.h.b16 %v391
  %v3010 = vunpack.c.l.b16 %v392
  %v3011 = vunpack.c.h.b16 %v392
  %v3012 = vunpack.c.l.b16 %v393
  %v3013 = vunpack.c.h.b16 %v393
  %v3014 = vunpack.c.l.b16 %v394
  %v3015 = vunpack.c.h.b16 %v394
  %v3016 = vunpack.c.l.b16 %v395
  %v3017 = vunpack.c.h.b16 %v395
  %v3018 = vunpack.c.l.b16 %v396
  %v3019 = vunpack.c.h.b16 %v396
  %v3020 = vunpack.c.l.b16 %v397
  %v3021 = vunpack.c.h.b16 %v397
  %v3022 = vunpack.c.l.b16 %v398
  %v3023 = vunpack.c.h.b16 %v398
  %v3024 = vunpack.c.l.b16 %v399
  %v3025 = vunpack.c.h.b16 %v399
  %v3026 = vunpack.c.l.b16 %v400
  %v3027 = vunpack.c.h.b16 %v400
  %v3028 = vunpack.c.l.b16 %v401
  %v3029 = vunpack.c.h.b16 %v401
  %v3030 = vunpack.c.l.b16 %v402
  %v3031 = vunpack.c.h.b16 %v402
  %v3032 = vunpack.c.l.b16 %v403
  %v3033 = vunpack.c.h.b16 %v403
  %v3034 = vunpack.c.l.b16 %v404
  %v3035 = vunpack.c.h.b16 %v404
  %v3036 = vunpack.c.l.b16 %v405
  %v3037 = vunpack.c.h.b16 %v405
  %v3038 = vunpack.c.l.b16 %v406
  %v3039 = vunpack.c.h.b16 %v406
  %v3040 = vunpack.c.l.b16 %v407
  %v3041 = vunpack.c.h.b16 %v407
  %v3042 = vunpack.c.l.b16 %v408
  %v3043 = vunpack.c.h.b16 %v408
  %v3044 = vunpack.c.l.b16 %v409
  %v3045 = vunpack.c.h.b16 %v409
  %v3046 = vunpack.c.l.b16 %v410
  %v3047 = vunpack.c.h.b16 %v410
  %v3048 = vunpack.c.l.b16 %v411
  %v3049 = vunpack.c.h.b16 %v411
  %v3050 = vunpack.c.l.b16 %v412
  %v3051 = vunpack.c.h.b16 %v412
  %v3052 = vunpack.c.l.b16 %v413
  %v3053 = vunpack.c.h.b16 %v413
  %v3054 = vunpack.c.l.b16 %v414
  %v3055 = vunpack.c.h.b16 %v414
  %v3056 = vunpack.c.l.b16 %v415
  %v3057 = vunpack.c.h.b16 %v415
  %v3058 = vunpack.c.l.b16 %v416
  %v3059 = vunpack.c.h.b16 %v416
  %v3060 = vunpack.c.l.b16 %v417
  %v3061 = vunpack.c.h.b16 %v417
  %v3062 = vunpack.c.l.b16 %v418
  %v3063 = vunpack.c.h.b16 %v418
  %v3064 = vunpack.c.l.b16 %v419
  %v3065 = vunpack.c.h.b16 %v419
  %v3066 = vunpack.c.l.b16 %v420
  %v3067 = vunpack.c.h.b16 %v420
  %v3068 = vunpack.c.l.b16 %v421
  %v3069 = vunpack.c.h.b16 %v421
  %v3070 = vunpack.c.l.b16 %v422
  %v3071 = vunpack.c.h.b16 %v422
  %v3072 = vunpack.c.l.b16 %v423
  %v3073 = vunpack.c.h.b16 %v423
  %v3074 = vunpack.c.l.b16 %v424
  %v3075 = vunpack.c.h.b16 %v424
  %v3076 = vunpack.c.l.b16 %v425
  %v3077 = vunpack.c.h.b16 %v425
  %v3078 = vunpack.c.l.b16 %v426
  %v3079 = vunpack.c.h.b16 %v426
  %v3080 = vunpack.c.l.b16 %v427
  %v3081 = vunpack.c.h.b16 %v427
  %v3082 = vunpack.c.l.b16 %v428
  %v3083 = vunpack.c.h.b16 %v428
  %v3084 = vunpack.c.l.b16 %v429
  %v3085 = vunpack.c.h.b16 %v429
  %v3086 = vunpack.c.l.b16 %v430
  %v3087 = vunpack.c.h.b16 %v430
  %v3088 = vunpack.c.l.b16 %v431
  %v3089 = vunpack.c.h.b16 %v431
  %v3090 = vunpack.c.l.b16 %v432
  %v3091 = vunpack.c.h.b16 %v432
  %v3092 = vunpack.c.l.b16 %v433
  %v3093 = vunpack.c.h.b16 %v433
  %v3094 = vunpack.c.l.b16 %v434
  %v3095 = vunpack.c.h.b16 %v434
  %v3096 = vunpack.c.l.b16 %v435
  %v3097 = vunpack.c.h.b16 %v435
  %v3098 = vunpack.c.l.b16 %v436
  %v3099 = vunpack.c.h.b16 %v436
  %v3100 = vunpack.c.l.b16 %v437
  %v3101 = vunpack.c.h.b16 %v437
  %v3102 = vunpack.c.l.b16 %v438
  %v3103 = vunpack.c.h.b16 %v438
  %v3104 = vunpack.c.l.b16 %v439
  %v3105 = vunpack.c.h.b16 %v439
  %v3106 = vunpack.c.l.b16 %v440
  %v3107 = vunpack.c.h.b16 %v440
  %v3108 = vunpack.c.l.b16 %v441
  %v3109 = vunpack.c.h.b16 %v441
  %v3110 = vunpack.c.l.b16 %v442
  %v3111 = vunpack.c.h.b16 %v442
  %v3112 = vunpack.c.l.b16 %v443
  %v3113 = vunpack.c.h.b16 %v443
  %v3114 = vunpack.c.l.b16 %v444
  %v3115 = vunpack.c.h.b16 %v444
  %v3116 = vunpack.c.l.b16 %v445
  %v3117 = vunpack.c.h.b16 %v445
  %v3118 = vunpack.c.l.b16 %v446
  %v3119 = vunpack.c.h.b16 %v446
  %v3120 = vunpack.c.l.b16 %v447
  %v3121 = vunpack.c.h.b16 %v447
  %v3122 = vunpack.c.l.b16 %v448
  %v3123 = vunpack.c.h.b16 %v448
  %v3124 = vunpack.c.l.b16 %v449
  %v3125 = vunpack.c.h.b16 %v449
  %v3126 = vunpack.c.l.b16 %v450
  %v3127 = vunpack.c.h.b16 %v450
  %v3128 = vunpack.c.l.b16 %v451
  %v3129 = vunpack.c.h.b16 %v451
  %v3130 = vunpack.c.l.b16 %v452
  %v3131 = vunpack.c.h.b16 %v452
  %v3132 = vunpack.c.l.b16 %v453
  %v3133 = vunpack.c.h.b16 %v453
  %v3134 = vunpack.c.l.b16 %v454
  %v3135 = vunpack.c.h.b16 %v454
  %v3136 = vunpack.c.l.b16 %v455
  %v3137 = vunpack.c.h.b16 %v455
  %v3138 = vunpack.c.l.b16 %v456
  %v3139 = vunpack.c.h.b16 %v456
  %v3140 = vunpack.c.l.b16 %v457
  %v3141 = vunpack.c.h.b16 %v457
  %v3142 = vunpack.c.l.b16 %v458
  %v3143 = vunpack.c.h.b16 %v458
  %v3144 = vunpack.c.l.b16 %v459
  %v3145 = vunpack.c.h.b16 %v459
  %v3146 = vunpack.c.l.b16 %v460
  %v3147 = vunpack.c.h.b16 %v460
  %v3148 = vunpack.c.l.b16 %v461
  %v3149 = vunpack.c.h.b16 %v461
  %v3150 = vunpack.c.l.b16 %v462
  %v3151 = vunpack.c.h.b16 %v462
  %v3152 = vunpack.c.l.b16 %v463
  %v3153 = vunpack.c.h.b16 %v463
  %v3154 = vunpack.c.l.b16 %v464
  %v3155 = vunpack.c.h.b16 %v464
  %v3156 = vunpack.c.l.b16 %v465
  %v3157 = vunpack.c.h.b16 %v465
  %v3158 = vunpack.c.l.b16 %v466
  %v3159 = vunpack.c.h.b16 %v466
  %v3160 = vunpack.c.l.b16 %v467
  %v3161 = vunpack.c.h.b16 %v467
  %v3162 = vunpack.c.l.b16 %v468
  %v3163 = vunpack.c.h.b16 %v468
  %v3164 = vunpack.c.l.b16 %v469
  %v3165 = vunpack.c.h.b16 %v469
  %v3166 = vunpack.c.l.b16 %v470
  %v3167 = vunpack.c.h.b16 %v470
  %v3168 = vunpack.c.l.b16 %v471
  %v3169 = vunpack.c.h.b16 %v471
  %v3170 = vunpack.c.l.b16 %v472
  %v3171 = vunpack.c.h.b16 %v472
  %v3172 = vunpack.c.l.b16 %v473
  %v3173 = vunpack.c.h.b16 %v473
  %v3174 = vunpack.c.l.b16 %v474
  %v3175 = vunpack.c.h.b16 %v474
  %v3176 = vunpack.c.l.b16 %v475
  %v3177 = vunpack.c.h.b16 %v475
  %v3178 = vunpack.c.l.b16 %v476
  %v3179 = vunpack.c.h.b16 %v476
  %v3180 = vunpack.c.l.b16 %v477
  %v3181 = vunpack.c.h.b16 %v477
  %v3182 = vunpack.c.l.b16 %v478
  %v3183 = vunpack.c.h.b16 %v478
  %v3184 = vunpack.c.l.b16 %v479
  %v3185 = vunpack.c.h.b16 %v479
  %v3186 = vunpack.c.l.b16 %v480
  %v3187 = vunpack.c.h.b16 %v480
  %v3188 = vunpack.c.l.b16 %v481
  %v3189 = vunpack.c.h.b16 %v481
  %v3190 = vunpack.c.l.b16 %v482
  %v3191 = vunpack.c.h.b16 %v482
  %v3192 = vunpack.c.l.b16 %v483
  %v3193 = vunpack.c.h.b16 %v483
  %v3194 = vunpack.c.l.b16 %v484
  %v3195 = vunpack.c.h.b16 %v484
  %v3196 = vunpack.c.l.b16 %v485
  %v3197 = vunpack.c.h.b16 %v485
  %v3198 = vunpack.c.l.b16 %v486
  %v3199 = vunpack.c.h.b16 %v486
  %v3200 = vunpack.c.l.b16 %v487
  %v3201 = vunpack.c.h.b16 %v487
  %v3202 = vunpack.c.l.b16 %v488
  %v3203 = vunpack.c.h.b16 %v488
  %v3204 = vunpack.c.l.b16 %v489
  %v3205 = vunpack.c.h.b16 %v489
  %v3206 = vunpack.c.l.b16 %v490
  %v3207 = vunpack.c.h.b16 %v490
  %v3208 = vunpack.c.l.b16 %v491
  %v3209 = vunpack.c.h.b16 %v491
  %v3210 = vunpack.c.l.b16 %v492
  %v3211 = vunpack.c.h.b16 %v492
  %v3212 = vunpack.c.l.b16 %v493
  %v3213 = vunpack.c.h.b16 %v493
  %v3214 = vunpack.c.l.b16 %v494
  %v3215 = vunpack.c.h.b16 %v494
  %v3216 = vunpack.c.l.b16 %v495
  %v3217 = vunpack.c.h.b16 %v495
  %v3218 = vunpack.c.l.b16 %v496
  %v3219 = vunpack.c.h.b16 %v496
  %v3220 = vunpack.c.l.b16 %v497
  %v3221 = vunpack.c.h.b16 %v497
  %v3222 = vunpack.c.l.b16 %v498
  %v3223 = vunpack.c.h.b16 %v498
  %v3224 = vunpack.c.l.b16 %v499
  %v3225 = vunpack.c.h.b16 %v499
  %v3226 = vunpack.c.l.b16 %v500
  %v3227 = vunpack.c.h.b16 %v500
  %v3228 = vunpack.c.l.b16 %v501
  %v3229 = vunpack.c.h.b16 %v501
  %v3230 = vunpack.c.l.b16 %v502
  %v3231 = vunpack.c.h.b16 %v502
  %v3232 = vunpack.c.l.b16 %v503
  %v3233 = vunpack.c.h.b16 %v503
  %v3234 = vunpack.c.l.b16 %v504
  %v3235 = vunpack.c.h.b16 %v504
  %v3236 = vunpack.c.l.b16 %v505
  %v3237 = vunpack.c.h.b16 %v505
  %v3238 = vunpack.c.l.b16 %v506
  %v3239 = vunpack.c.h.b16 %v506
  %v3240 = vunpack.c.l.b16 %v507
  %v3241 = vunpack.c.h.b16 %v507
  %v3242 = vunpack.c.l.b16 %v508
  %v3243 = vunpack.c.h.b16 %v508
  %v3244 = vunpack.c.l.b16 %v509
  %v3245 = vunpack.c.h.b16 %v509
  %v3246 = vunpack.c.l.b16 %v510
  %v3247 = vunpack.c.h.b16 %v510
  %v3248 = vunpack.c.l.b16 %v511
  %v3249 = vunpack.c.h.b16 %v511
  %v3250 = vunpack.c.l.b16 %v512
  %v3251 = vunpack.c.h.b16 %v512
  %v3252 = vunpack.c.l.b16 %v513
  %v3253 = vunpack.c.h.b16 %v513
  %v3254 = vunpack.c.l.b16 %v514
  %v3255 = vunpack.c.h.b16 %v514
  %v3256 = vunpack.c.l.b16 %v515
  %v3257 = vunpack.c.h.b16 %v515
  %v3258 = vunpack.c.l.b16 %v516
  %v3259 = vunpack.c.h.b16 %v516
  %v3260 = vunpack.c.l.b16 %v517
  %v3261 = vunpack.c.h.b16 %v517
  %v3262 = vunpack.c.l.b16 %v518
  %v3263 = vunpack.c.h.b16 %v518
  %v3264 = vunpack.c.l.b16 %v519
  %v3265 = vunpack.c.h.b16 %v519
  %v3266 = vunpack.c.l.b16 %v520
  %v3267 = vunpack.c.h.b16 %v520
  %v3268 = vunpack.c.l.b16 %v521
  %v3269 = vunpack.c.h.b16 %v521
  %v3270 = vunpack.c.l.b16 %v522
  %v3271 = vunpack.c.h.b16 %v522
  %v3272 = vunpack.c.l.b16 %v523
  %v3273 = vunpack.c.h.b16 %v523
  %v3274 = vunpack.c.l.b16 %v524
  %v3275 = vunpack.c.h.b16 %v524
  %v3276 = vunpack.c.l.b16 %v525
  %v3277 = vunpack.c.h.b16 %v525
  %v3278 = vunpack.c.l.b16 %v526
  %v3279 = vunpack.c.h.b16 %v526
  %v3280 = vunpack.c.l.b16 %v527
  %v3281 = vunpack.c.h.b16 %v527
  %v3282 = vunpack.c.l.b16 %v528
  %v3283 = vunpack.c.h.b16 %v528
  %v3284 = vunpack.c.l.b16 %v529
  %v3285 = vunpack.c.h.b16 %v529
  %v3286 = vunpack.c.l.b16 %v530
  %v3287 = vunpack.c.h.b16 %v530
  %v3288 = vunpack.c.l.b16 %v531
  %v3289 = vunpack.c.h.b16 %v531
  %v3290 = vunpack.c.l.b16 %v532
  %v3291 = vunpack.c.h.b16 %v532
  %v3292 = vunpack.c.l.b16 %v533
  %v3293 = vunpack.c.h.b16 %v533
  %v3294 = vunpack.c.l.b16 %v534
  %v3295 = vunpack.c.h.b16 %v534
  %v3296 = vunpack.c.l.b16 %v535
  %v3297 = vunpack.c.h.b16 %v535
  %v3298 = vunpack.c.l.b16 %v536
  %v3299 = vunpack.c.h.b16 %v536
  %v3300 = vunpack.c.l.b16 %v537
  %v3301 = vunpack.c.h.b16 %v537
  %v3302 = vunpack.c.l.b16 %v538
  %v3303 = vunpack.c.h.b16 %v538
  %v3304 = vunpack.c.l.b16 %v539
  %v3305 = vunpack.c.h.b16 %v539
  %v3306 = vunpack.c.l.b16 %v540
  %v3307 = vunpack.c.h.b16 %v540
  %v3308 = vunpack.c.l.b16 %v541
  %v3309 = vunpack.c.h.b16 %v541
  %v3310 = vunpack.c.l.b16 %v542
  %v3311 = vunpack.c.h.b16 %v542
  %v3312 = vunpack.c.l.b16 %v543
  %v3313 = vunpack.c.h.b16 %v543
  %v3314 = vunpack.c.l.b16 %v544
  %v3315 = vunpack.c.h.b16 %v544
  %v3316 = vunpack.c.l.b16 %v545
  %v3317 = vunpack.c.h.b16 %v545
  %v3318 = vunpack.c.l.b16 %v546
  %v3319 = vunpack.c.h.b16 %v546
  %v3320 = vunpack.c.l.b16 %v547
  %v3321 = vunpack.c.h.b16 %v547
  %v3322 = vunpack.c.l.b16 %v548
  %v3323 = vunpack.c.h.b16 %v548
  %v3324 = vunpack.c.l.b16 %v549
  %v3325 = vunpack.c.h.b16 %v549
  %v3326 = vunpack.c.l.b16 %v550
  %v3327 = vunpack.c.h.b16 %v550
  %v3328 = vunpack.c.l.b16 %v551
  %v3329 = vunpack.c.h.b16 %v551
  %v3330 = vunpack.c.l.b16 %v552
  %v3331 = vunpack.c.h.b16 %v552
  %v3332 = vunpack.c.l.b16 %v553
  %v3333 = vunpack.c.h.b16 %v553
  %v3334 = vunpack.c.l.b16 %v554
  %v3335 = vunpack.c.h.b16 %v554
  %v3336 = vunpack.c.l.b16 %v555
  %v3337 = vunpack.c.h.b16 %v555
  %v3338 = vunpack.c.l.b16 %v556
  %v3339 = vunpack.c.h.b16 %v556
  %v3340 = vunpack.c.l.b16 %v557
  %v3341 = vunpack.c.h.b16 %v557
  %v3342 = vunpack.c.l.b16 %v558
  %v3343 = vunpack.c.h.b16 %v558
  %v3344 = vunpack.c.l.b16 %v559
  %v3345 = vunpack.c.h.b16 %v559
  %v3346 = vunpack.c.l.b16 %v560
  %v3347 = vunpack.c.h.b16 %v560
  %v3348 = vunpack.c.l.b16 %v561
  %v3349 = vunpack.c.h.b16 %v561
  %v3350 = vunpack.c.l.b16 %v562
  %v3351 = vunpack.c.h.b16 %v562
  %v3352 = vunpack.c.l.b16 %v563
  %v3353 = vunpack.c.h.b16 %v563
  %v3354 = vunpack.c.l.b16 %v564
  %v3355 = vunpack.c.h.b16 %v564
  %v3356 = vunpack.c.l.b16 %v565
  %v3357 = vunpack.c.h.b16 %v565
  %v3358 = vunpack.c.l.b16 %v566
  %v3359 = vunpack.c.h.b16 %v566
  %v3360 = vunpack.c.l.b16 %v567
  %v3361 = vunpack.c.h.b16 %v567
  %v3362 = vunpack.c.l.b16 %v568
  %v3363 = vunpack.c.h.b16 %v568
  %v3364 = vunpack.c.l.b16 %v569
  %v3365 = vunpack.c.h.b16 %v569
  %v3366 = vunpack.c.l.b16 %v570
  %v3367 = vunpack.c.h.b16 %v570
  %v3368 = vunpack.c.l.b16 %v571
  %v3369 = vunpack.c.h.b16 %v571
  %v3370 = vunpack.c.l.b16 %v572
  %v3371 = vunpack.c.h.b16 %v572
  %v3372 = vunpack.c.l.b16 %v573
  %v3373 = vunpack.c.h.b16 %v573
  %v3374 = vunpack.c.l.b16 %v574
  %v3375 = vunpack.c.h.b16 %v574
  %v3376 = vunpack.c.l.b16 %v575
  %v3377 = vunpack.c.h.b16 %v575
  %v3378 = vunpack.c.l.b16 %v576
  %v3379 = vunpack.c.h.b16 %v576
  %v3380 = vunpack.c.l.b16 %v577
  %v3381 = vunpack.c.h.b16 %v577
  %v3382 = vunpack.c.l.b16 %v578
  %v3383 = vunpack.c.h.b16 %v578
  %v3384 = vunpack.c.l.b16 %v579
  %v3385 = vunpack.c.h.b16 %v579
  %v3386 = vunpack.c.l.b16 %v580
  %v3387 = vunpack.c.h.b16 %v580
  %v3388 = vunpack.c.l.b16 %v581
  %v3389 = vunpack.c.h.b16 %v581
  %v3390 = vunpack.c.l.b16 %v582
  %v3391 = vunpack.c.h.b16 %v582
  %v3392 = vunpack.c.l.b16 %v583
  %v3393 = vunpack.c.h.b16 %v583
  %v3394 = vunpack.c.l.b16 %v584
  %v3395 = vunpack.c.h.b16 %v584
  %v3396 = vunpack.c.l.b16 %v585
  %v3397 = vunpack.c.h.b16 %v585
  %v3398 = vunpack.c.l.b16 %v586
  %v3399 = vunpack.c.h.b16 %v586
  %v3400 = vunpack.c.l.b16 %v587
  %v3401 = vunpack.c.h.b16 %v587
  %v3402 = vunpack.c.l.b16 %v588
  %v3403 = vunpack.c.h.b16 %v588
  %v3404 = vunpack.c.l.b16 %v589
  %v3405 = vunpack.c.h.b16 %v589
  %v3406 = vunpack.c.l.b16 %v590
  %v3407 = vunpack.c.h.b16 %v590
  %v3408 = vunpack.c.l.b16 %v591
  %v3409 = vunpack.c.h.b16 %v591
  %v3410 = vunpack.c.l.b16 %v592
  %v3411 = vunpack.c.h.b16 %v592
  %v3412 = vunpack.c.l.b16 %v593
  %v3413 = vunpack.c.h.b16 %v593
  %v3414 = vunpack.c.l.b16 %v594
  %v3415 = vunpack.c.h.b16 %v594
  %v3416 = vunpack.c.l.b16 %v595
  %v3417 = vunpack.c.h.b16 %v595
  %v3418 = vunpack.c.l.b16 %v596
  %v3419 = vunpack.c.h.b16 %v596
  %v3420 = vunpack.c.l.b16 %v597
  %v3421 = vunpack.c.h.b16 %v597
  %v3422 = vunpack.c.l.b16 %v598
  %v3423 = vunpack.c.h.b16 %v598
  %v3424 = vunpack.c.l.b16 %v599
  %v3425 = vunpack.c.h.b16 %v599
  %v3426 = vunpack.c.l.b16 %v600
  %v3427 = vunpack.c.h.b16 %v600
  %v3428 = vunpack.c.l.b16 %v601
  %v3429 = vunpack.c.h.b16 %v601
  %v3430 = vunpack.c.l.b16 %v602
  %v3431 = vunpack.c.h.b16 %v602
  %v3432 = vunpack.c.l.b16 %v603
  %v3433 = vunpack.c.h.b16 %v603
  %v3434 = vunpack.c.l.b16 %v604
  %v3435 = vunpack.c.h.b16 %v604
  %v3436 = vunpack.c.l.b16 %v605
  %v3437 = vunpack.c.h.b16 %v605
  %v3438 = vunpack.c.l.b16 %v606
  %v3439 = vunpack.c.h.b16 %v606
  %v3440 = vunpack.c.l.b16 %v607
  %v3441 = vunpack.c.h.b16 %v607
  %v3442 = vunpack.c.l.b16 %v608
  %v3443 = vunpack.c.h.b16 %v608
  %v3444 = vunpack.c.l.b16 %v609
  %v3445 = vunpack.c.h.b16 %v609
  %v3446 = vunpack.c.l.b16 %v610
  %v3447 = vunpack.c.h.b16 %v610
  %v3448 = vunpack.c.l.b16 %v611
  %v3449 = vunpack.c.h.b16 %v611
  %v3450 = vunpack.c.l.b16 %v612
  %v3451 = vunpack.c.h.b16 %v612
  %v3452 = vunpack.c.l.b16 %v613
  %v3453 = vunpack.c.h.b16 %v613
  %v3454 = vunpack.c.l.b16 %v614
  %v3455 = vunpack.c.h.b16 %v614
  %v3456 = vunpack.c.l.b16 %v615
  %v3457 = vunpack.c.h.b16 %v615
  %v3458 = vunpack.c.l.b16 %v616
  %v3459 = vunpack.c.h.b16 %v616
  %v3460 = vunpack.c.l.b16 %v617
  %v3461 = vunpack.c.h.b16 %v617
  %v3462 = vunpack.c.l.b16 %v618
  %v3463 = vunpack.c.h.b16 %v618
  %v3464 = vunpack.c.l.b16 %v619
  %v3465 = vunpack.c.h.b16 %v619
  %v3466 = vunpack.c.l.b16 %v620
  %v3467 = vunpack.c.h.b16 %v620
  %v3468 = vunpack.c.l.b16 %v621
  %v3469 = vunpack.c.h.b16 %v621
  %v3470 = vunpack.c.l.b16 %v622
  %v3471 = vunpack.c.h.b16 %v622
  %v3472 = vunpack.c.l.b16 %v623
  %v3473 = vunpack.c.h.b16 %v623
  %v3474 = vunpack.c.l.b16 %v624
  %v3475 = vunpack.c.h.b16 %v624
  %v3476 = vunpack.c.l.b16 %v625
  %v3477 = vunpack.c.h.b16 %v625
  %v3478 = vunpack.c.l.b16 %v626
  %v3479 = vunpack.c.h.b16 %v626
  %v3480 = vunpack.c.l.b16 %v627
  %v3481 = vunpack.c.h.b16 %v627
  %v3482 = vunpack.c.l.b16 %v628
  %v3483 = vunpack.c.h.b16 %v628
  %v3484 = vunpack.c.l.b16 %v629
  %v3485 = vunpack.c.h.b16 %v629
  %v3486 = vunpack.c.l.b16 %v630
  %v3487 = vunpack.c.h.b16 %v630
  %v3488 = vunpack.c.l.b16 %v631
  %v3489 = vunpack.c.h.b16 %v631
  %v3490 = vunpack.c.l.b16 %v632
  %v3491 = vunpack.c.h.b16 %v632
  %v3492 = vunpack.c.l.b16 %v633
  %v3493 = vunpack.c.h.b16 %v633
  %v3494 = vunpack.c.l.b16 %v634
  %v3495 = vunpack.c.h.b16 %v634
  %v3496 = vunpack.c.l.b16 %v635
  %v3497 = vunpack.c.h.b16 %v635
  %v3498 = vunpack.c.l.b16 %v636
  %v3499 = vunpack.c.h.b16 %v636
  %v3500 = vunpack.c.l.b16 %v637
  %v3501 = vunpack.c.h.b16 %v637
  %v3502 = vunpack.c.l.b16 %v638
  %v3503 = vunpack.c.h.b16 %v638
  %v3504 = vunpack.c.l.b16 %v639
  %v3505 = vunpack.c.h.b16 %v639
  %v3506 = vunpack.c.l.b16 %v640
  %v3507 = vunpack.c.h.b16 %v640
  %v3508 = vunpack.c.l.b16 %v641
  %v3509 = vunpack.c.h.b16 %v641
  %v3510 = vunpack.c.l.b16 %v642
  %v3511 = vunpack.c.h.b16 %v642
  %v3512 = vunpack.c.l.b16 %v643
  %v3513 = vunpack.c.h.b16 %v643
  %v3514 = vunpack.c.l.b16 %v644
  %v3515 = vunpack.c.h.b16 %v644
  %v3516 = vunpack.c.l.b16 %v645
  %v3517 = vunpack.c.h.b16 %v645
  %v3518 = vunpack.c.l.b16 %v646
  %v3519 = vunpack.c.h.b16 %v646
  %v3520 = vunpack.c.l.b16 %v647
  %v3521 = vunpack.c.h.b16 %v647
  %v3522 = vunpack.c.l.b16 %v648
  %v3523 = vunpack.c.h.b16 %v648
  %v3524 = vunpack.c.l.b16 %v649
  %v3525 = vunpack.c.h.b16 %v649
  %v3526 = vunpack.c.l.b16 %v650
  %v3527 = vunpack.c.h.b16 %v650
  %v3528 = vunpack.c.l.b16 %v651
  %v3529 = vunpack.c.h.b16 %v651
  %v3530 = vunpack.c.l.b16 %v652
  %v3531 = vunpack.c.h.b16 %v652
  %v3532 = vunpack.c.l.b16 %v653
  %v3533 = vunpack.c.h.b16 %v653
  %v3534 = vunpack.c.l.b16 %v654
  %v3535 = vunpack.c.h.b16 %v654
  %v3536 = vunpack.c.l.b16 %v655
  %v3537 = vunpack.c.h.b16 %v655
  %v3538 = vunpack.c.l.b16 %v656
  %v3539 = vunpack.c.h.b16 %v656
  %v3540 = vunpack.c.l.b16 %v657
  %v3541 = vunpack.c.h.b16 %v657
  %v3542 = vunpack.c.l.b16 %v658
  %v3543 = vunpack.c.h.b16 %v658
  %v3544 = vunpack.c.l.b16 %v659
  %v3545 = vunpack.c.h.b16 %v659
  %v3546 = vunpack.c.l.b16 %v660
  %v3547 = vunpack.c.h.b16 %v660
  %v3548 = vunpack.c.l.b16 %v661
  %v3549 = vunpack.c.h.b16 %v661
  %v3550 = vunpack.c.l.b16 %v662
  %v3551 = vunpack.c.h.b16 %v662
  %v3552 = vunpack.c.l.b16 %v663
  %v3553 = vunpack.c.h.b16 %v663
  %v3554 = vunpack.c.l.b16 %v664
  %v3555 = vunpack.c.h.b16 %v664
  %v3556 = vunpack.c.l.b16 %v665
  %v3557 = vunpack.c.h.b16 %v665
  %v3558 = vunpack.c.l.b16 %v666
  %v3559 = vunpack.c.h.b16 %v666
  %v3560 = vunpack.c.l.b16 %v667
  %v3561 = vunpack.c.h.b16 %v667
  %v3562 = vunpack.c.l.b16 %v668
  %v3563 = vunpack.c.h.b16 %v668
  %v3564 = vunpack.c.l.b16 %v669
  %v3565 = vunpack.c.h.b16 %v669
  %v3566 = vunpack.c.l.b16 %v670
  %v3567 = vunpack.c.h.b16 %v670
  %v3568 = vunpack.c.l.b16 %v671
  %v3569 = vunpack.c.h.b16 %v671
  %v3570 = vunpack.c.l.b16 %v672
  %v3571 = vunpack.c.h.b16 %v672
  %v3572 = vunpack.c.l.b16 %v673
  %v3573 = vunpack.c.h.b16 %v673
  %v3574 = vunpack.c.l.b16 %v674
  %v3575 = vunpack.c.h.b16 %v674
  %v3576 = vunpack.c.l.b16 %v675
  %v3577 = vunpack.c.h.b16 %v675
  %v3578 = vunpack.c.l.b16 %v676
  %v3579 = vunpack.c.h.b16 %v676
  %v3580 = vunpack.c.l.b16 %v677
  %v3581 = vunpack.c.h.b16 %v677
  %v3582 = vunpack.c.l.b16 %v678
  %v3583 = vunpack.c.h.b16 %v678
  %v3584 = vunpack.c.l.b16 %v679
  %v3585 = vunpack.c.h.b16 %v679
  %v3586 = vunpack.c.l.b16 %v680
  %v3587 = vunpack.c.h.b16 %v680
  %v3588 = vunpack.c.l.b16 %v681
  %v3589 = vunpack.c.h.b16 %v681
  %v3590 = vunpack.c.l.b16 %v682
  %v3591 = vunpack.c.h.b16 %v682
  %v3592 = vunpack.c.l.b16 %v683
  %v3593 = vunpack.c.h.b16 %v683
  %v3594 = vunpack.c.l.b16 %v684
  %v3595 = vunpack.c.h.b16 %v684
  %v3596 = vunpack.c.l.b16 %v685
  %v3597 = vunpack.c.h.b16 %v685
  %v3598 = vunpack.c.l.b16 %v686
  %v3599 = vunpack.c.h.b16 %v686
  %v3600 = vunpack.c.l.b16 %v687
  %v3601 = vunpack.c.h.b16 %v687
  %v3602 = vunpack.c.l.b16 %v688
  %v3603 = vunpack.c.h.b16 %v688
  %v3604 = vunpack.c.l.b16 %v689
  %v3605 = vunpack.c.h.b16 %v689
  %v3606 = vunpack.c.l.b16 %v690
  %v3607 = vunpack.c.h.b16 %v690
  %v3608 = vunpack.c.l.b16 %v691
  %v3609 = vunpack.c.h.b16 %v691
  %v3610 = vunpack.c.l.b16 %v692
  %v3611 = vunpack.c.h.b16 %v692
  %v3612 = vunpack.c.l.b16 %v693
  %v3613 = vunpack.c.h.b16 %v693
  %v3614 = vunpack.c.l.b16 %v694
  %v3615 = vunpack.c.h.b16 %v694
  %v3616 = vunpack.c.l.b16 %v695
  %v3617 = vunpack.c.h.b16 %v695
  %v3618 = vunpack.c.l.b16 %v696
  %v3619 = vunpack.c.h.b16 %v696
  %v3620 = vunpack.c.l.b16 %v697
  %v3621 = vunpack.c.h.b16 %v697
  %v3622 = vunpack.c.l.b16 %v698
  %v3623 = vunpack.c.h.b16 %v698
  %v3624 = vunpack.c.l.b16 %v699
  %v3625 = vunpack.c.h.b16 %v699
  %v3626 = vunpack.c.l.b16 %v700
  %v3627 = vunpack.c.h.b16 %v700
  %v3628 = vunpack.c.l.b16 %v701
  %v3629 = vunpack.c.h.b16 %v701
  %v3630 = vunpack.c.l.b16 %v702
  %v3631 = vunpack.c.h.b16 %v702
  %v3632 = vunpack.c.l.b16 %v703
  %v3633 = vunpack.c.h.b16 %v703
  %v3634 = vunpack.c.l.b16 %v704
  %v3635 = vunpack.c.h.b16 %v704
  %v3636 = vunpack.c.l.b16 %v705
  %v3637 = vunpack.c.h.b16 %v705
  %v3638 = vunpack.c.l.b16 %v706
  %v3639 = vunpack.c.h.b16 %v706
  %v3640 = vunpack.c.l.b16 %v707
  %v3641 = vunpack.c.h.b16 %v707
  %v3642 = vunpack.c.l.b16 %v708
  %v3643 = vunpack.c.h.b16 %v708
  %v3644 = vunpack.c.l.b16 %v709
  %v3645 = vunpack.c.h.b16 %v709
  %v3646 = vunpack.c.l.b16 %v710
  %v3647 = vunpack.c.h.b16 %v710
  %v3648 = vunpack.c.l.b16 %v711
  %v3649 = vunpack.c.h.b16 %v711
  %v3650 = vunpack.c.l.b16 %v712
  %v3651 = vunpack.c.h.b16 %v712
  %v3652 = vunpack.c.l.b16 %v713
  %v3653 = vunpack.c.h.b16 %v713
  %v3654 = vunpack.c.l.b16 %v714
  %v3655 = vunpack.c.h.b16 %v714
  %v3656 = vunpack.c.l.b16 %v715
  %v3657 = vunpack.c.h.b16 %v715
  %v3658 = vunpack.c.l.b16 %v716
  %v3659 = vunpack.c.h.b16 %v716
  %v3660 = vunpack.c.l.b16 %v717
  %v3661 = vunpack.c.h.b16 %v717
  %v3662 = vunpack.c.l.b16 %v718
  %v3663 = vunpack.c.h.b16 %v718
  %v3664 = vunpack.c.l.b16 %v719
  %v3665 = vunpack.c.h.b16 %v719
  %v3666 = vunpack.c.l.b16 %v720
  %v3667 = vunpack.c.h.b16 %v720
  %v3668 = vunpack.c.l.b16 %v721
  %v3669 = vunpack.c.h.b16 %v721
  %v3670 = vunpack.c.l.b16 %v722
  %v3671 = vunpack.c.h.b16 %v722
  %v3672 = vunpack.c.l.b16 %v723
  %v3673 = vunpack.c.h.b16 %v723
  %v3674 = vunpack.c.l.b16 %v724
  %v3675 = vunpack.c.h.b16 %v724
  %v3676 = vunpack.c.l.b16 %v725
  %v3677 = vunpack.c.h.b16 %v725
  %v3678 = vunpack.c.l.b16 %v726
  %v3679 = vunpack.c.h.b16 %v726
  %v3680 = vunpack.c.l.b16 %v727
  %v3681 = vunpack.c.h.b16 %v727
  %v3682 = vunpack.c.l.b16 %v728
  %v3683 = vunpack.c.h.b16 %v728
  %v3684 = vunpack.c.l.b16 %v729
  %v3685 = vunpack.c.h.b16 %v729
  %v3686 = vunpack.c.l.b16 %v730
  %v3687 = vunpack.c.h.b16 %v730
  %v3688 = vunpack.c.l.b16 %v731
  %v3689 = vunpack.c.h.b16 %v731
  %v3690 = vunpack.c.l.b16 %v732
  %v3691 = vunpack.c.h.b16 %v732
  %v3692 = vunpack.c.l.b16 %v733
  %v3693 = vunpack.c.h.b16 %v733
  %v3694 = vunpack.c.l.b16 %v734
  %v3695 = vunpack.c.h.b16 %v734
  %v3696 = vunpack.c.l.b16 %v735
  %v3697 = vunpack.c.h.b16 %v735
  %v3698 = vunpack.c.l.b16 %v736
  %v3699 = vunpack.c.h.b16 %v736
  %v3700 = vunpack.c.l.b16 %v737
  %v3701 = vunpack.c.h.b16 %v737
  %v3702 = vunpack.c.l.b16 %v738
  %v3703 = vunpack.c.h.b16 %v738
  %v3704 = vunpack.c.l.b16 %v739
  %v3705 = vunpack.c.h.b16 %v739
  %v3706 = vunpack.c.l.b16 %v740
  %v3707 = vunpack.c.h.b16 %v740
  %v3708 = vunpack.c.l.b16 %v741
  %v3709 = vunpack.c.h.b16 %v741
  %v3710 = vunpack.c.l.b16 %v742
  %v3711 = vunpack.c.h.b16 %v742
  %v3712 = vunpack.c.l.b16 %v743
  %v3713 = vunpack.c.h.b16 %v743
  %v3714 = vunpack.c.l.b16 %v744
  %v3715 = vunpack.c.h.b16 %v744
  %v3716 = vunpack.c.l.b16 %v745
  %v3717 = vunpack.c.h.b16 %v745
  %v3718 = vunpack.c.l.b16 %v746
  %v3719 = vunpack.c.h.b16 %v746
  %v3720 = vunpack.c.l.b16 %v747
  %v3721 = vunpack.c.h.b16 %v747
  %v3722 = vunpack.c.l.b16 %v748
  %v3723 = vunpack.c.h.b16 %v748
  %v3724 = vunpack.c.l.b16 %v749
  %v3725 = vunpack.c.h.b16 %v749
  %v3726 = vunpack.c.l.b16 %v750
  %v3727 = vunpack.c.h.b16 %v750
  %v3728 = vunpack.c.l.b16 %v751
  %v3729 = vunpack.c.h.b16 %v751
  %v3730 = vunpack.c.l.b16 %v752
  %v3731 = vunpack.c.h.b16 %v752
  %v3732 = vunpack.c.l.b16 %v753
  %v3733 = vunpack.c.h.b16 %v753
  %v3734 = vunpack.c.l.b16 %v754
  %v3735 = vunpack.c.h.b16 %v754
  %v3736 = vunpack.c.l.b16 %v755
  %v3737 = vunpack.c.h.b16 %v755
  %v3738 = vunpack.c.l.b16 %v756
  %v3739 = vunpack.c.h.b16 %v756
  %v3740 = vunpack.c.l.b16 %v757
  %v3741 = vunpack.c.h.b16 %v757
  %v3742 = vunpack.c.l.b16 %v758
  %v3743 = vunpack.c.h.b16 %v758
  %v3744 = vunpack.c.l.b16 %v759
  %v3745 = vunpack.c.h.b16 %v759
  %v3746 = vunpack.c.l.b16 %v760
  %v3747 = vunpack.c.h.b16 %v760
  %v3748 = vunpack.c.l.b16 %v761
  %v3749 = vunpack.c.h.b16 %v761
  %v3750 = vunpack.c.l.b16 %v762
  %v3751 = vunpack.c.h.b16 %v762
  %v3752 = vunpack.c.l.b16 %v763
  %v3753 = vunpack.c.h.b16 %v763
  %v3754 = vunpack.c.l.b16 %v764
  %v3755 = vunpack.c.h.b16 %v764
  %v3756 = vunpack.c.l.b16 %v765
  %v3757 = vunpack.c.h.b16 %v765
  %v3758 = vunpack.c.l.b16 %v766
  %v3759 = vunpack.c.h.b16 %v766
  %v3760 = vunpack.c.l.b16 %v767
  %v3761 = vunpack.c.h.b16 %v767
  %v3762 = vunpack.c.l.b16 %v768
  %v3763 = vunpack.c.h.b16 %v768
  %v3764 = vunpack.c.l.b16 %v769
  %v3765 = vunpack.c.h.b16 %v769
  %v3766 = vunpack.c.l.b16 %v770
  %v3767 = vunpack.c.h.b16 %v770
  %v3768 = vunpack.c.l.b16 %v771
  %v3769 = vunpack.c.h.b16 %v771
  %v3770 = vunpack.c.l.b16 %v772
  %v3771 = vunpack.c.h.b16 %v772
  %v3772 = vunpack.c.l.b16 %v773
  %v3773 = vunpack.c.h.b16 %v773
  %v3774 = vunpack.c.l.b16 %v774
  %v3775 = vunpack.c.h.b16 %v774
  %v3776 = vunpack.c.l.b16 %v775
  %v3777 = vunpack.c.h.b16 %v775
  %v3778 = vunpack.c.l.b16 %v776
  %v3779 = vunpack.c.h.b16 %v776
  %v3780 = vunpack.c.l.b16 %v777
  %v3781 = vunpack.c.h.b16 %v777
  %v3782 = vunpack.c.l.b16 %v778
  %v3783 = vunpack.c.h.b16 %v778
  %v3784 = vunpack.c.l.b16 %v779
  %v3785 = vunpack.c.h.b16 %v779
  %v3786 = vunpack.c.l.b16 %v780
  %v3787 = vunpack.c.h.b16 %v780
  %v3788 = vunpack.c.l.b16 %v781
  %v3789 = vunpack.c.h.b16 %v781
  %v3790 = vunpack.c.l.b16 %v782
  %v3791 = vunpack.c.h.b16 %v782
  %v3792 = vunpack.c.l.b16 %v783
  %v3793 = vunpack.c.h.b16 %v783
  %v3794 = vunpack.c.l.b16 %v784
  %v3795 = vunpack.c.h.b16 %v784
  %v3796 = vunpack.c.l.b16 %v785
  %v3797 = vunpack.c.h.b16 %v785
  %v3798 = vunpack.c.l.b16 %v786
  %v3799 = vunpack.c.h.b16 %v786
  %v3800 = vunpack.c.l.b16 %v787
  %v3801 = vunpack.c.h.b16 %v787
  %v3802 = vunpack.c.l.b16 %v788
  %v3803 = vunpack.c.h.b16 %v788
  %v3804 = vunpack.c.l.b16 %v789
  %v3805 = vunpack.c.h.b16 %v789
  %v3806 = vunpack.c.l.b16 %v790
  %v3807 = vunpack.c.h.b16 %v790
  %v3808 = vunpack.c.l.b16 %v791
  %v3809 = vunpack.c.h.b16 %v791
  %v3810 = vunpack.c.l.b16 %v792
  %v3811 = vunpack.c.h.b16 %v792
  %v3812 = vunpack.c.l.b16 %v793
  %v3813 = vunpack.c.h.b16 %v793
  %v3814 = vunpack.c.l.b16 %v794
  %v3815 = vunpack.c.h.b16 %v794
  %v3816 = vunpack.c.l.b16 %v795
  %v3817 = vunpack.c.h.b16 %v795
  %v3818 = vunpack.c.l.b16 %v796
  %v3819 = vunpack.c.h.b16 %v796
  %v3820 = vunpack.c.l.b16 %v797
  %v3821 = vunpack.c.h.b16 %v797
  %v3822 = vunpack.c.l.b16 %v798
  %v3823 = vunpack.c.h.b16 %v798
  %v3824 = vunpack.c.l.b16 %v799
  %v3825 = vunpack.c.h.b16 %v799
  %v3826 = vunpack.c.l.b16 %v800
  %v3827 = vunpack.c.h.b16 %v800
  %v3828 = vunpack.c.l.b16 %v801
  %v3829 = vunpack.c.h.b16 %v801
  %v3830 = vunpack.c.l.b16 %v802
  %v3831 = vunpack.c.h.b16 %v802
  %v3832 = vunpack.c.l.b16 %v803
  %v3833 = vunpack.c.h.b16 %v803
  %v3834 = vunpack.c.l.b16 %v804
  %v3835 = vunpack.c.h.b16 %v804
  %v3836 = vunpack.c.l.b16 %v805
  %v3837 = vunpack.c.h.b16 %v805
  %v3838 = vunpack.c.l.b16 %v806
  %v3839 = vunpack.c.h.b16 %v806
  %v3840 = vunpack.c.l.b16 %v807
  %v3841 = vunpack.c.h.b16 %v807
  %v3842 = vunpack.c.l.b16 %v808
  %v3843 = vunpack.c.h.b16 %v808
  %v3844 = vunpack.c.l.b16 %v809
  %v3845 = vunpack.c.h.b16 %v809
  %v3846 = vunpack.c.l.b16 %v810
  %v3847 = vunpack.c.h.b16 %v810
  %v3848 = vunpack.c.l.b16 %v811
  %v3849 = vunpack.c.h.b16 %v811
  %v3850 = vunpack.c.l.b16 %v812
  %v3851 = vunpack.c.h.b16 %v812
  %v3852 = vunpack.c.l.b16 %v813
  %v3853 = vunpack.c.h.b16 %v813
  %v3854 = vunpack.c.l.b16 %v814
  %v3855 = vunpack.c.h.b16 %v814
  %v3856 = vunpack.c.l.b16 %v815
  %v3857 = vunpack.c.h.b16 %v815
  %v3858 = vunpack.c.l.b16 %v816
  %v3859 = vunpack.c.h.b16 %v816
  %v3860 = vunpack.c.l.b16 %v817
  %v3861 = vunpack.c.h.b16 %v817
  %v3862 = vunpack.c.l.b16 %v818
  %v3863 = vunpack.c.h.b16 %v818
  %v3864 = vunpack.c.l.b16 %v819
  %v3865 = vunpack.c.h.b16 %v819
  %v3866 = vunpack.c.l.b16 %v820
  %v3867 = vunpack.c.h.b16 %v820
  %v3868 = vunpack.c.l.b16 %v821
  %v3869 = vunpack.c.h.b16 %v821
  %v3870 = vunpack.c.l.b16 %v822
  %v3871 = vunpack.c.h.b16 %v822
  %v3872 = vunpack.c.l.b16 %v823
  %v3873 = vunpack.c.h.b16 %v823
  %v3874 = vunpack.c.l.b16 %v824
  %v3875 = vunpack.c.h.b16 %v824
  %v3876 = vunpack.c.l.b16 %v825
  %v3877 = vunpack.c.h.b16 %v825
  %v3878 = vunpack.c.l.b16 %v826
  %v3879 = vunpack.c.h.b16 %v826
  %v3880 = vunpack.c.l.b16 %v827
  %v3881 = vunpack.c.h.b16 %v827
  %v3882 = vunpack.c.l.b16 %v828
  %v3883 = vunpack.c.h.b16 %v828
  %v3884 = vunpack.c.l.b16 %v829
  %v3885 = vunpack.c.h.b16 %v829
  %v3886 = vunpack.c.l.b16 %v830
  %v3887 = vunpack.c.h.b16 %v830
  %v3888 = vunpack.c.l.b16 %v831
  %v3889 = vunpack.c.h.b16 %v831
  %v3890 = vunpack.c.l.b16 %v832
  %v3891 = vunpack.c.h.b16 %v832
  %v3892 = vunpack.c.l.b16 %v833
  %v3893 = vunpack.c.h.b16 %v833
  %v3894 = vunpack.c.l.b16 %v834
  %v3895 = vunpack.c.h.b16 %v834
  %v3896 = vunpack.c.l.b16 %v835
  %v3897 = vunpack.c.h.b16 %v835
  %v3898 = vunpack.c.l.b16 %v836
  %v3899 = vunpack.c.h.b16 %v836
  %v3900 = vunpack.c.l.b16 %v837
  %v3901 = vunpack.c.h.b16 %v837
  %v3902 = vunpack.c.l.b16 %v838
  %v3903 = vunpack.c.h.b16 %v838
  %v3904 = vunpack.c.l.b16 %v839
  %v3905 = vunpack.c.h.b16 %v839
  %v3906 = vunpack.c.l.b16 %v840
  %v3907 = vunpack.c.h.b16 %v840
  %v3908 = vunpack.c.l.b16 %v841
  %v3909 = vunpack.c.h.b16 %v841
  %v3910 = vunpack.c.l.b16 %v842
  %v3911 = vunpack.c.h.b16 %v842
  %v3912 = vunpack.c.l.b16 %v843
  %v3913 = vunpack.c.h.b16 %v843
  %v3914 = vunpack.c.l.b16 %v844
  %v3915 = vunpack.c.h.b16 %v844
  %v3916 = vunpack.c.l.b16 %v845
  %v3917 = vunpack.c.h.b16 %v845
  %v3918 = vunpack.c.l.b16 %v846
  %v3919 = vunpack.c.h.b16 %v846
  %v3920 = vunpack.c.l.b16 %v847
  %v3921 = vunpack.c.h.b16 %v847
  %v3922 = vunpack.c.l.b16 %v848
  %v3923 = vunpack.c.h.b16 %v848
  %v3924 = vunpack.c.l.b16 %v849
  %v3925 = vunpack.c.h.b16 %v849
  %v3926 = vunpack.c.l.b16 %v850
  %v3927 = vunpack.c.h.b16 %v850
  %v3928 = vunpack.c.l.b16 %v851
  %v3929 = vunpack.c.h.b16 %v851
  %v3930 = vunpack.c.l.b16 %v852
  %v3931 = vunpack.c.h.b16 %v852
  %v3932 = vunpack.c.l.b16 %v853
  %v3933 = vunpack.c.h.b16 %v853
  %v3934 = vunpack.c.l.b16 %v854
  %v3935 = vunpack.c.h.b16 %v854
  %v3936 = vunpack.c.l.b16 %v855
  %v3937 = vunpack.c.h.b16 %v855
  %v3938 = vunpack.c.l.b16 %v856
  %v3939 = vunpack.c.h.b16 %v856
  %v3940 = vunpack.c.l.b16 %v857
  %v3941 = vunpack.c.h.b16 %v857
  %v3942 = vunpack.c.l.b16 %v858
  %v3943 = vunpack.c.h.b16 %v858
  %v3944 = vunpack.c.l.b16 %v859
  %v3945 = vunpack.c.h.b16 %v859
  %v3946 = vunpack.c.l.b16 %v860
  %v3947 = vunpack.c.h.b16 %v860
  %v3948 = vunpack.c.l.b16 %v861
  %v3949 = vunpack.c.h.b16 %v861
  %v3950 = vunpack.c.l.b16 %v862
  %v3951 = vunpack.c.h.b16 %v862
  %v3952 = vunpack.c.l.b16 %v863
  %v3953 = vunpack.c.h.b16 %v863
  %v3954 = vunpack.c.l.b16 %v864
  %v3955 = vunpack.c.h.b16 %v864
  %v3956 = vunpack.c.l.b16 %v865
  %v3957 = vunpack.c.h.b16 %v865
  %v3958 = vunpack.c.l.b16 %v866
  %v3959 = vunpack.c.h.b16 %v866
  %v3960 = vunpack.c.l.b16 %v867
  %v3961 = vunpack.c.h.b16 %v867
  %v3962 = vunpack.c.l.b16 %v868
  %v3963 = vunpack.c.h.b16 %v868
  %v3964 = vunpack.c.l.b16 %v869
  %v3965 = vunpack.c.h.b16 %v869
  %v3966 = vunpack.c.l.b16 %v870
  %v3967 = vunpack.c.h.b16 %v870
  %v3968 = vunpack.c.l.b16 %v871
  %v3969 = vunpack.c.h.b16 %v871
  %v3970 = vunpack.c.l.b16 %v872
  %v3971 = vunpack.c.h.b16 %v872
  %v3972 = vunpack.c.l.b16 %v873
  %v3973 = vunpack.c.h.b16 %v873
  %v3974 = vunpack.c.l.b16 %v874
  %v3975 = vunpack.c.h.b16 %v874
  %v3976 = vunpack.c.l.b16 %v875
  %v3977 = vunpack.c.h.b16 %v875
  %v3978 = vunpack.c.l.b16 %v876
  %v3979 = vunpack.c.h.b16 %v876
  %v3980 = vunpack.c.l.b16 %v877
  %v3981 = vunpack.c.h.b16 %v877
  %v3982 = vunpack.c.l.b16 %v878
  %v3983 = vunpack.c.h.b16 %v878
  %v3984 = vunpack.c.l.b16 %v879
  %v3985 = vunpack.c.h.b16 %v879
  %v3986 = vunpack.c.l.b16 %v880
  %v3987 = vunpack.c.h.b16 %v880
  %v3988 = vunpack.c.l.b16 %v881
  %v3989 = vunpack.c.h.b16 %v881
  %v3990 = vunpack.c.l.b16 %v882
  %v3991 = vunpack.c.h.b16 %v882
  %v3992 = vunpack.c.l.b16 %v883
  %v3993 = vunpack.c.h.b16 %v883
  %v3994 = vunpack.c.l.b16 %v884
  %v3995 = vunpack.c.h.b16 %v884
  %v3996 = vunpack.c.l.b16 %v885
  %v3997 = vunpack.c.h.b16 %v885
  %v3998 = vunpack.c.l.b16 %v886
  %v3999 = vunpack.c.h.b16 %v886
  %v4000 = vunpack.c.l.b16 %v887
  %v4001 = vunpack.c.h.b16 %v887
  %v4002 = vunpack.c.l.b16 %v888
  %v4003 = vunpack.c.h.b16 %v888
  %v4004 = vunpack.c.l.b16 %v889
  %v4005 = vunpack.c.h.b16 %v889
  %v4006 = vunpack.c.l.b16 %v890
  %v4007 = vunpack.c.h.b16 %v890
  %v4008 = vunpack.c.l.b16 %v891
  %v4009 = vunpack.c.h.b16 %v891
  %v4010 = vunpack.c.l.b16 %v892
  %v4011 = vunpack.c.h.b16 %v892
  %v4012 = vunpack.c.l.b16 %v893
  %v4013 = vunpack.c.h.b16 %v893
  %v4014 = vunpack.c.l.b16 %v894
  %v4015 = vunpack.c.h.b16 %v894
  %v4016 = vunpack.c.l.b16 %v895
  %v4017 = vunpack.c.h.b16 %v895
  %v4018 = vunpack.c.l.b16 %v896
  %v4019 = vunpack.c.h.b16 %v896
  %v4020 = vunpack.c.l.b16 %v897
  %v4021 = vunpack.c.h.b16 %v897
  %v4022 = vunpack.c.l.b16 %v898
  %v4023 = vunpack.c.h.b16 %v898
  %v4024 = vunpack.c.l.b16 %v899
  %v4025 = vunpack.c.h.b16 %v899
  %v4026 = vunpack.c.l.b16 %v900
  %v4027 = vunpack.c.h.b16 %v900
  %v4028 = vunpack.c.l.b16 %v901
  %v4029 = vunpack.c.h.b16 %v901
  %v4030 = vunpack.c.l.b16 %v902
  %v4031 = vunpack.c.h.b16 %v902
  %v4032 = vunpack.c.l.b16 %v903
  %v4033 = vunpack.c.h.b16 %v903
  %v4034 = vunpack.c.l.b16 %v904
  %v4035 = vunpack.c.h.b16 %v904
  %v4036 = vunpack.c.l.b16 %v905
  %v4037 = vunpack.c.h.b16 %v905
  %v4038 = vunpack.c.l.b16 %v906
  %v4039 = vunpack.c.h.b16 %v906
  %v4040 = vunpack.c.l.b16 %v907
  %v4041 = vunpack.c.h.b16 %v907
  %v4042 = vunpack.c.l.b16 %v908
  %v4043 = vunpack.c.h.b16 %v908
  %v4044 = vunpack.c.l.b16 %v909
  %v4045 = vunpack.c.h.b16 %v909
  %v4046 = vunpack.c.l.b16 %v910
  %v4047 = vunpack.c.h.b16 %v910
  %v4048 = vunpack.c.l.b16 %v911
  %v4049 = vunpack.c.h.b16 %v911
  %v4050 = vunpack.c.l.b16 %v912
  %v4051 = vunpack.c.h.b16 %v912
  %v4052 = vunpack.c.l.b16 %v913
  %v4053 = vunpack.c.h.b16 %v913
  %v4054 = vunpack.c.l.b16 %v914
  %v4055 = vunpack.c.h.b16 %v914
  %v4056 = vunpack.c.l.b16 %v915
  %v4057 = vunpack.c.h.b16 %v915
  %v4058 = vunpack.c.l.b16 %v916
  %v4059 = vunpack.c.h.b16 %v916
  %v4060 = vunpack.c.l.b16 %v917
  %v4061 = vunpack.c.h.b16 %v917
  %v4062 = vunpack.c.l.b16 %v918
  %v4063 = vunpack.c.h.b16 %v918
  %v4064 = vunpack.c.l.b16 %v919
  %v4065 = vunpack.c.h.b16 %v919
  %v4066 = vunpack.c.l.b16 %v920
  %v4067 = vunpack.c.h.b16 %v920
  %v4068 = vunpack.c.l.b16 %v921
  %v4069 = vunpack.c.h.b16 %v921
  %v4070 = vunpack.c.l.b16 %v922
  %v4071 = vunpack.c.h.b16 %v922
  %v4072 = vunpack.c.l.b16 %v923
  %v4073 = vunpack.c.h.b16 %v923
  %v4074 = vunpack.c.l.b16 %v924
  %v4075 = vunpack.c.h.b16 %v924
  %v4076 = vunpack.c.l.b16 %v925
  %v4077 = vunpack.c.h.b16 %v925
  %v4078 = vunpack.c.l.b16 %v926
  %v4079 = vunpack.c.h.b16 %v926
  %v4080 = vunpack.c.l.b16 %v927
  %v4081 = vunpack.c.h.b16 %v927
  %v4082 = vunpack.c.l.b16 %v928
  %v4083 = vunpack.c.h.b16 %v928
  %v4084 = vunpack.c.l.b16 %v929
  %v4085 = vunpack.c.h.b16 %v929
  %v4086 = vunpack.c.l.b16 %v930
  %v4087 = vunpack.c.h.b16 %v930
  %v4088 = vunpack.c.l.b16 %v931
  %v4089 = vunpack.c.h.b16 %v931
  %v4090 = vunpack.c.l.b16 %v932
  %v4091 = vunpack.c.h.b16 %v932
  %v4092 = vunpack.c.l.b16 %v933
  %v4093 = vunpack.c.h.b16 %v933
  %v4094 = vunpack.c.l.b16 %v934
  %v4095 = vunpack.c.h.b16 %v934
  %v4096 = vunpack.c.l.b16 %v935
  %v4097 = vunpack.c.h.b16 %v935
  %v4098 = vunpack.c.l.b16 %v936
  %v4099 = vunpack.c.h.b16 %v936
  %v4100 = vunpack.c.l.b16 %v937
  %v4101 = vunpack.c.h.b16 %v937
  %v4102 = vunpack.c.l.b16 %v938
  %v4103 = vunpack.c.h.b16 %v938
  %v4104 = vunpack.c.l.b16 %v939
  %v4105 = vunpack.c.h.b16 %v939
  %v4106 = vunpack.c.l.b16 %v940
  %v4107 = vunpack.c.h.b16 %v940
  %v4108 = vunpack.c.l.b16 %v941
  %v4109 = vunpack.c.h.b16 %v941
  %v4110 = vunpack.c.l.b16 %v942
  %v4111 = vunpack.c.h.b16 %v942
  %v4112 = vunpack.c.l.b16 %v943
  %v4113 = vunpack.c.h.b16 %v943
  %v4114 = vunpack.c.l.b16 %v944
  %v4115 = vunpack.c.h.b16 %v944
  %v4116 = vunpack.c.l.b16 %v945
  %v4117 = vunpack.c.h.b16 %v945
  %v4118 = vunpack.c.l.b16 %v946
  %v4119 = vunpack.c.h.b16 %v946
  %v4120 = vunpack.c.l.b16 %v947
  %v4121 = vunpack.c.h.b16 %v947
  %v4122 = vunpack.c.l.b16 %v948
  %v4123 = vunpack.c.h.b16 %v948
  %v4124 = vunpack.c.l.b16 %v949
  %v4125 = vunpack.c.h.b16 %v949
  %v4126 = vunpack.c.l.b16 %v950
  %v4127 = vunpack.c.h.b16 %v950
  %v4128 = vunpack.c.l.b16 %v951
  %v4129 = vunpack.c.h.b16 %v951
  %v4130 = vunpack.c.l.b16 %v952
  %v4131 = vunpack.c.h.b16 %v952
  %v4132 = vunpack.c.l.b16 %v953
  %v4133 = vunpack.c.h.b16 %v953
  %v4134 = vunpack.c.l.b16 %v954
  %v4135 = vunpack.c.h.b16 %v954
  %v4136 = vunpack.c.l.b16 %v955
  %v4137 = vunpack.c.h.b16 %v955
  %v4138 = vunpack.c.l.b16 %v956
  %v4139 = vunpack.c.h.b16 %v956
  %v4140 = vunpack.c.l.b16 %v957
  %v4141 = vunpack.c.h.b16 %v957
  %v4142 = vunpack.c.l.b16 %v958
  %v4143 = vunpack.c.h.b16 %v958
  %v4144 = vunpack.c.l.b16 %v959
  %v4145 = vunpack.c.h.b16 %v959
  %v4146 = vunpack.c.l.b16 %v960
  %v4147 = vunpack.c.h.b16 %v960
  %v4148 = vunpack.c.l.b16 %v961
  %v4149 = vunpack.c.h.b16 %v961
  %v4150 = vunpack.c.l.b16 %v962
  %v4151 = vunpack.c.h.b16 %v962
  %v4152 = vunpack.c.l.b16 %v963
  %v4153 = vunpack.c.h.b16 %v963
  %v4154 = vunpack.c.l.b16 %v964
  %v4155 = vunpack.c.h.b16 %v964
  %v4156 = vunpack.c.l.b16 %v965
  %v4157 = vunpack.c.h.b16 %v965
  %v4158 = vunpack.c.l.b16 %v966
  %v4159 = vunpack.c.h.b16 %v966
  %v4160 = vunpack.c.l.b16 %v967
  %v4161 = vunpack.c.h.b16 %v967
  %v4162 = vunpack.c.l.b16 %v968
  %v4163 = vunpack.c.h.b16 %v968
  %v4164 = vunpack.c.l.b16 %v969
  %v4165 = vunpack.c.h.b16 %v969
  %v4166 = vunpack.c.l.b16 %v970
  %v4167 = vunpack.c.h.b16 %v970
  %v4168 = vunpack.c.l.b16 %v971
  %v4169 = vunpack.c.h.b16 %v971
  %v4170 = vunpack.c.l.b16 %v972
  %v4171 = vunpack.c.h.b16 %v972
  %v4172 = vunpack.c.l.b16 %v973
  %v4173 = vunpack.c.h.b16 %v973
  %v4174 = vunpack.c.l.b16 %v974
  %v4175 = vunpack.c.h.b16 %v974
  %v4176 = vunpack.c.l.b16 %v975
  %v4177 = vunpack.c.h.b16 %v975
  %v4178 = vunpack.c.l.b16 %v976
  %v4179 = vunpack.c.h.b16 %v976
  %v4180 = vunpack.c.l.b16 %v977
  %v4181 = vunpack.c.h.b16 %v977
  %v4182 = vunpack.c.l.b16 %v978
  %v4183 = vunpack.c.h.b16 %v978
  %v4184 = vunpack.c.l.b16 %v979
  %v4185 = vunpack.c.h.b16 %v979
  %v4186 = vunpack.c.l.b16 %v980
  %v4187 = vunpack.c.h.b16 %v980
  %v4188 = vunpack.c.l.b16 %v981
  %v4189 = vunpack.c.h.b16 %v981
  %v4190 = vunpack.c.l.b16 %v982
  %v4191 = vunpack.c.h.b16 %v982
  %v4192 = vunpack.c.l.b16 %v983
  %v4193 = vunpack.c.h.b16 %v983
  %v4194 = vunpack.c.l.b16 %v984
  %v4195 = vunpack.c.h.b16 %v984
  %v4196 = vunpack.c.l.b16 %v985
  %v4197 = vunpack.c.h.b16 %v985
  %v4198 = vunpack.c.l.b16 %v986
  %v4199 = vunpack.c.h.b16 %v986
  %v4200 = vunpack.c.l.b16 %v987
  %v4201 = vunpack.c.h.b16 %v987
  %v4202 = vunpack.c.l.b16 %v988
  %v4203 = vunpack.c.h.b16 %v988
  %v4204 = vunpack.c.l.b16 %v989
  %v4205 = vunpack.c.h.b16 %v989
  %v4206 = vunpack.c.l.b16 %v990
  %v4207 = vunpack.c.h.b16 %v990
  %v4208 = vunpack.c.l.b16 %v991
  %v4209 = vunpack.c.h.b16 %v991
  %v4210 = vunpack.c.l.b16 %v992
  %v4211 = vunpack.c.h.b16 %v992
  %v4212 = vunpack.c.l.b16 %v993
  %v4213 = vunpack.c.h.b16 %v993
  %v4214 = vunpack.c.l.b16 %v994
  %v4215 = vunpack.c.h.b16 %v994
  %v4216 = vunpack.c.l.b16 %v995
  %v4217 = vunpack.c.h.b16 %v995
  %v4218 = vunpack.c.l.b16 %v996
  %v4219 = vunpack.c.h.b16 %v996
  %v4220 = vunpack.c.l.b16 %v997
  %v4221 = vunpack.c.h.b16 %v997
  %v4222 = vunpack.c.l.b16 %v998
  %v4223 = vunpack.c.h.b16 %v998
  %v4224 = vunpack.c.l.b16 %v999
  %v4225 = vunpack.c.h.b16 %v999
  %v4226 = vunpack.c.l.b16 %v1000
  %v4227 = vunpack.c.h.b16 %v1000
  %v4228 = vunpack.c.l.b16 %v1001
  %v4229 = vunpack.c.h.b16 %v1001
  %v4230 = vunpack.c.l.b16 %v1002
  %v4231 = vunpack.c.h.b16 %v1002
  %v4232 = vunpack.c.l.b16 %v1003
  %v4233 = vunpack.c.h.b16 %v1003
  %v4234 = vunpack.c.l.b16 %v1004
  %v4235 = vunpack.c.h.b16 %v1004
  %v4236 = vunpack.c.l.b16 %v1005
  %v4237 = vunpack.c.h.b16 %v1005
  %v4238 = vunpack.c.l.b16 %v1006
  %v4239 = vunpack.c.h.b16 %v1006
  %v4240 = vunpack.c.l.b16 %v1007
  %v4241 = vunpack.c.h.b16 %v1007
  %v4242 = vunpack.c.l.b16 %v1008
  %v4243 = vunpack.c.h.b16 %v1008
  %v4244 = vunpack.c.l.b16 %v1009
  %v4245 = vunpack.c.h.b16 %v1009
  %v4246 = vunpack.c.l.b16 %v1010
  %v4247 = vunpack.c.h.b16 %v1010
  %v4248 = vunpack.c.l.b16 %v1011
  %v4249 = vunpack.c.h.b16 %v1011
  %v4250 = vunpack.c.l.b16 %v1012
  %v4251 = vunpack.c.h.b16 %v1012
  %v4252 = vunpack.c.l.b16 %v1013
  %v4253 = vunpack.c.h.b16 %v1013
  %v4254 = vunpack.c.l.b16 %v1014
  %v4255 = vunpack.c.h.b16 %v1014
  %v4256 = vunpack.c.l.b16 %v1015
  %v4257 = vunpack.c.h.b16 %v1015
  %v4258 = vunpack.c.l.b16 %v1016
  %v4259 = vunpack.c.h.b16 %v1016
  %v4260 = vunpack.c.l.b16 %v1017
  %v4261 = vunpack.c.h.b16 %v1017
  %v4262 = vunpack.c.l.b16 %v1018
  %v4263 = vunpack.c.h.b16 %v1018
  %v4264 = vunpack.c.l.b16 %v1019
  %v4265 = vunpack.c.h.b16 %v1019
  %v4266 = vunpack.c.l.b16 %v1020
  %v4267 = vunpack.c.h.b16 %v1020
  %v4268 = vunpack.c.l.b16 %v1021
  %v4269 = vunpack.c.h.b16 %v1021
  %v4270 = vunpack.c.l.b16 %v1022
  %v4271 = vunpack.c.h.b16 %v1022
  %v4272 = vunpack.c.l.b16 %v1023
  %v4273 = vunpack.c.h.b16 %v1023
  %v4274 = vunpack.c.l.b16 %v1024
  %v4275 = vunpack.c.h.b16 %v1024
  %v4276 = vunpack.c.l.b16 %v1025
  %v4277 = vunpack.c.h.b16 %v1025
  %v4278 = vunpack.c.l.b16 %v1026
  %v4279 = vunpack.c.h.b16 %v1026
  %v4280 = vunpack.c.l.b16 %v1027
  %v4281 = vunpack.c.h.b16 %v1027
  %v4282 = vunpack.c.l.b16 %v1028
  %v4283 = vunpack.c.h.b16 %v1028
  %v4284 = vunpack.c.l.b16 %v1029
  %v4285 = vunpack.c.h.b16 %v1029
  %v4286 = vunpack.c.l.b16 %v1030
  %v4287 = vunpack.c.h.b16 %v1030
  %v4288 = vunpack.c.l.b16 %v1031
  %v4289 = vunpack.c.h.b16 %v1031
  %v4290 = vunpack.c.l.b16 %v1032
  %v4291 = vunpack.c.h.b16 %v1032
  %v4292 = vunpack.c.l.b16 %v1033
  %v4293 = vunpack.c.h.b16 %v1033
  %v4294 = vunpack.c.l.b16 %v1034
  %v4295 = vunpack.c.h.b16 %v1034
  %v4296 = vunpack.c.l.b16 %v1035
  %v4297 = vunpack.c.h.b16 %v1035
  %v4298 = vunpack.c.l.b16 %v1036
  %v4299 = vunpack.c.h.b16 %v1036
  %v4300 = vunpack.c.l.b16 %v1037
  %v4301 = vunpack.c.h.b16 %v1037
  %v4302 = vunpack.c.l.b16 %v1038
  %v4303 = vunpack.c.h.b16 %v1038
  %v4304 = vunpack.c.l.b16 %v1039
  %v4305 = vunpack.c.h.b16 %v1039
  %v4306 = vunpack.c.l.b16 %v1040
  %v4307 = vunpack.c.h.b16 %v1040
  %v4308 = vunpack.c.l.b16 %v1041
  %v4309 = vunpack.c.h.b16 %v1041
  %v4310 = vunpack.c.l.b16 %v1042
  %v4311 = vunpack.c.h.b16 %v1042
  %v4312 = vunpack.c.l.b16 %v1043
  %v4313 = vunpack.c.h.b16 %v1043
  %v4314 = vunpack.c.l.b16 %v1044
  %v4315 = vunpack.c.h.b16 %v1044
  %v4316 = vunpack.c.l.b16 %v1045
  %v4317 = vunpack.c.h.b16 %v1045
  %v4318 = vunpack.c.l.b16 %v1046
  %v4319 = vunpack.c.h.b16 %v1046
  %v4320 = vunpack.c.l.b16 %v1047
  %v4321 = vunpack.c.h.b16 %v1047
  %v4322 = vunpack.c.l.b16 %v1048
  %v4323 = vunpack.c.h.b16 %v1048
  %v4324 = vunpack.c.l.b16 %v1049
  %v4325 = vunpack.c.h.b16 %v1049
  %v4326 = vunpack.c.l.b16 %v1050
  %v4327 = vunpack.c.h.b16 %v1050
  %v4328 = vunpack.c.l.b16 %v1051
  %v4329 = vunpack.c.h.b16 %v1051
  %v4330 = vunpack.c.l.b16 %v1052
  %v4331 = vunpack.c.h.b16 %v1052
  %v4332 = vunpack.c.l.b16 %v1053
  %v4333 = vunpack.c.h.b16 %v1053
  %v4334 = vunpack.c.l.b16 %v1054
  %v4335 = vunpack.c.h.b16 %v1054
  %v4336 = vunpack.c.l.b16 %v1055
  %v4337 = vunpack.c.h.b16 %v1055
  %v4338 = vunpack.c.l.b16 %v1056
  %v4339 = vunpack.c.h.b16 %v1056
  %v4340 = vunpack.c.l.b16 %v1057
  %v4341 = vunpack.c.h.b16 %v1057
  %v4342 = vunpack.c.l.b16 %v1058
  %v4343 = vunpack.c.h.b16 %v1058
  %v4344 = vunpack.c.l.b16 %v1059
  %v4345 = vunpack.c.h.b16 %v1059
  %v4346 = vunpack.c.l.b16 %v1060
  %v4347 = vunpack.c.h.b16 %v1060
  %v4348 = vunpack.c.l.b16 %v1061
  %v4349 = vunpack.c.h.b16 %v1061
  %v4350 = vunpack.c.l.b16 %v1062
  %v4351 = vunpack.c.h.b16 %v1062
  %v4352 = vunpack.c.l.b16 %v1063
  %v4353 = vunpack.c.h.b16 %v1063
  %v4354 = vunpack.c.l.b16 %v1064
  %v4355 = vunpack.c.h.b16 %v1064
  %v4356 = vunpack.c.l.b16 %v1065
  %v4357 = vunpack.c.h.b16 %v1065
  %v4358 = vunpack.c.l.b16 %v1066
  %v4359 = vunpack.c.h.b16 %v1066
  %v4360 = vunpack.c.l.b16 %v1067
  %v4361 = vunpack.c.h.b16 %v1067
  %v4362 = vunpack.c.l.b16 %v1068
  %v4363 = vunpack.c.h.b16 %v1068
  %v4364 = vunpack.c.l.b16 %v1069
  %v4365 = vunpack.c.h.b16 %v1069
  %v4366 = vpack.c.b16 %v2320, %v2318
  %v4367 = vpack.c.b16 %v2321, %v2319
  %v4368 = vpack.c.b16 %v2324, %v2322
  %v4369 = vpack.c.b16 %v2325, %v2323
  %v4370 = vpack.c.b16 %v2328, %v2326
  %v4371 = vpack.c.b16 %v2329, %v2327
  %v4372 = vpack.c.b16 %v2332, %v2330
  %v4373 = vpack.c.b16 %v2333, %v2331
  %v4374 = vpack.c.b16 %v2336, %v2334
  %v4375 = vpack.c.b16 %v2337, %v2335
  %v4376 = vpack.c.b16 %v2340, %v2338
  %v4377 = vpack.c.b16 %v2341, %v2339
  %v4378 = vpack.c.b16 %v2344, %v2342
  %v4379 = vpack.c.b16 %v2345, %v2343
  %v4380 = vpack.c.b16 %v2348, %v2346
  %v4381 = vpack.c.b16 %v2349, %v2347
  %v4382 = vpack.c.b16 %v2352, %v2350
  %v4383 = vpack.c.b16 %v2353, %v2351
  %v4384 = vpack.c.b16 %v2356, %v2354
  %v4385 = vpack.c.b16 %v2357, %v2355
  %v4386 = vpack.c.b16 %v2360, %v2358
  %v4387 = vpack.c.b16 %v2361, %v2359
  %v4388 = vpack.c.b16 %v2364, %v2362
  %v4389 = vpack.c.b16 %v2365, %v2363
  %v4390 = vpack.c.b16 %v2368, %v2366
  %v4391 = vpack.c.b16 %v2369, %v2367
  %v4392 = vpack.c.b16 %v2372, %v2370
  %v4393 = vpack.c.b16 %v2373, %v2371
  %v4394 = vpack.c.b16 %v2376, %v2374
  %v4395 = vpack.c.b16 %v2377, %v2375
  %v4396 = vpack.c.b16 %v2380, %v2378
  %v4397 = vpack.c.b16 %v2381, %v2379
  %v4398 = vpack.c.b16 %v2384, %v2382
  %v4399 = vpack.c.b16 %v2385, %v2383
  %v4400 = vpack.c.b16 %v2388, %v2386
  %v4401 = vpack.c.b16 %v2389, %v2387
  %v4402 = vpack.c.b16 %v2392, %v2390
  %v4403 = vpack.c.b16 %v2393, %v2391
  %v4404 = vpack.c.b16 %v2396, %v2394
  %v4405 = vpack.c.b16 %v2397, %v2395
  %v4406 = vpack.c.b16 %v2400, %v2398
  %v4407 = vpack.c.b16 %v2401, %v2399
  %v4408 = vpack.c.b16 %v2404, %v2402
  %v4409 = vpack.c.b16 %v2405, %v2403
  %v4410 = vpack.c.b16 %v2408, %v2406
  %v4411 = vpack.c.b16 %v2409, %v2407
  %v4412 = vpack.c.b16 %v2412, %v2410
  %v4413 = vpack.c.b16 %v2413, %v2411
  %v4414 = vpack.c.b16 %v2416, %v2414
  %v4415 = vpack.c.b16 %v2417, %v2415
  %v4416 = vpack.c.b16 %v2420, %v2418
  %v4417 = vpack.c.b16 %v2421, %v2419
  %v4418 = vpack.c.b16 %v2424, %v2422
  %v4419 = vpack.c.b16 %v2425, %v2423
  %v4420 = vpack.c.b16 %v2428, %v2426
  %v4421 = vpack.c.b16 %v2429, %v2427
  %v4422 = vpack.c.b16 %v2432, %v2430
  %v4423 = vpack.c.b16 %v2433, %v2431
  %v4424 = vpack.c.b16 %v2436, %v2434
  %v4425 = vpack.c.b16 %v2437, %v2435
  %v4426 = vpack.c.b16 %v2440, %v2438
  %v4427 = vpack.c.b16 %v2441, %v2439
  %v4428 = vpack.c.b16 %v2444, %v2442
  %v4429 = vpack.c.b16 %v2445, %v2443
  %v4430 = vpack.c.b16 %v2448, %v2446
  %v4431 = vpack.c.b16 %v2449, %v2447
  %v4432 = vpack.c.b16 %v2452, %v2450
  %v4433 = vpack.c.b16 %v2453, %v2451
  %v4434 = vpack.c.b16 %v2456, %v2454
  %v4435 = vpack.c.b16 %v2457, %v2455
  %v4436 = vpack.c.b16 %v2460, %v2458
  %v4437 = vpack.c.b16 %v2461, %v2459
  %v4438 = vpack.c.b16 %v2464, %v2462
  %v4439 = vpack.c.b16 %v2465, %v2463
  %v4440 = vpack.c.b16 %v2468, %v2466
  %v4441 = vpack.c.b16 %v2469, %v2467
  %v4442 = vpack.c.b16 %v2472, %v2470
  %v4443 = vpack.c.b16 %v2473, %v2471
  %v4444 = vpack.c.b16 %v2476, %v2474
  %v4445 = vpack.c.b16 %v2477, %v2475
  %v4446 = vpack.c.b16 %v2480, %v2478
  %v4447 = vpack.c.b16 %v2481, %v2479
  %v4448 = vpack.c.b16 %v2484, %v2482
  %v4449 = vpack.c.b16 %v2485, %v2483
  %v4450 = vpack.c.b16 %v2488, %v2486
  %v4451 = vpack.c.b16 %v2489, %v2487
  %v4452 = vpack.c.b16 %v2492, %v2490
  %v4453 = vpack.c.b16 %v2493, %v2491
  %v4454 = vpack.c.b16 %v2496, %v2494
  %v4455 = vpack.c.b16 %v2497, %v2495
  %v4456 = vpack.c.b16 %v2500, %v2498
  %v4457 = vpack.c.b16 %v2501, %v2499
  %v4458 = vpack.c.b16 %v2504, %v2502
  %v4459 = vpack.c.b16 %v2505, %v2503
  %v4460 = vpack.c.b16 %v2508, %v2506
  %v4461 = vpack.c.b16 %v2509, %v2507
  %v4462 = vpack.c.b16 %v2512, %v2510
  %v4463 = vpack.c.b16 %v2513, %v2511
  %v4464 = vpack.c.b16 %v2516, %v2514
  %v4465 = vpack.c.b16 %v2517, %v2515
  %v4466 = vpack.c.b16 %v2520, %v2518
  %v4467 = vpack.c.b16 %v2521, %v2519
  %v4468 = vpack.c.b16 %v2524, %v2522
  %v4469 = vpack.c.b16 %v2525, %v2523
  %v4470 = vpack.c.b16 %v2528, %v2526
  %v4471 = vpack.c.b16 %v2529, %v2527
  %v4472 = vpack.c.b16 %v2532, %v2530
  %v4473 = vpack.c.b16 %v2533, %v2531
  %v4474 = vpack.c.b16 %v2536, %v2534
  %v4475 = vpack.c.b16 %v2537, %v2535
  %v4476 = vpack.c.b16 %v2540, %v2538
  %v4477 = vpack.c.b16 %v2541, %v2539
  %v4478 = vpack.c.b16 %v2544, %v2542
  %v4479 = vpack.c.b16 %v2545, %v2543
  %v4480 = vpack.c.b16 %v2548, %v2546
  %v4481 = vpack.c.b16 %v2549, %v2547
  %v4482 = vpack.c.b16 %v2552, %v2550
  %v4483 = vpack.c.b16 %v2553, %v2551
  %v4484 = vpack.c.b16 %v2556, %v2554
  %v4485 = vpack.c.b16 %v2557, %v2555
  %v4486 = vpack.c.b16 %v2560, %v2558
  %v4487 = vpack.c.b16 %v2561, %v2559
  %v4488 = vpack.c.b16 %v2564, %v2562
  %v4489 = vpack.c.b16 %v2565, %v2563
  %v4490 = vpack.c.b16 %v2568, %v2566
  %v4491 = vpack.c.b16 %v2569, %v2567
  %v4492 = vpack.c.b16 %v2572, %v2570
  %v4493 = vpack.c.b16 %v2573, %v2571
  %v4494 = vpack.c.b16 %v2576, %v2574
  %v4495 = vpack.c.b16 %v2577, %v2575
  %v4496 = vpack.c.b16 %v2580, %v2578
  %v4497 = vpack.c.b16 %v2581, %v2579
  %v4498 = vpack.c.b16 %v2584, %v2582
  %v4499 = vpack.c.b16 %v2585, %v2583
  %v4500 = vpack.c.b16 %v2588, %v2586
  %v4501 = vpack.c.b16 %v2589, %v2587
  %v4502 = vpack.c.b16 %v2592, %v2590
  %v4503 = vpack.c.b16 %v2593, %v2591
  %v4504 = vpack.c.b16 %v2596, %v2594
  %v4505 = vpack.c.b16 %v2597, %v2595
  %v4506 = vpack.c.b16 %v2600, %v2598
  %v4507 = vpack.c.b16 %v2601, %v2599
  %v4508 = vpack.c.b16 %v2604, %v2602
  %v4509 = vpack.c.b16 %v2605, %v2603
  %v4510 = vpack.c.b16 %v2608, %v2606
  %v4511 = vpack.c.b16 %v2609, %v2607
  %v4512 = vpack.c.b16 %v2612, %v2610
  %v4513 = vpack.c.b16 %v2613, %v2611
  %v4514 = vpack.c.b16 %v2616, %v2614
  %v4515 = vpack.c.b16 %v2617, %v2615
  %v4516 = vpack.c.b16 %v2620, %v2618
  %v4517 = vpack.c.b16 %v2621, %v2619
  %v4518 = vpack.c.b16 %v2624, %v2622
  %v4519 = vpack.c.b16 %v2625, %v2623
  %v4520 = vpack.c.b16 %v2628, %v2626
  %v4521 = vpack.c.b16 %v2629, %v2627
  %v4522 = vpack.c.b16 %v2632, %v2630
  %v4523 = vpack.c.b16 %v2633, %v2631
  %v4524 = vpack.c.b16 %v2636, %v2634
  %v4525 = vpack.c.b16 %v2637, %v2635
  %v4526 = vpack.c.b16 %v2640, %v2638
  %v4527 = vpack.c.b16 %v2641, %v2639
  %v4528 = vpack.c.b16 %v2644, %v2642
  %v4529 = vpack.c.b16 %v2645, %v2643
  %v4530 = vpack.c.b16 %v2648, %v2646
  %v4531 = vpack.c.b16 %v2649, %v2647
  %v4532 = vpack.c.b16 %v2652, %v2650
  %v4533 = vpack.c.b16 %v2653, %v2651
  %v4534 = vpack.c.b16 %v2656, %v2654
  %v4535 = vpack.c.b16 %v2657, %v2655
  %v4536 = vpack.c.b16 %v2660, %v2658
  %v4537 = vpack.c.b16 %v2661, %v2659
  %v4538 = vpack.c.b16 %v2664, %v2662
  %v4539 = vpack.c.b16 %v2665, %v2663
  %v4540 = vpack.c.b16 %v2668, %v2666
  %v4541 = vpack.c.b16 %v2669, %v2667
  %v4542 = vpack.c.b16 %v2672, %v2670
  %v4543 = vpack.c.b16 %v2673, %v2671
  %v4544 = vpack.c.b16 %v2676, %v2674
  %v4545 = vpack.c.b16 %v2677, %v2675
  %v4546 = vpack.c.b16 %v2680, %v2678
  %v4547 = vpack.c.b16 %v2681, %v2679
  %v4548 = vpack.c.b16 %v2684, %v2682
  %v4549 = vpack.c.b16 %v2685, %v2683
  %v4550 = vpack.c.b16 %v2688, %v2686
  %v4551 = vpack.c.b16 %v2689, %v2687
  %v4552 = vpack.c.b16 %v2692, %v2690
  %v4553 = vpack.c.b16 %v2693, %v2691
  %v4554 = vpack.c.b16 %v2696, %v2694
  %v4555 = vpack.c.b16 %v2697, %v2695
  %v4556 = vpack.c.b16 %v2700, %v2698
  %v4557 = vpack.c.b16 %v2701, %v2699
  %v4558 = vpack.c.b16 %v2704, %v2702
  %v4559 = vpack.c.b16 %v2705, %v2703
  %v4560 = vpack.c.b16 %v2708, %v2706
  %v4561 = vpack.c.b16 %v2709, %v2707
  %v4562 = vpack.c.b16 %v2712, %v2710
  %v4563 = vpack.c.b16 %v2713, %v2711
  %v4564 = vpack.c.b16 %v2716, %v2714
  %v4565 = vpack.c.b16 %v2717, %v2715
  %v4566 = vpack.c.b16 %v2720, %v2718
  %v4567 = vpack.c.b16 %v2721, %v2719
  %v4568 = vpack.c.b16 %v2724, %v2722
  %v4569 = vpack.c.b16 %v2725, %v2723
  %v4570 = vpack.c.b16 %v2728, %v2726
  %v4571 = vpack.c.b16 %v2729, %v2727
  %v4572 = vpack.c.b16 %v2732, %v2730
  %v4573 = vpack.c.b16 %v2733, %v2731
  %v4574 = vpack.c.b16 %v2736, %v2734
  %v4575 = vpack.c.b16 %v2737, %v2735
  %v4576 = vpack.c.b16 %v2740, %v2738
  %v4577 = vpack.c.b16 %v2741, %v2739
  %v4578 = vpack.c.b16 %v2744, %v2742
  %v4579 = vpack.c.b16 %v2745, %v2743
  %v4580 = vpack.c.b16 %v2748, %v2746
  %v4581 = vpack.c.b16 %v2749, %v2747
  %v4582 = vpack.c.b16 %v2752, %v2750
  %v4583 = vpack.c.b16 %v2753, %v2751
  %v4584 = vpack.c.b16 %v2756, %v2754
  %v4585 = vpack.c.b16 %v2757, %v2755
  %v4586 = vpack.c.b16 %v2760, %v2758
  %v4587 = vpack.c.b16 %v2761, %v2759
  %v4588 = vpack.c.b16 %v2764, %v2762
  %v4589 = vpack.c.b16 %v2765, %v2763
  %v4590 = vpack.c.b16 %v2768, %v2766
  %v4591 = vpack.c.b16 %v2769, %v2767
  %v4592 = vpack.c.b16 %v2772, %v2770
  %v4593 = vpack.c.b16 %v2773, %v2771
  %v4594 = vpack.c.b16 %v2776, %v2774
  %v4595 = vpack.c.b16 %v2777, %v2775
  %v4596 = vpack.c.b16 %v2780, %v2778
  %v4597 = vpack.c.b16 %v2781, %v2779
  %v4598 = vpack.c.b16 %v2784, %v2782
  %v4599 = vpack.c.b16 %v2785, %v2783
  %v4600 = vpack.c.b16 %v2788, %v2786
  %v4601 = vpack.c.b16 %v2789, %v2787
  %v4602 = vpack.c.b16 %v2792, %v2790
  %v4603 = vpack.c.b16 %v2793, %v2791
  %v4604 = vpack.c.b16 %v2796, %v2794
  %v4605 = vpack.c.b16 %v2797, %v2795
  %v4606 = vpack.c.b16 %v2800, %v2798
  %v4607 = vpack.c.b16 %v2801, %v2799
  %v4608 = vpack.c.b16 %v2804, %v2802
  %v4609 = vpack.c.b16 %v2805, %v2803
  %v4610 = vpack.c.b16 %v2808, %v2806
  %v4611 = vpack.c.b16 %v2809, %v2807
  %v4612 = vpack.c.b16 %v2812, %v2810
  %v4613 = vpack.c.b16 %v2813, %v2811
  %v4614 = vpack.c.b16 %v2816, %v2814
  %v4615 = vpack.c.b16 %v2817, %v2815
  %v4616 = vpack.c.b16 %v2820, %v2818
  %v4617 = vpack.c.b16 %v2821, %v2819
  %v4618 = vpack.c.b16 %v2824, %v2822
  %v4619 = vpack.c.b16 %v2825, %v2823
  %v4620 = vpack.c.b16 %v2828, %v2826
  %v4621 = vpack.c.b16 %v2829, %v2827
  %v4622 = vpack.c.b16 %v2832, %v2830
  %v4623 = vpack.c.b16 %v2833, %v2831
  %v4624 = vpack.c.b16 %v2836, %v2834
  %v4625 = vpack.c.b16 %v2837, %v2835
  %v4626 = vpack.c.b16 %v2840, %v2838
  %v4627 = vpack.c.b16 %v2841, %v2839
  %v4628 = vpack.c.b16 %v2844, %v2842
  %v4629 = vpack.c.b16 %v2845, %v2843
  %v4630 = vpack.c.b16 %v2848, %v2846
  %v4631 = vpack.c.b16 %v2849, %v2847
  %v4632 = vpack.c.b16 %v2852, %v2850
  %v4633 = vpack.c.b16 %v2853, %v2851
  %v4634 = vpack.c.b16 %v2856, %v2854
  %v4635 = vpack.c.b16 %v2857, %v2855
  %v4636 = vpack.c.b16 %v2860, %v2858
  %v4637 = vpack.c.b16 %v2861, %v2859
  %v4638 = vpack.c.b16 %v2864, %v2862
  %v4639 = vpack.c.b16 %v2865, %v2863
  %v4640 = vpack.c.b16 %v2868, %v2866
  %v4641 = vpack.c.b16 %v2869, %v2867
  %v4642 = vpack.c.b16 %v2872, %v2870
  %v4643 = vpack.c.b16 %v2873, %v2871
  %v4644 = vpack.c.b16 %v2876, %v2874
  %v4645 = vpack.c.b16 %v2877, %v2875
  %v4646 = vpack.c.b16 %v2880, %v2878
  %v4647 = vpack.c.b16 %v2881, %v2879
  %v4648 = vpack.c.b16 %v2884, %v2882
  %v4649 = vpack.c.b16 %v2885, %v2883
  %v4650 = vpack.c.b16 %v2888, %v2886
  %v4651 = vpack.c.b16 %v2889, %v2887
  %v4652 = vpack.c.b16 %v2892, %v2890
  %v4653 = vpack.c.b16 %v2893, %v2891
  %v4654 = vpack.c.b16 %v2896, %v2894
  %v4655 = vpack.c.b16 %v2897, %v2895
  %v4656 = vpack.c.b16 %v2900, %v2898
  %v4657 = vpack.c.b16 %v2901, %v2899
  %v4658 = vpack.c.b16 %v2904, %v2902
  %v4659 = vpack.c.b16 %v2905, %v2903
  %v4660 = vpack.c.b16 %v2908, %v2906
  %v4661 = vpack.c.b16 %v2909, %v2907
  %v4662 = vpack.c.b16 %v2912, %v2910
  %v4663 = vpack.c.b16 %v2913, %v2911
  %v4664 = vpack.c.b16 %v2916, %v2914
  %v4665 = vpack.c.b16 %v2917, %v2915
  %v4666 = vpack.c.b16 %v2920, %v2918
  %v4667 = vpack.c.b16 %v2921, %v2919
  %v4668 = vpack.c.b16 %v2924, %v2922
  %v4669 = vpack.c.b16 %v2925, %v2923
  %v4670 = vpack.c.b16 %v2928, %v2926
  %v4671 = vpack.c.b16 %v2929, %v2927
  %v4672 = vpack.c.b16 %v2932, %v2930
  %v4673 = vpack.c.b16 %v2933, %v2931
  %v4674 = vpack.c.b16 %v2936, %v2934
  %v4675 = vpack.c.b16 %v2937, %v2935
  %v4676 = vpack.c.b16 %v2940, %v2938
  %v4677 = vpack.c.b16 %v2941, %v2939
  %v4678 = vpack.c.b16 %v2944, %v2942
  %v4679 = vpack.c.b16 %v2945, %v2943
  %v4680 = vpack.c.b16 %v2948, %v2946
  %v4681 = vpack.c.b16 %v2949, %v2947
  %v4682 = vpack.c.b16 %v2952, %v2950
  %v4683 = vpack.c.b16 %v2953, %v2951
  %v4684 = vpack.c.b16 %v2956, %v2954
  %v4685 = vpack.c.b16 %v2957, %v2955
  %v4686 = vpack.c.b16 %v2960, %v2958
  %v4687 = vpack.c.b16 %v2961, %v2959
  %v4688 = vpack.c.b16 %v2964, %v2962
  %v4689 = vpack.c.b16 %v2965, %v2963
  %v4690 = vpack.c.b16 %v2968, %v2966
  %v4691 = vpack.c.b16 %v2969, %v2967
  %v4692 = vpack.c.b16 %v2972, %v2970
  %v4693 = vpack.c.b16 %v2973, %v2971
  %v4694 = vpack.c.b16 %v2976, %v2974
  %v4695 = vpack.c.b16 %v2977, %v2975
  %v4696 = vpack.c.b16 %v2980, %v2978
  %v4697 = vpack.c.b16 %v2981, %v2979
  %v4698 = vpack.c.b16 %v2984, %v2982
  %v4699 = vpack.c.b16 %v2985, %v2983
  %v4700 = vpack.c.b16 %v2988, %v2986
  %v4701 = vpack.c.b16 %v2989, %v2987
  %v4702 = vpack.c.b16 %v2992, %v2990
  %v4703 = vpack.c.b16 %v2993, %v2991
  %v4704 = vpack.c.b16 %v2996, %v2994
  %v4705 = vpack.c.b16 %v2997, %v2995
  %v4706 = vpack.c.b16 %v3000, %v2998
  %v4707 = vpack.c.b16 %v3001, %v2999
  %v4708 = vpack.c.b16 %v3004, %v3002
  %v4709 = vpack.c.b16 %v3005, %v3003
  %v4710 = vpack.c.b16 %v3008, %v3006
  %v4711 = vpack.c.b16 %v3009, %v3007
  %v4712 = vpack.c.b16 %v3012, %v3010
  %v4713 = vpack.c.b16 %v3013, %v3011
  %v4714 = vpack.c.b16 %v3016, %v3014
  %v4715 = vpack.c.b16 %v3017, %v3015
  %v4716 = vpack.c.b16 %v3020, %v3018
  %v4717 = vpack.c.b16 %v3021, %v3019
  %v4718 = vpack.c.b16 %v3024, %v3022
  %v4719 = vpack.c.b16 %v3025, %v3023
  %v4720 = vpack.c.b16 %v3028, %v3026
  %v4721 = vpack.c.b16 %v3029, %v3027
  %v4722 = vpack.c.b16 %v3032, %v3030
  %v4723 = vpack.c.b16 %v3033, %v3031
  %v4724 = vpack.c.b16 %v3036, %v3034
  %v4725 = vpack.c.b16 %v3037, %v3035
  %v4726 = vpack.c.b16 %v3040, %v3038
  %v4727 = vpack.c.b16 %v3041, %v3039
  %v4728 = vpack.c.b16 %v3044, %v3042
  %v4729 = vpack.c.b16 %v3045, %v3043
  %v4730 = vpack.c.b16 %v3048, %v3046
  %v4731 = vpack.c.b16 %v3049, %v3047
  %v4732 = vpack.c.b16 %v3052, %v3050
  %v4733 = vpack.c.b16 %v3053, %v3051
  %v4734 = vpack.c.b16 %v3056, %v3054
  %v4735 = vpack.c.b16 %v3057, %v3055
  %v4736 = vpack.c.b16 %v3060, %v3058
  %v4737 = vpack.c.b16 %v3061, %v3059
  %v4738 = vpack.c.b16 %v3064, %v3062
  %v4739 = vpack.c.b16 %v3065, %v3063
  %v4740 = vpack.c.b16 %v3068, %v3066
  %v4741 = vpack.c.b16 %v3069, %v3067
  %v4742 = vpack.c.b16 %v3072, %v3070
  %v4743 = vpack.c.b16 %v3073, %v3071
  %v4744 = vpack.c.b16 %v3076, %v3074
  %v4745 = vpack.c.b16 %v3077, %v3075
  %v4746 = vpack.c.b16 %v3080, %v3078
  %v4747 = vpack.c.b16 %v3081, %v3079
  %v4748 = vpack.c.b16 %v3084, %v3082
  %v4749 = vpack.c.b16 %v3085, %v3083
  %v4750 = vpack.c.b16 %v3088, %v3086
  %v4751 = vpack.c.b16 %v3089, %v3087
  %v4752 = vpack.c.b16 %v3092, %v3090
  %v4753 = vpack.c.b16 %v3093, %v3091
  %v4754 = vpack.c.b16 %v3096, %v3094
  %v4755 = vpack.c.b16 %v3097, %v3095
  %v4756 = vpack.c.b16 %v3100, %v3098
  %v4757 = vpack.c.b16 %v3101, %v3099
  %v4758 = vpack.c.b16 %v3104, %v3102
  %v4759 = vpack.c.b16 %v3105, %v3103
  %v4760 = vpack.c.b16 %v3108, %v3106
  %v4761 = vpack.c.b16 %v3109, %v3107
  %v4762 = vpack.c.b16 %v3112, %v3110
  %v4763 = vpack.c.b16 %v3113, %v3111
  %v4764 = vpack.c.b16 %v3116, %v3114
  %v4765 = vpack.c.b16 %v3117, %v3115
  %v4766 = vpack.c.b16 %v3120, %v3118
  %v4767 = vpack.c.b16 %v3121, %v3119
  %v4768 = vpack.c.b16 %v3124, %v3122
  %v4769 = vpack.c.b16 %v3125, %v3123
  %v4770 = vpack.c.b16 %v3128, %v3126
  %v4771 = vpack.c.b16 %v3129, %v3127
  %v4772 = vpack.c.b16 %v3132, %v3130
  %v4773 = vpack.c.b16 %v3133, %v3131
  %v4774 = vpack.c.b16 %v3136, %v3134
  %v4775 = vpack.c.b16 %v3137, %v3135
  %v4776 = vpack.c.b16 %v3140, %v3138
  %v4777 = vpack.c.b16 %v3141, %v3139
  %v4778 = vpack.c.b16 %v3144, %v3142
  %v4779 = vpack.c.b16 %v3145, %v3143
  %v4780 = vpack.c.b16 %v3148, %v3146
  %v4781 = vpack.c.b16 %v3149, %v3147
  %v4782 = vpack.c.b16 %v3152, %v3150
  %v4783 = vpack.c.b16 %v3153, %v3151
  %v4784 = vpack.c.b16 %v3156, %v3154
  %v4785 = vpack.c.b16 %v3157, %v3155
  %v4786 = vpack.c.b16 %v3160, %v3158
  %v4787 = vpack.c.b16 %v3161, %v3159
  %v4788 = vpack.c.b16 %v3164, %v3162
  %v4789 = vpack.c.b16 %v3165, %v3163
  %v4790 = vpack.c.b16 %v3168, %v3166
  %v4791 = vpack.c.b16 %v3169, %v3167
  %v4792 = vpack.c.b16 %v3172, %v3170
  %v4793 = vpack.c.b16 %v3173, %v3171
  %v4794 = vpack.c.b16 %v3176, %v3174
  %v4795 = vpack.c.b16 %v3177, %v3175
  %v4796 = vpack.c.b16 %v3180, %v3178
  %v4797 = vpack.c.b16 %v3181, %v3179
  %v4798 = vpack.c.b16 %v3184, %v3182
  %v4799 = vpack.c.b16 %v3185, %v3183
  %v4800 = vpack.c.b16 %v3188, %v3186
  %v4801 = vpack.c.b16 %v3189, %v3187
  %v4802 = vpack.c.b16 %v3192, %v3190
  %v4803 = vpack.c.b16 %v3193, %v3191
  %v4804 = vpack.c.b16 %v3196, %v3194
  %v4805 = vpack.c.b16 %v3197, %v3195
  %v4806 = vpack.c.b16 %v3200, %v3198
  %v4807 = vpack.c.b16 %v3201, %v3199
  %v4808 = vpack.c.b16 %v3204, %v3202
  %v4809 = vpack.c.b16 %v3205, %v3203
  %v4810 = vpack.c.b16 %v3208, %v3206
  %v4811 = vpack.c.b16 %v3209, %v3207
  %v4812 = vpack.c.b16 %v3212, %v3210
  %v4813 = vpack.c.b16 %v3213, %v3211
  %v4814 = vpack.c.b16 %v3216, %v3214
  %v4815 = vpack.c.b16 %v3217, %v3215
  %v4816 = vpack.c.b16 %v3220, %v3218
  %v4817 = vpack.c.b16 %v3221, %v3219
  %v4818 = vpack.c.b16 %v3224, %v3222
  %v4819 = vpack.c.b16 %v3225, %v3223
  %v4820 = vpack.c.b16 %v3228, %v3226
  %v4821 = vpack.c.b16 %v3229, %v3227
  %v4822 = vpack.c.b16 %v3232, %v3230
  %v4823 = vpack.c.b16 %v3233, %v3231
  %v4824 = vpack.c.b16 %v3236, %v3234
  %v4825 = vpack.c.b16 %v3237, %v3235
  %v4826 = vpack.c.b16 %v3240, %v3238
  %v4827 = vpack.c.b16 %v3241, %v3239
  %v4828 = vpack.c.b16 %v3244, %v3242
  %v4829 = vpack.c.b16 %v3245, %v3243
  %v4830 = vpack.c.b16 %v3248, %v3246
  %v4831 = vpack.c.b16 %v3249, %v3247
  %v4832 = vpack.c.b16 %v3252, %v3250
  %v4833 = vpack.c.b16 %v3253, %v3251
  %v4834 = vpack.c.b16 %v3256, %v3254
  %v4835 = vpack.c.b16 %v3257, %v3255
  %v4836 = vpack.c.b16 %v3260, %v3258
  %v4837 = vpack.c.b16 %v3261, %v3259
  %v4838 = vpack.c.b16 %v3264, %v3262
  %v4839 = vpack.c.b16 %v3265, %v3263
  %v4840 = vpack.c.b16 %v3268, %v3266
  %v4841 = vpack.c.b16 %v3269, %v3267
  %v4842 = vpack.c.b16 %v3272, %v3270
  %v4843 = vpack.c.b16 %v3273, %v3271
  %v4844 = vpack.c.b16 %v3276, %v3274
  %v4845 = vpack.c.b16 %v3277, %v3275
  %v4846 = vpack.c.b16 %v3280, %v3278
  %v4847 = vpack.c.b16 %v3281, %v3279
  %v4848 = vpack.c.b16 %v3284, %v3282
  %v4849 = vpack.c.b16 %v3285, %v3283
  %v4850 = vpack.c.b16 %v3288, %v3286
  %v4851 = vpack.c.b16 %v3289, %v3287
  %v4852 = vpack.c.b16 %v3292, %v3290
  %v4853 = vpack.c.b16 %v3293, %v3291
  %v4854 = vpack.c.b16 %v3296, %v3294
  %v4855 = vpack.c.b16 %v3297, %v3295
  %v4856 = vpack.c.b16 %v3300, %v3298
  %v4857 = vpack.c.b16 %v3301, %v3299
  %v4858 = vpack.c.b16 %v3304, %v3302
  %v4859 = vpack.c.b16 %v3305, %v3303
  %v4860 = vpack.c.b16 %v3308, %v3306
  %v4861 = vpack.c.b16 %v3309, %v3307
  %v4862 = vpack.c.b16 %v3312, %v3310
  %v4863 = vpack.c.b16 %v3313, %v3311
  %v4864 = vpack.c.b16 %v3316, %v3314
  %v4865 = vpack.c.b16 %v3317, %v3315
  %v4866 = vpack.c.b16 %v3320, %v3318
  %v4867 = vpack.c.b16 %v3321, %v3319
  %v4868 = vpack.c.b16 %v3324, %v3322
  %v4869 = vpack.c.b16 %v3325, %v3323
  %v4870 = vpack.c.b16 %v3328, %v3326
  %v4871 = vpack.c.b16 %v3329, %v3327
  %v4872 = vpack.c.b16 %v3332, %v3330
  %v4873 = vpack.c.b16 %v3333, %v3331
  %v4874 = vpack.c.b16 %v3336, %v3334
  %v4875 = vpack.c.b16 %v3337, %v3335
  %v4876 = vpack.c.b16 %v3340, %v3338
  %v4877 = vpack.c.b16 %v3341, %v3339
  %v4878 = vpack.c.b16 %v3344, %v3342
  %v4879 = vpack.c.b16 %v3345, %v3343
  %v4880 = vpack.c.b16 %v3348, %v3346
  %v4881 = vpack.c.b16 %v3349, %v3347
  %v4882 = vpack.c.b16 %v3352, %v3350
  %v4883 = vpack.c.b16 %v3353, %v3351
  %v4884 = vpack.c.b16 %v3356, %v3354
  %v4885 = vpack.c.b16 %v3357, %v3355
  %v4886 = vpack.c.b16 %v3360, %v3358
  %v4887 = vpack.c.b16 %v3361, %v3359
  %v4888 = vpack.c.b16 %v3364, %v3362
  %v4889 = vpack.c.b16 %v3365, %v3363
  %v4890 = vpack.c.b16 %v3368, %v3366
  %v4891 = vpack.c.b16 %v3369, %v3367
  %v4892 = vpack.c.b16 %v3372, %v3370
  %v4893 = vpack.c.b16 %v3373, %v3371
  %v4894 = vpack.c.b16 %v3376, %v3374
  %v4895 = vpack.c.b16 %v3377, %v3375
  %v4896 = vpack.c.b16 %v3380, %v3378
  %v4897 = vpack.c.b16 %v3381, %v3379
  %v4898 = vpack.c.b16 %v3384, %v3382
  %v4899 = vpack.c.b16 %v3385, %v3383
  %v4900 = vpack.c.b16 %v3388, %v3386
  %v4901 = vpack.c.b16 %v3389, %v3387
  %v4902 = vpack.c.b16 %v3392, %v3390
  %v4903 = vpack.c.b16 %v3393, %v3391
  %v4904 = vpack.c.b16 %v3396, %v3394
  %v4905 = vpack.c.b16 %v3397, %v3395
  %v4906 = vpack.c.b16 %v3400, %v3398
  %v4907 = vpack.c.b16 %v3401, %v3399
  %v4908 = vpack.c.b16 %v3404, %v3402
  %v4909 = vpack.c.b16 %v3405, %v3403
  %v4910 = vpack.c.b16 %v3408, %v3406
  %v4911 = vpack.c.b16 %v3409, %v3407
  %v4912 = vpack.c.b16 %v3412, %v3410
  %v4913 = vpack.c.b16 %v3413, %v3411
  %v4914 = vpack.c.b16 %v3416, %v3414
  %v4915 = vpack.c.b16 %v3417, %v3415
  %v4916 = vpack.c.b16 %v3420, %v3418
  %v4917 = vpack.c.b16 %v3421, %v3419
  %v4918 = vpack.c.b16 %v3424, %v3422
  %v4919 = vpack.c.b16 %v3425, %v3423
  %v4920 = vpack.c.b16 %v3428, %v3426
  %v4921 = vpack.c.b16 %v3429, %v3427
  %v4922 = vpack.c.b16 %v3432, %v3430
  %v4923 = vpack.c.b16 %v3433, %v3431
  %v4924 = vpack.c.b16 %v3436, %v3434
  %v4925 = vpack.c.b16 %v3437, %v3435
  %v4926 = vpack.c.b16 %v3440, %v3438
  %v4927 = vpack.c.b16 %v3441, %v3439
  %v4928 = vpack.c.b16 %v3444, %v3442
  %v4929 = vpack.c.b16 %v3445, %v3443
  %v4930 = vpack.c.b16 %v3448, %v3446
  %v4931 = vpack.c.b16 %v3449, %v3447
  %v4932 = vpack.c.b16 %v3452, %v3450
  %v4933 = vpack.c.b16 %v3453, %v3451
  %v4934 = vpack.c.b16 %v3456, %v3454
  %v4935 = vpack.c.b16 %v3457, %v3455
  %v4936 = vpack.c.b16 %v3460, %v3458
  %v4937 = vpack.c.b16 %v3461, %v3459
  %v4938 = vpack.c.b16 %v3464, %v3462
  %v4939 = vpack.c.b16 %v3465, %v3463
  %v4940 = vpack.c.b16 %v3468, %v3466
  %v4941 = vpack.c.b16 %v3469, %v3467
  %v4942 = vpack.c.b16 %v3472, %v3470
  %v4943 = vpack.c.b16 %v3473, %v3471
  %v4944 = vpack.c.b16 %v3476, %v3474
  %v4945 = vpack.c.b16 %v3477, %v3475
  %v4946 = vpack.c.b16 %v3480, %v3478
  %v4947 = vpack.c.b16 %v3481, %v3479
  %v4948 = vpack.c.b16 %v3484, %v3482
  %v4949 = vpack.c.b16 %v3485, %v3483
  %v4950 = vpack.c.b16 %v3488, %v3486
  %v4951 = vpack.c.b16 %v3489, %v3487
  %v4952 = vpack.c.b16 %v3492, %v3490
  %v4953 = vpack.c.b16 %v3493, %v3491
  %v4954 = vpack.c.b16 %v3496, %v3494
  %v4955 = vpack.c.b16 %v3497, %v3495
  %v4956 = vpack.c.b16 %v3500, %v3498
  %v4957 = vpack.c.b16 %v3501, %v3499
  %v4958 = vpack.c.b16 %v3504, %v3502
  %v4959 = vpack.c.b16 %v3505, %v3503
  %v4960 = vpack.c.b16 %v3508, %v3506
  %v4961 = vpack.c.b16 %v3509, %v3507
  %v4962 = vpack.c.b16 %v3512, %v3510
  %v4963 = vpack.c.b16 %v3513, %v3511
  %v4964 = vpack.c.b16 %v3516, %v3514
  %v4965 = vpack.c.b16 %v3517, %v3515
  %v4966 = vpack.c.b16 %v3520, %v3518
  %v4967 = vpack.c.b16 %v3521, %v3519
  %v4968 = vpack.c.b16 %v3524, %v3522
  %v4969 = vpack.c.b16 %v3525, %v3523
  %v4970 = vpack.c.b16 %v3528, %v3526
  %v4971 = vpack.c.b16 %v3529, %v3527
  %v4972 = vpack.c.b16 %v3532, %v3530
  %v4973 = vpack.c.b16 %v3533, %v3531
  %v4974 = vpack.c.b16 %v3536, %v3534
  %v4975 = vpack.c.b16 %v3537, %v3535
  %v4976 = vpack.c.b16 %v3540, %v3538
  %v4977 = vpack.c.b16 %v3541, %v3539
  %v4978 = vpack.c.b16 %v3544, %v3542
  %v4979 = vpack.c.b16 %v3545, %v3543
  %v4980 = vpack.c.b16 %v3548, %v3546
  %v4981 = vpack.c.b16 %v3549, %v3547
  %v4982 = vpack.c.b16 %v3552, %v3550
  %v4983 = vpack.c.b16 %v3553, %v3551
  %v4984 = vpack.c.b16 %v3556, %v3554
  %v4985 = vpack.c.b16 %v3557, %v3555
  %v4986 = vpack.c.b16 %v3560, %v3558
  %v4987 = vpack.c.b16 %v3561, %v3559
  %v4988 = vpack.c.b16 %v3564, %v3562
  %v4989 = vpack.c.b16 %v3565, %v3563
  %v4990 = vpack.c.b16 %v3568, %v3566
  %v4991 = vpack.c.b16 %v3569, %v3567
  %v4992 = vpack.c.b16 %v3572, %v3570
  %v4993 = vpack.c.b16 %v3573, %v3571
  %v4994 = vpack.c.b16 %v3576, %v3574
  %v4995 = vpack.c.b16 %v3577, %v3575
  %v4996 = vpack.c.b16 %v3580, %v3578
  %v4997 = vpack.c.b16 %v3581, %v3579
  %v4998 = vpack.c.b16 %v3584, %v3582
  %v4999 = vpack.c.b16 %v3585, %v3583
  %v5000 = vpack.c.b16 %v3588, %v3586
  %v5001 = vpack.c.b16 %v3589, %v3587
  %v5002 = vpack.c.b16 %v3592, %v3590
  %v5003 = vpack.c.b16 %v3593, %v3591
  %v5004 = vpack.c.b16 %v3596, %v3594
  %v5005 = vpack.c.b16 %v3597, %v3595
  %v5006 = vpack.c.b16 %v3600, %v3598
  %v5007 = vpack.c.b16 %v3601, %v3599
  %v5008 = vpack.c.b16 %v3604, %v3602
  %v5009 = vpack.c.b16 %v3605, %v3603
  %v5010 = vpack.c.b16 %v3608, %v3606
  %v5011 = vpack.c.b16 %v3609, %v3607
  %v5012 = vpack.c.b16 %v3612, %v3610
  %v5013 = vpack.c.b16 %v3613, %v3611
  %v5014 = vpack.c.b16 %v3616, %v3614
  %v5015 = vpack.c.b16 %v3617, %v3615
  %v5016 = vpack.c.b16 %v3620, %v3618
  %v5017 = vpack.c.b16 %v3621, %v3619
  %v5018 = vpack.c.b16 %v3624, %v3622
  %v5019 = vpack.c.b16 %v3625, %v3623
  %v5020 = vpack.c.b16 %v3628, %v3626
  %v5021 = vpack.c.b16 %v3629, %v3627
  %v5022 = vpack.c.b16 %v3632, %v3630
  %v5023 = vpack.c.b16 %v3633, %v3631
  %v5024 = vpack.c.b16 %v3636, %v3634
  %v5025 = vpack.c.b16 %v3637, %v3635
  %v5026 = vpack.c.b16 %v3640, %v3638
  %v5027 = vpack.c.b16 %v3641, %v3639
  %v5028 = vpack.c.b16 %v3644, %v3642
  %v5029 = vpack.c.b16 %v3645, %v3643
  %v5030 = vpack.c.b16 %v3648, %v3646
  %v5031 = vpack.c.b16 %v3649, %v3647
  %v5032 = vpack.c.b16 %v3652, %v3650
  %v5033 = vpack.c.b16 %v3653, %v3651
  %v5034 = vpack.c.b16 %v3656, %v3654
  %v5035 = vpack.c.b16 %v3657, %v3655
  %v5036 = vpack.c.b16 %v3660, %v3658
  %v5037 = vpack.c.b16 %v3661, %v3659
  %v5038 = vpack.c.b16 %v3664, %v3662
  %v5039 = vpack.c.b16 %v3665, %v3663
  %v5040 = vpack.c.b16 %v3668, %v3666
  %v5041 = vpack.c.b16 %v3669, %v3667
  %v5042 = vpack.c.b16 %v3672, %v3670
  %v5043 = vpack.c.b16 %v3673, %v3671
  %v5044 = vpack.c.b16 %v3676, %v3674
  %v5045 = vpack.c.b16 %v3677, %v3675
  %v5046 = vpack.c.b16 %v3680, %v3678
  %v5047 = vpack.c.b16 %v3681, %v3679
  %v5048 = vpack.c.b16 %v3684, %v3682
  %v5049 = vpack.c.b16 %v3685, %v3683
  %v5050 = vpack.c.b16 %v3688, %v3686
  %v5051 = vpack.c.b16 %v3689, %v3687
  %v5052 = vpack.c.b16 %v3692, %v3690
  %v5053 = vpack.c.b16 %v3693, %v3691
  %v5054 = vpack.c.b16 %v3696, %v3694
  %v5055 = vpack.c.b16 %v3697, %v3695
  %v5056 = vpack.c.b16 %v3700, %v3698
  %v5057 = vpack.c.b16 %v3701, %v3699
  %v5058 = vpack.c.b16 %v3704, %v3702
  %v5059 = vpack.c.b16 %v3705, %v3703
  %v5060 = vpack.c.b16 %v3708, %v3706
  %v5061 = vpack.c.b16 %v3709, %v3707
  %v5062 = vpack.c.b16 %v3712, %v3710
  %v5063 = vpack.c.b16 %v3713, %v3711
  %v5064 = vpack.c.b16 %v3716, %v3714
  %v5065 = vpack.c.b16 %v3717, %v3715
  %v5066 = vpack.c.b16 %v3720, %v3718
  %v5067 = vpack.c.b16 %v3721, %v3719
  %v5068 = vpack.c.b16 %v3724, %v3722
  %v5069 = vpack.c.b16 %v3725, %v3723
  %v5070 = vpack.c.b16 %v3728, %v3726
  %v5071 = vpack.c.b16 %v3729, %v3727
  %v5072 = vpack.c.b16 %v3732, %v3730
  %v5073 = vpack.c.b16 %v3733, %v3731
  %v5074 = vpack.c.b16 %v3736, %v3734
  %v5075 = vpack.c.b16 %v3737, %v3735
  %v5076 = vpack.c.b16 %v3740, %v3738
  %v5077 = vpack.c.b16 %v3741, %v3739
  %v5078 = vpack.c.b16 %v3744, %v3742
  %v5079 = vpack.c.b16 %v3745, %v3743
  %v5080 = vpack.c.b16 %v3748, %v3746
  %v5081 = vpack.c.b16 %v3749, %v3747
  %v5082 = vpack.c.b16 %v3752, %v3750
  %v5083 = vpack.c.b16 %v3753, %v3751
  %v5084 = vpack.c.b16 %v3756, %v3754
  %v5085 = vpack.c.b16 %v3757, %v3755
  %v5086 = vpack.c.b16 %v3760, %v3758
  %v5087 = vpack.c.b16 %v3761, %v3759
  %v5088 = vpack.c.b16 %v3764, %v3762
  %v5089 = vpack.c.b16 %v3765, %v3763
  %v5090 = vpack.c.b16 %v3768, %v3766
  %v5091 = vpack.c.b16 %v3769, %v3767
  %v5092 = vpack.c.b16 %v3772, %v3770
  %v5093 = vpack.c.b16 %v3773, %v3771
  %v5094 = vpack.c.b16 %v3776, %v3774
  %v5095 = vpack.c.b16 %v3777, %v3775
  %v5096 = vpack.c.b16 %v3780, %v3778
  %v5097 = vpack.c.b16 %v3781, %v3779
  %v5098 = vpack.c.b16 %v3784, %v3782
  %v5099 = vpack.c.b16 %v3785, %v3783
  %v5100 = vpack.c.b16 %v3788, %v3786
  %v5101 = vpack.c.b16 %v3789, %v3787
  %v5102 = vpack.c.b16 %v3792, %v3790
  %v5103 = vpack.c.b16 %v3793, %v3791
  %v5104 = vpack.c.b16 %v3796, %v3794
  %v5105 = vpack.c.b16 %v3797, %v3795
  %v5106 = vpack.c.b16 %v3800, %v3798
  %v5107 = vpack.c.b16 %v3801, %v3799
  %v5108 = vpack.c.b16 %v3804, %v3802
  %v5109 = vpack.c.b16 %v3805, %v3803
  %v5110 = vpack.c.b16 %v3808, %v3806
  %v5111 = vpack.c.b16 %v3809, %v3807
  %v5112 = vpack.c.b16 %v3812, %v3810
  %v5113 = vpack.c.b16 %v3813, %v3811
  %v5114 = vpack.c.b16 %v3816, %v3814
  %v5115 = vpack.c.b16 %v3817, %v3815
  %v5116 = vpack.c.b16 %v3820, %v3818
  %v5117 = vpack.c.b16 %v3821, %v3819
  %v5118 = vpack.c.b16 %v3824, %v3822
  %v5119 = vpack.c.b16 %v3825, %v3823
  %v5120 = vpack.c.b16 %v3828, %v3826
  %v5121 = vpack.c.b16 %v3829, %v3827
  %v5122 = vpack.c.b16 %v3832, %v3830
  %v5123 = vpack.c.b16 %v3833, %v3831
  %v5124 = vpack.c.b16 %v3836, %v3834
  %v5125 = vpack.c.b16 %v3837, %v3835
  %v5126 = vpack.c.b16 %v3840, %v3838
  %v5127 = vpack.c.b16 %v3841, %v3839
  %v5128 = vpack.c.b16 %v3844, %v3842
  %v5129 = vpack.c.b16 %v3845, %v3843
  %v5130 = vpack.c.b16 %v3848, %v3846
  %v5131 = vpack.c.b16 %v3849, %v3847
  %v5132 = vpack.c.b16 %v3852, %v3850
  %v5133 = vpack.c.b16 %v3853, %v3851
  %v5134 = vpack.c.b16 %v3856, %v3854
  %v5135 = vpack.c.b16 %v3857, %v3855
  %v5136 = vpack.c.b16 %v3860, %v3858
  %v5137 = vpack.c.b16 %v3861, %v3859
  %v5138 = vpack.c.b16 %v3864, %v3862
  %v5139 = vpack.c.b16 %v3865, %v3863
  %v5140 = vpack.c.b16 %v3868, %v3866
  %v5141 = vpack.c.b16 %v3869, %v3867
  %v5142 = vpack.c.b16 %v3872, %v3870
  %v5143 = vpack.c.b16 %v3873, %v3871
  %v5144 = vpack.c.b16 %v3876, %v3874
  %v5145 = vpack.c.b16 %v3877, %v3875
  %v5146 = vpack.c.b16 %v3880, %v3878
  %v5147 = vpack.c.b16 %v3881, %v3879
  %v5148 = vpack.c.b16 %v3884, %v3882
  %v5149 = vpack.c.b16 %v3885, %v3883
  %v5150 = vpack.c.b16 %v3888, %v3886
  %v5151 = vpack.c.b16 %v3889, %v3887
  %v5152 = vpack.c.b16 %v3892, %v3890
  %v5153 = vpack.c.b16 %v3893, %v3891
  %v5154 = vpack.c.b16 %v3896, %v3894
  %v5155 = vpack.c.b16 %v3897, %v3895
  %v5156 = vpack.c.b16 %v3900, %v3898
  %v5157 = vpack.c.b16 %v3901, %v3899
  %v5158 = vpack.c.b16 %v3904, %v3902
  %v5159 = vpack.c.b16 %v3905, %v3903
  %v5160 = vpack.c.b16 %v3908, %v3906
  %v5161 = vpack.c.b16 %v3909, %v3907
  %v5162 = vpack.c.b16 %v3912, %v3910
  %v5163 = vpack.c.b16 %v3913, %v3911
  %v5164 = vpack.c.b16 %v3916, %v3914
  %v5165 = vpack.c.b16 %v3917, %v3915
  %v5166 = vpack.c.b16 %v3920, %v3918
  %v5167 = vpack.c.b16 %v3921, %v3919
  %v5168 = vpack.c.b16 %v3924, %v3922
  %v5169 = vpack.c.b16 %v3925, %v3923
  %v5170 = vpack.c.b16 %v3928, %v3926
  %v5171 = vpack.c.b16 %v3929, %v3927
  %v5172 = vpack.c.b16 %v3932, %v3930
  %v5173 = vpack.c.b16 %v3933, %v3931
  %v5174 = vpack.c.b16 %v3936, %v3934
  %v5175 = vpack.c.b16 %v3937, %v3935
  %v5176 = vpack.c.b16 %v3940, %v3938
  %v5177 = vpack.c.b16 %v3941, %v3939
  %v5178 = vpack.c.b16 %v3944, %v3942
  %v5179 = vpack.c.b16 %v3945, %v3943
  %v5180 = vpack.c.b16 %v3948, %v3946
  %v5181 = vpack.c.b16 %v3949, %v3947
  %v5182 = vpack.c.b16 %v3952, %v3950
  %v5183 = vpack.c.b16 %v3953, %v3951
  %v5184 = vpack.c.b16 %v3956, %v3954
  %v5185 = vpack.c.b16 %v3957, %v3955
  %v5186 = vpack.c.b16 %v3960, %v3958
  %v5187 = vpack.c.b16 %v3961, %v3959
  %v5188 = vpack.c.b16 %v3964, %v3962
  %v5189 = vpack.c.b16 %v3965, %v3963
  %v5190 = vpack.c.b16 %v3968, %v3966
  %v5191 = vpack.c.b16 %v3969, %v3967
  %v5192 = vpack.c.b16 %v3972, %v3970
  %v5193 = vpack.c.b16 %v3973, %v3971
  %v5194 = vpack.c.b16 %v3976, %v3974
  %v5195 = vpack.c.b16 %v3977, %v3975
  %v5196 = vpack.c.b16 %v3980, %v3978
  %v5197 = vpack.c.b16 %v3981, %v3979
  %v5198 = vpack.c.b16 %v3984, %v3982
  %v5199 = vpack.c.b16 %v3985, %v3983
  %v5200 = vpack.c.b16 %v3988, %v3986
  %v5201 = vpack.c.b16 %v3989, %v3987
  %v5202 = vpack.c.b16 %v3992, %v3990
  %v5203 = vpack.c.b16 %v3993, %v3991
  %v5204 = vpack.c.b16 %v3996, %v3994
  %v5205 = vpack.c.b16 %v3997, %v3995
  %v5206 = vpack.c.b16 %v4000, %v3998
  %v5207 = vpack.c.b16 %v4001, %v3999
  %v5208 = vpack.c.b16 %v4004, %v4002
  %v5209 = vpack.c.b16 %v4005, %v4003
  %v5210 = vpack.c.b16 %v4008, %v4006
  %v5211 = vpack.c.b16 %v4009, %v4007
  %v5212 = vpack.c.b16 %v4012, %v4010
  %v5213 = vpack.c.b16 %v4013, %v4011
  %v5214 = vpack.c.b16 %v4016, %v4014
  %v5215 = vpack.c.b16 %v4017, %v4015
  %v5216 = vpack.c.b16 %v4020, %v4018
  %v5217 = vpack.c.b16 %v4021, %v4019
  %v5218 = vpack.c.b16 %v4024, %v4022
  %v5219 = vpack.c.b16 %v4025, %v4023
  %v5220 = vpack.c.b16 %v4028, %v4026
  %v5221 = vpack.c.b16 %v4029, %v4027
  %v5222 = vpack.c.b16 %v4032, %v4030
  %v5223 = vpack.c.b16 %v4033, %v4031
  %v5224 = vpack.c.b16 %v4036, %v4034
  %v5225 = vpack.c.b16 %v4037, %v4035
  %v5226 = vpack.c.b16 %v4040, %v4038
  %v5227 = vpack.c.b16 %v4041, %v4039
  %v5228 = vpack.c.b16 %v4044, %v4042
  %v5229 = vpack.c.b16 %v4045, %v4043
  %v5230 = vpack.c.b16 %v4048, %v4046
  %v5231 = vpack.c.b16 %v4049, %v4047
  %v5232 = vpack.c.b16 %v4052, %v4050
  %v5233 = vpack.c.b16 %v4053, %v4051
  %v5234 = vpack.c.b16 %v4056, %v4054
  %v5235 = vpack.c.b16 %v4057, %v4055
  %v5236 = vpack.c.b16 %v4060, %v4058
  %v5237 = vpack.c.b16 %v4061, %v4059
  %v5238 = vpack.c.b16 %v4064, %v4062
  %v5239 = vpack.c.b16 %v4065, %v4063
  %v5240 = vpack.c.b16 %v4068, %v4066
  %v5241 = vpack.c.b16 %v4069, %v4067
  %v5242 = vpack.c.b16 %v4072, %v4070
  %v5243 = vpack.c.b16 %v4073, %v4071
  %v5244 = vpack.c.b16 %v4076, %v4074
  %v5245 = vpack.c.b16 %v4077, %v4075
  %v5246 = vpack.c.b16 %v4080, %v4078
  %v5247 = vpack.c.b16 %v4081, %v4079
  %v5248 = vpack.c.b16 %v4084, %v4082
  %v5249 = vpack.c.b16 %v4085, %v4083
  %v5250 = vpack.c.b16 %v4088, %v4086
  %v5251 = vpack.c.b16 %v4089, %v4087
  %v5252 = vpack.c.b16 %v4092, %v4090
  %v5253 = vpack.c.b16 %v4093, %v4091
  %v5254 = vpack.c.b16 %v4096, %v4094
  %v5255 = vpack.c.b16 %v4097, %v4095
  %v5256 = vpack.c.b16 %v4100, %v4098
  %v5257 = vpack.c.b16 %v4101, %v4099
  %v5258 = vpack.c.b16 %v4104, %v4102
  %v5259 = vpack.c.b16 %v4105, %v4103
  %v5260 = vpack.c.b16 %v4108, %v4106
  %v5261 = vpack.c.b16 %v4109, %v4107
  %v5262 = vpack.c.b16 %v4112, %v4110
  %v5263 = vpack.c.b16 %v4113, %v4111
  %v5264 = vpack.c.b16 %v4116, %v4114
  %v5265 = vpack.c.b16 %v4117, %v4115
  %v5266 = vpack.c.b16 %v4120, %v4118
  %v5267 = vpack.c.b16 %v4121, %v4119
  %v5268 = vpack.c.b16 %v4124, %v4122
  %v5269 = vpack.c.b16 %v4125, %v4123
  %v5270 = vpack.c.b16 %v4128, %v4126
  %v5271 = vpack.c.b16 %v4129, %v4127
  %v5272 = vpack.c.b16 %v4132, %v4130
  %v5273 = vpack.c.b16 %v4133, %v4131
  %v5274 = vpack.c.b16 %v4136, %v4134
  %v5275 = vpack.c.b16 %v4137, %v4135
  %v5276 = vpack.c.b16 %v4140, %v4138
  %v5277 = vpack.c.b16 %v4141, %v4139
  %v5278 = vpack.c.b16 %v4144, %v4142
  %v5279 = vpack.c.b16 %v4145, %v4143
  %v5280 = vpack.c.b16 %v4148, %v4146
  %v5281 = vpack.c.b16 %v4149, %v4147
  %v5282 = vpack.c.b16 %v4152, %v4150
  %v5283 = vpack.c.b16 %v4153, %v4151
  %v5284 = vpack.c.b16 %v4156, %v4154
  %v5285 = vpack.c.b16 %v4157, %v4155
  %v5286 = vpack.c.b16 %v4160, %v4158
  %v5287 = vpack.c.b16 %v4161, %v4159
  %v5288 = vpack.c.b16 %v4164, %v4162
  %v5289 = vpack.c.b16 %v4165, %v4163
  %v5290 = vpack.c.b16 %v4168, %v4166
  %v5291 = vpack.c.b16 %v4169, %v4167
  %v5292 = vpack.c.b16 %v4172, %v4170
  %v5293 = vpack.c.b16 %v4173, %v4171
  %v5294 = vpack.c.b16 %v4176, %v4174
  %v5295 = vpack.c.b16 %v4177, %v4175
  %v5296 = vpack.c.b16 %v4180, %v4178
  %v5297 = vpack.c.b16 %v4181, %v4179
  %v5298 = vpack.c.b16 %v4184, %v4182
  %v5299 = vpack.c.b16 %v4185, %v4183
  %v5300 = vpack.c.b16 %v4188, %v4186
  %v5301 = vpack.c.b16 %v4189, %v4187
  %v5302 = vpack.c.b16 %v4192, %v4190
  %v5303 = vpack.c.b16 %v4193, %v4191
  %v5304 = vpack.c.b16 %v4196, %v4194
  %v5305 = vpack.c.b16 %v4197, %v4195
  %v5306 = vpack.c.b16 %v4200, %v4198
  %v5307 = vpack.c.b16 %v4201, %v4199
  %v5308 = vpack.c.b16 %v4204, %v4202
  %v5309 = vpack.c.b16 %v4205, %v4203
  %v5310 = vpack.c.b16 %v4208, %v4206
  %v5311 = vpack.c.b16 %v4209, %v4207
  %v5312 = vpack.c.b16 %v4212, %v4210
  %v5313 = vpack.c.b16 %v4213, %v4211
  %v5314 = vpack.c.b16 %v4216, %v4214
  %v5315 = vpack.c.b16 %v4217, %v4215
  %v5316 = vpack.c.b16 %v4220, %v4218
  %v5317 = vpack.c.b16 %v4221, %v4219
  %v5318 = vpack.c.b16 %v4224, %v4222
  %v5319 = vpack.c.b16 %v4225, %v4223
  %v5320 = vpack.c.b16 %v4228, %v4226
  %v5321 = vpack.c.b16 %v4229, %v4227
  %v5322 = vpack.c.b16 %v4232, %v4230
  %v5323 = vpack.c.b16 %v4233, %v4231
  %v5324 = vpack.c.b16 %v4236, %v4234
  %v5325 = vpack.c.b16 %v4237, %v4235
  %v5326 = vpack.c.b16 %v4240, %v4238
  %v5327 = vpack.c.b16 %v4241, %v4239
  %v5328 = vpack.c.b16 %v4244, %v4242
  %v5329 = vpack.c.b16 %v4245, %v4243
  %v5330 = vpack.c.b16 %v4248, %v4246
  %v5331 = vpack.c.b16 %v4249, %v4247
  %v5332 = vpack.c.b16 %v4252, %v4250
  %v5333 = vpack.c.b16 %v4253, %v4251
  %v5334 = vpack.c.b16 %v4256, %v4254
  %v5335 = vpack.c.b16 %v4257, %v4255
  %v5336 = vpack.c.b16 %v4260, %v4258
  %v5337 = vpack.c.b16 %v4261, %v4259
  %v5338 = vpack.c.b16 %v4264, %v4262
  %v5339 = vpack.c.b16 %v4265, %v4263
  %v5340 = vpack.c.b16 %v4268, %v4266
  %v5341 = vpack.c.b16 %v4269, %v4267
  %v5342 = vpack.c.b16 %v4272, %v4270
  %v5343 = vpack.c.b16 %v4273, %v4271
  %v5344 = vpack.c.b16 %v4276, %v4274
  %v5345 = vpack.c.b16 %v4277, %v4275
  %v5346 = vpack.c.b16 %v4280, %v4278
  %v5347 = vpack.c.b16 %v4281, %v4279
  %v5348 = vpack.c.b16 %v4284, %v4282
  %v5349 = vpack.c.b16 %v4285, %v4283
  %v5350 = vpack.c.b16 %v4288, %v4286
  %v5351 = vpack.c.b16 %v4289, %v4287
  %v5352 = vpack.c.b16 %v4292, %v4290
  %v5353 = vpack.c.b16 %v4293, %v4291
  %v5354 = vpack.c.b16 %v4296, %v4294
  %v5355 = vpack.c.b16 %v4297, %v4295
  %v5356 = vpack.c.b16 %v4300, %v4298
  %v5357 = vpack.c.b16 %v4301, %v4299
  %v5358 = vpack.c.b16 %v4304, %v4302
  %v5359 = vpack.c.b16 %v4305, %v4303
  %v5360 = vpack.c.b16 %v4308, %v4306
  %v5361 = vpack.c.b16 %v4309, %v4307
  %v5362 = vpack.c.b16 %v4312, %v4310
  %v5363 = vpack.c.b16 %v4313, %v4311
  %v5364 = vpack.c.b16 %v4316, %v4314
  %v5365 = vpack.c.b16 %v4317, %v4315
  %v5366 = vpack.c.b16 %v4320, %v4318
  %v5367 = vpack.c.b16 %v4321, %v4319
  %v5368 = vpack.c.b16 %v4324, %v4322
  %v5369 = vpack.c.b16 %v4325, %v4323
  %v5370 = vpack.c.b16 %v4328, %v4326
  %v5371 = vpack.c.b16 %v4329, %v4327
  %v5372 = vpack.c.b16 %v4332, %v4330
  %v5373 = vpack.c.b16 %v4333, %v4331
  %v5374 = vpack.c.b16 %v4336, %v4334
  %v5375 = vpack.c.b16 %v4337, %v4335
  %v5376 = vpack.c.b16 %v4340, %v4338
  %v5377 = vpack.c.b16 %v4341, %v4339
  %v5378 = vpack.c.b16 %v4344, %v4342
  %v5379 = vpack.c.b16 %v4345, %v4343
  %v5380 = vpack.c.b16 %v4348, %v4346
  %v5381 = vpack.c.b16 %v4349, %v4347
  %v5382 = vpack.c.b16 %v4352, %v4350
  %v5383 = vpack.c.b16 %v4353, %v4351
  %v5384 = vpack.c.b16 %v4356, %v4354
  %v5385 = vpack.c.b16 %v4357, %v4355
  %v5386 = vpack.c.b16 %v4360, %v4358
  %v5387 = vpack.c.b16 %v4361, %v4359
  %v5388 = vpack.c.b16 %v4364, %v4362
  %v5389 = vpack.c.b16 %v4365, %v4363
  %6414 = vmatpush.bf16.msra.mxu0 %v4380
  %6415 = vmatpush.bf16.msra.mxu0 %v4378
  %6416 = vmatpush.bf16.msra.mxu0 %v4376
  %6417 = vmatpush.bf16.msra.mxu0 %v4374
  %6418 = vmatpush.bf16.msra.mxu0 %v4372
  %6419 = vmatpush.bf16.msra.mxu0 %v4370
  %6420 = vmatpush.bf16.msra.mxu0 %v4368
  %6421 = vmatpush.bf16.msra.mxu0 %v4366
  %6422 = vmatmul.bf16.gmra.mxu0 %v1166
  %v6423 = vpop.f32.mrf.mxu0
  %v6424 = vadd.f32 0.0, %v6423
  %v6425 = vpop.f32.mrf.mxu0
  %6426 = vdwg.mxu0
  %6427 = vmatpush.bf16.msra.mxu0 %v4396
  %6428 = vmatpush.bf16.msra.mxu0 %v4394
  %6429 = vmatpush.bf16.msra.mxu0 %v4392
  %6430 = vmatpush.bf16.msra.mxu0 %v4390
  %6431 = vmatpush.bf16.msra.mxu0 %v4388
  %6432 = vmatpush.bf16.msra.mxu0 %v4386
  %6433 = vmatpush.bf16.msra.mxu0 %v4384
  %6434 = vmatpush.bf16.msra.mxu0 %v4382
  %6435 = vmatmul.bf16.gmra.mxu0 %v1167
  %v6436 = vpop.f32.mrf.mxu0
  %v6437 = vadd.f32 %v6424, %v6436
  %v6438 = vpop.f32.mrf.mxu0
  %6439 = vdwg.mxu0
  %6440 = vmatpush.bf16.msra.mxu0 %v4412
  %6441 = vmatpush.bf16.msra.mxu0 %v4410
  %6442 = vmatpush.bf16.msra.mxu0 %v4408
  %6443 = vmatpush.bf16.msra.mxu0 %v4406
  %6444 = vmatpush.bf16.msra.mxu0 %v4404
  %6445 = vmatpush.bf16.msra.mxu0 %v4402
  %6446 = vmatpush.bf16.msra.mxu0 %v4400
  %6447 = vmatpush.bf16.msra.mxu0 %v4398
  %6448 = vmatmul.bf16.gmra.mxu0 %v1168
  %v6449 = vpop.f32.mrf.mxu0
  %v6450 = vadd.f32 %v6437, %v6449
  %v6451 = vpop.f32.mrf.mxu0
  %6452 = vdwg.mxu0
  %6453 = vmatpush.bf16.msra.mxu0 %v4428
  %6454 = vmatpush.bf16.msra.mxu0 %v4426
  %6455 = vmatpush.bf16.msra.mxu0 %v4424
  %6456 = vmatpush.bf16.msra.mxu0 %v4422
  %6457 = vmatpush.bf16.msra.mxu0 %v4420
  %6458 = vmatpush.bf16.msra.mxu0 %v4418
  %6459 = vmatpush.bf16.msra.mxu0 %v4416
  %6460 = vmatpush.bf16.msra.mxu0 %v4414
  %6461 = vmatmul.bf16.gmra.mxu0 %v1169
  %v6462 = vpop.f32.mrf.mxu0
  %v6463 = vadd.f32 %v6450, %v6462
  %v6464 = vpop.f32.mrf.mxu0
  %6465 = vdwg.mxu0
  %6466 = vmatpush.bf16.msra.mxu0 %v4444
  %6467 = vmatpush.bf16.msra.mxu0 %v4442
  %6468 = vmatpush.bf16.msra.mxu0 %v4440
  %6469 = vmatpush.bf16.msra.mxu0 %v4438
  %6470 = vmatpush.bf16.msra.mxu0 %v4436
  %6471 = vmatpush.bf16.msra.mxu0 %v4434
  %6472 = vmatpush.bf16.msra.mxu0 %v4432
  %6473 = vmatpush.bf16.msra.mxu0 %v4430
  %6474 = vmatmul.bf16.gmra.mxu0 %v1170
  %v6475 = vpop.f32.mrf.mxu0
  %v6476 = vadd.f32 %v6463, %v6475
  %v6477 = vpop.f32.mrf.mxu0
  %6478 = vdwg.mxu0
  %6479 = vmatpush.bf16.msra.mxu0 %v4460
  %6480 = vmatpush.bf16.msra.mxu0 %v4458
  %6481 = vmatpush.bf16.msra.mxu0 %v4456
  %6482 = vmatpush.bf16.msra.mxu0 %v4454
  %6483 = vmatpush.bf16.msra.mxu0 %v4452
  %6484 = vmatpush.bf16.msra.mxu0 %v4450
  %6485 = vmatpush.bf16.msra.mxu0 %v4448
  %6486 = vmatpush.bf16.msra.mxu0 %v4446
  %6487 = vmatmul.bf16.gmra.mxu0 %v1171
  %v6488 = vpop.f32.mrf.mxu0
  %v6489 = vadd.f32 %v6476, %v6488
  %v6490 = vpop.f32.mrf.mxu0
  %6491 = vdwg.mxu0
  %6492 = vmatpush.bf16.msra.mxu0 %v4476
  %6493 = vmatpush.bf16.msra.mxu0 %v4474
  %6494 = vmatpush.bf16.msra.mxu0 %v4472
  %6495 = vmatpush.bf16.msra.mxu0 %v4470
  %6496 = vmatpush.bf16.msra.mxu0 %v4468
  %6497 = vmatpush.bf16.msra.mxu0 %v4466
  %6498 = vmatpush.bf16.msra.mxu0 %v4464
  %6499 = vmatpush.bf16.msra.mxu0 %v4462
  %6500 = vmatmul.bf16.gmra.mxu0 %v1172
  %v6501 = vpop.f32.mrf.mxu0
  %v6502 = vadd.f32 %v6489, %v6501
  %v6503 = vpop.f32.mrf.mxu0
  %6504 = vdwg.mxu0
  %6505 = vmatpush.bf16.msra.mxu0 %v4492
  %6506 = vmatpush.bf16.msra.mxu0 %v4490
  %6507 = vmatpush.bf16.msra.mxu0 %v4488
  %6508 = vmatpush.bf16.msra.mxu0 %v4486
  %6509 = vmatpush.bf16.msra.mxu0 %v4484
  %6510 = vmatpush.bf16.msra.mxu0 %v4482
  %6511 = vmatpush.bf16.msra.mxu0 %v4480
  %6512 = vmatpush.bf16.msra.mxu0 %v4478
  %6513 = vmatmul.bf16.gmra.mxu0 %v1173
  %v6514 = vpop.f32.mrf.mxu0
  %v6515 = vadd.f32 %v6502, %v6514
  %v6516 = vpop.f32.mrf.mxu0
  %6517 = vdwg.mxu0
  %6518 = vmatpush.bf16.msra.mxu0 %v4508
  %6519 = vmatpush.bf16.msra.mxu0 %v4506
  %6520 = vmatpush.bf16.msra.mxu0 %v4504
  %6521 = vmatpush.bf16.msra.mxu0 %v4502
  %6522 = vmatpush.bf16.msra.mxu0 %v4500
  %6523 = vmatpush.bf16.msra.mxu0 %v4498
  %6524 = vmatpush.bf16.msra.mxu0 %v4496
  %6525 = vmatpush.bf16.msra.mxu0 %v4494
  %6526 = vmatmul.bf16.gmra.mxu0 %v1174
  %v6527 = vpop.f32.mrf.mxu0
  %v6528 = vadd.f32 %v6515, %v6527
  %v6529 = vpop.f32.mrf.mxu0
  %6530 = vdwg.mxu0
  %6531 = vmatpush.bf16.msra.mxu0 %v4524
  %6532 = vmatpush.bf16.msra.mxu0 %v4522
  %6533 = vmatpush.bf16.msra.mxu0 %v4520
  %6534 = vmatpush.bf16.msra.mxu0 %v4518
  %6535 = vmatpush.bf16.msra.mxu0 %v4516
  %6536 = vmatpush.bf16.msra.mxu0 %v4514
  %6537 = vmatpush.bf16.msra.mxu0 %v4512
  %6538 = vmatpush.bf16.msra.mxu0 %v4510
  %6539 = vmatmul.bf16.gmra.mxu0 %v1175
  %v6540 = vpop.f32.mrf.mxu0
  %v6541 = vadd.f32 %v6528, %v6540
  %v6542 = vpop.f32.mrf.mxu0
  %6543 = vdwg.mxu0
  %6544 = vmatpush.bf16.msra.mxu0 %v4540
  %6545 = vmatpush.bf16.msra.mxu0 %v4538
  %6546 = vmatpush.bf16.msra.mxu0 %v4536
  %6547 = vmatpush.bf16.msra.mxu0 %v4534
  %6548 = vmatpush.bf16.msra.mxu0 %v4532
  %6549 = vmatpush.bf16.msra.mxu0 %v4530
  %6550 = vmatpush.bf16.msra.mxu0 %v4528
  %6551 = vmatpush.bf16.msra.mxu0 %v4526
  %6552 = vmatmul.bf16.gmra.mxu0 %v1176
  %v6553 = vpop.f32.mrf.mxu0
  %v6554 = vadd.f32 %v6541, %v6553
  %v6555 = vpop.f32.mrf.mxu0
  %6556 = vdwg.mxu0
  %6557 = vmatpush.bf16.msra.mxu0 %v4556
  %6558 = vmatpush.bf16.msra.mxu0 %v4554
  %6559 = vmatpush.bf16.msra.mxu0 %v4552
  %6560 = vmatpush.bf16.msra.mxu0 %v4550
  %6561 = vmatpush.bf16.msra.mxu0 %v4548
  %6562 = vmatpush.bf16.msra.mxu0 %v4546
  %6563 = vmatpush.bf16.msra.mxu0 %v4544
  %6564 = vmatpush.bf16.msra.mxu0 %v4542
  %6565 = vmatmul.bf16.gmra.mxu0 %v1177
  %v6566 = vpop.f32.mrf.mxu0
  %v6567 = vadd.f32 %v6554, %v6566
  %v6568 = vpop.f32.mrf.mxu0
  %6569 = vdwg.mxu0
  %6570 = vmatpush.bf16.msra.mxu0 %v4572
  %6571 = vmatpush.bf16.msra.mxu0 %v4570
  %6572 = vmatpush.bf16.msra.mxu0 %v4568
  %6573 = vmatpush.bf16.msra.mxu0 %v4566
  %6574 = vmatpush.bf16.msra.mxu0 %v4564
  %6575 = vmatpush.bf16.msra.mxu0 %v4562
  %6576 = vmatpush.bf16.msra.mxu0 %v4560
  %6577 = vmatpush.bf16.msra.mxu0 %v4558
  %6578 = vmatmul.bf16.gmra.mxu0 %v1178
  %v6579 = vpop.f32.mrf.mxu0
  %v6580 = vadd.f32 %v6567, %v6579
  %v6581 = vpop.f32.mrf.mxu0
  %6582 = vdwg.mxu0
  %6583 = vmatpush.bf16.msra.mxu0 %v4588
  %6584 = vmatpush.bf16.msra.mxu0 %v4586
  %6585 = vmatpush.bf16.msra.mxu0 %v4584
  %6586 = vmatpush.bf16.msra.mxu0 %v4582
  %6587 = vmatpush.bf16.msra.mxu0 %v4580
  %6588 = vmatpush.bf16.msra.mxu0 %v4578
  %6589 = vmatpush.bf16.msra.mxu0 %v4576
  %6590 = vmatpush.bf16.msra.mxu0 %v4574
  %6591 = vmatmul.bf16.gmra.mxu0 %v1179
  %v6592 = vpop.f32.mrf.mxu0
  %v6593 = vadd.f32 %v6580, %v6592
  %v6594 = vpop.f32.mrf.mxu0
  %6595 = vdwg.mxu0
  %6596 = vmatpush.bf16.msra.mxu0 %v4604
  %6597 = vmatpush.bf16.msra.mxu0 %v4602
  %6598 = vmatpush.bf16.msra.mxu0 %v4600
  %6599 = vmatpush.bf16.msra.mxu0 %v4598
  %6600 = vmatpush.bf16.msra.mxu0 %v4596
  %6601 = vmatpush.bf16.msra.mxu0 %v4594
  %6602 = vmatpush.bf16.msra.mxu0 %v4592
  %6603 = vmatpush.bf16.msra.mxu0 %v4590
  %6604 = vmatmul.bf16.gmra.mxu0 %v1180
  %v6605 = vpop.f32.mrf.mxu0
  %v6606 = vadd.f32 %v6593, %v6605
  %v6607 = vpop.f32.mrf.mxu0
  %6608 = vdwg.mxu0
  %6609 = vmatpush.bf16.msra.mxu0 %v4620
  %6610 = vmatpush.bf16.msra.mxu0 %v4618
  %6611 = vmatpush.bf16.msra.mxu0 %v4616
  %6612 = vmatpush.bf16.msra.mxu0 %v4614
  %6613 = vmatpush.bf16.msra.mxu0 %v4612
  %6614 = vmatpush.bf16.msra.mxu0 %v4610
  %6615 = vmatpush.bf16.msra.mxu0 %v4608
  %6616 = vmatpush.bf16.msra.mxu0 %v4606
  %6617 = vmatmul.bf16.gmra.mxu0 %v1181
  %v6618 = vpop.f32.mrf.mxu0
  %v6619 = vadd.f32 %v6606, %v6618
  %v6620 = vpop.f32.mrf.mxu0
  %6621 = vdwg.mxu0
  %6622 = vmatpush.bf16.msra.mxu0 %v4636
  %6623 = vmatpush.bf16.msra.mxu0 %v4634
  %6624 = vmatpush.bf16.msra.mxu0 %v4632
  %6625 = vmatpush.bf16.msra.mxu0 %v4630
  %6626 = vmatpush.bf16.msra.mxu0 %v4628
  %6627 = vmatpush.bf16.msra.mxu0 %v4626
  %6628 = vmatpush.bf16.msra.mxu0 %v4624
  %6629 = vmatpush.bf16.msra.mxu0 %v4622
  %6630 = vmatmul.bf16.gmra.mxu0 %v1182
  %v6631 = vpop.f32.mrf.mxu0
  %v6632 = vadd.f32 %v6619, %v6631
  %v6633 = vpop.f32.mrf.mxu0
  %6634 = vdwg.mxu0
  %6635 = vmatpush.bf16.msra.mxu0 %v4652
  %6636 = vmatpush.bf16.msra.mxu0 %v4650
  %6637 = vmatpush.bf16.msra.mxu0 %v4648
  %6638 = vmatpush.bf16.msra.mxu0 %v4646
  %6639 = vmatpush.bf16.msra.mxu0 %v4644
  %6640 = vmatpush.bf16.msra.mxu0 %v4642
  %6641 = vmatpush.bf16.msra.mxu0 %v4640
  %6642 = vmatpush.bf16.msra.mxu0 %v4638
  %6643 = vmatmul.bf16.gmra.mxu0 %v1183
  %v6644 = vpop.f32.mrf.mxu0
  %v6645 = vadd.f32 %v6632, %v6644
  %v6646 = vpop.f32.mrf.mxu0
  %6647 = vdwg.mxu0
  %6648 = vmatpush.bf16.msra.mxu0 %v4668
  %6649 = vmatpush.bf16.msra.mxu0 %v4666
  %6650 = vmatpush.bf16.msra.mxu0 %v4664
  %6651 = vmatpush.bf16.msra.mxu0 %v4662
  %6652 = vmatpush.bf16.msra.mxu0 %v4660
  %6653 = vmatpush.bf16.msra.mxu0 %v4658
  %6654 = vmatpush.bf16.msra.mxu0 %v4656
  %6655 = vmatpush.bf16.msra.mxu0 %v4654
  %6656 = vmatmul.bf16.gmra.mxu0 %v1184
  %v6657 = vpop.f32.mrf.mxu0
  %v6658 = vadd.f32 %v6645, %v6657
  %v6659 = vpop.f32.mrf.mxu0
  %6660 = vdwg.mxu0
  %6661 = vmatpush.bf16.msra.mxu0 %v4684
  %6662 = vmatpush.bf16.msra.mxu0 %v4682
  %6663 = vmatpush.bf16.msra.mxu0 %v4680
  %6664 = vmatpush.bf16.msra.mxu0 %v4678
  %6665 = vmatpush.bf16.msra.mxu0 %v4676
  %6666 = vmatpush.bf16.msra.mxu0 %v4674
  %6667 = vmatpush.bf16.msra.mxu0 %v4672
  %6668 = vmatpush.bf16.msra.mxu0 %v4670
  %6669 = vmatmul.bf16.gmra.mxu0 %v1185
  %v6670 = vpop.f32.mrf.mxu0
  %v6671 = vadd.f32 %v6658, %v6670
  %v6672 = vpop.f32.mrf.mxu0
  %6673 = vdwg.mxu0
  %6674 = vmatpush.bf16.msra.mxu0 %v4700
  %6675 = vmatpush.bf16.msra.mxu0 %v4698
  %6676 = vmatpush.bf16.msra.mxu0 %v4696
  %6677 = vmatpush.bf16.msra.mxu0 %v4694
  %6678 = vmatpush.bf16.msra.mxu0 %v4692
  %6679 = vmatpush.bf16.msra.mxu0 %v4690
  %6680 = vmatpush.bf16.msra.mxu0 %v4688
  %6681 = vmatpush.bf16.msra.mxu0 %v4686
  %6682 = vmatmul.bf16.gmra.mxu0 %v1186
  %v6683 = vpop.f32.mrf.mxu0
  %v6684 = vadd.f32 %v6671, %v6683
  %v6685 = vpop.f32.mrf.mxu0
  %6686 = vdwg.mxu0
  %6687 = vmatpush.bf16.msra.mxu0 %v4716
  %6688 = vmatpush.bf16.msra.mxu0 %v4714
  %6689 = vmatpush.bf16.msra.mxu0 %v4712
  %6690 = vmatpush.bf16.msra.mxu0 %v4710
  %6691 = vmatpush.bf16.msra.mxu0 %v4708
  %6692 = vmatpush.bf16.msra.mxu0 %v4706
  %6693 = vmatpush.bf16.msra.mxu0 %v4704
  %6694 = vmatpush.bf16.msra.mxu0 %v4702
  %6695 = vmatmul.bf16.gmra.mxu0 %v1187
  %v6696 = vpop.f32.mrf.mxu0
  %v6697 = vadd.f32 %v6684, %v6696
  %v6698 = vpop.f32.mrf.mxu0
  %6699 = vdwg.mxu0
  %6700 = vmatpush.bf16.msra.mxu0 %v4732
  %6701 = vmatpush.bf16.msra.mxu0 %v4730
  %6702 = vmatpush.bf16.msra.mxu0 %v4728
  %6703 = vmatpush.bf16.msra.mxu0 %v4726
  %6704 = vmatpush.bf16.msra.mxu0 %v4724
  %6705 = vmatpush.bf16.msra.mxu0 %v4722
  %6706 = vmatpush.bf16.msra.mxu0 %v4720
  %6707 = vmatpush.bf16.msra.mxu0 %v4718
  %6708 = vmatmul.bf16.gmra.mxu0 %v1188
  %v6709 = vpop.f32.mrf.mxu0
  %v6710 = vadd.f32 %v6697, %v6709
  %v6711 = vpop.f32.mrf.mxu0
  %6712 = vdwg.mxu0
  %6713 = vmatpush.bf16.msra.mxu0 %v4748
  %6714 = vmatpush.bf16.msra.mxu0 %v4746
  %6715 = vmatpush.bf16.msra.mxu0 %v4744
  %6716 = vmatpush.bf16.msra.mxu0 %v4742
  %6717 = vmatpush.bf16.msra.mxu0 %v4740
  %6718 = vmatpush.bf16.msra.mxu0 %v4738
  %6719 = vmatpush.bf16.msra.mxu0 %v4736
  %6720 = vmatpush.bf16.msra.mxu0 %v4734
  %6721 = vmatmul.bf16.gmra.mxu0 %v1189
  %v6722 = vpop.f32.mrf.mxu0
  %v6723 = vadd.f32 %v6710, %v6722
  %v6724 = vpop.f32.mrf.mxu0
  %6725 = vdwg.mxu0
  %6726 = vmatpush.bf16.msra.mxu0 %v4764
  %6727 = vmatpush.bf16.msra.mxu0 %v4762
  %6728 = vmatpush.bf16.msra.mxu0 %v4760
  %6729 = vmatpush.bf16.msra.mxu0 %v4758
  %6730 = vmatpush.bf16.msra.mxu0 %v4756
  %6731 = vmatpush.bf16.msra.mxu0 %v4754
  %6732 = vmatpush.bf16.msra.mxu0 %v4752
  %6733 = vmatpush.bf16.msra.mxu0 %v4750
  %6734 = vmatmul.bf16.gmra.mxu0 %v1190
  %v6735 = vpop.f32.mrf.mxu0
  %v6736 = vadd.f32 %v6723, %v6735
  %v6737 = vpop.f32.mrf.mxu0
  %6738 = vdwg.mxu0
  %6739 = vmatpush.bf16.msra.mxu0 %v4780
  %6740 = vmatpush.bf16.msra.mxu0 %v4778
  %6741 = vmatpush.bf16.msra.mxu0 %v4776
  %6742 = vmatpush.bf16.msra.mxu0 %v4774
  %6743 = vmatpush.bf16.msra.mxu0 %v4772
  %6744 = vmatpush.bf16.msra.mxu0 %v4770
  %6745 = vmatpush.bf16.msra.mxu0 %v4768
  %6746 = vmatpush.bf16.msra.mxu0 %v4766
  %6747 = vmatmul.bf16.gmra.mxu0 %v1191
  %v6748 = vpop.f32.mrf.mxu0
  %v6749 = vadd.f32 %v6736, %v6748
  %v6750 = vpop.f32.mrf.mxu0
  %6751 = vdwg.mxu0
  %6752 = vmatpush.bf16.msra.mxu0 %v4796
  %6753 = vmatpush.bf16.msra.mxu0 %v4794
  %6754 = vmatpush.bf16.msra.mxu0 %v4792
  %6755 = vmatpush.bf16.msra.mxu0 %v4790
  %6756 = vmatpush.bf16.msra.mxu0 %v4788
  %6757 = vmatpush.bf16.msra.mxu0 %v4786
  %6758 = vmatpush.bf16.msra.mxu0 %v4784
  %6759 = vmatpush.bf16.msra.mxu0 %v4782
  %6760 = vmatmul.bf16.gmra.mxu0 %v1192
  %v6761 = vpop.f32.mrf.mxu0
  %v6762 = vadd.f32 %v6749, %v6761
  %v6763 = vpop.f32.mrf.mxu0
  %6764 = vdwg.mxu0
  %6765 = vmatpush.bf16.msra.mxu0 %v4812
  %6766 = vmatpush.bf16.msra.mxu0 %v4810
  %6767 = vmatpush.bf16.msra.mxu0 %v4808
  %6768 = vmatpush.bf16.msra.mxu0 %v4806
  %6769 = vmatpush.bf16.msra.mxu0 %v4804
  %6770 = vmatpush.bf16.msra.mxu0 %v4802
  %6771 = vmatpush.bf16.msra.mxu0 %v4800
  %6772 = vmatpush.bf16.msra.mxu0 %v4798
  %6773 = vmatmul.bf16.gmra.mxu0 %v1193
  %v6774 = vpop.f32.mrf.mxu0
  %v6775 = vadd.f32 %v6762, %v6774
  %v6776 = vpop.f32.mrf.mxu0
  %6777 = vdwg.mxu0
  %6778 = vmatpush.bf16.msra.mxu0 %v4828
  %6779 = vmatpush.bf16.msra.mxu0 %v4826
  %6780 = vmatpush.bf16.msra.mxu0 %v4824
  %6781 = vmatpush.bf16.msra.mxu0 %v4822
  %6782 = vmatpush.bf16.msra.mxu0 %v4820
  %6783 = vmatpush.bf16.msra.mxu0 %v4818
  %6784 = vmatpush.bf16.msra.mxu0 %v4816
  %6785 = vmatpush.bf16.msra.mxu0 %v4814
  %6786 = vmatmul.bf16.gmra.mxu0 %v1194
  %v6787 = vpop.f32.mrf.mxu0
  %v6788 = vadd.f32 %v6775, %v6787
  %v6789 = vpop.f32.mrf.mxu0
  %6790 = vdwg.mxu0
  %6791 = vmatpush.bf16.msra.mxu0 %v4844
  %6792 = vmatpush.bf16.msra.mxu0 %v4842
  %6793 = vmatpush.bf16.msra.mxu0 %v4840
  %6794 = vmatpush.bf16.msra.mxu0 %v4838
  %6795 = vmatpush.bf16.msra.mxu0 %v4836
  %6796 = vmatpush.bf16.msra.mxu0 %v4834
  %6797 = vmatpush.bf16.msra.mxu0 %v4832
  %6798 = vmatpush.bf16.msra.mxu0 %v4830
  %6799 = vmatmul.bf16.gmra.mxu0 %v1195
  %v6800 = vpop.f32.mrf.mxu0
  %v6801 = vadd.f32 %v6788, %v6800
  %v6802 = vpop.f32.mrf.mxu0
  %6803 = vdwg.mxu0
  %6804 = vmatpush.bf16.msra.mxu0 %v4860
  %6805 = vmatpush.bf16.msra.mxu0 %v4858
  %6806 = vmatpush.bf16.msra.mxu0 %v4856
  %6807 = vmatpush.bf16.msra.mxu0 %v4854
  %6808 = vmatpush.bf16.msra.mxu0 %v4852
  %6809 = vmatpush.bf16.msra.mxu0 %v4850
  %6810 = vmatpush.bf16.msra.mxu0 %v4848
  %6811 = vmatpush.bf16.msra.mxu0 %v4846
  %6812 = vmatmul.bf16.gmra.mxu0 %v1196
  %v6813 = vpop.f32.mrf.mxu0
  %v6814 = vadd.f32 %v6801, %v6813
  %v6815 = vpop.f32.mrf.mxu0
  %6816 = vdwg.mxu0
  %6817 = vmatpush.bf16.msra.mxu0 %v4876
  %6818 = vmatpush.bf16.msra.mxu0 %v4874
  %6819 = vmatpush.bf16.msra.mxu0 %v4872
  %6820 = vmatpush.bf16.msra.mxu0 %v4870
  %6821 = vmatpush.bf16.msra.mxu0 %v4868
  %6822 = vmatpush.bf16.msra.mxu0 %v4866
  %6823 = vmatpush.bf16.msra.mxu0 %v4864
  %6824 = vmatpush.bf16.msra.mxu0 %v4862
  %6825 = vmatmul.bf16.gmra.mxu0 %v1197
  %v6826 = vpop.f32.mrf.mxu0
  %v6827 = vadd.f32 %v6814, %v6826
  %v6828 = vpop.f32.mrf.mxu0
  %6829 = vdwg.mxu0
  %6830 = vmatpush.bf16.msra.mxu0 %v4892
  %6831 = vmatpush.bf16.msra.mxu0 %v4890
  %6832 = vmatpush.bf16.msra.mxu0 %v4888
  %6833 = vmatpush.bf16.msra.mxu0 %v4886
  %6834 = vmatpush.bf16.msra.mxu0 %v4884
  %6835 = vmatpush.bf16.msra.mxu0 %v4882
  %6836 = vmatpush.bf16.msra.mxu0 %v4880
  %6837 = vmatpush.bf16.msra.mxu0 %v4878
  %6838 = vmatmul.bf16.gmra.mxu0 %v1198
  %v6839 = vpop.f32.mrf.mxu0
  %v6840 = vadd.f32 %v6827, %v6839
  %v6841 = vpop.f32.mrf.mxu0
  %6842 = vdwg.mxu0
  %6843 = vmatpush.bf16.msra.mxu0 %v4908
  %6844 = vmatpush.bf16.msra.mxu0 %v4906
  %6845 = vmatpush.bf16.msra.mxu0 %v4904
  %6846 = vmatpush.bf16.msra.mxu0 %v4902
  %6847 = vmatpush.bf16.msra.mxu0 %v4900
  %6848 = vmatpush.bf16.msra.mxu0 %v4898
  %6849 = vmatpush.bf16.msra.mxu0 %v4896
  %6850 = vmatpush.bf16.msra.mxu0 %v4894
  %6851 = vmatmul.bf16.gmra.mxu0 %v1199
  %v6852 = vpop.f32.mrf.mxu0
  %v6853 = vadd.f32 %v6840, %v6852
  %v6854 = vpop.f32.mrf.mxu0
  %6855 = vdwg.mxu0
  %6856 = vmatpush.bf16.msra.mxu0 %v4924
  %6857 = vmatpush.bf16.msra.mxu0 %v4922
  %6858 = vmatpush.bf16.msra.mxu0 %v4920
  %6859 = vmatpush.bf16.msra.mxu0 %v4918
  %6860 = vmatpush.bf16.msra.mxu0 %v4916
  %6861 = vmatpush.bf16.msra.mxu0 %v4914
  %6862 = vmatpush.bf16.msra.mxu0 %v4912
  %6863 = vmatpush.bf16.msra.mxu0 %v4910
  %6864 = vmatmul.bf16.gmra.mxu0 %v1200
  %v6865 = vpop.f32.mrf.mxu0
  %v6866 = vadd.f32 %v6853, %v6865
  %v6867 = vpop.f32.mrf.mxu0
  %6868 = vdwg.mxu0
  %6869 = vmatpush.bf16.msra.mxu0 %v4940
  %6870 = vmatpush.bf16.msra.mxu0 %v4938
  %6871 = vmatpush.bf16.msra.mxu0 %v4936
  %6872 = vmatpush.bf16.msra.mxu0 %v4934
  %6873 = vmatpush.bf16.msra.mxu0 %v4932
  %6874 = vmatpush.bf16.msra.mxu0 %v4930
  %6875 = vmatpush.bf16.msra.mxu0 %v4928
  %6876 = vmatpush.bf16.msra.mxu0 %v4926
  %6877 = vmatmul.bf16.gmra.mxu0 %v1201
  %v6878 = vpop.f32.mrf.mxu0
  %v6879 = vadd.f32 %v6866, %v6878
  %v6880 = vpop.f32.mrf.mxu0
  %6881 = vdwg.mxu0
  %6882 = vmatpush.bf16.msra.mxu0 %v4956
  %6883 = vmatpush.bf16.msra.mxu0 %v4954
  %6884 = vmatpush.bf16.msra.mxu0 %v4952
  %6885 = vmatpush.bf16.msra.mxu0 %v4950
  %6886 = vmatpush.bf16.msra.mxu0 %v4948
  %6887 = vmatpush.bf16.msra.mxu0 %v4946
  %6888 = vmatpush.bf16.msra.mxu0 %v4944
  %6889 = vmatpush.bf16.msra.mxu0 %v4942
  %6890 = vmatmul.bf16.gmra.mxu0 %v1202
  %v6891 = vpop.f32.mrf.mxu0
  %v6892 = vadd.f32 %v6879, %v6891
  %v6893 = vpop.f32.mrf.mxu0
  %6894 = vdwg.mxu0
  %6895 = vmatpush.bf16.msra.mxu0 %v4972
  %6896 = vmatpush.bf16.msra.mxu0 %v4970
  %6897 = vmatpush.bf16.msra.mxu0 %v4968
  %6898 = vmatpush.bf16.msra.mxu0 %v4966
  %6899 = vmatpush.bf16.msra.mxu0 %v4964
  %6900 = vmatpush.bf16.msra.mxu0 %v4962
  %6901 = vmatpush.bf16.msra.mxu0 %v4960
  %6902 = vmatpush.bf16.msra.mxu0 %v4958
  %6903 = vmatmul.bf16.gmra.mxu0 %v1203
  %v6904 = vpop.f32.mrf.mxu0
  %v6905 = vadd.f32 %v6892, %v6904
  %v6906 = vpop.f32.mrf.mxu0
  %6907 = vdwg.mxu0
  %6908 = vmatpush.bf16.msra.mxu0 %v4988
  %6909 = vmatpush.bf16.msra.mxu0 %v4986
  %6910 = vmatpush.bf16.msra.mxu0 %v4984
  %6911 = vmatpush.bf16.msra.mxu0 %v4982
  %6912 = vmatpush.bf16.msra.mxu0 %v4980
  %6913 = vmatpush.bf16.msra.mxu0 %v4978
  %6914 = vmatpush.bf16.msra.mxu0 %v4976
  %6915 = vmatpush.bf16.msra.mxu0 %v4974
  %6916 = vmatmul.bf16.gmra.mxu0 %v1204
  %v6917 = vpop.f32.mrf.mxu0
  %v6918 = vadd.f32 %v6905, %v6917
  %v6919 = vpop.f32.mrf.mxu0
  %6920 = vdwg.mxu0
  %6921 = vmatpush.bf16.msra.mxu0 %v5004
  %6922 = vmatpush.bf16.msra.mxu0 %v5002
  %6923 = vmatpush.bf16.msra.mxu0 %v5000
  %6924 = vmatpush.bf16.msra.mxu0 %v4998
  %6925 = vmatpush.bf16.msra.mxu0 %v4996
  %6926 = vmatpush.bf16.msra.mxu0 %v4994
  %6927 = vmatpush.bf16.msra.mxu0 %v4992
  %6928 = vmatpush.bf16.msra.mxu0 %v4990
  %6929 = vmatmul.bf16.gmra.mxu0 %v1205
  %v6930 = vpop.f32.mrf.mxu0
  %v6931 = vadd.f32 %v6918, %v6930
  %v6932 = vpop.f32.mrf.mxu0
  %6933 = vdwg.mxu0
  %6934 = vmatpush.bf16.msra.mxu0 %v5020
  %6935 = vmatpush.bf16.msra.mxu0 %v5018
  %6936 = vmatpush.bf16.msra.mxu0 %v5016
  %6937 = vmatpush.bf16.msra.mxu0 %v5014
  %6938 = vmatpush.bf16.msra.mxu0 %v5012
  %6939 = vmatpush.bf16.msra.mxu0 %v5010
  %6940 = vmatpush.bf16.msra.mxu0 %v5008
  %6941 = vmatpush.bf16.msra.mxu0 %v5006
  %6942 = vmatmul.bf16.gmra.mxu0 %v1206
  %v6943 = vpop.f32.mrf.mxu0
  %v6944 = vadd.f32 %v6931, %v6943
  %v6945 = vpop.f32.mrf.mxu0
  %6946 = vdwg.mxu0
  %6947 = vmatpush.bf16.msra.mxu0 %v5036
  %6948 = vmatpush.bf16.msra.mxu0 %v5034
  %6949 = vmatpush.bf16.msra.mxu0 %v5032
  %6950 = vmatpush.bf16.msra.mxu0 %v5030
  %6951 = vmatpush.bf16.msra.mxu0 %v5028
  %6952 = vmatpush.bf16.msra.mxu0 %v5026
  %6953 = vmatpush.bf16.msra.mxu0 %v5024
  %6954 = vmatpush.bf16.msra.mxu0 %v5022
  %6955 = vmatmul.bf16.gmra.mxu0 %v1207
  %v6956 = vpop.f32.mrf.mxu0
  %v6957 = vadd.f32 %v6944, %v6956
  %v6958 = vpop.f32.mrf.mxu0
  %6959 = vdwg.mxu0
  %6960 = vmatpush.bf16.msra.mxu0 %v5052
  %6961 = vmatpush.bf16.msra.mxu0 %v5050
  %6962 = vmatpush.bf16.msra.mxu0 %v5048
  %6963 = vmatpush.bf16.msra.mxu0 %v5046
  %6964 = vmatpush.bf16.msra.mxu0 %v5044
  %6965 = vmatpush.bf16.msra.mxu0 %v5042
  %6966 = vmatpush.bf16.msra.mxu0 %v5040
  %6967 = vmatpush.bf16.msra.mxu0 %v5038
  %6968 = vmatmul.bf16.gmra.mxu0 %v1208
  %v6969 = vpop.f32.mrf.mxu0
  %v6970 = vadd.f32 %v6957, %v6969
  %v6971 = vpop.f32.mrf.mxu0
  %6972 = vdwg.mxu0
  %6973 = vmatpush.bf16.msra.mxu0 %v5068
  %6974 = vmatpush.bf16.msra.mxu0 %v5066
  %6975 = vmatpush.bf16.msra.mxu0 %v5064
  %6976 = vmatpush.bf16.msra.mxu0 %v5062
  %6977 = vmatpush.bf16.msra.mxu0 %v5060
  %6978 = vmatpush.bf16.msra.mxu0 %v5058
  %6979 = vmatpush.bf16.msra.mxu0 %v5056
  %6980 = vmatpush.bf16.msra.mxu0 %v5054
  %6981 = vmatmul.bf16.gmra.mxu0 %v1209
  %v6982 = vpop.f32.mrf.mxu0
  %v6983 = vadd.f32 %v6970, %v6982
  %v6984 = vpop.f32.mrf.mxu0
  %6985 = vdwg.mxu0
  %6986 = vmatpush.bf16.msra.mxu0 %v5084
  %6987 = vmatpush.bf16.msra.mxu0 %v5082
  %6988 = vmatpush.bf16.msra.mxu0 %v5080
  %6989 = vmatpush.bf16.msra.mxu0 %v5078
  %6990 = vmatpush.bf16.msra.mxu0 %v5076
  %6991 = vmatpush.bf16.msra.mxu0 %v5074
  %6992 = vmatpush.bf16.msra.mxu0 %v5072
  %6993 = vmatpush.bf16.msra.mxu0 %v5070
  %6994 = vmatmul.bf16.gmra.mxu0 %v1210
  %v6995 = vpop.f32.mrf.mxu0
  %v6996 = vadd.f32 %v6983, %v6995
  %v6997 = vpop.f32.mrf.mxu0
  %6998 = vdwg.mxu0
  %6999 = vmatpush.bf16.msra.mxu0 %v5100
  %7000 = vmatpush.bf16.msra.mxu0 %v5098
  %7001 = vmatpush.bf16.msra.mxu0 %v5096
  %7002 = vmatpush.bf16.msra.mxu0 %v5094
  %7003 = vmatpush.bf16.msra.mxu0 %v5092
  %7004 = vmatpush.bf16.msra.mxu0 %v5090
  %7005 = vmatpush.bf16.msra.mxu0 %v5088
  %7006 = vmatpush.bf16.msra.mxu0 %v5086
  %7007 = vmatmul.bf16.gmra.mxu0 %v1211
  %v7008 = vpop.f32.mrf.mxu0
  %v7009 = vadd.f32 %v6996, %v7008
  %v7010 = vpop.f32.mrf.mxu0
  %7011 = vdwg.mxu0
  %7012 = vmatpush.bf16.msra.mxu0 %v5116
  %7013 = vmatpush.bf16.msra.mxu0 %v5114
  %7014 = vmatpush.bf16.msra.mxu0 %v5112
  %7015 = vmatpush.bf16.msra.mxu0 %v5110
  %7016 = vmatpush.bf16.msra.mxu0 %v5108
  %7017 = vmatpush.bf16.msra.mxu0 %v5106
  %7018 = vmatpush.bf16.msra.mxu0 %v5104
  %7019 = vmatpush.bf16.msra.mxu0 %v5102
  %7020 = vmatmul.bf16.gmra.mxu0 %v1212
  %v7021 = vpop.f32.mrf.mxu0
  %v7022 = vadd.f32 %v7009, %v7021
  %v7023 = vpop.f32.mrf.mxu0
  %7024 = vdwg.mxu0
  %7025 = vmatpush.bf16.msra.mxu0 %v5132
  %7026 = vmatpush.bf16.msra.mxu0 %v5130
  %7027 = vmatpush.bf16.msra.mxu0 %v5128
  %7028 = vmatpush.bf16.msra.mxu0 %v5126
  %7029 = vmatpush.bf16.msra.mxu0 %v5124
  %7030 = vmatpush.bf16.msra.mxu0 %v5122
  %7031 = vmatpush.bf16.msra.mxu0 %v5120
  %7032 = vmatpush.bf16.msra.mxu0 %v5118
  %7033 = vmatmul.bf16.gmra.mxu0 %v1213
  %v7034 = vpop.f32.mrf.mxu0
  %v7035 = vadd.f32 %v7022, %v7034
  %v7036 = vpop.f32.mrf.mxu0
  %7037 = vdwg.mxu0
  %7038 = vmatpush.bf16.msra.mxu0 %v5148
  %7039 = vmatpush.bf16.msra.mxu0 %v5146
  %7040 = vmatpush.bf16.msra.mxu0 %v5144
  %7041 = vmatpush.bf16.msra.mxu0 %v5142
  %7042 = vmatpush.bf16.msra.mxu0 %v5140
  %7043 = vmatpush.bf16.msra.mxu0 %v5138
  %7044 = vmatpush.bf16.msra.mxu0 %v5136
  %7045 = vmatpush.bf16.msra.mxu0 %v5134
  %7046 = vmatmul.bf16.gmra.mxu0 %v1214
  %v7047 = vpop.f32.mrf.mxu0
  %v7048 = vadd.f32 %v7035, %v7047
  %v7049 = vpop.f32.mrf.mxu0
  %7050 = vdwg.mxu0
  %7051 = vmatpush.bf16.msra.mxu0 %v5164
  %7052 = vmatpush.bf16.msra.mxu0 %v5162
  %7053 = vmatpush.bf16.msra.mxu0 %v5160
  %7054 = vmatpush.bf16.msra.mxu0 %v5158
  %7055 = vmatpush.bf16.msra.mxu0 %v5156
  %7056 = vmatpush.bf16.msra.mxu0 %v5154
  %7057 = vmatpush.bf16.msra.mxu0 %v5152
  %7058 = vmatpush.bf16.msra.mxu0 %v5150
  %7059 = vmatmul.bf16.gmra.mxu0 %v1215
  %v7060 = vpop.f32.mrf.mxu0
  %v7061 = vadd.f32 %v7048, %v7060
  %v7062 = vpop.f32.mrf.mxu0
  %7063 = vdwg.mxu0
  %7064 = vmatpush.bf16.msra.mxu0 %v5180
  %7065 = vmatpush.bf16.msra.mxu0 %v5178
  %7066 = vmatpush.bf16.msra.mxu0 %v5176
  %7067 = vmatpush.bf16.msra.mxu0 %v5174
  %7068 = vmatpush.bf16.msra.mxu0 %v5172
  %7069 = vmatpush.bf16.msra.mxu0 %v5170
  %7070 = vmatpush.bf16.msra.mxu0 %v5168
  %7071 = vmatpush.bf16.msra.mxu0 %v5166
  %7072 = vmatmul.bf16.gmra.mxu0 %v1216
  %v7073 = vpop.f32.mrf.mxu0
  %v7074 = vadd.f32 %v7061, %v7073
  %v7075 = vpop.f32.mrf.mxu0
  %7076 = vdwg.mxu0
  %7077 = vmatpush.bf16.msra.mxu0 %v5196
  %7078 = vmatpush.bf16.msra.mxu0 %v5194
  %7079 = vmatpush.bf16.msra.mxu0 %v5192
  %7080 = vmatpush.bf16.msra.mxu0 %v5190
  %7081 = vmatpush.bf16.msra.mxu0 %v5188
  %7082 = vmatpush.bf16.msra.mxu0 %v5186
  %7083 = vmatpush.bf16.msra.mxu0 %v5184
  %7084 = vmatpush.bf16.msra.mxu0 %v5182
  %7085 = vmatmul.bf16.gmra.mxu0 %v1217
  %v7086 = vpop.f32.mrf.mxu0
  %v7087 = vadd.f32 %v7074, %v7086
  %v7088 = vpop.f32.mrf.mxu0
  %7089 = vdwg.mxu0
  %7090 = vmatpush.bf16.msra.mxu0 %v5212
  %7091 = vmatpush.bf16.msra.mxu0 %v5210
  %7092 = vmatpush.bf16.msra.mxu0 %v5208
  %7093 = vmatpush.bf16.msra.mxu0 %v5206
  %7094 = vmatpush.bf16.msra.mxu0 %v5204
  %7095 = vmatpush.bf16.msra.mxu0 %v5202
  %7096 = vmatpush.bf16.msra.mxu0 %v5200
  %7097 = vmatpush.bf16.msra.mxu0 %v5198
  %7098 = vmatmul.bf16.gmra.mxu0 %v1218
  %v7099 = vpop.f32.mrf.mxu0
  %v7100 = vadd.f32 %v7087, %v7099
  %v7101 = vpop.f32.mrf.mxu0
  %7102 = vdwg.mxu0
  %7103 = vmatpush.bf16.msra.mxu0 %v5228
  %7104 = vmatpush.bf16.msra.mxu0 %v5226
  %7105 = vmatpush.bf16.msra.mxu0 %v5224
  %7106 = vmatpush.bf16.msra.mxu0 %v5222
  %7107 = vmatpush.bf16.msra.mxu0 %v5220
  %7108 = vmatpush.bf16.msra.mxu0 %v5218
  %7109 = vmatpush.bf16.msra.mxu0 %v5216
  %7110 = vmatpush.bf16.msra.mxu0 %v5214
  %7111 = vmatmul.bf16.gmra.mxu0 %v1219
  %v7112 = vpop.f32.mrf.mxu0
  %v7113 = vadd.f32 %v7100, %v7112
  %v7114 = vpop.f32.mrf.mxu0
  %7115 = vdwg.mxu0
  %7116 = vmatpush.bf16.msra.mxu0 %v5244
  %7117 = vmatpush.bf16.msra.mxu0 %v5242
  %7118 = vmatpush.bf16.msra.mxu0 %v5240
  %7119 = vmatpush.bf16.msra.mxu0 %v5238
  %7120 = vmatpush.bf16.msra.mxu0 %v5236
  %7121 = vmatpush.bf16.msra.mxu0 %v5234
  %7122 = vmatpush.bf16.msra.mxu0 %v5232
  %7123 = vmatpush.bf16.msra.mxu0 %v5230
  %7124 = vmatmul.bf16.gmra.mxu0 %v1220
  %v7125 = vpop.f32.mrf.mxu0
  %v7126 = vadd.f32 %v7113, %v7125
  %v7127 = vpop.f32.mrf.mxu0
  %7128 = vdwg.mxu0
  %7129 = vmatpush.bf16.msra.mxu0 %v5260
  %7130 = vmatpush.bf16.msra.mxu0 %v5258
  %7131 = vmatpush.bf16.msra.mxu0 %v5256
  %7132 = vmatpush.bf16.msra.mxu0 %v5254
  %7133 = vmatpush.bf16.msra.mxu0 %v5252
  %7134 = vmatpush.bf16.msra.mxu0 %v5250
  %7135 = vmatpush.bf16.msra.mxu0 %v5248
  %7136 = vmatpush.bf16.msra.mxu0 %v5246
  %7137 = vmatmul.bf16.gmra.mxu0 %v1221
  %v7138 = vpop.f32.mrf.mxu0
  %v7139 = vadd.f32 %v7126, %v7138
  %v7140 = vpop.f32.mrf.mxu0
  %7141 = vdwg.mxu0
  %7142 = vmatpush.bf16.msra.mxu0 %v5276
  %7143 = vmatpush.bf16.msra.mxu0 %v5274
  %7144 = vmatpush.bf16.msra.mxu0 %v5272
  %7145 = vmatpush.bf16.msra.mxu0 %v5270
  %7146 = vmatpush.bf16.msra.mxu0 %v5268
  %7147 = vmatpush.bf16.msra.mxu0 %v5266
  %7148 = vmatpush.bf16.msra.mxu0 %v5264
  %7149 = vmatpush.bf16.msra.mxu0 %v5262
  %7150 = vmatmul.bf16.gmra.mxu0 %v1222
  %v7151 = vpop.f32.mrf.mxu0
  %v7152 = vadd.f32 %v7139, %v7151
  %v7153 = vpop.f32.mrf.mxu0
  %7154 = vdwg.mxu0
  %7155 = vmatpush.bf16.msra.mxu0 %v5292
  %7156 = vmatpush.bf16.msra.mxu0 %v5290
  %7157 = vmatpush.bf16.msra.mxu0 %v5288
  %7158 = vmatpush.bf16.msra.mxu0 %v5286
  %7159 = vmatpush.bf16.msra.mxu0 %v5284
  %7160 = vmatpush.bf16.msra.mxu0 %v5282
  %7161 = vmatpush.bf16.msra.mxu0 %v5280
  %7162 = vmatpush.bf16.msra.mxu0 %v5278
  %7163 = vmatmul.bf16.gmra.mxu0 %v1223
  %v7164 = vpop.f32.mrf.mxu0
  %v7165 = vadd.f32 %v7152, %v7164
  %v7166 = vpop.f32.mrf.mxu0
  %7167 = vdwg.mxu0
  %7168 = vmatpush.bf16.msra.mxu0 %v5308
  %7169 = vmatpush.bf16.msra.mxu0 %v5306
  %7170 = vmatpush.bf16.msra.mxu0 %v5304
  %7171 = vmatpush.bf16.msra.mxu0 %v5302
  %7172 = vmatpush.bf16.msra.mxu0 %v5300
  %7173 = vmatpush.bf16.msra.mxu0 %v5298
  %7174 = vmatpush.bf16.msra.mxu0 %v5296
  %7175 = vmatpush.bf16.msra.mxu0 %v5294
  %7176 = vmatmul.bf16.gmra.mxu0 %v1224
  %v7177 = vpop.f32.mrf.mxu0
  %v7178 = vadd.f32 %v7165, %v7177
  %v7179 = vpop.f32.mrf.mxu0
  %7180 = vdwg.mxu0
  %7181 = vmatpush.bf16.msra.mxu0 %v5324
  %7182 = vmatpush.bf16.msra.mxu0 %v5322
  %7183 = vmatpush.bf16.msra.mxu0 %v5320
  %7184 = vmatpush.bf16.msra.mxu0 %v5318
  %7185 = vmatpush.bf16.msra.mxu0 %v5316
  %7186 = vmatpush.bf16.msra.mxu0 %v5314
  %7187 = vmatpush.bf16.msra.mxu0 %v5312
  %7188 = vmatpush.bf16.msra.mxu0 %v5310
  %7189 = vmatmul.bf16.gmra.mxu0 %v1225
  %v7190 = vpop.f32.mrf.mxu0
  %v7191 = vadd.f32 %v7178, %v7190
  %v7192 = vpop.f32.mrf.mxu0
  %7193 = vdwg.mxu0
  %7194 = vmatpush.bf16.msra.mxu0 %v5340
  %7195 = vmatpush.bf16.msra.mxu0 %v5338
  %7196 = vmatpush.bf16.msra.mxu0 %v5336
  %7197 = vmatpush.bf16.msra.mxu0 %v5334
  %7198 = vmatpush.bf16.msra.mxu0 %v5332
  %7199 = vmatpush.bf16.msra.mxu0 %v5330
  %7200 = vmatpush.bf16.msra.mxu0 %v5328
  %7201 = vmatpush.bf16.msra.mxu0 %v5326
  %7202 = vmatmul.bf16.gmra.mxu0 %v1226
  %v7203 = vpop.f32.mrf.mxu0
  %v7204 = vadd.f32 %v7191, %v7203
  %v7205 = vpop.f32.mrf.mxu0
  %7206 = vdwg.mxu0
  %7207 = vmatpush.bf16.msra.mxu0 %v5356
  %7208 = vmatpush.bf16.msra.mxu0 %v5354
  %7209 = vmatpush.bf16.msra.mxu0 %v5352
  %7210 = vmatpush.bf16.msra.mxu0 %v5350
  %7211 = vmatpush.bf16.msra.mxu0 %v5348
  %7212 = vmatpush.bf16.msra.mxu0 %v5346
  %7213 = vmatpush.bf16.msra.mxu0 %v5344
  %7214 = vmatpush.bf16.msra.mxu0 %v5342
  %7215 = vmatmul.bf16.gmra.mxu0 %v1227
  %v7216 = vpop.f32.mrf.mxu0
  %v7217 = vadd.f32 %v7204, %v7216
  %v7218 = vpop.f32.mrf.mxu0
  %7219 = vdwg.mxu0
  %7220 = vmatpush.bf16.msra.mxu0 %v5372
  %7221 = vmatpush.bf16.msra.mxu0 %v5370
  %7222 = vmatpush.bf16.msra.mxu0 %v5368
  %7223 = vmatpush.bf16.msra.mxu0 %v5366
  %7224 = vmatpush.bf16.msra.mxu0 %v5364
  %7225 = vmatpush.bf16.msra.mxu0 %v5362
  %7226 = vmatpush.bf16.msra.mxu0 %v5360
  %7227 = vmatpush.bf16.msra.mxu0 %v5358
  %7228 = vmatmul.bf16.gmra.mxu0 %v1228
  %v7229 = vpop.f32.mrf.mxu0
  %v7230 = vadd.f32 %v7217, %v7229
  %v7231 = vpop.f32.mrf.mxu0
  %7232 = vdwg.mxu0
  %7233 = vmatpush.bf16.msra.mxu0 %v5388
  %7234 = vmatpush.bf16.msra.mxu0 %v5386
  %7235 = vmatpush.bf16.msra.mxu0 %v5384
  %7236 = vmatpush.bf16.msra.mxu0 %v5382
  %7237 = vmatpush.bf16.msra.mxu0 %v5380
  %7238 = vmatpush.bf16.msra.mxu0 %v5378
  %7239 = vmatpush.bf16.msra.mxu0 %v5376
  %7240 = vmatpush.bf16.msra.mxu0 %v5374
  %7241 = vmatmul.bf16.gmra.mxu0 %v1229
  %v7242 = vpop.f32.mrf.mxu0
  %v7243 = vadd.f32 %v7230, %v7242
  %v7244 = vpop.f32.mrf.mxu0
  %7245 = vdwg.mxu0
  %7246 = vmatpush.bf16.msra.mxu0 %v4381
  %7247 = vmatpush.bf16.msra.mxu0 %v4379
  %7248 = vmatpush.bf16.msra.mxu0 %v4377
  %7249 = vmatpush.bf16.msra.mxu0 %v4375
  %7250 = vmatpush.bf16.msra.mxu0 %v4373
  %7251 = vmatpush.bf16.msra.mxu0 %v4371
  %7252 = vmatpush.bf16.msra.mxu0 %v4369
  %7253 = vmatpush.bf16.msra.mxu0 %v4367
  %7254 = vmatmul.bf16.gmra.mxu0 %v1166
  %v7255 = vpop.f32.mrf.mxu0
  %v7256 = vadd.f32 0.0, %v7255
  %v7257 = vpop.f32.mrf.mxu0
  %7258 = vdwg.mxu0
  %7259 = vmatpush.bf16.msra.mxu0 %v4397
  %7260 = vmatpush.bf16.msra.mxu0 %v4395
  %7261 = vmatpush.bf16.msra.mxu0 %v4393
  %7262 = vmatpush.bf16.msra.mxu0 %v4391
  %7263 = vmatpush.bf16.msra.mxu0 %v4389
  %7264 = vmatpush.bf16.msra.mxu0 %v4387
  %7265 = vmatpush.bf16.msra.mxu0 %v4385
  %7266 = vmatpush.bf16.msra.mxu0 %v4383
  %7267 = vmatmul.bf16.gmra.mxu0 %v1167
  %v7268 = vpop.f32.mrf.mxu0
  %v7269 = vadd.f32 %v7256, %v7268
  %v7270 = vpop.f32.mrf.mxu0
  %7271 = vdwg.mxu0
  %7272 = vmatpush.bf16.msra.mxu0 %v4413
  %7273 = vmatpush.bf16.msra.mxu0 %v4411
  %7274 = vmatpush.bf16.msra.mxu0 %v4409
  %7275 = vmatpush.bf16.msra.mxu0 %v4407
  %7276 = vmatpush.bf16.msra.mxu0 %v4405
  %7277 = vmatpush.bf16.msra.mxu0 %v4403
  %7278 = vmatpush.bf16.msra.mxu0 %v4401
  %7279 = vmatpush.bf16.msra.mxu0 %v4399
  %7280 = vmatmul.bf16.gmra.mxu0 %v1168
  %v7281 = vpop.f32.mrf.mxu0
  %v7282 = vadd.f32 %v7269, %v7281
  %v7283 = vpop.f32.mrf.mxu0
  %7284 = vdwg.mxu0
  %7285 = vmatpush.bf16.msra.mxu0 %v4429
  %7286 = vmatpush.bf16.msra.mxu0 %v4427
  %7287 = vmatpush.bf16.msra.mxu0 %v4425
  %7288 = vmatpush.bf16.msra.mxu0 %v4423
  %7289 = vmatpush.bf16.msra.mxu0 %v4421
  %7290 = vmatpush.bf16.msra.mxu0 %v4419
  %7291 = vmatpush.bf16.msra.mxu0 %v4417
  %7292 = vmatpush.bf16.msra.mxu0 %v4415
  %7293 = vmatmul.bf16.gmra.mxu0 %v1169
  %v7294 = vpop.f32.mrf.mxu0
  %v7295 = vadd.f32 %v7282, %v7294
  %v7296 = vpop.f32.mrf.mxu0
  %7297 = vdwg.mxu0
  %7298 = vmatpush.bf16.msra.mxu0 %v4445
  %7299 = vmatpush.bf16.msra.mxu0 %v4443
  %7300 = vmatpush.bf16.msra.mxu0 %v4441
  %7301 = vmatpush.bf16.msra.mxu0 %v4439
  %7302 = vmatpush.bf16.msra.mxu0 %v4437
  %7303 = vmatpush.bf16.msra.mxu0 %v4435
  %7304 = vmatpush.bf16.msra.mxu0 %v4433
  %7305 = vmatpush.bf16.msra.mxu0 %v4431
  %7306 = vmatmul.bf16.gmra.mxu0 %v1170
  %v7307 = vpop.f32.mrf.mxu0
  %v7308 = vadd.f32 %v7295, %v7307
  %v7309 = vpop.f32.mrf.mxu0
  %7310 = vdwg.mxu0
  %7311 = vmatpush.bf16.msra.mxu0 %v4461
  %7312 = vmatpush.bf16.msra.mxu0 %v4459
  %7313 = vmatpush.bf16.msra.mxu0 %v4457
  %7314 = vmatpush.bf16.msra.mxu0 %v4455
  %7315 = vmatpush.bf16.msra.mxu0 %v4453
  %7316 = vmatpush.bf16.msra.mxu0 %v4451
  %7317 = vmatpush.bf16.msra.mxu0 %v4449
  %7318 = vmatpush.bf16.msra.mxu0 %v4447
  %7319 = vmatmul.bf16.gmra.mxu0 %v1171
  %v7320 = vpop.f32.mrf.mxu0
  %v7321 = vadd.f32 %v7308, %v7320
  %v7322 = vpop.f32.mrf.mxu0
  %7323 = vdwg.mxu0
  %7324 = vmatpush.bf16.msra.mxu0 %v4477
  %7325 = vmatpush.bf16.msra.mxu0 %v4475
  %7326 = vmatpush.bf16.msra.mxu0 %v4473
  %7327 = vmatpush.bf16.msra.mxu0 %v4471
  %7328 = vmatpush.bf16.msra.mxu0 %v4469
  %7329 = vmatpush.bf16.msra.mxu0 %v4467
  %7330 = vmatpush.bf16.msra.mxu0 %v4465
  %7331 = vmatpush.bf16.msra.mxu0 %v4463
  %7332 = vmatmul.bf16.gmra.mxu0 %v1172
  %v7333 = vpop.f32.mrf.mxu0
  %v7334 = vadd.f32 %v7321, %v7333
  %v7335 = vpop.f32.mrf.mxu0
  %7336 = vdwg.mxu0
  %7337 = vmatpush.bf16.msra.mxu0 %v4493
  %7338 = vmatpush.bf16.msra.mxu0 %v4491
  %7339 = vmatpush.bf16.msra.mxu0 %v4489
  %7340 = vmatpush.bf16.msra.mxu0 %v4487
  %7341 = vmatpush.bf16.msra.mxu0 %v4485
  %7342 = vmatpush.bf16.msra.mxu0 %v4483
  %7343 = vmatpush.bf16.msra.mxu0 %v4481
  %7344 = vmatpush.bf16.msra.mxu0 %v4479
  %7345 = vmatmul.bf16.gmra.mxu0 %v1173
  %v7346 = vpop.f32.mrf.mxu0
  %v7347 = vadd.f32 %v7334, %v7346
  %v7348 = vpop.f32.mrf.mxu0
  %7349 = vdwg.mxu0
  %7350 = vmatpush.bf16.msra.mxu0 %v4509
  %7351 = vmatpush.bf16.msra.mxu0 %v4507
  %7352 = vmatpush.bf16.msra.mxu0 %v4505
  %7353 = vmatpush.bf16.msra.mxu0 %v4503
  %7354 = vmatpush.bf16.msra.mxu0 %v4501
  %7355 = vmatpush.bf16.msra.mxu0 %v4499
  %7356 = vmatpush.bf16.msra.mxu0 %v4497
  %7357 = vmatpush.bf16.msra.mxu0 %v4495
  %7358 = vmatmul.bf16.gmra.mxu0 %v1174
  %v7359 = vpop.f32.mrf.mxu0
  %v7360 = vadd.f32 %v7347, %v7359
  %v7361 = vpop.f32.mrf.mxu0
  %7362 = vdwg.mxu0
  %7363 = vmatpush.bf16.msra.mxu0 %v4525
  %7364 = vmatpush.bf16.msra.mxu0 %v4523
  %7365 = vmatpush.bf16.msra.mxu0 %v4521
  %7366 = vmatpush.bf16.msra.mxu0 %v4519
  %7367 = vmatpush.bf16.msra.mxu0 %v4517
  %7368 = vmatpush.bf16.msra.mxu0 %v4515
  %7369 = vmatpush.bf16.msra.mxu0 %v4513
  %7370 = vmatpush.bf16.msra.mxu0 %v4511
  %7371 = vmatmul.bf16.gmra.mxu0 %v1175
  %v7372 = vpop.f32.mrf.mxu0
  %v7373 = vadd.f32 %v7360, %v7372
  %v7374 = vpop.f32.mrf.mxu0
  %7375 = vdwg.mxu0
  %7376 = vmatpush.bf16.msra.mxu0 %v4541
  %7377 = vmatpush.bf16.msra.mxu0 %v4539
  %7378 = vmatpush.bf16.msra.mxu0 %v4537
  %7379 = vmatpush.bf16.msra.mxu0 %v4535
  %7380 = vmatpush.bf16.msra.mxu0 %v4533
  %7381 = vmatpush.bf16.msra.mxu0 %v4531
  %7382 = vmatpush.bf16.msra.mxu0 %v4529
  %7383 = vmatpush.bf16.msra.mxu0 %v4527
  %7384 = vmatmul.bf16.gmra.mxu0 %v1176
  %v7385 = vpop.f32.mrf.mxu0
  %v7386 = vadd.f32 %v7373, %v7385
  %v7387 = vpop.f32.mrf.mxu0
  %7388 = vdwg.mxu0
  %7389 = vmatpush.bf16.msra.mxu0 %v4557
  %7390 = vmatpush.bf16.msra.mxu0 %v4555
  %7391 = vmatpush.bf16.msra.mxu0 %v4553
  %7392 = vmatpush.bf16.msra.mxu0 %v4551
  %7393 = vmatpush.bf16.msra.mxu0 %v4549
  %7394 = vmatpush.bf16.msra.mxu0 %v4547
  %7395 = vmatpush.bf16.msra.mxu0 %v4545
  %7396 = vmatpush.bf16.msra.mxu0 %v4543
  %7397 = vmatmul.bf16.gmra.mxu0 %v1177
  %v7398 = vpop.f32.mrf.mxu0
  %v7399 = vadd.f32 %v7386, %v7398
  %v7400 = vpop.f32.mrf.mxu0
  %7401 = vdwg.mxu0
  %7402 = vmatpush.bf16.msra.mxu0 %v4573
  %7403 = vmatpush.bf16.msra.mxu0 %v4571
  %7404 = vmatpush.bf16.msra.mxu0 %v4569
  %7405 = vmatpush.bf16.msra.mxu0 %v4567
  %7406 = vmatpush.bf16.msra.mxu0 %v4565
  %7407 = vmatpush.bf16.msra.mxu0 %v4563
  %7408 = vmatpush.bf16.msra.mxu0 %v4561
  %7409 = vmatpush.bf16.msra.mxu0 %v4559
  %7410 = vmatmul.bf16.gmra.mxu0 %v1178
  %v7411 = vpop.f32.mrf.mxu0
  %v7412 = vadd.f32 %v7399, %v7411
  %v7413 = vpop.f32.mrf.mxu0
  %7414 = vdwg.mxu0
  %7415 = vmatpush.bf16.msra.mxu0 %v4589
  %7416 = vmatpush.bf16.msra.mxu0 %v4587
  %7417 = vmatpush.bf16.msra.mxu0 %v4585
  %7418 = vmatpush.bf16.msra.mxu0 %v4583
  %7419 = vmatpush.bf16.msra.mxu0 %v4581
  %7420 = vmatpush.bf16.msra.mxu0 %v4579
  %7421 = vmatpush.bf16.msra.mxu0 %v4577
  %7422 = vmatpush.bf16.msra.mxu0 %v4575
  %7423 = vmatmul.bf16.gmra.mxu0 %v1179
  %v7424 = vpop.f32.mrf.mxu0
  %v7425 = vadd.f32 %v7412, %v7424
  %v7426 = vpop.f32.mrf.mxu0
  %7427 = vdwg.mxu0
  %7428 = vmatpush.bf16.msra.mxu0 %v4605
  %7429 = vmatpush.bf16.msra.mxu0 %v4603
  %7430 = vmatpush.bf16.msra.mxu0 %v4601
  %7431 = vmatpush.bf16.msra.mxu0 %v4599
  %7432 = vmatpush.bf16.msra.mxu0 %v4597
  %7433 = vmatpush.bf16.msra.mxu0 %v4595
  %7434 = vmatpush.bf16.msra.mxu0 %v4593
  %7435 = vmatpush.bf16.msra.mxu0 %v4591
  %7436 = vmatmul.bf16.gmra.mxu0 %v1180
  %v7437 = vpop.f32.mrf.mxu0
  %v7438 = vadd.f32 %v7425, %v7437
  %v7439 = vpop.f32.mrf.mxu0
  %7440 = vdwg.mxu0
  %7441 = vmatpush.bf16.msra.mxu0 %v4621
  %7442 = vmatpush.bf16.msra.mxu0 %v4619
  %7443 = vmatpush.bf16.msra.mxu0 %v4617
  %7444 = vmatpush.bf16.msra.mxu0 %v4615
  %7445 = vmatpush.bf16.msra.mxu0 %v4613
  %7446 = vmatpush.bf16.msra.mxu0 %v4611
  %7447 = vmatpush.bf16.msra.mxu0 %v4609
  %7448 = vmatpush.bf16.msra.mxu0 %v4607
  %7449 = vmatmul.bf16.gmra.mxu0 %v1181
  %v7450 = vpop.f32.mrf.mxu0
  %v7451 = vadd.f32 %v7438, %v7450
  %v7452 = vpop.f32.mrf.mxu0
  %7453 = vdwg.mxu0
  %7454 = vmatpush.bf16.msra.mxu0 %v4637
  %7455 = vmatpush.bf16.msra.mxu0 %v4635
  %7456 = vmatpush.bf16.msra.mxu0 %v4633
  %7457 = vmatpush.bf16.msra.mxu0 %v4631
  %7458 = vmatpush.bf16.msra.mxu0 %v4629
  %7459 = vmatpush.bf16.msra.mxu0 %v4627
  %7460 = vmatpush.bf16.msra.mxu0 %v4625
  %7461 = vmatpush.bf16.msra.mxu0 %v4623
  %7462 = vmatmul.bf16.gmra.mxu0 %v1182
  %v7463 = vpop.f32.mrf.mxu0
  %v7464 = vadd.f32 %v7451, %v7463
  %v7465 = vpop.f32.mrf.mxu0
  %7466 = vdwg.mxu0
  %7467 = vmatpush.bf16.msra.mxu0 %v4653
  %7468 = vmatpush.bf16.msra.mxu0 %v4651
  %7469 = vmatpush.bf16.msra.mxu0 %v4649
  %7470 = vmatpush.bf16.msra.mxu0 %v4647
  %7471 = vmatpush.bf16.msra.mxu0 %v4645
  %7472 = vmatpush.bf16.msra.mxu0 %v4643
  %7473 = vmatpush.bf16.msra.mxu0 %v4641
  %7474 = vmatpush.bf16.msra.mxu0 %v4639
  %7475 = vmatmul.bf16.gmra.mxu0 %v1183
  %v7476 = vpop.f32.mrf.mxu0
  %v7477 = vadd.f32 %v7464, %v7476
  %v7478 = vpop.f32.mrf.mxu0
  %7479 = vdwg.mxu0
  %7480 = vmatpush.bf16.msra.mxu0 %v4669
  %7481 = vmatpush.bf16.msra.mxu0 %v4667
  %7482 = vmatpush.bf16.msra.mxu0 %v4665
  %7483 = vmatpush.bf16.msra.mxu0 %v4663
  %7484 = vmatpush.bf16.msra.mxu0 %v4661
  %7485 = vmatpush.bf16.msra.mxu0 %v4659
  %7486 = vmatpush.bf16.msra.mxu0 %v4657
  %7487 = vmatpush.bf16.msra.mxu0 %v4655
  %7488 = vmatmul.bf16.gmra.mxu0 %v1184
  %v7489 = vpop.f32.mrf.mxu0
  %v7490 = vadd.f32 %v7477, %v7489
  %v7491 = vpop.f32.mrf.mxu0
  %7492 = vdwg.mxu0
  %7493 = vmatpush.bf16.msra.mxu0 %v4685
  %7494 = vmatpush.bf16.msra.mxu0 %v4683
  %7495 = vmatpush.bf16.msra.mxu0 %v4681
  %7496 = vmatpush.bf16.msra.mxu0 %v4679
  %7497 = vmatpush.bf16.msra.mxu0 %v4677
  %7498 = vmatpush.bf16.msra.mxu0 %v4675
  %7499 = vmatpush.bf16.msra.mxu0 %v4673
  %7500 = vmatpush.bf16.msra.mxu0 %v4671
  %7501 = vmatmul.bf16.gmra.mxu0 %v1185
  %v7502 = vpop.f32.mrf.mxu0
  %v7503 = vadd.f32 %v7490, %v7502
  %v7504 = vpop.f32.mrf.mxu0
  %7505 = vdwg.mxu0
  %7506 = vmatpush.bf16.msra.mxu0 %v4701
  %7507 = vmatpush.bf16.msra.mxu0 %v4699
  %7508 = vmatpush.bf16.msra.mxu0 %v4697
  %7509 = vmatpush.bf16.msra.mxu0 %v4695
  %7510 = vmatpush.bf16.msra.mxu0 %v4693
  %7511 = vmatpush.bf16.msra.mxu0 %v4691
  %7512 = vmatpush.bf16.msra.mxu0 %v4689
  %7513 = vmatpush.bf16.msra.mxu0 %v4687
  %7514 = vmatmul.bf16.gmra.mxu0 %v1186
  %v7515 = vpop.f32.mrf.mxu0
  %v7516 = vadd.f32 %v7503, %v7515
  %v7517 = vpop.f32.mrf.mxu0
  %7518 = vdwg.mxu0
  %7519 = vmatpush.bf16.msra.mxu0 %v4717
  %7520 = vmatpush.bf16.msra.mxu0 %v4715
  %7521 = vmatpush.bf16.msra.mxu0 %v4713
  %7522 = vmatpush.bf16.msra.mxu0 %v4711
  %7523 = vmatpush.bf16.msra.mxu0 %v4709
  %7524 = vmatpush.bf16.msra.mxu0 %v4707
  %7525 = vmatpush.bf16.msra.mxu0 %v4705
  %7526 = vmatpush.bf16.msra.mxu0 %v4703
  %7527 = vmatmul.bf16.gmra.mxu0 %v1187
  %v7528 = vpop.f32.mrf.mxu0
  %v7529 = vadd.f32 %v7516, %v7528
  %v7530 = vpop.f32.mrf.mxu0
  %7531 = vdwg.mxu0
  %7532 = vmatpush.bf16.msra.mxu0 %v4733
  %7533 = vmatpush.bf16.msra.mxu0 %v4731
  %7534 = vmatpush.bf16.msra.mxu0 %v4729
  %7535 = vmatpush.bf16.msra.mxu0 %v4727
  %7536 = vmatpush.bf16.msra.mxu0 %v4725
  %7537 = vmatpush.bf16.msra.mxu0 %v4723
  %7538 = vmatpush.bf16.msra.mxu0 %v4721
  %7539 = vmatpush.bf16.msra.mxu0 %v4719
  %7540 = vmatmul.bf16.gmra.mxu0 %v1188
  %v7541 = vpop.f32.mrf.mxu0
  %v7542 = vadd.f32 %v7529, %v7541
  %v7543 = vpop.f32.mrf.mxu0
  %7544 = vdwg.mxu0
  %7545 = vmatpush.bf16.msra.mxu0 %v4749
  %7546 = vmatpush.bf16.msra.mxu0 %v4747
  %7547 = vmatpush.bf16.msra.mxu0 %v4745
  %7548 = vmatpush.bf16.msra.mxu0 %v4743
  %7549 = vmatpush.bf16.msra.mxu0 %v4741
  %7550 = vmatpush.bf16.msra.mxu0 %v4739
  %7551 = vmatpush.bf16.msra.mxu0 %v4737
  %7552 = vmatpush.bf16.msra.mxu0 %v4735
  %7553 = vmatmul.bf16.gmra.mxu0 %v1189
  %v7554 = vpop.f32.mrf.mxu0
  %v7555 = vadd.f32 %v7542, %v7554
  %v7556 = vpop.f32.mrf.mxu0
  %7557 = vdwg.mxu0
  %7558 = vmatpush.bf16.msra.mxu0 %v4765
  %7559 = vmatpush.bf16.msra.mxu0 %v4763
  %7560 = vmatpush.bf16.msra.mxu0 %v4761
  %7561 = vmatpush.bf16.msra.mxu0 %v4759
  %7562 = vmatpush.bf16.msra.mxu0 %v4757
  %7563 = vmatpush.bf16.msra.mxu0 %v4755
  %7564 = vmatpush.bf16.msra.mxu0 %v4753
  %7565 = vmatpush.bf16.msra.mxu0 %v4751
  %7566 = vmatmul.bf16.gmra.mxu0 %v1190
  %v7567 = vpop.f32.mrf.mxu0
  %v7568 = vadd.f32 %v7555, %v7567
  %v7569 = vpop.f32.mrf.mxu0
  %7570 = vdwg.mxu0
  %7571 = vmatpush.bf16.msra.mxu0 %v4781
  %7572 = vmatpush.bf16.msra.mxu0 %v4779
  %7573 = vmatpush.bf16.msra.mxu0 %v4777
  %7574 = vmatpush.bf16.msra.mxu0 %v4775
  %7575 = vmatpush.bf16.msra.mxu0 %v4773
  %7576 = vmatpush.bf16.msra.mxu0 %v4771
  %7577 = vmatpush.bf16.msra.mxu0 %v4769
  %7578 = vmatpush.bf16.msra.mxu0 %v4767
  %7579 = vmatmul.bf16.gmra.mxu0 %v1191
  %v7580 = vpop.f32.mrf.mxu0
  %v7581 = vadd.f32 %v7568, %v7580
  %v7582 = vpop.f32.mrf.mxu0
  %7583 = vdwg.mxu0
  %7584 = vmatpush.bf16.msra.mxu0 %v4797
  %7585 = vmatpush.bf16.msra.mxu0 %v4795
  %7586 = vmatpush.bf16.msra.mxu0 %v4793
  %7587 = vmatpush.bf16.msra.mxu0 %v4791
  %7588 = vmatpush.bf16.msra.mxu0 %v4789
  %7589 = vmatpush.bf16.msra.mxu0 %v4787
  %7590 = vmatpush.bf16.msra.mxu0 %v4785
  %7591 = vmatpush.bf16.msra.mxu0 %v4783
  %7592 = vmatmul.bf16.gmra.mxu0 %v1192
  %v7593 = vpop.f32.mrf.mxu0
  %v7594 = vadd.f32 %v7581, %v7593
  %v7595 = vpop.f32.mrf.mxu0
  %7596 = vdwg.mxu0
  %7597 = vmatpush.bf16.msra.mxu0 %v4813
  %7598 = vmatpush.bf16.msra.mxu0 %v4811
  %7599 = vmatpush.bf16.msra.mxu0 %v4809
  %7600 = vmatpush.bf16.msra.mxu0 %v4807
  %7601 = vmatpush.bf16.msra.mxu0 %v4805
  %7602 = vmatpush.bf16.msra.mxu0 %v4803
  %7603 = vmatpush.bf16.msra.mxu0 %v4801
  %7604 = vmatpush.bf16.msra.mxu0 %v4799
  %7605 = vmatmul.bf16.gmra.mxu0 %v1193
  %v7606 = vpop.f32.mrf.mxu0
  %v7607 = vadd.f32 %v7594, %v7606
  %v7608 = vpop.f32.mrf.mxu0
  %7609 = vdwg.mxu0
  %7610 = vmatpush.bf16.msra.mxu0 %v4829
  %7611 = vmatpush.bf16.msra.mxu0 %v4827
  %7612 = vmatpush.bf16.msra.mxu0 %v4825
  %7613 = vmatpush.bf16.msra.mxu0 %v4823
  %7614 = vmatpush.bf16.msra.mxu0 %v4821
  %7615 = vmatpush.bf16.msra.mxu0 %v4819
  %7616 = vmatpush.bf16.msra.mxu0 %v4817
  %7617 = vmatpush.bf16.msra.mxu0 %v4815
  %7618 = vmatmul.bf16.gmra.mxu0 %v1194
  %v7619 = vpop.f32.mrf.mxu0
  %v7620 = vadd.f32 %v7607, %v7619
  %v7621 = vpop.f32.mrf.mxu0
  %7622 = vdwg.mxu0
  %7623 = vmatpush.bf16.msra.mxu0 %v4845
  %7624 = vmatpush.bf16.msra.mxu0 %v4843
  %7625 = vmatpush.bf16.msra.mxu0 %v4841
  %7626 = vmatpush.bf16.msra.mxu0 %v4839
  %7627 = vmatpush.bf16.msra.mxu0 %v4837
  %7628 = vmatpush.bf16.msra.mxu0 %v4835
  %7629 = vmatpush.bf16.msra.mxu0 %v4833
  %7630 = vmatpush.bf16.msra.mxu0 %v4831
  %7631 = vmatmul.bf16.gmra.mxu0 %v1195
  %v7632 = vpop.f32.mrf.mxu0
  %v7633 = vadd.f32 %v7620, %v7632
  %v7634 = vpop.f32.mrf.mxu0
  %7635 = vdwg.mxu0
  %7636 = vmatpush.bf16.msra.mxu0 %v4861
  %7637 = vmatpush.bf16.msra.mxu0 %v4859
  %7638 = vmatpush.bf16.msra.mxu0 %v4857
  %7639 = vmatpush.bf16.msra.mxu0 %v4855
  %7640 = vmatpush.bf16.msra.mxu0 %v4853
  %7641 = vmatpush.bf16.msra.mxu0 %v4851
  %7642 = vmatpush.bf16.msra.mxu0 %v4849
  %7643 = vmatpush.bf16.msra.mxu0 %v4847
  %7644 = vmatmul.bf16.gmra.mxu0 %v1196
  %v7645 = vpop.f32.mrf.mxu0
  %v7646 = vadd.f32 %v7633, %v7645
  %v7647 = vpop.f32.mrf.mxu0
  %7648 = vdwg.mxu0
  %7649 = vmatpush.bf16.msra.mxu0 %v4877
  %7650 = vmatpush.bf16.msra.mxu0 %v4875
  %7651 = vmatpush.bf16.msra.mxu0 %v4873
  %7652 = vmatpush.bf16.msra.mxu0 %v4871
  %7653 = vmatpush.bf16.msra.mxu0 %v4869
  %7654 = vmatpush.bf16.msra.mxu0 %v4867
  %7655 = vmatpush.bf16.msra.mxu0 %v4865
  %7656 = vmatpush.bf16.msra.mxu0 %v4863
  %7657 = vmatmul.bf16.gmra.mxu0 %v1197
  %v7658 = vpop.f32.mrf.mxu0
  %v7659 = vadd.f32 %v7646, %v7658
  %v7660 = vpop.f32.mrf.mxu0
  %7661 = vdwg.mxu0
  %7662 = vmatpush.bf16.msra.mxu0 %v4893
  %7663 = vmatpush.bf16.msra.mxu0 %v4891
  %7664 = vmatpush.bf16.msra.mxu0 %v4889
  %7665 = vmatpush.bf16.msra.mxu0 %v4887
  %7666 = vmatpush.bf16.msra.mxu0 %v4885
  %7667 = vmatpush.bf16.msra.mxu0 %v4883
  %7668 = vmatpush.bf16.msra.mxu0 %v4881
  %7669 = vmatpush.bf16.msra.mxu0 %v4879
  %7670 = vmatmul.bf16.gmra.mxu0 %v1198
  %v7671 = vpop.f32.mrf.mxu0
  %v7672 = vadd.f32 %v7659, %v7671
  %v7673 = vpop.f32.mrf.mxu0
  %7674 = vdwg.mxu0
  %7675 = vmatpush.bf16.msra.mxu0 %v4909
  %7676 = vmatpush.bf16.msra.mxu0 %v4907
  %7677 = vmatpush.bf16.msra.mxu0 %v4905
  %7678 = vmatpush.bf16.msra.mxu0 %v4903
  %7679 = vmatpush.bf16.msra.mxu0 %v4901
  %7680 = vmatpush.bf16.msra.mxu0 %v4899
  %7681 = vmatpush.bf16.msra.mxu0 %v4897
  %7682 = vmatpush.bf16.msra.mxu0 %v4895
  %7683 = vmatmul.bf16.gmra.mxu0 %v1199
  %v7684 = vpop.f32.mrf.mxu0
  %v7685 = vadd.f32 %v7672, %v7684
  %v7686 = vpop.f32.mrf.mxu0
  %7687 = vdwg.mxu0
  %7688 = vmatpush.bf16.msra.mxu0 %v4925
  %7689 = vmatpush.bf16.msra.mxu0 %v4923
  %7690 = vmatpush.bf16.msra.mxu0 %v4921
  %7691 = vmatpush.bf16.msra.mxu0 %v4919
  %7692 = vmatpush.bf16.msra.mxu0 %v4917
  %7693 = vmatpush.bf16.msra.mxu0 %v4915
  %7694 = vmatpush.bf16.msra.mxu0 %v4913
  %7695 = vmatpush.bf16.msra.mxu0 %v4911
  %7696 = vmatmul.bf16.gmra.mxu0 %v1200
  %v7697 = vpop.f32.mrf.mxu0
  %v7698 = vadd.f32 %v7685, %v7697
  %v7699 = vpop.f32.mrf.mxu0
  %7700 = vdwg.mxu0
  %7701 = vmatpush.bf16.msra.mxu0 %v4941
  %7702 = vmatpush.bf16.msra.mxu0 %v4939
  %7703 = vmatpush.bf16.msra.mxu0 %v4937
  %7704 = vmatpush.bf16.msra.mxu0 %v4935
  %7705 = vmatpush.bf16.msra.mxu0 %v4933
  %7706 = vmatpush.bf16.msra.mxu0 %v4931
  %7707 = vmatpush.bf16.msra.mxu0 %v4929
  %7708 = vmatpush.bf16.msra.mxu0 %v4927
  %7709 = vmatmul.bf16.gmra.mxu0 %v1201
  %v7710 = vpop.f32.mrf.mxu0
  %v7711 = vadd.f32 %v7698, %v7710
  %v7712 = vpop.f32.mrf.mxu0
  %7713 = vdwg.mxu0
  %7714 = vmatpush.bf16.msra.mxu0 %v4957
  %7715 = vmatpush.bf16.msra.mxu0 %v4955
  %7716 = vmatpush.bf16.msra.mxu0 %v4953
  %7717 = vmatpush.bf16.msra.mxu0 %v4951
  %7718 = vmatpush.bf16.msra.mxu0 %v4949
  %7719 = vmatpush.bf16.msra.mxu0 %v4947
  %7720 = vmatpush.bf16.msra.mxu0 %v4945
  %7721 = vmatpush.bf16.msra.mxu0 %v4943
  %7722 = vmatmul.bf16.gmra.mxu0 %v1202
  %v7723 = vpop.f32.mrf.mxu0
  %v7724 = vadd.f32 %v7711, %v7723
  %v7725 = vpop.f32.mrf.mxu0
  %7726 = vdwg.mxu0
  %7727 = vmatpush.bf16.msra.mxu0 %v4973
  %7728 = vmatpush.bf16.msra.mxu0 %v4971
  %7729 = vmatpush.bf16.msra.mxu0 %v4969
  %7730 = vmatpush.bf16.msra.mxu0 %v4967
  %7731 = vmatpush.bf16.msra.mxu0 %v4965
  %7732 = vmatpush.bf16.msra.mxu0 %v4963
  %7733 = vmatpush.bf16.msra.mxu0 %v4961
  %7734 = vmatpush.bf16.msra.mxu0 %v4959
  %7735 = vmatmul.bf16.gmra.mxu0 %v1203
  %v7736 = vpop.f32.mrf.mxu0
  %v7737 = vadd.f32 %v7724, %v7736
  %v7738 = vpop.f32.mrf.mxu0
  %7739 = vdwg.mxu0
  %7740 = vmatpush.bf16.msra.mxu0 %v4989
  %7741 = vmatpush.bf16.msra.mxu0 %v4987
  %7742 = vmatpush.bf16.msra.mxu0 %v4985
  %7743 = vmatpush.bf16.msra.mxu0 %v4983
  %7744 = vmatpush.bf16.msra.mxu0 %v4981
  %7745 = vmatpush.bf16.msra.mxu0 %v4979
  %7746 = vmatpush.bf16.msra.mxu0 %v4977
  %7747 = vmatpush.bf16.msra.mxu0 %v4975
  %7748 = vmatmul.bf16.gmra.mxu0 %v1204
  %v7749 = vpop.f32.mrf.mxu0
  %v7750 = vadd.f32 %v7737, %v7749
  %v7751 = vpop.f32.mrf.mxu0
  %7752 = vdwg.mxu0
  %7753 = vmatpush.bf16.msra.mxu0 %v5005
  %7754 = vmatpush.bf16.msra.mxu0 %v5003
  %7755 = vmatpush.bf16.msra.mxu0 %v5001
  %7756 = vmatpush.bf16.msra.mxu0 %v4999
  %7757 = vmatpush.bf16.msra.mxu0 %v4997
  %7758 = vmatpush.bf16.msra.mxu0 %v4995
  %7759 = vmatpush.bf16.msra.mxu0 %v4993
  %7760 = vmatpush.bf16.msra.mxu0 %v4991
  %7761 = vmatmul.bf16.gmra.mxu0 %v1205
  %v7762 = vpop.f32.mrf.mxu0
  %v7763 = vadd.f32 %v7750, %v7762
  %v7764 = vpop.f32.mrf.mxu0
  %7765 = vdwg.mxu0
  %7766 = vmatpush.bf16.msra.mxu0 %v5021
  %7767 = vmatpush.bf16.msra.mxu0 %v5019
  %7768 = vmatpush.bf16.msra.mxu0 %v5017
  %7769 = vmatpush.bf16.msra.mxu0 %v5015
  %7770 = vmatpush.bf16.msra.mxu0 %v5013
  %7771 = vmatpush.bf16.msra.mxu0 %v5011
  %7772 = vmatpush.bf16.msra.mxu0 %v5009
  %7773 = vmatpush.bf16.msra.mxu0 %v5007
  %7774 = vmatmul.bf16.gmra.mxu0 %v1206
  %v7775 = vpop.f32.mrf.mxu0
  %v7776 = vadd.f32 %v7763, %v7775
  %v7777 = vpop.f32.mrf.mxu0
  %7778 = vdwg.mxu0
  %7779 = vmatpush.bf16.msra.mxu0 %v5037
  %7780 = vmatpush.bf16.msra.mxu0 %v5035
  %7781 = vmatpush.bf16.msra.mxu0 %v5033
  %7782 = vmatpush.bf16.msra.mxu0 %v5031
  %7783 = vmatpush.bf16.msra.mxu0 %v5029
  %7784 = vmatpush.bf16.msra.mxu0 %v5027
  %7785 = vmatpush.bf16.msra.mxu0 %v5025
  %7786 = vmatpush.bf16.msra.mxu0 %v5023
  %7787 = vmatmul.bf16.gmra.mxu0 %v1207
  %v7788 = vpop.f32.mrf.mxu0
  %v7789 = vadd.f32 %v7776, %v7788
  %v7790 = vpop.f32.mrf.mxu0
  %7791 = vdwg.mxu0
  %7792 = vmatpush.bf16.msra.mxu0 %v5053
  %7793 = vmatpush.bf16.msra.mxu0 %v5051
  %7794 = vmatpush.bf16.msra.mxu0 %v5049
  %7795 = vmatpush.bf16.msra.mxu0 %v5047
  %7796 = vmatpush.bf16.msra.mxu0 %v5045
  %7797 = vmatpush.bf16.msra.mxu0 %v5043
  %7798 = vmatpush.bf16.msra.mxu0 %v5041
  %7799 = vmatpush.bf16.msra.mxu0 %v5039
  %7800 = vmatmul.bf16.gmra.mxu0 %v1208
  %v7801 = vpop.f32.mrf.mxu0
  %v7802 = vadd.f32 %v7789, %v7801
  %v7803 = vpop.f32.mrf.mxu0
  %7804 = vdwg.mxu0
  %7805 = vmatpush.bf16.msra.mxu0 %v5069
  %7806 = vmatpush.bf16.msra.mxu0 %v5067
  %7807 = vmatpush.bf16.msra.mxu0 %v5065
  %7808 = vmatpush.bf16.msra.mxu0 %v5063
  %7809 = vmatpush.bf16.msra.mxu0 %v5061
  %7810 = vmatpush.bf16.msra.mxu0 %v5059
  %7811 = vmatpush.bf16.msra.mxu0 %v5057
  %7812 = vmatpush.bf16.msra.mxu0 %v5055
  %7813 = vmatmul.bf16.gmra.mxu0 %v1209
  %v7814 = vpop.f32.mrf.mxu0
  %v7815 = vadd.f32 %v7802, %v7814
  %v7816 = vpop.f32.mrf.mxu0
  %7817 = vdwg.mxu0
  %7818 = vmatpush.bf16.msra.mxu0 %v5085
  %7819 = vmatpush.bf16.msra.mxu0 %v5083
  %7820 = vmatpush.bf16.msra.mxu0 %v5081
  %7821 = vmatpush.bf16.msra.mxu0 %v5079
  %7822 = vmatpush.bf16.msra.mxu0 %v5077
  %7823 = vmatpush.bf16.msra.mxu0 %v5075
  %7824 = vmatpush.bf16.msra.mxu0 %v5073
  %7825 = vmatpush.bf16.msra.mxu0 %v5071
  %7826 = vmatmul.bf16.gmra.mxu0 %v1210
  %v7827 = vpop.f32.mrf.mxu0
  %v7828 = vadd.f32 %v7815, %v7827
  %v7829 = vpop.f32.mrf.mxu0
  %7830 = vdwg.mxu0
  %7831 = vmatpush.bf16.msra.mxu0 %v5101
  %7832 = vmatpush.bf16.msra.mxu0 %v5099
  %7833 = vmatpush.bf16.msra.mxu0 %v5097
  %7834 = vmatpush.bf16.msra.mxu0 %v5095
  %7835 = vmatpush.bf16.msra.mxu0 %v5093
  %7836 = vmatpush.bf16.msra.mxu0 %v5091
  %7837 = vmatpush.bf16.msra.mxu0 %v5089
  %7838 = vmatpush.bf16.msra.mxu0 %v5087
  %7839 = vmatmul.bf16.gmra.mxu0 %v1211
  %v7840 = vpop.f32.mrf.mxu0
  %v7841 = vadd.f32 %v7828, %v7840
  %v7842 = vpop.f32.mrf.mxu0
  %7843 = vdwg.mxu0
  %7844 = vmatpush.bf16.msra.mxu0 %v5117
  %7845 = vmatpush.bf16.msra.mxu0 %v5115
  %7846 = vmatpush.bf16.msra.mxu0 %v5113
  %7847 = vmatpush.bf16.msra.mxu0 %v5111
  %7848 = vmatpush.bf16.msra.mxu0 %v5109
  %7849 = vmatpush.bf16.msra.mxu0 %v5107
  %7850 = vmatpush.bf16.msra.mxu0 %v5105
  %7851 = vmatpush.bf16.msra.mxu0 %v5103
  %7852 = vmatmul.bf16.gmra.mxu0 %v1212
  %v7853 = vpop.f32.mrf.mxu0
  %v7854 = vadd.f32 %v7841, %v7853
  %v7855 = vpop.f32.mrf.mxu0
  %7856 = vdwg.mxu0
  %7857 = vmatpush.bf16.msra.mxu0 %v5133
  %7858 = vmatpush.bf16.msra.mxu0 %v5131
  %7859 = vmatpush.bf16.msra.mxu0 %v5129
  %7860 = vmatpush.bf16.msra.mxu0 %v5127
  %7861 = vmatpush.bf16.msra.mxu0 %v5125
  %7862 = vmatpush.bf16.msra.mxu0 %v5123
  %7863 = vmatpush.bf16.msra.mxu0 %v5121
  %7864 = vmatpush.bf16.msra.mxu0 %v5119
  %7865 = vmatmul.bf16.gmra.mxu0 %v1213
  %v7866 = vpop.f32.mrf.mxu0
  %v7867 = vadd.f32 %v7854, %v7866
  %v7868 = vpop.f32.mrf.mxu0
  %7869 = vdwg.mxu0
  %7870 = vmatpush.bf16.msra.mxu0 %v5149
  %7871 = vmatpush.bf16.msra.mxu0 %v5147
  %7872 = vmatpush.bf16.msra.mxu0 %v5145
  %7873 = vmatpush.bf16.msra.mxu0 %v5143
  %7874 = vmatpush.bf16.msra.mxu0 %v5141
  %7875 = vmatpush.bf16.msra.mxu0 %v5139
  %7876 = vmatpush.bf16.msra.mxu0 %v5137
  %7877 = vmatpush.bf16.msra.mxu0 %v5135
  %7878 = vmatmul.bf16.gmra.mxu0 %v1214
  %v7879 = vpop.f32.mrf.mxu0
  %v7880 = vadd.f32 %v7867, %v7879
  %v7881 = vpop.f32.mrf.mxu0
  %7882 = vdwg.mxu0
  %7883 = vmatpush.bf16.msra.mxu0 %v5165
  %7884 = vmatpush.bf16.msra.mxu0 %v5163
  %7885 = vmatpush.bf16.msra.mxu0 %v5161
  %7886 = vmatpush.bf16.msra.mxu0 %v5159
  %7887 = vmatpush.bf16.msra.mxu0 %v5157
  %7888 = vmatpush.bf16.msra.mxu0 %v5155
  %7889 = vmatpush.bf16.msra.mxu0 %v5153
  %7890 = vmatpush.bf16.msra.mxu0 %v5151
  %7891 = vmatmul.bf16.gmra.mxu0 %v1215
  %v7892 = vpop.f32.mrf.mxu0
  %v7893 = vadd.f32 %v7880, %v7892
  %v7894 = vpop.f32.mrf.mxu0
  %7895 = vdwg.mxu0
  %7896 = vmatpush.bf16.msra.mxu0 %v5181
  %7897 = vmatpush.bf16.msra.mxu0 %v5179
  %7898 = vmatpush.bf16.msra.mxu0 %v5177
  %7899 = vmatpush.bf16.msra.mxu0 %v5175
  %7900 = vmatpush.bf16.msra.mxu0 %v5173
  %7901 = vmatpush.bf16.msra.mxu0 %v5171
  %7902 = vmatpush.bf16.msra.mxu0 %v5169
  %7903 = vmatpush.bf16.msra.mxu0 %v5167
  %7904 = vmatmul.bf16.gmra.mxu0 %v1216
  %v7905 = vpop.f32.mrf.mxu0
  %v7906 = vadd.f32 %v7893, %v7905
  %v7907 = vpop.f32.mrf.mxu0
  %7908 = vdwg.mxu0
  %7909 = vmatpush.bf16.msra.mxu0 %v5197
  %7910 = vmatpush.bf16.msra.mxu0 %v5195
  %7911 = vmatpush.bf16.msra.mxu0 %v5193
  %7912 = vmatpush.bf16.msra.mxu0 %v5191
  %7913 = vmatpush.bf16.msra.mxu0 %v5189
  %7914 = vmatpush.bf16.msra.mxu0 %v5187
  %7915 = vmatpush.bf16.msra.mxu0 %v5185
  %7916 = vmatpush.bf16.msra.mxu0 %v5183
  %7917 = vmatmul.bf16.gmra.mxu0 %v1217
  %v7918 = vpop.f32.mrf.mxu0
  %v7919 = vadd.f32 %v7906, %v7918
  %v7920 = vpop.f32.mrf.mxu0
  %7921 = vdwg.mxu0
  %7922 = vmatpush.bf16.msra.mxu0 %v5213
  %7923 = vmatpush.bf16.msra.mxu0 %v5211
  %7924 = vmatpush.bf16.msra.mxu0 %v5209
  %7925 = vmatpush.bf16.msra.mxu0 %v5207
  %7926 = vmatpush.bf16.msra.mxu0 %v5205
  %7927 = vmatpush.bf16.msra.mxu0 %v5203
  %7928 = vmatpush.bf16.msra.mxu0 %v5201
  %7929 = vmatpush.bf16.msra.mxu0 %v5199
  %7930 = vmatmul.bf16.gmra.mxu0 %v1218
  %v7931 = vpop.f32.mrf.mxu0
  %v7932 = vadd.f32 %v7919, %v7931
  %v7933 = vpop.f32.mrf.mxu0
  %7934 = vdwg.mxu0
  %7935 = vmatpush.bf16.msra.mxu0 %v5229
  %7936 = vmatpush.bf16.msra.mxu0 %v5227
  %7937 = vmatpush.bf16.msra.mxu0 %v5225
  %7938 = vmatpush.bf16.msra.mxu0 %v5223
  %7939 = vmatpush.bf16.msra.mxu0 %v5221
  %7940 = vmatpush.bf16.msra.mxu0 %v5219
  %7941 = vmatpush.bf16.msra.mxu0 %v5217
  %7942 = vmatpush.bf16.msra.mxu0 %v5215
  %7943 = vmatmul.bf16.gmra.mxu0 %v1219
  %v7944 = vpop.f32.mrf.mxu0
  %v7945 = vadd.f32 %v7932, %v7944
  %v7946 = vpop.f32.mrf.mxu0
  %7947 = vdwg.mxu0
  %7948 = vmatpush.bf16.msra.mxu0 %v5245
  %7949 = vmatpush.bf16.msra.mxu0 %v5243
  %7950 = vmatpush.bf16.msra.mxu0 %v5241
  %7951 = vmatpush.bf16.msra.mxu0 %v5239
  %7952 = vmatpush.bf16.msra.mxu0 %v5237
  %7953 = vmatpush.bf16.msra.mxu0 %v5235
  %7954 = vmatpush.bf16.msra.mxu0 %v5233
  %7955 = vmatpush.bf16.msra.mxu0 %v5231
  %7956 = vmatmul.bf16.gmra.mxu0 %v1220
  %v7957 = vpop.f32.mrf.mxu0
  %v7958 = vadd.f32 %v7945, %v7957
  %v7959 = vpop.f32.mrf.mxu0
  %7960 = vdwg.mxu0
  %7961 = vmatpush.bf16.msra.mxu0 %v5261
  %7962 = vmatpush.bf16.msra.mxu0 %v5259
  %7963 = vmatpush.bf16.msra.mxu0 %v5257
  %7964 = vmatpush.bf16.msra.mxu0 %v5255
  %7965 = vmatpush.bf16.msra.mxu0 %v5253
  %7966 = vmatpush.bf16.msra.mxu0 %v5251
  %7967 = vmatpush.bf16.msra.mxu0 %v5249
  %7968 = vmatpush.bf16.msra.mxu0 %v5247
  %7969 = vmatmul.bf16.gmra.mxu0 %v1221
  %v7970 = vpop.f32.mrf.mxu0
  %v7971 = vadd.f32 %v7958, %v7970
  %v7972 = vpop.f32.mrf.mxu0
  %7973 = vdwg.mxu0
  %7974 = vmatpush.bf16.msra.mxu0 %v5277
  %7975 = vmatpush.bf16.msra.mxu0 %v5275
  %7976 = vmatpush.bf16.msra.mxu0 %v5273
  %7977 = vmatpush.bf16.msra.mxu0 %v5271
  %7978 = vmatpush.bf16.msra.mxu0 %v5269
  %7979 = vmatpush.bf16.msra.mxu0 %v5267
  %7980 = vmatpush.bf16.msra.mxu0 %v5265
  %7981 = vmatpush.bf16.msra.mxu0 %v5263
  %7982 = vmatmul.bf16.gmra.mxu0 %v1222
  %v7983 = vpop.f32.mrf.mxu0
  %v7984 = vadd.f32 %v7971, %v7983
  %v7985 = vpop.f32.mrf.mxu0
  %7986 = vdwg.mxu0
  %7987 = vmatpush.bf16.msra.mxu0 %v5293
  %7988 = vmatpush.bf16.msra.mxu0 %v5291
  %7989 = vmatpush.bf16.msra.mxu0 %v5289
  %7990 = vmatpush.bf16.msra.mxu0 %v5287
  %7991 = vmatpush.bf16.msra.mxu0 %v5285
  %7992 = vmatpush.bf16.msra.mxu0 %v5283
  %7993 = vmatpush.bf16.msra.mxu0 %v5281
  %7994 = vmatpush.bf16.msra.mxu0 %v5279
  %7995 = vmatmul.bf16.gmra.mxu0 %v1223
  %v7996 = vpop.f32.mrf.mxu0
  %v7997 = vadd.f32 %v7984, %v7996
  %v7998 = vpop.f32.mrf.mxu0
  %7999 = vdwg.mxu0
  %8000 = vmatpush.bf16.msra.mxu0 %v5309
  %8001 = vmatpush.bf16.msra.mxu0 %v5307
  %8002 = vmatpush.bf16.msra.mxu0 %v5305
  %8003 = vmatpush.bf16.msra.mxu0 %v5303
  %8004 = vmatpush.bf16.msra.mxu0 %v5301
  %8005 = vmatpush.bf16.msra.mxu0 %v5299
  %8006 = vmatpush.bf16.msra.mxu0 %v5297
  %8007 = vmatpush.bf16.msra.mxu0 %v5295
  %8008 = vmatmul.bf16.gmra.mxu0 %v1224
  %v8009 = vpop.f32.mrf.mxu0
  %v8010 = vadd.f32 %v7997, %v8009
  %v8011 = vpop.f32.mrf.mxu0
  %8012 = vdwg.mxu0
  %8013 = vmatpush.bf16.msra.mxu0 %v5325
  %8014 = vmatpush.bf16.msra.mxu0 %v5323
  %8015 = vmatpush.bf16.msra.mxu0 %v5321
  %8016 = vmatpush.bf16.msra.mxu0 %v5319
  %8017 = vmatpush.bf16.msra.mxu0 %v5317
  %8018 = vmatpush.bf16.msra.mxu0 %v5315
  %8019 = vmatpush.bf16.msra.mxu0 %v5313
  %8020 = vmatpush.bf16.msra.mxu0 %v5311
  %8021 = vmatmul.bf16.gmra.mxu0 %v1225
  %v8022 = vpop.f32.mrf.mxu0
  %v8023 = vadd.f32 %v8010, %v8022
  %v8024 = vpop.f32.mrf.mxu0
  %8025 = vdwg.mxu0
  %8026 = vmatpush.bf16.msra.mxu0 %v5341
  %8027 = vmatpush.bf16.msra.mxu0 %v5339
  %8028 = vmatpush.bf16.msra.mxu0 %v5337
  %8029 = vmatpush.bf16.msra.mxu0 %v5335
  %8030 = vmatpush.bf16.msra.mxu0 %v5333
  %8031 = vmatpush.bf16.msra.mxu0 %v5331
  %8032 = vmatpush.bf16.msra.mxu0 %v5329
  %8033 = vmatpush.bf16.msra.mxu0 %v5327
  %8034 = vmatmul.bf16.gmra.mxu0 %v1226
  %v8035 = vpop.f32.mrf.mxu0
  %v8036 = vadd.f32 %v8023, %v8035
  %v8037 = vpop.f32.mrf.mxu0
  %8038 = vdwg.mxu0
  %8039 = vmatpush.bf16.msra.mxu0 %v5357
  %8040 = vmatpush.bf16.msra.mxu0 %v5355
  %8041 = vmatpush.bf16.msra.mxu0 %v5353
  %8042 = vmatpush.bf16.msra.mxu0 %v5351
  %8043 = vmatpush.bf16.msra.mxu0 %v5349
  %8044 = vmatpush.bf16.msra.mxu0 %v5347
  %8045 = vmatpush.bf16.msra.mxu0 %v5345
  %8046 = vmatpush.bf16.msra.mxu0 %v5343
  %8047 = vmatmul.bf16.gmra.mxu0 %v1227
  %v8048 = vpop.f32.mrf.mxu0
  %v8049 = vadd.f32 %v8036, %v8048
  %v8050 = vpop.f32.mrf.mxu0
  %8051 = vdwg.mxu0
  %8052 = vmatpush.bf16.msra.mxu0 %v5373
  %8053 = vmatpush.bf16.msra.mxu0 %v5371
  %8054 = vmatpush.bf16.msra.mxu0 %v5369
  %8055 = vmatpush.bf16.msra.mxu0 %v5367
  %8056 = vmatpush.bf16.msra.mxu0 %v5365
  %8057 = vmatpush.bf16.msra.mxu0 %v5363
  %8058 = vmatpush.bf16.msra.mxu0 %v5361
  %8059 = vmatpush.bf16.msra.mxu0 %v5359
  %8060 = vmatmul.bf16.gmra.mxu0 %v1228
  %v8061 = vpop.f32.mrf.mxu0
  %v8062 = vadd.f32 %v8049, %v8061
  %v8063 = vpop.f32.mrf.mxu0
  %8064 = vdwg.mxu0
  %8065 = vmatpush.bf16.msra.mxu0 %v5389
  %8066 = vmatpush.bf16.msra.mxu0 %v5387
  %8067 = vmatpush.bf16.msra.mxu0 %v5385
  %8068 = vmatpush.bf16.msra.mxu0 %v5383
  %8069 = vmatpush.bf16.msra.mxu0 %v5381
  %8070 = vmatpush.bf16.msra.mxu0 %v5379
  %8071 = vmatpush.bf16.msra.mxu0 %v5377
  %8072 = vmatpush.bf16.msra.mxu0 %v5375
  %8073 = vmatmul.bf16.gmra.mxu0 %v1229
  %v8074 = vpop.f32.mrf.mxu0
  %v8075 = vadd.f32 %v8062, %v8074
  %v8076 = vpop.f32.mrf.mxu0
  %8077 = vdwg.mxu0
  %v8078 = vrot.slane %v7243, 4
  %v8079 = vadd.f32 %v7243, %v8078
  %v8080 = vrot.slane %v8079, 2
  %v8081 = vadd.f32 %v8079, %v8080
  %v8082 = vrot.slane %v8081, 1
  %v8083 = vadd.f32 %v8081, %v8082
  %v8084 = vrot.slane %v8075, 4
  %v8085 = vadd.f32 %v8075, %v8084
  %v8086 = vrot.slane %v8085, 2
  %v8087 = vadd.f32 %v8085, %v8086
  %v8088 = vrot.slane %v8087, 1
  %v8089 = vadd.f32 %v8087, %v8088
  %v8090 = vmul.f32 %v8083, 0.5
  %v8091 = vmul.f32 %v8089, 0.5
  %v8092 = vlaneseq
  %v8093 = vshrl.u32 %v8092, 7
  %vm8094 = vcmp.lt.s32.totalorder %v8093, 2
  %v8095 = vsub.f32 %v7243, %v8090
  %v8096 = vsub.f32 %v8075, %v8091
  %v8097 = vsel %vm8094, %v8095, 0.0
  %v8098 = vsel %vm8094, %v8096, 0.0
  %v8099 = vmul.f32 %v8097, %v8097
  %v8100 = vmul.f32 %v8098, %v8098
  %v8101 = vrot.slane %v8099, 4
  %v8102 = vadd.f32 %v8099, %v8101
  %v8103 = vrot.slane %v8102, 2
  %v8104 = vadd.f32 %v8102, %v8103
  %v8105 = vrot.slane %v8104, 1
  %v8106 = vadd.f32 %v8104, %v8105
  %v8107 = vrot.slane %v8100, 4
  %v8108 = vadd.f32 %v8100, %v8107
  %v8109 = vrot.slane %v8108, 2
  %v8110 = vadd.f32 %v8108, %v8109
  %v8111 = vrot.slane %v8110, 1
  %v8112 = vadd.f32 %v8110, %v8111
  %v8113 = vmul.f32 %v8106, 0.5
  %v8114 = vmul.f32 %v8112, 0.5
  %v8115 = vadd.f32 %v8113, 1e-05
  %v8116 = vadd.f32 %v8114, 1e-05
  %v8117 = vrsqrt.pop %v8115
  %v8118 = vmul.f32 %v8117, %v8115
  %v8119 = vmul.f32 %v8118, %v8117
  %v8120 = vmul.f32 0.5, %v8119
  %v8121 = vsub.f32 1.5, %v8120
  %v8122 = vmul.f32 %v8117, %v8121
  %vm8123 = vweird.f32 %v8115
  %vm8124 = vweird.f32 %v8117
  %vm8125 = vmor %vm8123, %vm8124
  %v8126 = vsel %vm8125, %v8117, %v8122
  %v8127 = vrsqrt.pop %v8116
  %v8128 = vmul.f32 %v8127, %v8116
  %v8129 = vmul.f32 %v8128, %v8127
  %v8130 = vmul.f32 0.5, %v8129
  %v8131 = vsub.f32 1.5, %v8130
  %v8132 = vmul.f32 %v8127, %v8131
  %vm8133 = vweird.f32 %v8116
  %vm8134 = vweird.f32 %v8127
  %vm8135 = vmor %vm8133, %vm8134
  %v8136 = vsel %vm8135, %v8127, %v8132
  %v8137 = vmul.f32 %v8095, %v8126
  %v8138 = vmul.f32 %v8096, %v8136
  %vm8139 = vcmp.ge.f32.partialorder %v8137, 0.0
  %vm8140 = vcmp.ge.f32.partialorder %v8138, 0.0
  %v8141 = vmul.f32 %v8137, 0.2
  %v8142 = vmul.f32 %v8138, 0.2
  %v8143 = vsel %vm8139, %v8137, %v8141
  %v8144 = vsel %vm8140, %v8138, %v8142
  %v8145 = vpack.c.bf16 %v8143, %v8143
  %v8146 = vpack.c.bf16 %v8144, %v8144
  %v8147 = vld [vmem:[%s2] sm:$0xf]
  %v8148 = vld [vmem:[%s2 + $0x4] sm:$0xf]
  %v8149 = vld [vmem:[%s2 + $0x8] sm:$0xf]
  %v8150 = vld [vmem:[%s2 + $0xc] sm:$0xf]
  %v8151 = vld [vmem:[%s2 + $0x10] sm:$0xf]
  %v8152 = vld [vmem:[%s2 + $0x14] sm:$0xf]
  %v8153 = vld [vmem:[%s2 + $0x18] sm:$0xf]
  %v8154 = vld [vmem:[%s2 + $0x1c] sm:$0xf]
  %v8155 = vld [vmem:[%s2 + $0x20] sm:$0xf]
  %v8156 = vld [vmem:[%s2 + $0x24] sm:$0xf]
  %v8157 = vld [vmem:[%s2 + $0x28] sm:$0xf]
  %v8158 = vld [vmem:[%s2 + $0x2c] sm:$0xf]
  %v8159 = vld [vmem:[%s2 + $0x30] sm:$0xf]
  %v8160 = vld [vmem:[%s2 + $0x34] sm:$0xf]
  %v8161 = vld [vmem:[%s2 + $0x38] sm:$0xf]
  %v8162 = vld [vmem:[%s2 + $0x3c] sm:$0xf]
  %v8163 = vld [vmem:[%s2 + $0x40] sm:$0xf]
  %v8164 = vld [vmem:[%s2 + $0x44] sm:$0xf]
  %v8165 = vld [vmem:[%s2 + $0x48] sm:$0xf]
  %v8166 = vld [vmem:[%s2 + $0x4c] sm:$0xf]
  %v8167 = vld [vmem:[%s2 + $0x50] sm:$0xf]
  %v8168 = vld [vmem:[%s2 + $0x54] sm:$0xf]
  %v8169 = vld [vmem:[%s2 + $0x58] sm:$0xf]
  %v8170 = vld [vmem:[%s2 + $0x5c] sm:$0xf]
  %v8171 = vld [vmem:[%s2 + $0x60] sm:$0xf]
  %v8172 = vld [vmem:[%s2 + $0x64] sm:$0xf]
  %v8173 = vld [vmem:[%s2 + $0x68] sm:$0xf]
  %v8174 = vld [vmem:[%s2 + $0x6c] sm:$0xf]
  %v8175 = vld [vmem:[%s2 + $0x70] sm:$0xf]
  %v8176 = vld [vmem:[%s2 + $0x74] sm:$0xf]
  %v8177 = vld [vmem:[%s2 + $0x78] sm:$0xf]
  %v8178 = vld [vmem:[%s2 + $0x7c] sm:$0xf]
  %v8211 = vunpack.c.l.b16 %v8147
  %v8212 = vunpack.c.l.b16 %v8148
  %v8213 = vunpack.c.l.b16 %v8149
  %v8214 = vunpack.c.l.b16 %v8150
  %v8215 = vunpack.c.l.b16 %v8151
  %v8216 = vunpack.c.l.b16 %v8152
  %v8217 = vunpack.c.l.b16 %v8153
  %v8218 = vunpack.c.l.b16 %v8154
  %v8219 = vunpack.c.l.b16 %v8155
  %v8220 = vunpack.c.l.b16 %v8156
  %v8221 = vunpack.c.l.b16 %v8157
  %v8222 = vunpack.c.l.b16 %v8158
  %v8223 = vunpack.c.l.b16 %v8159
  %v8224 = vunpack.c.l.b16 %v8160
  %v8225 = vunpack.c.l.b16 %v8161
  %v8226 = vunpack.c.l.b16 %v8162
  %v8227 = vunpack.c.l.b16 %v8163
  %v8228 = vunpack.c.l.b16 %v8164
  %v8229 = vunpack.c.l.b16 %v8165
  %v8230 = vunpack.c.l.b16 %v8166
  %v8231 = vunpack.c.l.b16 %v8167
  %v8232 = vunpack.c.l.b16 %v8168
  %v8233 = vunpack.c.l.b16 %v8169
  %v8234 = vunpack.c.l.b16 %v8170
  %v8235 = vunpack.c.l.b16 %v8171
  %v8236 = vunpack.c.l.b16 %v8172
  %v8237 = vunpack.c.l.b16 %v8173
  %v8238 = vunpack.c.l.b16 %v8174
  %v8239 = vunpack.c.l.b16 %v8175
  %v8240 = vunpack.c.l.b16 %v8176
  %v8241 = vunpack.c.l.b16 %v8177
  %v8242 = vunpack.c.l.b16 %v8178
  %v8243 = vpack.c.b16 %v8212, %v8211
  %v8244 = vpack.c.b16 %v8214, %v8213
  %v8245 = vpack.c.b16 %v8216, %v8215
  %v8246 = vpack.c.b16 %v8218, %v8217
  %v8247 = vpack.c.b16 %v8220, %v8219
  %v8248 = vpack.c.b16 %v8222, %v8221
  %v8249 = vpack.c.b16 %v8224, %v8223
  %v8250 = vpack.c.b16 %v8226, %v8225
  %v8251 = vpack.c.b16 %v8228, %v8227
  %v8252 = vpack.c.b16 %v8230, %v8229
  %v8253 = vpack.c.b16 %v8232, %v8231
  %v8254 = vpack.c.b16 %v8234, %v8233
  %v8255 = vpack.c.b16 %v8236, %v8235
  %v8256 = vpack.c.b16 %v8238, %v8237
  %v8257 = vpack.c.b16 %v8240, %v8239
  %v8258 = vpack.c.b16 %v8242, %v8241
  %8275 = vmatpush.bf16.msra.mxu0 %v8250
  %8276 = vmatpush.bf16.msra.mxu0 %v8249
  %8277 = vmatpush.bf16.msra.mxu0 %v8248
  %8278 = vmatpush.bf16.msra.mxu0 %v8247
  %8279 = vmatpush.bf16.msra.mxu0 %v8246
  %8280 = vmatpush.bf16.msra.mxu0 %v8245
  %8281 = vmatpush.bf16.msra.mxu0 %v8244
  %8282 = vmatpush.bf16.msra.mxu0 %v8243
  %8283 = vmatmul.bf16.gmra.mxu0 %v8145
  %v8284 = vpop.f32.mrf.mxu0
  %v8285 = vadd.f32 0.0, %v8284
  %v8286 = vpop.f32.mrf.mxu0
  %8287 = vdwg.mxu0
  %8288 = vmatpush.bf16.msra.mxu0 %v8258
  %8289 = vmatpush.bf16.msra.mxu0 %v8257
  %8290 = vmatpush.bf16.msra.mxu0 %v8256
  %8291 = vmatpush.bf16.msra.mxu0 %v8255
  %8292 = vmatpush.bf16.msra.mxu0 %v8254
  %8293 = vmatpush.bf16.msra.mxu0 %v8253
  %8294 = vmatpush.bf16.msra.mxu0 %v8252
  %8295 = vmatpush.bf16.msra.mxu0 %v8251
  %8296 = vmatmul.bf16.gmra.mxu0 %v8146
  %v8297 = vpop.f32.mrf.mxu0
  %v8298 = vadd.f32 %v8285, %v8297
  %v8299 = vpop.f32.mrf.mxu0
  %8300 = vdwg.mxu0
  %v8301 = vsub.f32 0.0, %v8298
  %v8302 = vmul.f32 %v8301, 1.442695
  %v8303 = vpow.pop %v8302
  %v8304 = vadd.f32 %v8303, 1.0
  %v8305 = vrcp.pop %v8304
  %v8306 = vmax.f32 %v8305, 0.0
  %v8307 = vmin.f32 %v8306, 1.0
  %8308 = vst [vmem:[%s3] sm:$0xff] %v8307
  // Predicated region
  $region14: #{dc_discriminator.5} parent=0 // pred_check
    _
  $region15: #{dc_discriminator.5} parent=0 // pred_check_branch
    %8310 = sbr.rel (0) target = $region17
  $region16: #{dc_discriminator.5} parent=0 // pred_region
    _
  $region17: #{dc_discriminator.5} parent=0 // pred_fallthru
    _
  // Predicated region
  $region18: #{dc_discriminator.5} parent=0 // pred_check
    _
  $region19: #{dc_discriminator.5} parent=0 // pred_check_branch
    %8312 = sbr.rel (0) target = $region21
  $region20: #{dc_discriminator.5} parent=0 // pred_region
    _
  $region21: #{dc_discriminator.5} parent=0 // pred_fallthru
    _

</llo_original>
